<compile_context>
chip_gen: v7x
topology: tpu7x:2x2x1
jax: 0.10.0
libtpu: 0.0.40
codegen_flags: <defaults>
</compile_context>

<pallas_src>
import math
import functools

import jax
import jax.numpy as jnp
from jax.experimental import pallas as pl
from jax.experimental.pallas import tpu as pltpu

EPS = 1e-5        # nn.LayerNorm default eps
NEG_BIG = -1e30   # additive mask value for padded / cross-sample positions


def _layer_norm(x, gamma, beta):
    mu = jnp.mean(x, axis=-1, keepdims=True)
    var = jnp.mean((x - mu) ** 2, axis=-1, keepdims=True)
    return (x - mu) * jax.lax.rsqrt(var + EPS) * gamma + beta


# ---------------------------------------------------------------------------
# Per-stream fused kernel.
#   x        : (B*S, Din)  f32   (rows of all batch samples stacked)
#   abias    : (B*S, B*S)  f32   0 inside the same sample & valid key, -1e30 else
#   pbias    : (B*S, 1)    f32   0 for valid rows, -1e30 for padded rows (amax)
#   weights  : matmul weights pre-cast to bf16; biases / LN params f32
#   layer weights carry a leading layer axis and are statically indexed.
# ---------------------------------------------------------------------------
def sttr_stream_kernel(x_ref, pe_ref, abias_ref, pbias_ref,
                       ew1_ref, eb1_ref, eg_ref, ebt_ref, ew2_ref, eb2_ref,
                       wqkv_ref, bqkv_ref, wo_ref, bo_ref, g1_ref, be1_ref,
                       wf1_ref, bf1_ref, wf2_ref, bf2_ref, g2_ref, be2_ref,
                       fcw_ref, out_ref, *, num_head, batch):
    bf16 = jnp.bfloat16
    f32 = jnp.float32
    rows = x_ref.shape[0]                 # B * S_pad
    seq = rows // batch
    d_model = ew2_ref.shape[1]
    num_layer = wqkv_ref.shape[0]
    dh = d_model // num_head
    scale = 1.0 / math.sqrt(dh)

    abias = abias_ref[...]                # (rows, rows)

    # ---------------- Skeleton_Emb + positional encoding --------------------
    h = jnp.dot(x_ref[...].astype(bf16), ew1_ref[...],
                preferred_element_type=f32) + eb1_ref[...]
    h = _layer_norm(h, eg_ref[...], ebt_ref[...])
    h = jnp.maximum(h, 0.0)
    y = (jnp.dot(h.astype(bf16), ew2_ref[...], preferred_element_type=f32)
         + eb2_ref[...] + pe_ref[...])                        # (rows, D) f32

    # ---------------- TransformerEncoder (post-norm, dropout=0) -------------
    for l in range(num_layer):
        qkv = (jnp.dot(y.astype(bf16), wqkv_ref[l], preferred_element_type=f32)
               + bqkv_ref[l])                                 # (rows, 3D) f32
        qb = (qkv[:, :d_model] * scale).astype(bf16)
        kb = qkv[:, d_model:2 * d_model].astype(bf16)
        vb = qkv[:, 2 * d_model:].astype(bf16)

        heads = []
        for hh in range(num_head):
            sl = slice(hh * dh, (hh + 1) * dh)
            # scores over ALL B*S keys; cross-sample + padded keys masked out
            s = jax.lax.dot_general(qb[:, sl], kb[:, sl],
                                    (((1,), (1,)), ((), ())),
                                    preferred_element_type=f32) + abias
            m = jnp.max(s, axis=-1, keepdims=True)
            p = jnp.exp(s - m)
            p = p * pl.reciprocal(jnp.sum(p, axis=-1, keepdims=True),
                                  approx=True)
            heads.append(jnp.dot(p.astype(bf16), vb[:, sl],
                                 preferred_element_type=f32))
        o = jnp.concatenate(heads, axis=-1)                   # (rows, D) f32

        attn = jnp.dot(o.astype(bf16), wo_ref[l],
                       preferred_element_type=f32) + bo_ref[l]
        y = _layer_norm(y + attn, g1_ref[l], be1_ref[l])

        f = jnp.maximum(jnp.dot(y.astype(bf16), wf1_ref[l],
                                preferred_element_type=f32) + bf1_ref[l], 0.0)
        f = jnp.dot(f.astype(bf16), wf2_ref[l],
                    preferred_element_type=f32) + bf2_ref[l]
        y = _layer_norm(y + f, g2_ref[l], be2_ref[l])

    # ------------- masked amax pool + this stream's half of fc --------------
    ym = y + pbias_ref[...]                                   # (rows, D)
    pooled = jnp.concatenate(
        [jnp.max(ym[b * seq:(b + 1) * seq], axis=0, keepdims=True)
         for b in range(batch)], axis=0)                      # (B, D)
    out_ref[...] = jnp.dot(pooled.astype(bf16), fcw_ref[...],
                           preferred_element_type=f32)        # (B, C)


# ---------------------------------------------------------------------------
# Wrappers
# ---------------------------------------------------------------------------
def _full_spec(a):
    nd = a.ndim
    return pl.BlockSpec(a.shape, lambda i, nd=nd: (0,) * nd)


def _round_up(n, m):
    return (n + m - 1) // m * m


def _stream_forward(x, p, *, num_head):
    """One stream: embed -> encoder stack -> masked amax -> half classifier."""
    B, S, din = x.shape
    Sp = _round_up(S, 8)                   # sublane-align the sequence length
    D = p["ew2"].shape[1]
    C = p["fcw"].shape[1]

    xp = jnp.zeros((B, Sp, din), jnp.float32)
    xp = xp.at[:, :S, :].set(x.astype(jnp.float32)).reshape(B * Sp, din)

    pe = jnp.zeros((Sp, D), jnp.float32).at[:S, :].set(
        p["pe"][:S].astype(jnp.float32))
    pe = jnp.tile(pe, (B, 1))              # (B*Sp, D)

    idx = jnp.arange(B * Sp)
    same_sample = (idx[:, None] // Sp) == (idx[None, :] // Sp)
    key_valid = (idx % Sp) < S
    abias = jnp.where(same_sample & key_valid[None, :], 0.0, NEG_BIG
                      ).astype(jnp.float32)                  # (B*Sp, B*Sp)
    pbias = jnp.where(key_valid, 0.0, NEG_BIG).astype(jnp.float32)[:, None]

    ins = [xp, pe, abias, pbias,
           p["ew1"], p["eb1"], p["eg"], p["ebt"], p["ew2"], p["eb2"],
           p["wqkv"], p["bqkv"], p["wo"], p["bo"], p["g1"], p["be1"],
           p["wf1"], p["bf1"], p["wf2"], p["bf2"], p["g2"], p["be2"],
           p["fcw"]]

    kern = functools.partial(sttr_stream_kernel, num_head=num_head, batch=B)
    return pl.pallas_call(
        kern,
        out_shape=jax.ShapeDtypeStruct((B, C), jnp.float32),
        grid=(1,),
        in_specs=[_full_spec(a) for a in ins],
        out_specs=pl.BlockSpec((B, C), lambda i: (0, 0)),
        compiler_params=pltpu.CompilerParams(
            dimension_semantics=("arbitrary",)),
    )(*ins)


def downstream_forward(jt, js, packed, *, num_head):
    """Downstream.forward for modality='joint', knn_eval=False, detect=False."""
    part_t = _stream_forward(jt, packed["t"], num_head=num_head)
    part_s = _stream_forward(js, packed["s"], num_head=num_head)
    # fc(cat([amax_t, amax_s])) == amax_t @ W[:D] + amax_s @ W[D:] + b
    return part_t + part_s + packed["fcb"]


# ---------------------------------------------------------------------------
# Parameter construction (deterministic, synthetic — shapes from __init__).
# Linear weights stored already transposed: (in, out); biases as (1, out).
# ---------------------------------------------------------------------------
def init_linear(key, din, dout, scale=0.1):
    kw, kb = jax.random.split(key)
    return (jax.random.normal(kw, (din, dout), jnp.float32) * scale,
            jax.random.normal(kb, (1, dout), jnp.float32) * scale)


def init_ln(key, d):
    kg, kb = jax.random.split(key)
    return (1.0 + 0.1 * jax.random.normal(kg, (1, d), jnp.float32),
            0.1 * jax.random.normal(kb, (1, d), jnp.float32))


def init_emb(key, din, d):
    k1, k2, k3 = jax.random.split(key, 3)
    w1, b1 = init_linear(k1, din, d)
    g, bt = init_ln(k3, d)
    w2, b2 = init_linear(k2, d, d)
    return (w1, b1, g, bt, w2, b2)


def init_layer(key, d):
    k1, k2, k3, k4, k5, k6 = jax.random.split(key, 6)
    wqkv, bqkv = init_linear(k1, d, 3 * d)
    wo, bo = init_linear(k2, d, d)
    g1, be1 = init_ln(k5, d)
    wf1, bf1 = init_linear(k3, d, d)     # dim_feedforward = d_model in STTR
    wf2, bf2 = init_linear(k4, d, d)
    g2, be2 = init_ln(k6, d)
    return (wqkv, bqkv, wo, bo, g1, be1, wf1, bf1, wf2, bf2, g2, be2)


def sinusoidal_pe(seq_len, d):
    position = jnp.arange(seq_len, dtype=jnp.float32)[:, None]
    div_term = jnp.exp(jnp.arange(0, d, 2, dtype=jnp.float32)
                       * (-math.log(10000.0) / d))
    pe = jnp.zeros((seq_len, d), jnp.float32)
    pe = pe.at[:, 0::2].set(jnp.sin(position * div_term))
    pe = pe.at[:, 1::2].set(jnp.cos(position * div_term))
    return pe


_LAYER_KEYS = ("wqkv", "bqkv", "wo", "bo", "g1", "be1",
               "wf1", "bf1", "wf2", "bf2", "g2", "be2")
_BF16_KEYS = frozenset({"wqkv", "wo", "wf1", "wf2"})


def _pack_stream(emb, layers, pe, fcw_half):
    w1, b1, g, bt, w2, b2 = emb
    p = {"ew1": w1.astype(jnp.bfloat16), "eb1": b1, "eg": g, "ebt": bt,
         "ew2": w2.astype(jnp.bfloat16), "eb2": b2,
         "pe": pe, "fcw": fcw_half.astype(jnp.bfloat16)}
    for i, k in enumerate(_LAYER_KEYS):
        a = jnp.stack([lp[i] for lp in layers])   # leading layer axis L
        p[k] = a.astype(jnp.bfloat16) if k in _BF16_KEYS else a
    return p


def pack_params(raw):
    d = raw["t_emb"][4].shape[0]
    return {
        "t": _pack_stream(raw["t_emb"], raw["t_layers"], raw["pe"],
                          raw["fc_w"][:d]),
        "s": _pack_stream(raw["s_emb"], raw["s_layers"], raw["spe"],
                          raw["fc_w"][d:]),
        "fcb": raw["fc_b"],
    }


# ---------------------------------------------------------------------------
# Pure-JAX reference (unpadded, f32) for a correctness check.
# ---------------------------------------------------------------------------
def _ref_forward(jt, js, raw, num_head):
    def ln(x, g, b):
        mu = x.mean(-1, keepdims=True)
        var = ((x - mu) ** 2).mean(-1, keepdims=True)
        return (x - mu) / jnp.sqrt(var + EPS) * g + b

    def embed(x, p):
        w1, b1, g, bt, w2, b2 = p
        h = ln(x @ w1 + b1, g, bt)
        return jnp.maximum(h, 0.0) @ w2 + b2

    def enc_layer(x, p):
        wqkv, bqkv, wo, bo, g1, be1, wf1, bf1, wf2, bf2, g2, be2 = p
        B, S, D = x.shape
        H, dh = num_head, D // num_head
        qkv = x @ wqkv + bqkv
        q, k, v = (a.reshape(B, S, H, dh) for a in
                   (qkv[..., :D], qkv[..., D:2 * D], qkv[..., 2 * D:]))
        sc = jnp.einsum('bqhd,bkhd->bhqk', q, k) / math.sqrt(dh)
        a = jax.nn.softmax(sc, axis=-1)
        o = jnp.einsum('bhqk,bkhd->bqhd', a, v).reshape(B, S, D)
        x = ln(x + o @ wo + bo, g1, be1)
        f = jnp.maximum(x @ wf1 + bf1, 0.0) @ wf2 + bf2
        return ln(x + f, g2, be2)

    y_t = embed(jt, raw["t_emb"]) + raw["pe"][:jt.shape[1]]
    y_s = embed(js, raw["s_emb"]) + raw["spe"][:js.shape[1]]
    for p in raw["t_layers"]:
        y_t = enc_layer(y_t, p)
    for p in raw["s_layers"]:
        y_s = enc_layer(y_s, p)
    feat = jnp.concatenate([y_t.max(axis=1), y_s.max(axis=1)], axis=-1)
    return feat @ raw["fc_w"] + raw["fc_b"]


if __name__ == "__main__":
    key = jax.random.PRNGKey(0)
    B, T, S = 2, 8, 50            # S must be 50: spe is nn.Parameter (1, 50, hidden)
    t_in, s_in, D = 12, 24, 32    # t_input_size, s_input_size, hidden_size
    num_head, num_layer, num_class = 4, 2, 16

    ks = jax.random.split(key, 3 + 2 * num_layer + 3)
    raw = {
        "t_emb": init_emb(ks[0], t_in, D),
        "s_emb": init_emb(ks[1], s_in, D),
        "pe": sinusoidal_pe(max(T, S), D),                      # PositionalEncoding buffer
        "spe": jnp.clip(jax.random.normal(ks[2], (S, D), jnp.float32) * 0.02,
                        -2.0, 2.0),                             # trunc_normal-ish
        "t_layers": [init_layer(ks[3 + i], D) for i in range(num_layer)],
        "s_layers": [init_layer(ks[3 + num_layer + i], D) for i in range(num_layer)],
    }
    raw["fc_w"], raw["fc_b"] = init_linear(ks[3 + 2 * num_layer], 2 * D, num_class)

    packed = pack_params(raw)

    jt = jax.random.normal(ks[-2], (B, T, t_in), jnp.float32)
    js = jax.random.normal(ks[-1], (B, S, s_in), jnp.float32)

    fwd = jax.jit(downstream_forward, static_argnames=("num_head",))
    out = jax.block_until_ready(fwd(jt, js, packed, num_head=num_head))

    ref = _ref_forward(jt, js, raw, num_head)
    assert out.shape == (B, num_class)
    assert bool(jnp.all(jnp.isfinite(out)))
    assert bool(jnp.allclose(out, ref, rtol=5e-2, atol=5e-2)), (out, ref)
    print("KERNEL_OK")
</pallas_src>

<mosaic_0001>
module attributes {stable_mosaic.version = 11 : i64} {
  func.func @sttr_stream_kernel(%arg0: i32, %arg1: memref<112x24xf32, #tpu.memory_space<vmem>>, %arg2: memref<112x32xf32, #tpu.memory_space<vmem>>, %arg3: memref<112x112xf32, #tpu.memory_space<vmem>>, %arg4: memref<112x1xf32, #tpu.memory_space<vmem>>, %arg5: memref<24x32xbf16, #tpu.memory_space<vmem>>, %arg6: memref<1x32xf32, #tpu.memory_space<vmem>>, %arg7: memref<1x32xf32, #tpu.memory_space<vmem>>, %arg8: memref<1x32xf32, #tpu.memory_space<vmem>>, %arg9: memref<32x32xbf16, #tpu.memory_space<vmem>>, %arg10: memref<1x32xf32, #tpu.memory_space<vmem>>, %arg11: memref<2x32x96xbf16, #tpu.memory_space<vmem>>, %arg12: memref<2x1x96xf32, #tpu.memory_space<vmem>>, %arg13: memref<2x32x32xbf16, #tpu.memory_space<vmem>>, %arg14: memref<2x1x32xf32, #tpu.memory_space<vmem>>, %arg15: memref<2x1x32xf32, #tpu.memory_space<vmem>>, %arg16: memref<2x1x32xf32, #tpu.memory_space<vmem>>, %arg17: memref<2x32x32xbf16, #tpu.memory_space<vmem>>, %arg18: memref<2x1x32xf32, #tpu.memory_space<vmem>>, %arg19: memref<2x32x32xbf16, #tpu.memory_space<vmem>>, %arg20: memref<2x1x32xf32, #tpu.memory_space<vmem>>, %arg21: memref<2x1x32xf32, #tpu.memory_space<vmem>>, %arg22: memref<2x1x32xf32, #tpu.memory_space<vmem>>, %arg23: memref<32x16xbf16, #tpu.memory_space<vmem>>, %arg24: memref<2x16xf32, #tpu.memory_space<vmem>>) attributes {dimension_semantics = [#tpu.dimension_semantics<arbitrary>], iteration_bounds = array<i64: 1>, scalar_prefetch = 0 : i64, scratch_operands = 0 : i64, tpu.core_type = #tpu.core_type<tc>, window_params = [{pipeline_mode = #tpu.pipeline_mode<synchronous>, transform_indices = @transform_0, window_bounds = array<i64: 112, 24>}, {pipeline_mode = #tpu.pipeline_mode<synchronous>, transform_indices = @transform_1, window_bounds = array<i64: 112, 32>}, {pipeline_mode = #tpu.pipeline_mode<synchronous>, transform_indices = @transform_2, window_bounds = array<i64: 112, 112>}, {pipeline_mode = #tpu.pipeline_mode<synchronous>, transform_indices = @transform_3, window_bounds = array<i64: 112, 1>}, {pipeline_mode = #tpu.pipeline_mode<synchronous>, transform_indices = @transform_4, window_bounds = array<i64: 24, 32>}, {pipeline_mode = #tpu.pipeline_mode<synchronous>, transform_indices = @transform_5, window_bounds = array<i64: 1, 32>}, {pipeline_mode = #tpu.pipeline_mode<synchronous>, transform_indices = @transform_6, window_bounds = array<i64: 1, 32>}, {pipeline_mode = #tpu.pipeline_mode<synchronous>, transform_indices = @transform_7, window_bounds = array<i64: 1, 32>}, {pipeline_mode = #tpu.pipeline_mode<synchronous>, transform_indices = @transform_8, window_bounds = array<i64: 32, 32>}, {pipeline_mode = #tpu.pipeline_mode<synchronous>, transform_indices = @transform_9, window_bounds = array<i64: 1, 32>}, {pipeline_mode = #tpu.pipeline_mode<synchronous>, transform_indices = @transform_10, window_bounds = array<i64: 2, 32, 96>}, {pipeline_mode = #tpu.pipeline_mode<synchronous>, transform_indices = @transform_11, window_bounds = array<i64: 2, 1, 96>}, {pipeline_mode = #tpu.pipeline_mode<synchronous>, transform_indices = @transform_12, window_bounds = array<i64: 2, 32, 32>}, {pipeline_mode = #tpu.pipeline_mode<synchronous>, transform_indices = @transform_13, window_bounds = array<i64: 2, 1, 32>}, {pipeline_mode = #tpu.pipeline_mode<synchronous>, transform_indices = @transform_14, window_bounds = array<i64: 2, 1, 32>}, {pipeline_mode = #tpu.pipeline_mode<synchronous>, transform_indices = @transform_15, window_bounds = array<i64: 2, 1, 32>}, {pipeline_mode = #tpu.pipeline_mode<synchronous>, transform_indices = @transform_16, window_bounds = array<i64: 2, 32, 32>}, {pipeline_mode = #tpu.pipeline_mode<synchronous>, transform_indices = @transform_17, window_bounds = array<i64: 2, 1, 32>}, {pipeline_mode = #tpu.pipeline_mode<synchronous>, transform_indices = @transform_18, window_bounds = array<i64: 2, 32, 32>}, {pipeline_mode = #tpu.pipeline_mode<synchronous>, transform_indices = @transform_19, window_bounds = array<i64: 2, 1, 32>}, {pipeline_mode = #tpu.pipeline_mode<synchronous>, transform_indices = @transform_20, window_bounds = array<i64: 2, 1, 32>}, {pipeline_mode = #tpu.pipeline_mode<synchronous>, transform_indices = @transform_21, window_bounds = array<i64: 2, 1, 32>}, {pipeline_mode = #tpu.pipeline_mode<synchronous>, transform_indices = @transform_22, window_bounds = array<i64: 32, 16>}, {pipeline_mode = #tpu.pipeline_mode<synchronous>, transform_indices = @transform_23, window_bounds = array<i64: 2, 16>}]} {
    %c0 = arith.constant 0 : index
    %c0_0 = arith.constant 0 : index
    %0 = vector.load %arg3[%c0, %c0_0] : memref<112x112xf32, #tpu.memory_space<vmem>>, vector<112x112xf32>
    %c0_1 = arith.constant 0 : index
    %c0_2 = arith.constant 0 : index
    %1 = vector.load %arg1[%c0_1, %c0_2] : memref<112x24xf32, #tpu.memory_space<vmem>>, vector<112x24xf32>
    %2 = arith.truncf %1 : vector<112x24xf32> to vector<112x24xbf16>
    %c0_3 = arith.constant 0 : index
    %c0_4 = arith.constant 0 : index
    %3 = vector.load %arg5[%c0_3, %c0_4] : memref<24x32xbf16, #tpu.memory_space<vmem>>, vector<24x32xbf16>
    %cst = arith.constant dense<0.000000e+00> : vector<112x32xf32>
    %4 = tpu.matmul %2, %3, %cst {dimension_numbers = #tpu.dot_dimension_numbers<[1], [0], [0], [1], [0, 0, 1, 1], [], []>} : vector<112x24xbf16>, vector<24x32xbf16>, vector<112x32xf32> -> vector<112x32xf32>
    %c0_5 = arith.constant 0 : index
    %c0_6 = arith.constant 0 : index
    %5 = vector.load %arg6[%c0_5, %c0_6] : memref<1x32xf32, #tpu.memory_space<vmem>>, vector<1x32xf32>
    %6 = vector.broadcast %5 : vector<1x32xf32> to vector<112x32xf32>
    %7 = arith.addf %4, %6 : vector<112x32xf32>
    %c0_7 = arith.constant 0 : index
    %c0_8 = arith.constant 0 : index
    %8 = vector.load %arg7[%c0_7, %c0_8] : memref<1x32xf32, #tpu.memory_space<vmem>>, vector<1x32xf32>
    %c0_9 = arith.constant 0 : index
    %c0_10 = arith.constant 0 : index
    %9 = vector.load %arg8[%c0_9, %c0_10] : memref<1x32xf32, #tpu.memory_space<vmem>>, vector<1x32xf32>
    %cst_11 = arith.constant dense<0.000000e+00> : vector<112xf32>
    %10 = vector.multi_reduction <add>, %7, %cst_11 [1] : vector<112x32xf32> to vector<112xf32>
    %11 = vector.shape_cast %10 : vector<112xf32> to vector<112x1xf32>
    %cst_12 = arith.constant 3.200000e+01 : f32
    %12 = vector.broadcast %cst_12 : f32 to vector<112x1xf32>
    %13 = arith.divf %11, %12 : vector<112x1xf32>
    %14 = vector.broadcast %13 : vector<112x1xf32> to vector<112x32xf32>
    %15 = arith.subf %7, %14 : vector<112x32xf32>
    %16 = arith.mulf %15, %15 : vector<112x32xf32>
    %cst_13 = arith.constant dense<0.000000e+00> : vector<112xf32>
    %17 = vector.multi_reduction <add>, %16, %cst_13 [1] : vector<112x32xf32> to vector<112xf32>
    %18 = vector.shape_cast %17 : vector<112xf32> to vector<112x1xf32>
    %cst_14 = arith.constant 3.200000e+01 : f32
    %19 = vector.broadcast %cst_14 : f32 to vector<112x1xf32>
    %20 = arith.divf %18, %19 : vector<112x1xf32>
    %21 = vector.broadcast %13 : vector<112x1xf32> to vector<112x32xf32>
    %22 = arith.subf %7, %21 : vector<112x32xf32>
    %cst_15 = arith.constant 9.99999974E-6 : f32
    %23 = vector.broadcast %cst_15 : f32 to vector<112x1xf32>
    %24 = arith.addf %20, %23 : vector<112x1xf32>
    %25 = math.rsqrt %24 : vector<112x1xf32>
    %26 = vector.broadcast %25 : vector<112x1xf32> to vector<112x32xf32>
    %27 = arith.mulf %22, %26 : vector<112x32xf32>
    %28 = vector.broadcast %8 : vector<1x32xf32> to vector<112x32xf32>
    %29 = arith.mulf %27, %28 : vector<112x32xf32>
    %30 = vector.broadcast %9 : vector<1x32xf32> to vector<112x32xf32>
    %31 = arith.addf %29, %30 : vector<112x32xf32>
    %cst_16 = arith.constant 0.000000e+00 : f32
    %32 = vector.broadcast %cst_16 : f32 to vector<112x32xf32>
    %33 = arith.maximumf %31, %32 : vector<112x32xf32>
    %34 = arith.truncf %33 : vector<112x32xf32> to vector<112x32xbf16>
    %c0_17 = arith.constant 0 : index
    %c0_18 = arith.constant 0 : index
    %35 = vector.load %arg9[%c0_17, %c0_18] : memref<32x32xbf16, #tpu.memory_space<vmem>>, vector<32x32xbf16>
    %cst_19 = arith.constant dense<0.000000e+00> : vector<112x32xf32>
    %36 = tpu.matmul %34, %35, %cst_19 {dimension_numbers = #tpu.dot_dimension_numbers<[1], [0], [0], [1], [0, 0, 1, 1], [], []>} : vector<112x32xbf16>, vector<32x32xbf16>, vector<112x32xf32> -> vector<112x32xf32>
    %c0_20 = arith.constant 0 : index
    %c0_21 = arith.constant 0 : index
    %37 = vector.load %arg10[%c0_20, %c0_21] : memref<1x32xf32, #tpu.memory_space<vmem>>, vector<1x32xf32>
    %38 = vector.broadcast %37 : vector<1x32xf32> to vector<112x32xf32>
    %39 = arith.addf %36, %38 : vector<112x32xf32>
    %c0_22 = arith.constant 0 : index
    %c0_23 = arith.constant 0 : index
    %40 = vector.load %arg2[%c0_22, %c0_23] : memref<112x32xf32, #tpu.memory_space<vmem>>, vector<112x32xf32>
    %41 = arith.addf %39, %40 : vector<112x32xf32>
    %42 = arith.truncf %41 : vector<112x32xf32> to vector<112x32xbf16>
    %c0_24 = arith.constant 0 : index
    %c0_25 = arith.constant 0 : index
    %c0_26 = arith.constant 0 : index
    %43 = vector.load %arg11[%c0_24, %c0_25, %c0_26] : memref<2x32x96xbf16, #tpu.memory_space<vmem>>, vector<1x32x96xbf16>
    %44 = vector.shape_cast %43 : vector<1x32x96xbf16> to vector<32x96xbf16>
    %cst_27 = arith.constant dense<0.000000e+00> : vector<112x96xf32>
    %45 = tpu.matmul %42, %44, %cst_27 {dimension_numbers = #tpu.dot_dimension_numbers<[1], [0], [0], [1], [0, 0, 1, 1], [], []>} : vector<112x32xbf16>, vector<32x96xbf16>, vector<112x96xf32> -> vector<112x96xf32>
    %c0_28 = arith.constant 0 : index
    %c0_29 = arith.constant 0 : index
    %c0_30 = arith.constant 0 : index
    %46 = vector.load %arg12[%c0_28, %c0_29, %c0_30] : memref<2x1x96xf32, #tpu.memory_space<vmem>>, vector<1x1x96xf32>
    %47 = vector.shape_cast %46 : vector<1x1x96xf32> to vector<1x96xf32>
    %48 = vector.broadcast %47 : vector<1x96xf32> to vector<112x96xf32>
    %49 = arith.addf %45, %48 : vector<112x96xf32>
    %50 = vector.extract_strided_slice %49 {offsets = [0, 0], sizes = [112, 32], strides = [1, 1]} : vector<112x96xf32> to vector<112x32xf32>
    %cst_31 = arith.constant 0.353553385 : f32
    %51 = vector.broadcast %cst_31 : f32 to vector<112x32xf32>
    %52 = arith.mulf %50, %51 : vector<112x32xf32>
    %53 = arith.truncf %52 : vector<112x32xf32> to vector<112x32xbf16>
    %54 = vector.extract_strided_slice %49 {offsets = [0, 32], sizes = [112, 32], strides = [1, 1]} : vector<112x96xf32> to vector<112x32xf32>
    %55 = arith.truncf %54 : vector<112x32xf32> to vector<112x32xbf16>
    %56 = vector.extract_strided_slice %49 {offsets = [0, 64], sizes = [112, 32], strides = [1, 1]} : vector<112x96xf32> to vector<112x32xf32>
    %57 = arith.truncf %56 : vector<112x32xf32> to vector<112x32xbf16>
    %58 = vector.extract_strided_slice %53 {offsets = [0, 0], sizes = [112, 8], strides = [1, 1]} : vector<112x32xbf16> to vector<112x8xbf16>
    %59 = vector.extract_strided_slice %55 {offsets = [0, 0], sizes = [112, 8], strides = [1, 1]} : vector<112x32xbf16> to vector<112x8xbf16>
    %cst_32 = arith.constant dense<0.000000e+00> : vector<112x112xf32>
    %60 = tpu.matmul %58, %59, %cst_32 {dimension_numbers = #tpu.dot_dimension_numbers<[1], [1], [0], [0], [0, 0, 1, 0], [], []>} : vector<112x8xbf16>, vector<112x8xbf16>, vector<112x112xf32> -> vector<112x112xf32>
    %61 = arith.addf %60, %0 : vector<112x112xf32>
    %cst_33 = arith.constant dense<0xFF800000> : vector<112xf32>
    %62 = vector.multi_reduction <maximumf>, %61, %cst_33 [1] : vector<112x112xf32> to vector<112xf32>
    %63 = vector.shape_cast %62 : vector<112xf32> to vector<112x1xf32>
    %64 = vector.broadcast %63 : vector<112x1xf32> to vector<112x112xf32>
    %65 = arith.subf %61, %64 : vector<112x112xf32>
    %66 = math.exp %65 : vector<112x112xf32>
    %cst_34 = arith.constant dense<0.000000e+00> : vector<112xf32>
    %67 = vector.multi_reduction <add>, %66, %cst_34 [1] : vector<112x112xf32> to vector<112xf32>
    %68 = vector.shape_cast %67 : vector<112xf32> to vector<112x1xf32>
    %69 = tpu.reciprocal %68 {approx = true} : vector<112x1xf32> -> vector<112x1xf32>
    %70 = vector.broadcast %69 : vector<112x1xf32> to vector<112x112xf32>
    %71 = arith.mulf %66, %70 : vector<112x112xf32>
    %72 = arith.truncf %71 : vector<112x112xf32> to vector<112x112xbf16>
    %73 = vector.extract_strided_slice %57 {offsets = [0, 0], sizes = [112, 8], strides = [1, 1]} : vector<112x32xbf16> to vector<112x8xbf16>
    %cst_35 = arith.constant dense<0.000000e+00> : vector<112x8xf32>
    %74 = tpu.matmul %72, %73, %cst_35 {dimension_numbers = #tpu.dot_dimension_numbers<[1], [0], [0], [1], [0, 0, 1, 1], [], []>} : vector<112x112xbf16>, vector<112x8xbf16>, vector<112x8xf32> -> vector<112x8xf32>
    %75 = vector.extract_strided_slice %53 {offsets = [0, 8], sizes = [112, 8], strides = [1, 1]} : vector<112x32xbf16> to vector<112x8xbf16>
    %76 = vector.extract_strided_slice %55 {offsets = [0, 8], sizes = [112, 8], strides = [1, 1]} : vector<112x32xbf16> to vector<112x8xbf16>
    %cst_36 = arith.constant dense<0.000000e+00> : vector<112x112xf32>
    %77 = tpu.matmul %75, %76, %cst_36 {dimension_numbers = #tpu.dot_dimension_numbers<[1], [1], [0], [0], [0, 0, 1, 0], [], []>} : vector<112x8xbf16>, vector<112x8xbf16>, vector<112x112xf32> -> vector<112x112xf32>
    %78 = arith.addf %77, %0 : vector<112x112xf32>
    %cst_37 = arith.constant dense<0xFF800000> : vector<112xf32>
    %79 = vector.multi_reduction <maximumf>, %78, %cst_37 [1] : vector<112x112xf32> to vector<112xf32>
    %80 = vector.shape_cast %79 : vector<112xf32> to vector<112x1xf32>
    %81 = vector.broadcast %80 : vector<112x1xf32> to vector<112x112xf32>
    %82 = arith.subf %78, %81 : vector<112x112xf32>
    %83 = math.exp %82 : vector<112x112xf32>
    %cst_38 = arith.constant dense<0.000000e+00> : vector<112xf32>
    %84 = vector.multi_reduction <add>, %83, %cst_38 [1] : vector<112x112xf32> to vector<112xf32>
    %85 = vector.shape_cast %84 : vector<112xf32> to vector<112x1xf32>
    %86 = tpu.reciprocal %85 {approx = true} : vector<112x1xf32> -> vector<112x1xf32>
    %87 = vector.broadcast %86 : vector<112x1xf32> to vector<112x112xf32>
    %88 = arith.mulf %83, %87 : vector<112x112xf32>
    %89 = arith.truncf %88 : vector<112x112xf32> to vector<112x112xbf16>
    %90 = vector.extract_strided_slice %57 {offsets = [0, 8], sizes = [112, 8], strides = [1, 1]} : vector<112x32xbf16> to vector<112x8xbf16>
    %cst_39 = arith.constant dense<0.000000e+00> : vector<112x8xf32>
    %91 = tpu.matmul %89, %90, %cst_39 {dimension_numbers = #tpu.dot_dimension_numbers<[1], [0], [0], [1], [0, 0, 1, 1], [], []>} : vector<112x112xbf16>, vector<112x8xbf16>, vector<112x8xf32> -> vector<112x8xf32>
    %92 = vector.extract_strided_slice %53 {offsets = [0, 16], sizes = [112, 8], strides = [1, 1]} : vector<112x32xbf16> to vector<112x8xbf16>
    %93 = vector.extract_strided_slice %55 {offsets = [0, 16], sizes = [112, 8], strides = [1, 1]} : vector<112x32xbf16> to vector<112x8xbf16>
    %cst_40 = arith.constant dense<0.000000e+00> : vector<112x112xf32>
    %94 = tpu.matmul %92, %93, %cst_40 {dimension_numbers = #tpu.dot_dimension_numbers<[1], [1], [0], [0], [0, 0, 1, 0], [], []>} : vector<112x8xbf16>, vector<112x8xbf16>, vector<112x112xf32> -> vector<112x112xf32>
    %95 = arith.addf %94, %0 : vector<112x112xf32>
    %cst_41 = arith.constant dense<0xFF800000> : vector<112xf32>
    %96 = vector.multi_reduction <maximumf>, %95, %cst_41 [1] : vector<112x112xf32> to vector<112xf32>
    %97 = vector.shape_cast %96 : vector<112xf32> to vector<112x1xf32>
    %98 = vector.broadcast %97 : vector<112x1xf32> to vector<112x112xf32>
    %99 = arith.subf %95, %98 : vector<112x112xf32>
    %100 = math.exp %99 : vector<112x112xf32>
    %cst_42 = arith.constant dense<0.000000e+00> : vector<112xf32>
    %101 = vector.multi_reduction <add>, %100, %cst_42 [1] : vector<112x112xf32> to vector<112xf32>
    %102 = vector.shape_cast %101 : vector<112xf32> to vector<112x1xf32>
    %103 = tpu.reciprocal %102 {approx = true} : vector<112x1xf32> -> vector<112x1xf32>
    %104 = vector.broadcast %103 : vector<112x1xf32> to vector<112x112xf32>
    %105 = arith.mulf %100, %104 : vector<112x112xf32>
    %106 = arith.truncf %105 : vector<112x112xf32> to vector<112x112xbf16>
    %107 = vector.extract_strided_slice %57 {offsets = [0, 16], sizes = [112, 8], strides = [1, 1]} : vector<112x32xbf16> to vector<112x8xbf16>
    %cst_43 = arith.constant dense<0.000000e+00> : vector<112x8xf32>
    %108 = tpu.matmul %106, %107, %cst_43 {dimension_numbers = #tpu.dot_dimension_numbers<[1], [0], [0], [1], [0, 0, 1, 1], [], []>} : vector<112x112xbf16>, vector<112x8xbf16>, vector<112x8xf32> -> vector<112x8xf32>
    %109 = vector.extract_strided_slice %53 {offsets = [0, 24], sizes = [112, 8], strides = [1, 1]} : vector<112x32xbf16> to vector<112x8xbf16>
    %110 = vector.extract_strided_slice %55 {offsets = [0, 24], sizes = [112, 8], strides = [1, 1]} : vector<112x32xbf16> to vector<112x8xbf16>
    %cst_44 = arith.constant dense<0.000000e+00> : vector<112x112xf32>
    %111 = tpu.matmul %109, %110, %cst_44 {dimension_numbers = #tpu.dot_dimension_numbers<[1], [1], [0], [0], [0, 0, 1, 0], [], []>} : vector<112x8xbf16>, vector<112x8xbf16>, vector<112x112xf32> -> vector<112x112xf32>
    %112 = arith.addf %111, %0 : vector<112x112xf32>
    %cst_45 = arith.constant dense<0xFF800000> : vector<112xf32>
    %113 = vector.multi_reduction <maximumf>, %112, %cst_45 [1] : vector<112x112xf32> to vector<112xf32>
    %114 = vector.shape_cast %113 : vector<112xf32> to vector<112x1xf32>
    %115 = vector.broadcast %114 : vector<112x1xf32> to vector<112x112xf32>
    %116 = arith.subf %112, %115 : vector<112x112xf32>
    %117 = math.exp %116 : vector<112x112xf32>
    %cst_46 = arith.constant dense<0.000000e+00> : vector<112xf32>
    %118 = vector.multi_reduction <add>, %117, %cst_46 [1] : vector<112x112xf32> to vector<112xf32>
    %119 = vector.shape_cast %118 : vector<112xf32> to vector<112x1xf32>
    %120 = tpu.reciprocal %119 {approx = true} : vector<112x1xf32> -> vector<112x1xf32>
    %121 = vector.broadcast %120 : vector<112x1xf32> to vector<112x112xf32>
    %122 = arith.mulf %117, %121 : vector<112x112xf32>
    %123 = arith.truncf %122 : vector<112x112xf32> to vector<112x112xbf16>
    %124 = vector.extract_strided_slice %57 {offsets = [0, 24], sizes = [112, 8], strides = [1, 1]} : vector<112x32xbf16> to vector<112x8xbf16>
    %cst_47 = arith.constant dense<0.000000e+00> : vector<112x8xf32>
    %125 = tpu.matmul %123, %124, %cst_47 {dimension_numbers = #tpu.dot_dimension_numbers<[1], [0], [0], [1], [0, 0, 1, 1], [], []>} : vector<112x112xbf16>, vector<112x8xbf16>, vector<112x8xf32> -> vector<112x8xf32>
    %126 = tpu.concatenate %74, %91, %108, %125 in 1 : vector<112x8xf32>, vector<112x8xf32>, vector<112x8xf32>, vector<112x8xf32> -> vector<112x32xf32>
    %127 = arith.truncf %126 : vector<112x32xf32> to vector<112x32xbf16>
    %c0_48 = arith.constant 0 : index
    %c0_49 = arith.constant 0 : index
    %c0_50 = arith.constant 0 : index
    %128 = vector.load %arg13[%c0_48, %c0_49, %c0_50] : memref<2x32x32xbf16, #tpu.memory_space<vmem>>, vector<1x32x32xbf16>
    %129 = vector.shape_cast %128 : vector<1x32x32xbf16> to vector<32x32xbf16>
    %cst_51 = arith.constant dense<0.000000e+00> : vector<112x32xf32>
    %130 = tpu.matmul %127, %129, %cst_51 {dimension_numbers = #tpu.dot_dimension_numbers<[1], [0], [0], [1], [0, 0, 1, 1], [], []>} : vector<112x32xbf16>, vector<32x32xbf16>, vector<112x32xf32> -> vector<112x32xf32>
    %c0_52 = arith.constant 0 : index
    %c0_53 = arith.constant 0 : index
    %c0_54 = arith.constant 0 : index
    %131 = vector.load %arg14[%c0_52, %c0_53, %c0_54] : memref<2x1x32xf32, #tpu.memory_space<vmem>>, vector<1x1x32xf32>
    %132 = vector.shape_cast %131 : vector<1x1x32xf32> to vector<1x32xf32>
    %133 = vector.broadcast %132 : vector<1x32xf32> to vector<112x32xf32>
    %134 = arith.addf %130, %133 : vector<112x32xf32>
    %135 = arith.addf %41, %134 : vector<112x32xf32>
    %c0_55 = arith.constant 0 : index
    %c0_56 = arith.constant 0 : index
    %c0_57 = arith.constant 0 : index
    %136 = vector.load %arg15[%c0_55, %c0_56, %c0_57] : memref<2x1x32xf32, #tpu.memory_space<vmem>>, vector<1x1x32xf32>
    %137 = vector.shape_cast %136 : vector<1x1x32xf32> to vector<1x32xf32>
    %c0_58 = arith.constant 0 : index
    %c0_59 = arith.constant 0 : index
    %c0_60 = arith.constant 0 : index
    %138 = vector.load %arg16[%c0_58, %c0_59, %c0_60] : memref<2x1x32xf32, #tpu.memory_space<vmem>>, vector<1x1x32xf32>
    %139 = vector.shape_cast %138 : vector<1x1x32xf32> to vector<1x32xf32>
    %cst_61 = arith.constant dense<0.000000e+00> : vector<112xf32>
    %140 = vector.multi_reduction <add>, %135, %cst_61 [1] : vector<112x32xf32> to vector<112xf32>
    %141 = vector.shape_cast %140 : vector<112xf32> to vector<112x1xf32>
    %cst_62 = arith.constant 3.200000e+01 : f32
    %142 = vector.broadcast %cst_62 : f32 to vector<112x1xf32>
    %143 = arith.divf %141, %142 : vector<112x1xf32>
    %144 = vector.broadcast %143 : vector<112x1xf32> to vector<112x32xf32>
    %145 = arith.subf %135, %144 : vector<112x32xf32>
    %146 = arith.mulf %145, %145 : vector<112x32xf32>
    %cst_63 = arith.constant dense<0.000000e+00> : vector<112xf32>
    %147 = vector.multi_reduction <add>, %146, %cst_63 [1] : vector<112x32xf32> to vector<112xf32>
    %148 = vector.shape_cast %147 : vector<112xf32> to vector<112x1xf32>
    %cst_64 = arith.constant 3.200000e+01 : f32
    %149 = vector.broadcast %cst_64 : f32 to vector<112x1xf32>
    %150 = arith.divf %148, %149 : vector<112x1xf32>
    %151 = vector.broadcast %143 : vector<112x1xf32> to vector<112x32xf32>
    %152 = arith.subf %135, %151 : vector<112x32xf32>
    %cst_65 = arith.constant 9.99999974E-6 : f32
    %153 = vector.broadcast %cst_65 : f32 to vector<112x1xf32>
    %154 = arith.addf %150, %153 : vector<112x1xf32>
    %155 = math.rsqrt %154 : vector<112x1xf32>
    %156 = vector.broadcast %155 : vector<112x1xf32> to vector<112x32xf32>
    %157 = arith.mulf %152, %156 : vector<112x32xf32>
    %158 = vector.broadcast %137 : vector<1x32xf32> to vector<112x32xf32>
    %159 = arith.mulf %157, %158 : vector<112x32xf32>
    %160 = vector.broadcast %139 : vector<1x32xf32> to vector<112x32xf32>
    %161 = arith.addf %159, %160 : vector<112x32xf32>
    %162 = arith.truncf %161 : vector<112x32xf32> to vector<112x32xbf16>
    %c0_66 = arith.constant 0 : index
    %c0_67 = arith.constant 0 : index
    %c0_68 = arith.constant 0 : index
    %163 = vector.load %arg17[%c0_66, %c0_67, %c0_68] : memref<2x32x32xbf16, #tpu.memory_space<vmem>>, vector<1x32x32xbf16>
    %164 = vector.shape_cast %163 : vector<1x32x32xbf16> to vector<32x32xbf16>
    %cst_69 = arith.constant dense<0.000000e+00> : vector<112x32xf32>
    %165 = tpu.matmul %162, %164, %cst_69 {dimension_numbers = #tpu.dot_dimension_numbers<[1], [0], [0], [1], [0, 0, 1, 1], [], []>} : vector<112x32xbf16>, vector<32x32xbf16>, vector<112x32xf32> -> vector<112x32xf32>
    %c0_70 = arith.constant 0 : index
    %c0_71 = arith.constant 0 : index
    %c0_72 = arith.constant 0 : index
    %166 = vector.load %arg18[%c0_70, %c0_71, %c0_72] : memref<2x1x32xf32, #tpu.memory_space<vmem>>, vector<1x1x32xf32>
    %167 = vector.shape_cast %166 : vector<1x1x32xf32> to vector<1x32xf32>
    %168 = vector.broadcast %167 : vector<1x32xf32> to vector<112x32xf32>
    %169 = arith.addf %165, %168 : vector<112x32xf32>
    %cst_73 = arith.constant 0.000000e+00 : f32
    %170 = vector.broadcast %cst_73 : f32 to vector<112x32xf32>
    %171 = arith.maximumf %169, %170 : vector<112x32xf32>
    %172 = arith.truncf %171 : vector<112x32xf32> to vector<112x32xbf16>
    %c0_74 = arith.constant 0 : index
    %c0_75 = arith.constant 0 : index
    %c0_76 = arith.constant 0 : index
    %173 = vector.load %arg19[%c0_74, %c0_75, %c0_76] : memref<2x32x32xbf16, #tpu.memory_space<vmem>>, vector<1x32x32xbf16>
    %174 = vector.shape_cast %173 : vector<1x32x32xbf16> to vector<32x32xbf16>
    %cst_77 = arith.constant dense<0.000000e+00> : vector<112x32xf32>
    %175 = tpu.matmul %172, %174, %cst_77 {dimension_numbers = #tpu.dot_dimension_numbers<[1], [0], [0], [1], [0, 0, 1, 1], [], []>} : vector<112x32xbf16>, vector<32x32xbf16>, vector<112x32xf32> -> vector<112x32xf32>
    %c0_78 = arith.constant 0 : index
    %c0_79 = arith.constant 0 : index
    %c0_80 = arith.constant 0 : index
    %176 = vector.load %arg20[%c0_78, %c0_79, %c0_80] : memref<2x1x32xf32, #tpu.memory_space<vmem>>, vector<1x1x32xf32>
    %177 = vector.shape_cast %176 : vector<1x1x32xf32> to vector<1x32xf32>
    %178 = vector.broadcast %177 : vector<1x32xf32> to vector<112x32xf32>
    %179 = arith.addf %175, %178 : vector<112x32xf32>
    %180 = arith.addf %161, %179 : vector<112x32xf32>
    %c0_81 = arith.constant 0 : index
    %c0_82 = arith.constant 0 : index
    %c0_83 = arith.constant 0 : index
    %181 = vector.load %arg21[%c0_81, %c0_82, %c0_83] : memref<2x1x32xf32, #tpu.memory_space<vmem>>, vector<1x1x32xf32>
    %182 = vector.shape_cast %181 : vector<1x1x32xf32> to vector<1x32xf32>
    %c0_84 = arith.constant 0 : index
    %c0_85 = arith.constant 0 : index
    %c0_86 = arith.constant 0 : index
    %183 = vector.load %arg22[%c0_84, %c0_85, %c0_86] : memref<2x1x32xf32, #tpu.memory_space<vmem>>, vector<1x1x32xf32>
    %184 = vector.shape_cast %183 : vector<1x1x32xf32> to vector<1x32xf32>
    %cst_87 = arith.constant dense<0.000000e+00> : vector<112xf32>
    %185 = vector.multi_reduction <add>, %180, %cst_87 [1] : vector<112x32xf32> to vector<112xf32>
    %186 = vector.shape_cast %185 : vector<112xf32> to vector<112x1xf32>
    %cst_88 = arith.constant 3.200000e+01 : f32
    %187 = vector.broadcast %cst_88 : f32 to vector<112x1xf32>
    %188 = arith.divf %186, %187 : vector<112x1xf32>
    %189 = vector.broadcast %188 : vector<112x1xf32> to vector<112x32xf32>
    %190 = arith.subf %180, %189 : vector<112x32xf32>
    %191 = arith.mulf %190, %190 : vector<112x32xf32>
    %cst_89 = arith.constant dense<0.000000e+00> : vector<112xf32>
    %192 = vector.multi_reduction <add>, %191, %cst_89 [1] : vector<112x32xf32> to vector<112xf32>
    %193 = vector.shape_cast %192 : vector<112xf32> to vector<112x1xf32>
    %cst_90 = arith.constant 3.200000e+01 : f32
    %194 = vector.broadcast %cst_90 : f32 to vector<112x1xf32>
    %195 = arith.divf %193, %194 : vector<112x1xf32>
    %196 = vector.broadcast %188 : vector<112x1xf32> to vector<112x32xf32>
    %197 = arith.subf %180, %196 : vector<112x32xf32>
    %cst_91 = arith.constant 9.99999974E-6 : f32
    %198 = vector.broadcast %cst_91 : f32 to vector<112x1xf32>
    %199 = arith.addf %195, %198 : vector<112x1xf32>
    %200 = math.rsqrt %199 : vector<112x1xf32>
    %201 = vector.broadcast %200 : vector<112x1xf32> to vector<112x32xf32>
    %202 = arith.mulf %197, %201 : vector<112x32xf32>
    %203 = vector.broadcast %182 : vector<1x32xf32> to vector<112x32xf32>
    %204 = arith.mulf %202, %203 : vector<112x32xf32>
    %205 = vector.broadcast %184 : vector<1x32xf32> to vector<112x32xf32>
    %206 = arith.addf %204, %205 : vector<112x32xf32>
    %207 = arith.truncf %206 : vector<112x32xf32> to vector<112x32xbf16>
    %c1 = arith.constant 1 : index
    %c0_92 = arith.constant 0 : index
    %c0_93 = arith.constant 0 : index
    %208 = vector.load %arg11[%c1, %c0_92, %c0_93] : memref<2x32x96xbf16, #tpu.memory_space<vmem>>, vector<1x32x96xbf16>
    %209 = vector.shape_cast %208 : vector<1x32x96xbf16> to vector<32x96xbf16>
    %cst_94 = arith.constant dense<0.000000e+00> : vector<112x96xf32>
    %210 = tpu.matmul %207, %209, %cst_94 {dimension_numbers = #tpu.dot_dimension_numbers<[1], [0], [0], [1], [0, 0, 1, 1], [], []>} : vector<112x32xbf16>, vector<32x96xbf16>, vector<112x96xf32> -> vector<112x96xf32>
    %c1_95 = arith.constant 1 : index
    %c0_96 = arith.constant 0 : index
    %c0_97 = arith.constant 0 : index
    %211 = vector.load %arg12[%c1_95, %c0_96, %c0_97] : memref<2x1x96xf32, #tpu.memory_space<vmem>>, vector<1x1x96xf32>
    %212 = vector.shape_cast %211 : vector<1x1x96xf32> to vector<1x96xf32>
    %213 = vector.broadcast %212 : vector<1x96xf32> to vector<112x96xf32>
    %214 = arith.addf %210, %213 : vector<112x96xf32>
    %215 = vector.extract_strided_slice %214 {offsets = [0, 0], sizes = [112, 32], strides = [1, 1]} : vector<112x96xf32> to vector<112x32xf32>
    %cst_98 = arith.constant 0.353553385 : f32
    %216 = vector.broadcast %cst_98 : f32 to vector<112x32xf32>
    %217 = arith.mulf %215, %216 : vector<112x32xf32>
    %218 = arith.truncf %217 : vector<112x32xf32> to vector<112x32xbf16>
    %219 = vector.extract_strided_slice %214 {offsets = [0, 32], sizes = [112, 32], strides = [1, 1]} : vector<112x96xf32> to vector<112x32xf32>
    %220 = arith.truncf %219 : vector<112x32xf32> to vector<112x32xbf16>
    %221 = vector.extract_strided_slice %214 {offsets = [0, 64], sizes = [112, 32], strides = [1, 1]} : vector<112x96xf32> to vector<112x32xf32>
    %222 = arith.truncf %221 : vector<112x32xf32> to vector<112x32xbf16>
    %223 = vector.extract_strided_slice %218 {offsets = [0, 0], sizes = [112, 8], strides = [1, 1]} : vector<112x32xbf16> to vector<112x8xbf16>
    %224 = vector.extract_strided_slice %220 {offsets = [0, 0], sizes = [112, 8], strides = [1, 1]} : vector<112x32xbf16> to vector<112x8xbf16>
    %cst_99 = arith.constant dense<0.000000e+00> : vector<112x112xf32>
    %225 = tpu.matmul %223, %224, %cst_99 {dimension_numbers = #tpu.dot_dimension_numbers<[1], [1], [0], [0], [0, 0, 1, 0], [], []>} : vector<112x8xbf16>, vector<112x8xbf16>, vector<112x112xf32> -> vector<112x112xf32>
    %226 = arith.addf %225, %0 : vector<112x112xf32>
    %cst_100 = arith.constant dense<0xFF800000> : vector<112xf32>
    %227 = vector.multi_reduction <maximumf>, %226, %cst_100 [1] : vector<112x112xf32> to vector<112xf32>
    %228 = vector.shape_cast %227 : vector<112xf32> to vector<112x1xf32>
    %229 = vector.broadcast %228 : vector<112x1xf32> to vector<112x112xf32>
    %230 = arith.subf %226, %229 : vector<112x112xf32>
    %231 = math.exp %230 : vector<112x112xf32>
    %cst_101 = arith.constant dense<0.000000e+00> : vector<112xf32>
    %232 = vector.multi_reduction <add>, %231, %cst_101 [1] : vector<112x112xf32> to vector<112xf32>
    %233 = vector.shape_cast %232 : vector<112xf32> to vector<112x1xf32>
    %234 = tpu.reciprocal %233 {approx = true} : vector<112x1xf32> -> vector<112x1xf32>
    %235 = vector.broadcast %234 : vector<112x1xf32> to vector<112x112xf32>
    %236 = arith.mulf %231, %235 : vector<112x112xf32>
    %237 = arith.truncf %236 : vector<112x112xf32> to vector<112x112xbf16>
    %238 = vector.extract_strided_slice %222 {offsets = [0, 0], sizes = [112, 8], strides = [1, 1]} : vector<112x32xbf16> to vector<112x8xbf16>
    %cst_102 = arith.constant dense<0.000000e+00> : vector<112x8xf32>
    %239 = tpu.matmul %237, %238, %cst_102 {dimension_numbers = #tpu.dot_dimension_numbers<[1], [0], [0], [1], [0, 0, 1, 1], [], []>} : vector<112x112xbf16>, vector<112x8xbf16>, vector<112x8xf32> -> vector<112x8xf32>
    %240 = vector.extract_strided_slice %218 {offsets = [0, 8], sizes = [112, 8], strides = [1, 1]} : vector<112x32xbf16> to vector<112x8xbf16>
    %241 = vector.extract_strided_slice %220 {offsets = [0, 8], sizes = [112, 8], strides = [1, 1]} : vector<112x32xbf16> to vector<112x8xbf16>
    %cst_103 = arith.constant dense<0.000000e+00> : vector<112x112xf32>
    %242 = tpu.matmul %240, %241, %cst_103 {dimension_numbers = #tpu.dot_dimension_numbers<[1], [1], [0], [0], [0, 0, 1, 0], [], []>} : vector<112x8xbf16>, vector<112x8xbf16>, vector<112x112xf32> -> vector<112x112xf32>
    %243 = arith.addf %242, %0 : vector<112x112xf32>
    %cst_104 = arith.constant dense<0xFF800000> : vector<112xf32>
    %244 = vector.multi_reduction <maximumf>, %243, %cst_104 [1] : vector<112x112xf32> to vector<112xf32>
    %245 = vector.shape_cast %244 : vector<112xf32> to vector<112x1xf32>
    %246 = vector.broadcast %245 : vector<112x1xf32> to vector<112x112xf32>
    %247 = arith.subf %243, %246 : vector<112x112xf32>
    %248 = math.exp %247 : vector<112x112xf32>
    %cst_105 = arith.constant dense<0.000000e+00> : vector<112xf32>
    %249 = vector.multi_reduction <add>, %248, %cst_105 [1] : vector<112x112xf32> to vector<112xf32>
    %250 = vector.shape_cast %249 : vector<112xf32> to vector<112x1xf32>
    %251 = tpu.reciprocal %250 {approx = true} : vector<112x1xf32> -> vector<112x1xf32>
    %252 = vector.broadcast %251 : vector<112x1xf32> to vector<112x112xf32>
    %253 = arith.mulf %248, %252 : vector<112x112xf32>
    %254 = arith.truncf %253 : vector<112x112xf32> to vector<112x112xbf16>
    %255 = vector.extract_strided_slice %222 {offsets = [0, 8], sizes = [112, 8], strides = [1, 1]} : vector<112x32xbf16> to vector<112x8xbf16>
    %cst_106 = arith.constant dense<0.000000e+00> : vector<112x8xf32>
    %256 = tpu.matmul %254, %255, %cst_106 {dimension_numbers = #tpu.dot_dimension_numbers<[1], [0], [0], [1], [0, 0, 1, 1], [], []>} : vector<112x112xbf16>, vector<112x8xbf16>, vector<112x8xf32> -> vector<112x8xf32>
    %257 = vector.extract_strided_slice %218 {offsets = [0, 16], sizes = [112, 8], strides = [1, 1]} : vector<112x32xbf16> to vector<112x8xbf16>
    %258 = vector.extract_strided_slice %220 {offsets = [0, 16], sizes = [112, 8], strides = [1, 1]} : vector<112x32xbf16> to vector<112x8xbf16>
    %cst_107 = arith.constant dense<0.000000e+00> : vector<112x112xf32>
    %259 = tpu.matmul %257, %258, %cst_107 {dimension_numbers = #tpu.dot_dimension_numbers<[1], [1], [0], [0], [0, 0, 1, 0], [], []>} : vector<112x8xbf16>, vector<112x8xbf16>, vector<112x112xf32> -> vector<112x112xf32>
    %260 = arith.addf %259, %0 : vector<112x112xf32>
    %cst_108 = arith.constant dense<0xFF800000> : vector<112xf32>
    %261 = vector.multi_reduction <maximumf>, %260, %cst_108 [1] : vector<112x112xf32> to vector<112xf32>
    %262 = vector.shape_cast %261 : vector<112xf32> to vector<112x1xf32>
    %263 = vector.broadcast %262 : vector<112x1xf32> to vector<112x112xf32>
    %264 = arith.subf %260, %263 : vector<112x112xf32>
    %265 = math.exp %264 : vector<112x112xf32>
    %cst_109 = arith.constant dense<0.000000e+00> : vector<112xf32>
    %266 = vector.multi_reduction <add>, %265, %cst_109 [1] : vector<112x112xf32> to vector<112xf32>
    %267 = vector.shape_cast %266 : vector<112xf32> to vector<112x1xf32>
    %268 = tpu.reciprocal %267 {approx = true} : vector<112x1xf32> -> vector<112x1xf32>
    %269 = vector.broadcast %268 : vector<112x1xf32> to vector<112x112xf32>
    %270 = arith.mulf %265, %269 : vector<112x112xf32>
    %271 = arith.truncf %270 : vector<112x112xf32> to vector<112x112xbf16>
    %272 = vector.extract_strided_slice %222 {offsets = [0, 16], sizes = [112, 8], strides = [1, 1]} : vector<112x32xbf16> to vector<112x8xbf16>
    %cst_110 = arith.constant dense<0.000000e+00> : vector<112x8xf32>
    %273 = tpu.matmul %271, %272, %cst_110 {dimension_numbers = #tpu.dot_dimension_numbers<[1], [0], [0], [1], [0, 0, 1, 1], [], []>} : vector<112x112xbf16>, vector<112x8xbf16>, vector<112x8xf32> -> vector<112x8xf32>
    %274 = vector.extract_strided_slice %218 {offsets = [0, 24], sizes = [112, 8], strides = [1, 1]} : vector<112x32xbf16> to vector<112x8xbf16>
    %275 = vector.extract_strided_slice %220 {offsets = [0, 24], sizes = [112, 8], strides = [1, 1]} : vector<112x32xbf16> to vector<112x8xbf16>
    %cst_111 = arith.constant dense<0.000000e+00> : vector<112x112xf32>
    %276 = tpu.matmul %274, %275, %cst_111 {dimension_numbers = #tpu.dot_dimension_numbers<[1], [1], [0], [0], [0, 0, 1, 0], [], []>} : vector<112x8xbf16>, vector<112x8xbf16>, vector<112x112xf32> -> vector<112x112xf32>
    %277 = arith.addf %276, %0 : vector<112x112xf32>
    %cst_112 = arith.constant dense<0xFF800000> : vector<112xf32>
    %278 = vector.multi_reduction <maximumf>, %277, %cst_112 [1] : vector<112x112xf32> to vector<112xf32>
    %279 = vector.shape_cast %278 : vector<112xf32> to vector<112x1xf32>
    %280 = vector.broadcast %279 : vector<112x1xf32> to vector<112x112xf32>
    %281 = arith.subf %277, %280 : vector<112x112xf32>
    %282 = math.exp %281 : vector<112x112xf32>
    %cst_113 = arith.constant dense<0.000000e+00> : vector<112xf32>
    %283 = vector.multi_reduction <add>, %282, %cst_113 [1] : vector<112x112xf32> to vector<112xf32>
    %284 = vector.shape_cast %283 : vector<112xf32> to vector<112x1xf32>
    %285 = tpu.reciprocal %284 {approx = true} : vector<112x1xf32> -> vector<112x1xf32>
    %286 = vector.broadcast %285 : vector<112x1xf32> to vector<112x112xf32>
    %287 = arith.mulf %282, %286 : vector<112x112xf32>
    %288 = arith.truncf %287 : vector<112x112xf32> to vector<112x112xbf16>
    %289 = vector.extract_strided_slice %222 {offsets = [0, 24], sizes = [112, 8], strides = [1, 1]} : vector<112x32xbf16> to vector<112x8xbf16>
    %cst_114 = arith.constant dense<0.000000e+00> : vector<112x8xf32>
    %290 = tpu.matmul %288, %289, %cst_114 {dimension_numbers = #tpu.dot_dimension_numbers<[1], [0], [0], [1], [0, 0, 1, 1], [], []>} : vector<112x112xbf16>, vector<112x8xbf16>, vector<112x8xf32> -> vector<112x8xf32>
    %291 = tpu.concatenate %239, %256, %273, %290 in 1 : vector<112x8xf32>, vector<112x8xf32>, vector<112x8xf32>, vector<112x8xf32> -> vector<112x32xf32>
    %292 = arith.truncf %291 : vector<112x32xf32> to vector<112x32xbf16>
    %c1_115 = arith.constant 1 : index
    %c0_116 = arith.constant 0 : index
    %c0_117 = arith.constant 0 : index
    %293 = vector.load %arg13[%c1_115, %c0_116, %c0_117] : memref<2x32x32xbf16, #tpu.memory_space<vmem>>, vector<1x32x32xbf16>
    %294 = vector.shape_cast %293 : vector<1x32x32xbf16> to vector<32x32xbf16>
    %cst_118 = arith.constant dense<0.000000e+00> : vector<112x32xf32>
    %295 = tpu.matmul %292, %294, %cst_118 {dimension_numbers = #tpu.dot_dimension_numbers<[1], [0], [0], [1], [0, 0, 1, 1], [], []>} : vector<112x32xbf16>, vector<32x32xbf16>, vector<112x32xf32> -> vector<112x32xf32>
    %c1_119 = arith.constant 1 : index
    %c0_120 = arith.constant 0 : index
    %c0_121 = arith.constant 0 : index
    %296 = vector.load %arg14[%c1_119, %c0_120, %c0_121] : memref<2x1x32xf32, #tpu.memory_space<vmem>>, vector<1x1x32xf32>
    %297 = vector.shape_cast %296 : vector<1x1x32xf32> to vector<1x32xf32>
    %298 = vector.broadcast %297 : vector<1x32xf32> to vector<112x32xf32>
    %299 = arith.addf %295, %298 : vector<112x32xf32>
    %300 = arith.addf %206, %299 : vector<112x32xf32>
    %c1_122 = arith.constant 1 : index
    %c0_123 = arith.constant 0 : index
    %c0_124 = arith.constant 0 : index
    %301 = vector.load %arg15[%c1_122, %c0_123, %c0_124] : memref<2x1x32xf32, #tpu.memory_space<vmem>>, vector<1x1x32xf32>
    %302 = vector.shape_cast %301 : vector<1x1x32xf32> to vector<1x32xf32>
    %c1_125 = arith.constant 1 : index
    %c0_126 = arith.constant 0 : index
    %c0_127 = arith.constant 0 : index
    %303 = vector.load %arg16[%c1_125, %c0_126, %c0_127] : memref<2x1x32xf32, #tpu.memory_space<vmem>>, vector<1x1x32xf32>
    %304 = vector.shape_cast %303 : vector<1x1x32xf32> to vector<1x32xf32>
    %cst_128 = arith.constant dense<0.000000e+00> : vector<112xf32>
    %305 = vector.multi_reduction <add>, %300, %cst_128 [1] : vector<112x32xf32> to vector<112xf32>
    %306 = vector.shape_cast %305 : vector<112xf32> to vector<112x1xf32>
    %cst_129 = arith.constant 3.200000e+01 : f32
    %307 = vector.broadcast %cst_129 : f32 to vector<112x1xf32>
    %308 = arith.divf %306, %307 : vector<112x1xf32>
    %309 = vector.broadcast %308 : vector<112x1xf32> to vector<112x32xf32>
    %310 = arith.subf %300, %309 : vector<112x32xf32>
    %311 = arith.mulf %310, %310 : vector<112x32xf32>
    %cst_130 = arith.constant dense<0.000000e+00> : vector<112xf32>
    %312 = vector.multi_reduction <add>, %311, %cst_130 [1] : vector<112x32xf32> to vector<112xf32>
    %313 = vector.shape_cast %312 : vector<112xf32> to vector<112x1xf32>
    %cst_131 = arith.constant 3.200000e+01 : f32
    %314 = vector.broadcast %cst_131 : f32 to vector<112x1xf32>
    %315 = arith.divf %313, %314 : vector<112x1xf32>
    %316 = vector.broadcast %308 : vector<112x1xf32> to vector<112x32xf32>
    %317 = arith.subf %300, %316 : vector<112x32xf32>
    %cst_132 = arith.constant 9.99999974E-6 : f32
    %318 = vector.broadcast %cst_132 : f32 to vector<112x1xf32>
    %319 = arith.addf %315, %318 : vector<112x1xf32>
    %320 = math.rsqrt %319 : vector<112x1xf32>
    %321 = vector.broadcast %320 : vector<112x1xf32> to vector<112x32xf32>
    %322 = arith.mulf %317, %321 : vector<112x32xf32>
    %323 = vector.broadcast %302 : vector<1x32xf32> to vector<112x32xf32>
    %324 = arith.mulf %322, %323 : vector<112x32xf32>
    %325 = vector.broadcast %304 : vector<1x32xf32> to vector<112x32xf32>
    %326 = arith.addf %324, %325 : vector<112x32xf32>
    %327 = arith.truncf %326 : vector<112x32xf32> to vector<112x32xbf16>
    %c1_133 = arith.constant 1 : index
    %c0_134 = arith.constant 0 : index
    %c0_135 = arith.constant 0 : index
    %328 = vector.load %arg17[%c1_133, %c0_134, %c0_135] : memref<2x32x32xbf16, #tpu.memory_space<vmem>>, vector<1x32x32xbf16>
    %329 = vector.shape_cast %328 : vector<1x32x32xbf16> to vector<32x32xbf16>
    %cst_136 = arith.constant dense<0.000000e+00> : vector<112x32xf32>
    %330 = tpu.matmul %327, %329, %cst_136 {dimension_numbers = #tpu.dot_dimension_numbers<[1], [0], [0], [1], [0, 0, 1, 1], [], []>} : vector<112x32xbf16>, vector<32x32xbf16>, vector<112x32xf32> -> vector<112x32xf32>
    %c1_137 = arith.constant 1 : index
    %c0_138 = arith.constant 0 : index
    %c0_139 = arith.constant 0 : index
    %331 = vector.load %arg18[%c1_137, %c0_138, %c0_139] : memref<2x1x32xf32, #tpu.memory_space<vmem>>, vector<1x1x32xf32>
    %332 = vector.shape_cast %331 : vector<1x1x32xf32> to vector<1x32xf32>
    %333 = vector.broadcast %332 : vector<1x32xf32> to vector<112x32xf32>
    %334 = arith.addf %330, %333 : vector<112x32xf32>
    %cst_140 = arith.constant 0.000000e+00 : f32
    %335 = vector.broadcast %cst_140 : f32 to vector<112x32xf32>
    %336 = arith.maximumf %334, %335 : vector<112x32xf32>
    %337 = arith.truncf %336 : vector<112x32xf32> to vector<112x32xbf16>
    %c1_141 = arith.constant 1 : index
    %c0_142 = arith.constant 0 : index
    %c0_143 = arith.constant 0 : index
    %338 = vector.load %arg19[%c1_141, %c0_142, %c0_143] : memref<2x32x32xbf16, #tpu.memory_space<vmem>>, vector<1x32x32xbf16>
    %339 = vector.shape_cast %338 : vector<1x32x32xbf16> to vector<32x32xbf16>
    %cst_144 = arith.constant dense<0.000000e+00> : vector<112x32xf32>
    %340 = tpu.matmul %337, %339, %cst_144 {dimension_numbers = #tpu.dot_dimension_numbers<[1], [0], [0], [1], [0, 0, 1, 1], [], []>} : vector<112x32xbf16>, vector<32x32xbf16>, vector<112x32xf32> -> vector<112x32xf32>
    %c1_145 = arith.constant 1 : index
    %c0_146 = arith.constant 0 : index
    %c0_147 = arith.constant 0 : index
    %341 = vector.load %arg20[%c1_145, %c0_146, %c0_147] : memref<2x1x32xf32, #tpu.memory_space<vmem>>, vector<1x1x32xf32>
    %342 = vector.shape_cast %341 : vector<1x1x32xf32> to vector<1x32xf32>
    %343 = vector.broadcast %342 : vector<1x32xf32> to vector<112x32xf32>
    %344 = arith.addf %340, %343 : vector<112x32xf32>
    %345 = arith.addf %326, %344 : vector<112x32xf32>
    %c1_148 = arith.constant 1 : index
    %c0_149 = arith.constant 0 : index
    %c0_150 = arith.constant 0 : index
    %346 = vector.load %arg21[%c1_148, %c0_149, %c0_150] : memref<2x1x32xf32, #tpu.memory_space<vmem>>, vector<1x1x32xf32>
    %347 = vector.shape_cast %346 : vector<1x1x32xf32> to vector<1x32xf32>
    %c1_151 = arith.constant 1 : index
    %c0_152 = arith.constant 0 : index
    %c0_153 = arith.constant 0 : index
    %348 = vector.load %arg22[%c1_151, %c0_152, %c0_153] : memref<2x1x32xf32, #tpu.memory_space<vmem>>, vector<1x1x32xf32>
    %349 = vector.shape_cast %348 : vector<1x1x32xf32> to vector<1x32xf32>
    %cst_154 = arith.constant dense<0.000000e+00> : vector<112xf32>
    %350 = vector.multi_reduction <add>, %345, %cst_154 [1] : vector<112x32xf32> to vector<112xf32>
    %351 = vector.shape_cast %350 : vector<112xf32> to vector<112x1xf32>
    %cst_155 = arith.constant 3.200000e+01 : f32
    %352 = vector.broadcast %cst_155 : f32 to vector<112x1xf32>
    %353 = arith.divf %351, %352 : vector<112x1xf32>
    %354 = vector.broadcast %353 : vector<112x1xf32> to vector<112x32xf32>
    %355 = arith.subf %345, %354 : vector<112x32xf32>
    %356 = arith.mulf %355, %355 : vector<112x32xf32>
    %cst_156 = arith.constant dense<0.000000e+00> : vector<112xf32>
    %357 = vector.multi_reduction <add>, %356, %cst_156 [1] : vector<112x32xf32> to vector<112xf32>
    %358 = vector.shape_cast %357 : vector<112xf32> to vector<112x1xf32>
    %cst_157 = arith.constant 3.200000e+01 : f32
    %359 = vector.broadcast %cst_157 : f32 to vector<112x1xf32>
    %360 = arith.divf %358, %359 : vector<112x1xf32>
    %361 = vector.broadcast %353 : vector<112x1xf32> to vector<112x32xf32>
    %362 = arith.subf %345, %361 : vector<112x32xf32>
    %cst_158 = arith.constant 9.99999974E-6 : f32
    %363 = vector.broadcast %cst_158 : f32 to vector<112x1xf32>
    %364 = arith.addf %360, %363 : vector<112x1xf32>
    %365 = math.rsqrt %364 : vector<112x1xf32>
    %366 = vector.broadcast %365 : vector<112x1xf32> to vector<112x32xf32>
    %367 = arith.mulf %362, %366 : vector<112x32xf32>
    %368 = vector.broadcast %347 : vector<1x32xf32> to vector<112x32xf32>
    %369 = arith.mulf %367, %368 : vector<112x32xf32>
    %370 = vector.broadcast %349 : vector<1x32xf32> to vector<112x32xf32>
    %371 = arith.addf %369, %370 : vector<112x32xf32>
    %c0_159 = arith.constant 0 : index
    %c0_160 = arith.constant 0 : index
    %372 = vector.load %arg4[%c0_159, %c0_160] : memref<112x1xf32, #tpu.memory_space<vmem>>, vector<112x1xf32>
    %373 = vector.broadcast %372 : vector<112x1xf32> to vector<112x32xf32>
    %374 = arith.addf %371, %373 : vector<112x32xf32>
    %375 = vector.extract_strided_slice %374 {offsets = [0, 0], sizes = [56, 32], strides = [1, 1]} : vector<112x32xf32> to vector<56x32xf32>
    %cst_161 = arith.constant dense<0xFF800000> : vector<32xf32>
    %376 = vector.multi_reduction <maximumf>, %375, %cst_161 [0] : vector<56x32xf32> to vector<32xf32>
    %377 = vector.shape_cast %376 : vector<32xf32> to vector<1x32xf32>
    %378 = vector.extract_strided_slice %374 {offsets = [56, 0], sizes = [56, 32], strides = [1, 1]} : vector<112x32xf32> to vector<56x32xf32>
    %cst_162 = arith.constant dense<0xFF800000> : vector<32xf32>
    %379 = vector.multi_reduction <maximumf>, %378, %cst_162 [0] : vector<56x32xf32> to vector<32xf32>
    %380 = vector.shape_cast %379 : vector<32xf32> to vector<1x32xf32>
    %381 = tpu.concatenate %377, %380 in 0 : vector<1x32xf32>, vector<1x32xf32> -> vector<2x32xf32>
    %382 = arith.truncf %381 : vector<2x32xf32> to vector<2x32xbf16>
    %c0_163 = arith.constant 0 : index
    %c0_164 = arith.constant 0 : index
    %383 = vector.load %arg23[%c0_163, %c0_164] : memref<32x16xbf16, #tpu.memory_space<vmem>>, vector<32x16xbf16>
    %cst_165 = arith.constant dense<0.000000e+00> : vector<2x16xf32>
    %384 = tpu.matmul %382, %383, %cst_165 {dimension_numbers = #tpu.dot_dimension_numbers<[1], [0], [0], [1], [0, 0, 1, 1], [], []>} : vector<2x32xbf16>, vector<32x16xbf16>, vector<2x16xf32> -> vector<2x16xf32>
    %c0_166 = arith.constant 0 : index
    %c0_167 = arith.constant 0 : index
    %385 = vector.load %arg24[%c0_166, %c0_167] : memref<2x16xf32, #tpu.memory_space<vmem>>, vector<2x16xf32>
    tpu.vector_store %arg24[%c0_166, %c0_167], %384 {strides = array<i32>} : memref<2x16xf32, #tpu.memory_space<vmem>>, vector<2x16xf32>,
    return
  }
  func.func @transform_0(%arg0: i32) -> (i32, i32) {
    %c0_i32 = arith.constant 0 : i32
    %c0_i32_0 = arith.constant 0 : i32
    %c0_i32_1 = arith.constant 0 : i32
    return %c0_i32, %c0_i32_0 : i32, i32
  }
  func.func @transform_1(%arg0: i32) -> (i32, i32) {
    %c0_i32 = arith.constant 0 : i32
    %c0_i32_0 = arith.constant 0 : i32
    %c0_i32_1 = arith.constant 0 : i32
    return %c0_i32, %c0_i32_0 : i32, i32
  }
  func.func @transform_2(%arg0: i32) -> (i32, i32) {
    %c0_i32 = arith.constant 0 : i32
    %c0_i32_0 = arith.constant 0 : i32
    %c0_i32_1 = arith.constant 0 : i32
    return %c0_i32, %c0_i32_0 : i32, i32
  }
  func.func @transform_3(%arg0: i32) -> (i32, i32) {
    %c0_i32 = arith.constant 0 : i32
    %c0_i32_0 = arith.constant 0 : i32
    %c0_i32_1 = arith.constant 0 : i32
    return %c0_i32, %c0_i32_0 : i32, i32
  }
  func.func @transform_4(%arg0: i32) -> (i32, i32) {
    %c0_i32 = arith.constant 0 : i32
    %c0_i32_0 = arith.constant 0 : i32
    %c0_i32_1 = arith.constant 0 : i32
    return %c0_i32, %c0_i32_0 : i32, i32
  }
  func.func @transform_5(%arg0: i32) -> (i32, i32) {
    %c0_i32 = arith.constant 0 : i32
    %c0_i32_0 = arith.constant 0 : i32
    %c0_i32_1 = arith.constant 0 : i32
    return %c0_i32, %c0_i32_0 : i32, i32
  }
  func.func @transform_6(%arg0: i32) -> (i32, i32) {
    %c0_i32 = arith.constant 0 : i32
    %c0_i32_0 = arith.constant 0 : i32
    %c0_i32_1 = arith.constant 0 : i32
    return %c0_i32, %c0_i32_0 : i32, i32
  }
  func.func @transform_7(%arg0: i32) -> (i32, i32) {
    %c0_i32 = arith.constant 0 : i32
    %c0_i32_0 = arith.constant 0 : i32
    %c0_i32_1 = arith.constant 0 : i32
    return %c0_i32, %c0_i32_0 : i32, i32
  }
  func.func @transform_8(%arg0: i32) -> (i32, i32) {
    %c0_i32 = arith.constant 0 : i32
    %c0_i32_0 = arith.constant 0 : i32
    %c0_i32_1 = arith.constant 0 : i32
    return %c0_i32, %c0_i32_0 : i32, i32
  }
  func.func @transform_9(%arg0: i32) -> (i32, i32) {
    %c0_i32 = arith.constant 0 : i32
    %c0_i32_0 = arith.constant 0 : i32
    %c0_i32_1 = arith.constant 0 : i32
    return %c0_i32, %c0_i32_0 : i32, i32
  }
  func.func @transform_10(%arg0: i32) -> (i32, i32, i32) {
    %c0_i32 = arith.constant 0 : i32
    %c0_i32_0 = arith.constant 0 : i32
    %c0_i32_1 = arith.constant 0 : i32
    %c0_i32_2 = arith.constant 0 : i32
    return %c0_i32, %c0_i32_0, %c0_i32_1 : i32, i32, i32
  }
  func.func @transform_11(%arg0: i32) -> (i32, i32, i32) {
    %c0_i32 = arith.constant 0 : i32
    %c0_i32_0 = arith.constant 0 : i32
    %c0_i32_1 = arith.constant 0 : i32
    %c0_i32_2 = arith.constant 0 : i32
    return %c0_i32, %c0_i32_0, %c0_i32_1 : i32, i32, i32
  }
  func.func @transform_12(%arg0: i32) -> (i32, i32, i32) {
    %c0_i32 = arith.constant 0 : i32
    %c0_i32_0 = arith.constant 0 : i32
    %c0_i32_1 = arith.constant 0 : i32
    %c0_i32_2 = arith.constant 0 : i32
    return %c0_i32, %c0_i32_0, %c0_i32_1 : i32, i32, i32
  }
  func.func @transform_13(%arg0: i32) -> (i32, i32, i32) {
    %c0_i32 = arith.constant 0 : i32
    %c0_i32_0 = arith.constant 0 : i32
    %c0_i32_1 = arith.constant 0 : i32
    %c0_i32_2 = arith.constant 0 : i32
    return %c0_i32, %c0_i32_0, %c0_i32_1 : i32, i32, i32
  }
  func.func @transform_14(%arg0: i32) -> (i32, i32, i32) {
    %c0_i32 = arith.constant 0 : i32
    %c0_i32_0 = arith.constant 0 : i32
    %c0_i32_1 = arith.constant 0 : i32
    %c0_i32_2 = arith.constant 0 : i32
    return %c0_i32, %c0_i32_0, %c0_i32_1 : i32, i32, i32
  }
  func.func @transform_15(%arg0: i32) -> (i32, i32, i32) {
    %c0_i32 = arith.constant 0 : i32
    %c0_i32_0 = arith.constant 0 : i32
    %c0_i32_1 = arith.constant 0 : i32
    %c0_i32_2 = arith.constant 0 : i32
    return %c0_i32, %c0_i32_0, %c0_i32_1 : i32, i32, i32
  }
  func.func @transform_16(%arg0: i32) -> (i32, i32, i32) {
    %c0_i32 = arith.constant 0 : i32
    %c0_i32_0 = arith.constant 0 : i32
    %c0_i32_1 = arith.constant 0 : i32
    %c0_i32_2 = arith.constant 0 : i32
    return %c0_i32, %c0_i32_0, %c0_i32_1 : i32, i32, i32
  }
  func.func @transform_17(%arg0: i32) -> (i32, i32, i32) {
    %c0_i32 = arith.constant 0 : i32
    %c0_i32_0 = arith.constant 0 : i32
    %c0_i32_1 = arith.constant 0 : i32
    %c0_i32_2 = arith.constant 0 : i32
    return %c0_i32, %c0_i32_0, %c0_i32_1 : i32, i32, i32
  }
  func.func @transform_18(%arg0: i32) -> (i32, i32, i32) {
    %c0_i32 = arith.constant 0 : i32
    %c0_i32_0 = arith.constant 0 : i32
    %c0_i32_1 = arith.constant 0 : i32
    %c0_i32_2 = arith.constant 0 : i32
    return %c0_i32, %c0_i32_0, %c0_i32_1 : i32, i32, i32
  }
  func.func @transform_19(%arg0: i32) -> (i32, i32, i32) {
    %c0_i32 = arith.constant 0 : i32
    %c0_i32_0 = arith.constant 0 : i32
    %c0_i32_1 = arith.constant 0 : i32
    %c0_i32_2 = arith.constant 0 : i32
    return %c0_i32, %c0_i32_0, %c0_i32_1 : i32, i32, i32
  }
  func.func @transform_20(%arg0: i32) -> (i32, i32, i32) {
    %c0_i32 = arith.constant 0 : i32
    %c0_i32_0 = arith.constant 0 : i32
    %c0_i32_1 = arith.constant 0 : i32
    %c0_i32_2 = arith.constant 0 : i32
    return %c0_i32, %c0_i32_0, %c0_i32_1 : i32, i32, i32
  }
  func.func @transform_21(%arg0: i32) -> (i32, i32, i32) {
    %c0_i32 = arith.constant 0 : i32
    %c0_i32_0 = arith.constant 0 : i32
    %c0_i32_1 = arith.constant 0 : i32
    %c0_i32_2 = arith.constant 0 : i32
    return %c0_i32, %c0_i32_0, %c0_i32_1 : i32, i32, i32
  }
  func.func @transform_22(%arg0: i32) -> (i32, i32) {
    %c0_i32 = arith.constant 0 : i32
    %c0_i32_0 = arith.constant 0 : i32
    %c0_i32_1 = arith.constant 0 : i32
    return %c0_i32, %c0_i32_0 : i32, i32
  }
  func.func @transform_23(%arg0: i32) -> (i32, i32) {
    %c0_i32 = arith.constant 0 : i32
    %c0_i32_0 = arith.constant 0 : i32
    %c0_i32_1 = arith.constant 0 : i32
    return %c0_i32, %c0_i32_0 : i32, i32
  }
}

module attributes {stable_mosaic.version = 11 : i64} {
  func.func @sttr_stream_kernel(%arg0: i32, %arg1: memref<16x12xf32, #tpu.memory_space<vmem>>, %arg2: memref<16x32xf32, #tpu.memory_space<vmem>>, %arg3: memref<16x16xf32, #tpu.memory_space<vmem>>, %arg4: memref<16x1xf32, #tpu.memory_space<vmem>>, %arg5: memref<12x32xbf16, #tpu.memory_space<vmem>>, %arg6: memref<1x32xf32, #tpu.memory_space<vmem>>, %arg7: memref<1x32xf32, #tpu.memory_space<vmem>>, %arg8: memref<1x32xf32, #tpu.memory_space<vmem>>, %arg9: memref<32x32xbf16, #tpu.memory_space<vmem>>, %arg10: memref<1x32xf32, #tpu.memory_space<vmem>>, %arg11: memref<2x32x96xbf16, #tpu.memory_space<vmem>>, %arg12: memref<2x1x96xf32, #tpu.memory_space<vmem>>, %arg13: memref<2x32x32xbf16, #tpu.memory_space<vmem>>, %arg14: memref<2x1x32xf32, #tpu.memory_space<vmem>>, %arg15: memref<2x1x32xf32, #tpu.memory_space<vmem>>, %arg16: memref<2x1x32xf32, #tpu.memory_space<vmem>>, %arg17: memref<2x32x32xbf16, #tpu.memory_space<vmem>>, %arg18: memref<2x1x32xf32, #tpu.memory_space<vmem>>, %arg19: memref<2x32x32xbf16, #tpu.memory_space<vmem>>, %arg20: memref<2x1x32xf32, #tpu.memory_space<vmem>>, %arg21: memref<2x1x32xf32, #tpu.memory_space<vmem>>, %arg22: memref<2x1x32xf32, #tpu.memory_space<vmem>>, %arg23: memref<32x16xbf16, #tpu.memory_space<vmem>>, %arg24: memref<2x16xf32, #tpu.memory_space<vmem>>) attributes {dimension_semantics = [#tpu.dimension_semantics<arbitrary>], iteration_bounds = array<i64: 1>, scalar_prefetch = 0 : i64, scratch_operands = 0 : i64, tpu.core_type = #tpu.core_type<tc>, window_params = [{pipeline_mode = #tpu.pipeline_mode<synchronous>, transform_indices = @transform_0, window_bounds = array<i64: 16, 12>}, {pipeline_mode = #tpu.pipeline_mode<synchronous>, transform_indices = @transform_1, window_bounds = array<i64: 16, 32>}, {pipeline_mode = #tpu.pipeline_mode<synchronous>, transform_indices = @transform_2, window_bounds = array<i64: 16, 16>}, {pipeline_mode = #tpu.pipeline_mode<synchronous>, transform_indices = @transform_3, window_bounds = array<i64: 16, 1>}, {pipeline_mode = #tpu.pipeline_mode<synchronous>, transform_indices = @transform_4, window_bounds = array<i64: 12, 32>}, {pipeline_mode = #tpu.pipeline_mode<synchronous>, transform_indices = @transform_5, window_bounds = array<i64: 1, 32>}, {pipeline_mode = #tpu.pipeline_mode<synchronous>, transform_indices = @transform_6, window_bounds = array<i64: 1, 32>}, {pipeline_mode = #tpu.pipeline_mode<synchronous>, transform_indices = @transform_7, window_bounds = array<i64: 1, 32>}, {pipeline_mode = #tpu.pipeline_mode<synchronous>, transform_indices = @transform_8, window_bounds = array<i64: 32, 32>}, {pipeline_mode = #tpu.pipeline_mode<synchronous>, transform_indices = @transform_9, window_bounds = array<i64: 1, 32>}, {pipeline_mode = #tpu.pipeline_mode<synchronous>, transform_indices = @transform_10, window_bounds = array<i64: 2, 32, 96>}, {pipeline_mode = #tpu.pipeline_mode<synchronous>, transform_indices = @transform_11, window_bounds = array<i64: 2, 1, 96>}, {pipeline_mode = #tpu.pipeline_mode<synchronous>, transform_indices = @transform_12, window_bounds = array<i64: 2, 32, 32>}, {pipeline_mode = #tpu.pipeline_mode<synchronous>, transform_indices = @transform_13, window_bounds = array<i64: 2, 1, 32>}, {pipeline_mode = #tpu.pipeline_mode<synchronous>, transform_indices = @transform_14, window_bounds = array<i64: 2, 1, 32>}, {pipeline_mode = #tpu.pipeline_mode<synchronous>, transform_indices = @transform_15, window_bounds = array<i64: 2, 1, 32>}, {pipeline_mode = #tpu.pipeline_mode<synchronous>, transform_indices = @transform_16, window_bounds = array<i64: 2, 32, 32>}, {pipeline_mode = #tpu.pipeline_mode<synchronous>, transform_indices = @transform_17, window_bounds = array<i64: 2, 1, 32>}, {pipeline_mode = #tpu.pipeline_mode<synchronous>, transform_indices = @transform_18, window_bounds = array<i64: 2, 32, 32>}, {pipeline_mode = #tpu.pipeline_mode<synchronous>, transform_indices = @transform_19, window_bounds = array<i64: 2, 1, 32>}, {pipeline_mode = #tpu.pipeline_mode<synchronous>, transform_indices = @transform_20, window_bounds = array<i64: 2, 1, 32>}, {pipeline_mode = #tpu.pipeline_mode<synchronous>, transform_indices = @transform_21, window_bounds = array<i64: 2, 1, 32>}, {pipeline_mode = #tpu.pipeline_mode<synchronous>, transform_indices = @transform_22, window_bounds = array<i64: 32, 16>}, {pipeline_mode = #tpu.pipeline_mode<synchronous>, transform_indices = @transform_23, window_bounds = array<i64: 2, 16>}]} {
    %c0 = arith.constant 0 : index
    %c0_0 = arith.constant 0 : index
    %0 = vector.load %arg3[%c0, %c0_0] : memref<16x16xf32, #tpu.memory_space<vmem>>, vector<16x16xf32>
    %c0_1 = arith.constant 0 : index
    %c0_2 = arith.constant 0 : index
    %1 = vector.load %arg1[%c0_1, %c0_2] : memref<16x12xf32, #tpu.memory_space<vmem>>, vector<16x12xf32>
    %2 = arith.truncf %1 : vector<16x12xf32> to vector<16x12xbf16>
    %c0_3 = arith.constant 0 : index
    %c0_4 = arith.constant 0 : index
    %3 = vector.load %arg5[%c0_3, %c0_4] : memref<12x32xbf16, #tpu.memory_space<vmem>>, vector<12x32xbf16>
    %cst = arith.constant dense<0.000000e+00> : vector<16x32xf32>
    %4 = tpu.matmul %2, %3, %cst {dimension_numbers = #tpu.dot_dimension_numbers<[1], [0], [0], [1], [0, 0, 1, 1], [], []>} : vector<16x12xbf16>, vector<12x32xbf16>, vector<16x32xf32> -> vector<16x32xf32>
    %c0_5 = arith.constant 0 : index
    %c0_6 = arith.constant 0 : index
    %5 = vector.load %arg6[%c0_5, %c0_6] : memref<1x32xf32, #tpu.memory_space<vmem>>, vector<1x32xf32>
    %6 = vector.broadcast %5 : vector<1x32xf32> to vector<16x32xf32>
    %7 = arith.addf %4, %6 : vector<16x32xf32>
    %c0_7 = arith.constant 0 : index
    %c0_8 = arith.constant 0 : index
    %8 = vector.load %arg7[%c0_7, %c0_8] : memref<1x32xf32, #tpu.memory_space<vmem>>, vector<1x32xf32>
    %c0_9 = arith.constant 0 : index
    %c0_10 = arith.constant 0 : index
    %9 = vector.load %arg8[%c0_9, %c0_10] : memref<1x32xf32, #tpu.memory_space<vmem>>, vector<1x32xf32>
    %cst_11 = arith.constant dense<0.000000e+00> : vector<16xf32>
    %10 = vector.multi_reduction <add>, %7, %cst_11 [1] : vector<16x32xf32> to vector<16xf32>
    %11 = vector.shape_cast %10 : vector<16xf32> to vector<16x1xf32>
    %cst_12 = arith.constant 3.200000e+01 : f32
    %12 = vector.broadcast %cst_12 : f32 to vector<16x1xf32>
    %13 = arith.divf %11, %12 : vector<16x1xf32>
    %14 = vector.broadcast %13 : vector<16x1xf32> to vector<16x32xf32>
    %15 = arith.subf %7, %14 : vector<16x32xf32>
    %16 = arith.mulf %15, %15 : vector<16x32xf32>
    %cst_13 = arith.constant dense<0.000000e+00> : vector<16xf32>
    %17 = vector.multi_reduction <add>, %16, %cst_13 [1] : vector<16x32xf32> to vector<16xf32>
    %18 = vector.shape_cast %17 : vector<16xf32> to vector<16x1xf32>
    %cst_14 = arith.constant 3.200000e+01 : f32
    %19 = vector.broadcast %cst_14 : f32 to vector<16x1xf32>
    %20 = arith.divf %18, %19 : vector<16x1xf32>
    %21 = vector.broadcast %13 : vector<16x1xf32> to vector<16x32xf32>
    %22 = arith.subf %7, %21 : vector<16x32xf32>
    %cst_15 = arith.constant 9.99999974E-6 : f32
    %23 = vector.broadcast %cst_15 : f32 to vector<16x1xf32>
    %24 = arith.addf %20, %23 : vector<16x1xf32>
    %25 = math.rsqrt %24 : vector<16x1xf32>
    %26 = vector.broadcast %25 : vector<16x1xf32> to vector<16x32xf32>
    %27 = arith.mulf %22, %26 : vector<16x32xf32>
    %28 = vector.broadcast %8 : vector<1x32xf32> to vector<16x32xf32>
    %29 = arith.mulf %27, %28 : vector<16x32xf32>
    %30 = vector.broadcast %9 : vector<1x32xf32> to vector<16x32xf32>
    %31 = arith.addf %29, %30 : vector<16x32xf32>
    %cst_16 = arith.constant 0.000000e+00 : f32
    %32 = vector.broadcast %cst_16 : f32 to vector<16x32xf32>
    %33 = arith.maximumf %31, %32 : vector<16x32xf32>
    %34 = arith.truncf %33 : vector<16x32xf32> to vector<16x32xbf16>
    %c0_17 = arith.constant 0 : index
    %c0_18 = arith.constant 0 : index
    %35 = vector.load %arg9[%c0_17, %c0_18] : memref<32x32xbf16, #tpu.memory_space<vmem>>, vector<32x32xbf16>
    %cst_19 = arith.constant dense<0.000000e+00> : vector<16x32xf32>
    %36 = tpu.matmul %34, %35, %cst_19 {dimension_numbers = #tpu.dot_dimension_numbers<[1], [0], [0], [1], [0, 0, 1, 1], [], []>} : vector<16x32xbf16>, vector<32x32xbf16>, vector<16x32xf32> -> vector<16x32xf32>
    %c0_20 = arith.constant 0 : index
    %c0_21 = arith.constant 0 : index
    %37 = vector.load %arg10[%c0_20, %c0_21] : memref<1x32xf32, #tpu.memory_space<vmem>>, vector<1x32xf32>
    %38 = vector.broadcast %37 : vector<1x32xf32> to vector<16x32xf32>
    %39 = arith.addf %36, %38 : vector<16x32xf32>
    %c0_22 = arith.constant 0 : index
    %c0_23 = arith.constant 0 : index
    %40 = vector.load %arg2[%c0_22, %c0_23] : memref<16x32xf32, #tpu.memory_space<vmem>>, vector<16x32xf32>
    %41 = arith.addf %39, %40 : vector<16x32xf32>
    %42 = arith.truncf %41 : vector<16x32xf32> to vector<16x32xbf16>
    %c0_24 = arith.constant 0 : index
    %c0_25 = arith.constant 0 : index
    %c0_26 = arith.constant 0 : index
    %43 = vector.load %arg11[%c0_24, %c0_25, %c0_26] : memref<2x32x96xbf16, #tpu.memory_space<vmem>>, vector<1x32x96xbf16>
    %44 = vector.shape_cast %43 : vector<1x32x96xbf16> to vector<32x96xbf16>
    %cst_27 = arith.constant dense<0.000000e+00> : vector<16x96xf32>
    %45 = tpu.matmul %42, %44, %cst_27 {dimension_numbers = #tpu.dot_dimension_numbers<[1], [0], [0], [1], [0, 0, 1, 1], [], []>} : vector<16x32xbf16>, vector<32x96xbf16>, vector<16x96xf32> -> vector<16x96xf32>
    %c0_28 = arith.constant 0 : index
    %c0_29 = arith.constant 0 : index
    %c0_30 = arith.constant 0 : index
    %46 = vector.load %arg12[%c0_28, %c0_29, %c0_30] : memref<2x1x96xf32, #tpu.memory_space<vmem>>, vector<1x1x96xf32>
    %47 = vector.shape_cast %46 : vector<1x1x96xf32> to vector<1x96xf32>
    %48 = vector.broadcast %47 : vector<1x96xf32> to vector<16x96xf32>
    %49 = arith.addf %45, %48 : vector<16x96xf32>
    %50 = vector.extract_strided_slice %49 {offsets = [0, 0], sizes = [16, 32], strides = [1, 1]} : vector<16x96xf32> to vector<16x32xf32>
    %cst_31 = arith.constant 0.353553385 : f32
    %51 = vector.broadcast %cst_31 : f32 to vector<16x32xf32>
    %52 = arith.mulf %50, %51 : vector<16x32xf32>
    %53 = arith.truncf %52 : vector<16x32xf32> to vector<16x32xbf16>
    %54 = vector.extract_strided_slice %49 {offsets = [0, 32], sizes = [16, 32], strides = [1, 1]} : vector<16x96xf32> to vector<16x32xf32>
    %55 = arith.truncf %54 : vector<16x32xf32> to vector<16x32xbf16>
    %56 = vector.extract_strided_slice %49 {offsets = [0, 64], sizes = [16, 32], strides = [1, 1]} : vector<16x96xf32> to vector<16x32xf32>
    %57 = arith.truncf %56 : vector<16x32xf32> to vector<16x32xbf16>
    %58 = vector.extract_strided_slice %53 {offsets = [0, 0], sizes = [16, 8], strides = [1, 1]} : vector<16x32xbf16> to vector<16x8xbf16>
    %59 = vector.extract_strided_slice %55 {offsets = [0, 0], sizes = [16, 8], strides = [1, 1]} : vector<16x32xbf16> to vector<16x8xbf16>
    %cst_32 = arith.constant dense<0.000000e+00> : vector<16x16xf32>
    %60 = tpu.matmul %58, %59, %cst_32 {dimension_numbers = #tpu.dot_dimension_numbers<[1], [1], [0], [0], [0, 0, 1, 0], [], []>} : vector<16x8xbf16>, vector<16x8xbf16>, vector<16x16xf32> -> vector<16x16xf32>
    %61 = arith.addf %60, %0 : vector<16x16xf32>
    %cst_33 = arith.constant dense<0xFF800000> : vector<16xf32>
    %62 = vector.multi_reduction <maximumf>, %61, %cst_33 [1] : vector<16x16xf32> to vector<16xf32>
    %63 = vector.shape_cast %62 : vector<16xf32> to vector<16x1xf32>
    %64 = vector.broadcast %63 : vector<16x1xf32> to vector<16x16xf32>
    %65 = arith.subf %61, %64 : vector<16x16xf32>
    %66 = math.exp %65 : vector<16x16xf32>
    %cst_34 = arith.constant dense<0.000000e+00> : vector<16xf32>
    %67 = vector.multi_reduction <add>, %66, %cst_34 [1] : vector<16x16xf32> to vector<16xf32>
    %68 = vector.shape_cast %67 : vector<16xf32> to vector<16x1xf32>
    %69 = tpu.reciprocal %68 {approx = true} : vector<16x1xf32> -> vector<16x1xf32>
    %70 = vector.broadcast %69 : vector<16x1xf32> to vector<16x16xf32>
    %71 = arith.mulf %66, %70 : vector<16x16xf32>
    %72 = arith.truncf %71 : vector<16x16xf32> to vector<16x16xbf16>
    %73 = vector.extract_strided_slice %57 {offsets = [0, 0], sizes = [16, 8], strides = [1, 1]} : vector<16x32xbf16> to vector<16x8xbf16>
    %cst_35 = arith.constant dense<0.000000e+00> : vector<16x8xf32>
    %74 = tpu.matmul %72, %73, %cst_35 {dimension_numbers = #tpu.dot_dimension_numbers<[1], [0], [0], [1], [0, 0, 1, 1], [], []>} : vector<16x16xbf16>, vector<16x8xbf16>, vector<16x8xf32> -> vector<16x8xf32>
    %75 = vector.extract_strided_slice %53 {offsets = [0, 8], sizes = [16, 8], strides = [1, 1]} : vector<16x32xbf16> to vector<16x8xbf16>
    %76 = vector.extract_strided_slice %55 {offsets = [0, 8], sizes = [16, 8], strides = [1, 1]} : vector<16x32xbf16> to vector<16x8xbf16>
    %cst_36 = arith.constant dense<0.000000e+00> : vector<16x16xf32>
    %77 = tpu.matmul %75, %76, %cst_36 {dimension_numbers = #tpu.dot_dimension_numbers<[1], [1], [0], [0], [0, 0, 1, 0], [], []>} : vector<16x8xbf16>, vector<16x8xbf16>, vector<16x16xf32> -> vector<16x16xf32>
    %78 = arith.addf %77, %0 : vector<16x16xf32>
    %cst_37 = arith.constant dense<0xFF800000> : vector<16xf32>
    %79 = vector.multi_reduction <maximumf>, %78, %cst_37 [1] : vector<16x16xf32> to vector<16xf32>
    %80 = vector.shape_cast %79 : vector<16xf32> to vector<16x1xf32>
    %81 = vector.broadcast %80 : vector<16x1xf32> to vector<16x16xf32>
    %82 = arith.subf %78, %81 : vector<16x16xf32>
    %83 = math.exp %82 : vector<16x16xf32>
    %cst_38 = arith.constant dense<0.000000e+00> : vector<16xf32>
    %84 = vector.multi_reduction <add>, %83, %cst_38 [1] : vector<16x16xf32> to vector<16xf32>
    %85 = vector.shape_cast %84 : vector<16xf32> to vector<16x1xf32>
    %86 = tpu.reciprocal %85 {approx = true} : vector<16x1xf32> -> vector<16x1xf32>
    %87 = vector.broadcast %86 : vector<16x1xf32> to vector<16x16xf32>
    %88 = arith.mulf %83, %87 : vector<16x16xf32>
    %89 = arith.truncf %88 : vector<16x16xf32> to vector<16x16xbf16>
    %90 = vector.extract_strided_slice %57 {offsets = [0, 8], sizes = [16, 8], strides = [1, 1]} : vector<16x32xbf16> to vector<16x8xbf16>
    %cst_39 = arith.constant dense<0.000000e+00> : vector<16x8xf32>
    %91 = tpu.matmul %89, %90, %cst_39 {dimension_numbers = #tpu.dot_dimension_numbers<[1], [0], [0], [1], [0, 0, 1, 1], [], []>} : vector<16x16xbf16>, vector<16x8xbf16>, vector<16x8xf32> -> vector<16x8xf32>
    %92 = vector.extract_strided_slice %53 {offsets = [0, 16], sizes = [16, 8], strides = [1, 1]} : vector<16x32xbf16> to vector<16x8xbf16>
    %93 = vector.extract_strided_slice %55 {offsets = [0, 16], sizes = [16, 8], strides = [1, 1]} : vector<16x32xbf16> to vector<16x8xbf16>
    %cst_40 = arith.constant dense<0.000000e+00> : vector<16x16xf32>
    %94 = tpu.matmul %92, %93, %cst_40 {dimension_numbers = #tpu.dot_dimension_numbers<[1], [1], [0], [0], [0, 0, 1, 0], [], []>} : vector<16x8xbf16>, vector<16x8xbf16>, vector<16x16xf32> -> vector<16x16xf32>
    %95 = arith.addf %94, %0 : vector<16x16xf32>
    %cst_41 = arith.constant dense<0xFF800000> : vector<16xf32>
    %96 = vector.multi_reduction <maximumf>, %95, %cst_41 [1] : vector<16x16xf32> to vector<16xf32>
    %97 = vector.shape_cast %96 : vector<16xf32> to vector<16x1xf32>
    %98 = vector.broadcast %97 : vector<16x1xf32> to vector<16x16xf32>
    %99 = arith.subf %95, %98 : vector<16x16xf32>
    %100 = math.exp %99 : vector<16x16xf32>
    %cst_42 = arith.constant dense<0.000000e+00> : vector<16xf32>
    %101 = vector.multi_reduction <add>, %100, %cst_42 [1] : vector<16x16xf32> to vector<16xf32>
    %102 = vector.shape_cast %101 : vector<16xf32> to vector<16x1xf32>
    %103 = tpu.reciprocal %102 {approx = true} : vector<16x1xf32> -> vector<16x1xf32>
    %104 = vector.broadcast %103 : vector<16x1xf32> to vector<16x16xf32>
    %105 = arith.mulf %100, %104 : vector<16x16xf32>
    %106 = arith.truncf %105 : vector<16x16xf32> to vector<16x16xbf16>
    %107 = vector.extract_strided_slice %57 {offsets = [0, 16], sizes = [16, 8], strides = [1, 1]} : vector<16x32xbf16> to vector<16x8xbf16>
    %cst_43 = arith.constant dense<0.000000e+00> : vector<16x8xf32>
    %108 = tpu.matmul %106, %107, %cst_43 {dimension_numbers = #tpu.dot_dimension_numbers<[1], [0], [0], [1], [0, 0, 1, 1], [], []>} : vector<16x16xbf16>, vector<16x8xbf16>, vector<16x8xf32> -> vector<16x8xf32>
    %109 = vector.extract_strided_slice %53 {offsets = [0, 24], sizes = [16, 8], strides = [1, 1]} : vector<16x32xbf16> to vector<16x8xbf16>
    %110 = vector.extract_strided_slice %55 {offsets = [0, 24], sizes = [16, 8], strides = [1, 1]} : vector<16x32xbf16> to vector<16x8xbf16>
    %cst_44 = arith.constant dense<0.000000e+00> : vector<16x16xf32>
    %111 = tpu.matmul %109, %110, %cst_44 {dimension_numbers = #tpu.dot_dimension_numbers<[1], [1], [0], [0], [0, 0, 1, 0], [], []>} : vector<16x8xbf16>, vector<16x8xbf16>, vector<16x16xf32> -> vector<16x16xf32>
    %112 = arith.addf %111, %0 : vector<16x16xf32>
    %cst_45 = arith.constant dense<0xFF800000> : vector<16xf32>
    %113 = vector.multi_reduction <maximumf>, %112, %cst_45 [1] : vector<16x16xf32> to vector<16xf32>
    %114 = vector.shape_cast %113 : vector<16xf32> to vector<16x1xf32>
    %115 = vector.broadcast %114 : vector<16x1xf32> to vector<16x16xf32>
    %116 = arith.subf %112, %115 : vector<16x16xf32>
    %117 = math.exp %116 : vector<16x16xf32>
    %cst_46 = arith.constant dense<0.000000e+00> : vector<16xf32>
    %118 = vector.multi_reduction <add>, %117, %cst_46 [1] : vector<16x16xf32> to vector<16xf32>
    %119 = vector.shape_cast %118 : vector<16xf32> to vector<16x1xf32>
    %120 = tpu.reciprocal %119 {approx = true} : vector<16x1xf32> -> vector<16x1xf32>
    %121 = vector.broadcast %120 : vector<16x1xf32> to vector<16x16xf32>
    %122 = arith.mulf %117, %121 : vector<16x16xf32>
    %123 = arith.truncf %122 : vector<16x16xf32> to vector<16x16xbf16>
    %124 = vector.extract_strided_slice %57 {offsets = [0, 24], sizes = [16, 8], strides = [1, 1]} : vector<16x32xbf16> to vector<16x8xbf16>
    %cst_47 = arith.constant dense<0.000000e+00> : vector<16x8xf32>
    %125 = tpu.matmul %123, %124, %cst_47 {dimension_numbers = #tpu.dot_dimension_numbers<[1], [0], [0], [1], [0, 0, 1, 1], [], []>} : vector<16x16xbf16>, vector<16x8xbf16>, vector<16x8xf32> -> vector<16x8xf32>
    %126 = tpu.concatenate %74, %91, %108, %125 in 1 : vector<16x8xf32>, vector<16x8xf32>, vector<16x8xf32>, vector<16x8xf32> -> vector<16x32xf32>
    %127 = arith.truncf %126 : vector<16x32xf32> to vector<16x32xbf16>
    %c0_48 = arith.constant 0 : index
    %c0_49 = arith.constant 0 : index
    %c0_50 = arith.constant 0 : index
    %128 = vector.load %arg13[%c0_48, %c0_49, %c0_50] : memref<2x32x32xbf16, #tpu.memory_space<vmem>>, vector<1x32x32xbf16>
    %129 = vector.shape_cast %128 : vector<1x32x32xbf16> to vector<32x32xbf16>
    %cst_51 = arith.constant dense<0.000000e+00> : vector<16x32xf32>
    %130 = tpu.matmul %127, %129, %cst_51 {dimension_numbers = #tpu.dot_dimension_numbers<[1], [0], [0], [1], [0, 0, 1, 1], [], []>} : vector<16x32xbf16>, vector<32x32xbf16>, vector<16x32xf32> -> vector<16x32xf32>
    %c0_52 = arith.constant 0 : index
    %c0_53 = arith.constant 0 : index
    %c0_54 = arith.constant 0 : index
    %131 = vector.load %arg14[%c0_52, %c0_53, %c0_54] : memref<2x1x32xf32, #tpu.memory_space<vmem>>, vector<1x1x32xf32>
    %132 = vector.shape_cast %131 : vector<1x1x32xf32> to vector<1x32xf32>
    %133 = vector.broadcast %132 : vector<1x32xf32> to vector<16x32xf32>
    %134 = arith.addf %130, %133 : vector<16x32xf32>
    %135 = arith.addf %41, %134 : vector<16x32xf32>
    %c0_55 = arith.constant 0 : index
    %c0_56 = arith.constant 0 : index
    %c0_57 = arith.constant 0 : index
    %136 = vector.load %arg15[%c0_55, %c0_56, %c0_57] : memref<2x1x32xf32, #tpu.memory_space<vmem>>, vector<1x1x32xf32>
    %137 = vector.shape_cast %136 : vector<1x1x32xf32> to vector<1x32xf32>
    %c0_58 = arith.constant 0 : index
    %c0_59 = arith.constant 0 : index
    %c0_60 = arith.constant 0 : index
    %138 = vector.load %arg16[%c0_58, %c0_59, %c0_60] : memref<2x1x32xf32, #tpu.memory_space<vmem>>, vector<1x1x32xf32>
    %139 = vector.shape_cast %138 : vector<1x1x32xf32> to vector<1x32xf32>
    %cst_61 = arith.constant dense<0.000000e+00> : vector<16xf32>
    %140 = vector.multi_reduction <add>, %135, %cst_61 [1] : vector<16x32xf32> to vector<16xf32>
    %141 = vector.shape_cast %140 : vector<16xf32> to vector<16x1xf32>
    %cst_62 = arith.constant 3.200000e+01 : f32
    %142 = vector.broadcast %cst_62 : f32 to vector<16x1xf32>
    %143 = arith.divf %141, %142 : vector<16x1xf32>
    %144 = vector.broadcast %143 : vector<16x1xf32> to vector<16x32xf32>
    %145 = arith.subf %135, %144 : vector<16x32xf32>
    %146 = arith.mulf %145, %145 : vector<16x32xf32>
    %cst_63 = arith.constant dense<0.000000e+00> : vector<16xf32>
    %147 = vector.multi_reduction <add>, %146, %cst_63 [1] : vector<16x32xf32> to vector<16xf32>
    %148 = vector.shape_cast %147 : vector<16xf32> to vector<16x1xf32>
    %cst_64 = arith.constant 3.200000e+01 : f32
    %149 = vector.broadcast %cst_64 : f32 to vector<16x1xf32>
    %150 = arith.divf %148, %149 : vector<16x1xf32>
    %151 = vector.broadcast %143 : vector<16x1xf32> to vector<16x32xf32>
    %152 = arith.subf %135, %151 : vector<16x32xf32>
    %cst_65 = arith.constant 9.99999974E-6 : f32
    %153 = vector.broadcast %cst_65 : f32 to vector<16x1xf32>
    %154 = arith.addf %150, %153 : vector<16x1xf32>
    %155 = math.rsqrt %154 : vector<16x1xf32>
    %156 = vector.broadcast %155 : vector<16x1xf32> to vector<16x32xf32>
    %157 = arith.mulf %152, %156 : vector<16x32xf32>
    %158 = vector.broadcast %137 : vector<1x32xf32> to vector<16x32xf32>
    %159 = arith.mulf %157, %158 : vector<16x32xf32>
    %160 = vector.broadcast %139 : vector<1x32xf32> to vector<16x32xf32>
    %161 = arith.addf %159, %160 : vector<16x32xf32>
    %162 = arith.truncf %161 : vector<16x32xf32> to vector<16x32xbf16>
    %c0_66 = arith.constant 0 : index
    %c0_67 = arith.constant 0 : index
    %c0_68 = arith.constant 0 : index
    %163 = vector.load %arg17[%c0_66, %c0_67, %c0_68] : memref<2x32x32xbf16, #tpu.memory_space<vmem>>, vector<1x32x32xbf16>
    %164 = vector.shape_cast %163 : vector<1x32x32xbf16> to vector<32x32xbf16>
    %cst_69 = arith.constant dense<0.000000e+00> : vector<16x32xf32>
    %165 = tpu.matmul %162, %164, %cst_69 {dimension_numbers = #tpu.dot_dimension_numbers<[1], [0], [0], [1], [0, 0, 1, 1], [], []>} : vector<16x32xbf16>, vector<32x32xbf16>, vector<16x32xf32> -> vector<16x32xf32>
    %c0_70 = arith.constant 0 : index
    %c0_71 = arith.constant 0 : index
    %c0_72 = arith.constant 0 : index
    %166 = vector.load %arg18[%c0_70, %c0_71, %c0_72] : memref<2x1x32xf32, #tpu.memory_space<vmem>>, vector<1x1x32xf32>
    %167 = vector.shape_cast %166 : vector<1x1x32xf32> to vector<1x32xf32>
    %168 = vector.broadcast %167 : vector<1x32xf32> to vector<16x32xf32>
    %169 = arith.addf %165, %168 : vector<16x32xf32>
    %cst_73 = arith.constant 0.000000e+00 : f32
    %170 = vector.broadcast %cst_73 : f32 to vector<16x32xf32>
    %171 = arith.maximumf %169, %170 : vector<16x32xf32>
    %172 = arith.truncf %171 : vector<16x32xf32> to vector<16x32xbf16>
    %c0_74 = arith.constant 0 : index
    %c0_75 = arith.constant 0 : index
    %c0_76 = arith.constant 0 : index
    %173 = vector.load %arg19[%c0_74, %c0_75, %c0_76] : memref<2x32x32xbf16, #tpu.memory_space<vmem>>, vector<1x32x32xbf16>
    %174 = vector.shape_cast %173 : vector<1x32x32xbf16> to vector<32x32xbf16>
    %cst_77 = arith.constant dense<0.000000e+00> : vector<16x32xf32>
    %175 = tpu.matmul %172, %174, %cst_77 {dimension_numbers = #tpu.dot_dimension_numbers<[1], [0], [0], [1], [0, 0, 1, 1], [], []>} : vector<16x32xbf16>, vector<32x32xbf16>, vector<16x32xf32> -> vector<16x32xf32>
    %c0_78 = arith.constant 0 : index
    %c0_79 = arith.constant 0 : index
    %c0_80 = arith.constant 0 : index
    %176 = vector.load %arg20[%c0_78, %c0_79, %c0_80] : memref<2x1x32xf32, #tpu.memory_space<vmem>>, vector<1x1x32xf32>
    %177 = vector.shape_cast %176 : vector<1x1x32xf32> to vector<1x32xf32>
    %178 = vector.broadcast %177 : vector<1x32xf32> to vector<16x32xf32>
    %179 = arith.addf %175, %178 : vector<16x32xf32>
    %180 = arith.addf %161, %179 : vector<16x32xf32>
    %c0_81 = arith.constant 0 : index
    %c0_82 = arith.constant 0 : index
    %c0_83 = arith.constant 0 : index
    %181 = vector.load %arg21[%c0_81, %c0_82, %c0_83] : memref<2x1x32xf32, #tpu.memory_space<vmem>>, vector<1x1x32xf32>
    %182 = vector.shape_cast %181 : vector<1x1x32xf32> to vector<1x32xf32>
    %c0_84 = arith.constant 0 : index
    %c0_85 = arith.constant 0 : index
    %c0_86 = arith.constant 0 : index
    %183 = vector.load %arg22[%c0_84, %c0_85, %c0_86] : memref<2x1x32xf32, #tpu.memory_space<vmem>>, vector<1x1x32xf32>
    %184 = vector.shape_cast %183 : vector<1x1x32xf32> to vector<1x32xf32>
    %cst_87 = arith.constant dense<0.000000e+00> : vector<16xf32>
    %185 = vector.multi_reduction <add>, %180, %cst_87 [1] : vector<16x32xf32> to vector<16xf32>
    %186 = vector.shape_cast %185 : vector<16xf32> to vector<16x1xf32>
    %cst_88 = arith.constant 3.200000e+01 : f32
    %187 = vector.broadcast %cst_88 : f32 to vector<16x1xf32>
    %188 = arith.divf %186, %187 : vector<16x1xf32>
    %189 = vector.broadcast %188 : vector<16x1xf32> to vector<16x32xf32>
    %190 = arith.subf %180, %189 : vector<16x32xf32>
    %191 = arith.mulf %190, %190 : vector<16x32xf32>
    %cst_89 = arith.constant dense<0.000000e+00> : vector<16xf32>
    %192 = vector.multi_reduction <add>, %191, %cst_89 [1] : vector<16x32xf32> to vector<16xf32>
    %193 = vector.shape_cast %192 : vector<16xf32> to vector<16x1xf32>
    %cst_90 = arith.constant 3.200000e+01 : f32
    %194 = vector.broadcast %cst_90 : f32 to vector<16x1xf32>
    %195 = arith.divf %193, %194 : vector<16x1xf32>
    %196 = vector.broadcast %188 : vector<16x1xf32> to vector<16x32xf32>
    %197 = arith.subf %180, %196 : vector<16x32xf32>
    %cst_91 = arith.constant 9.99999974E-6 : f32
    %198 = vector.broadcast %cst_91 : f32 to vector<16x1xf32>
    %199 = arith.addf %195, %198 : vector<16x1xf32>
    %200 = math.rsqrt %199 : vector<16x1xf32>
    %201 = vector.broadcast %200 : vector<16x1xf32> to vector<16x32xf32>
    %202 = arith.mulf %197, %201 : vector<16x32xf32>
    %203 = vector.broadcast %182 : vector<1x32xf32> to vector<16x32xf32>
    %204 = arith.mulf %202, %203 : vector<16x32xf32>
    %205 = vector.broadcast %184 : vector<1x32xf32> to vector<16x32xf32>
    %206 = arith.addf %204, %205 : vector<16x32xf32>
    %207 = arith.truncf %206 : vector<16x32xf32> to vector<16x32xbf16>
    %c1 = arith.constant 1 : index
    %c0_92 = arith.constant 0 : index
    %c0_93 = arith.constant 0 : index
    %208 = vector.load %arg11[%c1, %c0_92, %c0_93] : memref<2x32x96xbf16, #tpu.memory_space<vmem>>, vector<1x32x96xbf16>
    %209 = vector.shape_cast %208 : vector<1x32x96xbf16> to vector<32x96xbf16>
    %cst_94 = arith.constant dense<0.000000e+00> : vector<16x96xf32>
    %210 = tpu.matmul %207, %209, %cst_94 {dimension_numbers = #tpu.dot_dimension_numbers<[1], [0], [0], [1], [0, 0, 1, 1], [], []>} : vector<16x32xbf16>, vector<32x96xbf16>, vector<16x96xf32> -> vector<16x96xf32>
    %c1_95 = arith.constant 1 : index
    %c0_96 = arith.constant 0 : index
    %c0_97 = arith.constant 0 : index
    %211 = vector.load %arg12[%c1_95, %c0_96, %c0_97] : memref<2x1x96xf32, #tpu.memory_space<vmem>>, vector<1x1x96xf32>
    %212 = vector.shape_cast %211 : vector<1x1x96xf32> to vector<1x96xf32>
    %213 = vector.broadcast %212 : vector<1x96xf32> to vector<16x96xf32>
    %214 = arith.addf %210, %213 : vector<16x96xf32>
    %215 = vector.extract_strided_slice %214 {offsets = [0, 0], sizes = [16, 32], strides = [1, 1]} : vector<16x96xf32> to vector<16x32xf32>
    %cst_98 = arith.constant 0.353553385 : f32
    %216 = vector.broadcast %cst_98 : f32 to vector<16x32xf32>
    %217 = arith.mulf %215, %216 : vector<16x32xf32>
    %218 = arith.truncf %217 : vector<16x32xf32> to vector<16x32xbf16>
    %219 = vector.extract_strided_slice %214 {offsets = [0, 32], sizes = [16, 32], strides = [1, 1]} : vector<16x96xf32> to vector<16x32xf32>
    %220 = arith.truncf %219 : vector<16x32xf32> to vector<16x32xbf16>
    %221 = vector.extract_strided_slice %214 {offsets = [0, 64], sizes = [16, 32], strides = [1, 1]} : vector<16x96xf32> to vector<16x32xf32>
    %222 = arith.truncf %221 : vector<16x32xf32> to vector<16x32xbf16>
    %223 = vector.extract_strided_slice %218 {offsets = [0, 0], sizes = [16, 8], strides = [1, 1]} : vector<16x32xbf16> to vector<16x8xbf16>
    %224 = vector.extract_strided_slice %220 {offsets = [0, 0], sizes = [16, 8], strides = [1, 1]} : vector<16x32xbf16> to vector<16x8xbf16>
    %cst_99 = arith.constant dense<0.000000e+00> : vector<16x16xf32>
    %225 = tpu.matmul %223, %224, %cst_99 {dimension_numbers = #tpu.dot_dimension_numbers<[1], [1], [0], [0], [0, 0, 1, 0], [], []>} : vector<16x8xbf16>, vector<16x8xbf16>, vector<16x16xf32> -> vector<16x16xf32>
    %226 = arith.addf %225, %0 : vector<16x16xf32>
    %cst_100 = arith.constant dense<0xFF800000> : vector<16xf32>
    %227 = vector.multi_reduction <maximumf>, %226, %cst_100 [1] : vector<16x16xf32> to vector<16xf32>
    %228 = vector.shape_cast %227 : vector<16xf32> to vector<16x1xf32>
    %229 = vector.broadcast %228 : vector<16x1xf32> to vector<16x16xf32>
    %230 = arith.subf %226, %229 : vector<16x16xf32>
    %231 = math.exp %230 : vector<16x16xf32>
    %cst_101 = arith.constant dense<0.000000e+00> : vector<16xf32>
    %232 = vector.multi_reduction <add>, %231, %cst_101 [1] : vector<16x16xf32> to vector<16xf32>
    %233 = vector.shape_cast %232 : vector<16xf32> to vector<16x1xf32>
    %234 = tpu.reciprocal %233 {approx = true} : vector<16x1xf32> -> vector<16x1xf32>
    %235 = vector.broadcast %234 : vector<16x1xf32> to vector<16x16xf32>
    %236 = arith.mulf %231, %235 : vector<16x16xf32>
    %237 = arith.truncf %236 : vector<16x16xf32> to vector<16x16xbf16>
    %238 = vector.extract_strided_slice %222 {offsets = [0, 0], sizes = [16, 8], strides = [1, 1]} : vector<16x32xbf16> to vector<16x8xbf16>
    %cst_102 = arith.constant dense<0.000000e+00> : vector<16x8xf32>
    %239 = tpu.matmul %237, %238, %cst_102 {dimension_numbers = #tpu.dot_dimension_numbers<[1], [0], [0], [1], [0, 0, 1, 1], [], []>} : vector<16x16xbf16>, vector<16x8xbf16>, vector<16x8xf32> -> vector<16x8xf32>
    %240 = vector.extract_strided_slice %218 {offsets = [0, 8], sizes = [16, 8], strides = [1, 1]} : vector<16x32xbf16> to vector<16x8xbf16>
    %241 = vector.extract_strided_slice %220 {offsets = [0, 8], sizes = [16, 8], strides = [1, 1]} : vector<16x32xbf16> to vector<16x8xbf16>
    %cst_103 = arith.constant dense<0.000000e+00> : vector<16x16xf32>
    %242 = tpu.matmul %240, %241, %cst_103 {dimension_numbers = #tpu.dot_dimension_numbers<[1], [1], [0], [0], [0, 0, 1, 0], [], []>} : vector<16x8xbf16>, vector<16x8xbf16>, vector<16x16xf32> -> vector<16x16xf32>
    %243 = arith.addf %242, %0 : vector<16x16xf32>
    %cst_104 = arith.constant dense<0xFF800000> : vector<16xf32>
    %244 = vector.multi_reduction <maximumf>, %243, %cst_104 [1] : vector<16x16xf32> to vector<16xf32>
    %245 = vector.shape_cast %244 : vector<16xf32> to vector<16x1xf32>
    %246 = vector.broadcast %245 : vector<16x1xf32> to vector<16x16xf32>
    %247 = arith.subf %243, %246 : vector<16x16xf32>
    %248 = math.exp %247 : vector<16x16xf32>
    %cst_105 = arith.constant dense<0.000000e+00> : vector<16xf32>
    %249 = vector.multi_reduction <add>, %248, %cst_105 [1] : vector<16x16xf32> to vector<16xf32>
    %250 = vector.shape_cast %249 : vector<16xf32> to vector<16x1xf32>
    %251 = tpu.reciprocal %250 {approx = true} : vector<16x1xf32> -> vector<16x1xf32>
    %252 = vector.broadcast %251 : vector<16x1xf32> to vector<16x16xf32>
    %253 = arith.mulf %248, %252 : vector<16x16xf32>
    %254 = arith.truncf %253 : vector<16x16xf32> to vector<16x16xbf16>
    %255 = vector.extract_strided_slice %222 {offsets = [0, 8], sizes = [16, 8], strides = [1, 1]} : vector<16x32xbf16> to vector<16x8xbf16>
    %cst_106 = arith.constant dense<0.000000e+00> : vector<16x8xf32>
    %256 = tpu.matmul %254, %255, %cst_106 {dimension_numbers = #tpu.dot_dimension_numbers<[1], [0], [0], [1], [0, 0, 1, 1], [], []>} : vector<16x16xbf16>, vector<16x8xbf16>, vector<16x8xf32> -> vector<16x8xf32>
    %257 = vector.extract_strided_slice %218 {offsets = [0, 16], sizes = [16, 8], strides = [1, 1]} : vector<16x32xbf16> to vector<16x8xbf16>
    %258 = vector.extract_strided_slice %220 {offsets = [0, 16], sizes = [16, 8], strides = [1, 1]} : vector<16x32xbf16> to vector<16x8xbf16>
    %cst_107 = arith.constant dense<0.000000e+00> : vector<16x16xf32>
    %259 = tpu.matmul %257, %258, %cst_107 {dimension_numbers = #tpu.dot_dimension_numbers<[1], [1], [0], [0], [0, 0, 1, 0], [], []>} : vector<16x8xbf16>, vector<16x8xbf16>, vector<16x16xf32> -> vector<16x16xf32>
    %260 = arith.addf %259, %0 : vector<16x16xf32>
    %cst_108 = arith.constant dense<0xFF800000> : vector<16xf32>
    %261 = vector.multi_reduction <maximumf>, %260, %cst_108 [1] : vector<16x16xf32> to vector<16xf32>
    %262 = vector.shape_cast %261 : vector<16xf32> to vector<16x1xf32>
    %263 = vector.broadcast %262 : vector<16x1xf32> to vector<16x16xf32>
    %264 = arith.subf %260, %263 : vector<16x16xf32>
    %265 = math.exp %264 : vector<16x16xf32>
    %cst_109 = arith.constant dense<0.000000e+00> : vector<16xf32>
    %266 = vector.multi_reduction <add>, %265, %cst_109 [1] : vector<16x16xf32> to vector<16xf32>
    %267 = vector.shape_cast %266 : vector<16xf32> to vector<16x1xf32>
    %268 = tpu.reciprocal %267 {approx = true} : vector<16x1xf32> -> vector<16x1xf32>
    %269 = vector.broadcast %268 : vector<16x1xf32> to vector<16x16xf32>
    %270 = arith.mulf %265, %269 : vector<16x16xf32>
    %271 = arith.truncf %270 : vector<16x16xf32> to vector<16x16xbf16>
    %272 = vector.extract_strided_slice %222 {offsets = [0, 16], sizes = [16, 8], strides = [1, 1]} : vector<16x32xbf16> to vector<16x8xbf16>
    %cst_110 = arith.constant dense<0.000000e+00> : vector<16x8xf32>
    %273 = tpu.matmul %271, %272, %cst_110 {dimension_numbers = #tpu.dot_dimension_numbers<[1], [0], [0], [1], [0, 0, 1, 1], [], []>} : vector<16x16xbf16>, vector<16x8xbf16>, vector<16x8xf32> -> vector<16x8xf32>
    %274 = vector.extract_strided_slice %218 {offsets = [0, 24], sizes = [16, 8], strides = [1, 1]} : vector<16x32xbf16> to vector<16x8xbf16>
    %275 = vector.extract_strided_slice %220 {offsets = [0, 24], sizes = [16, 8], strides = [1, 1]} : vector<16x32xbf16> to vector<16x8xbf16>
    %cst_111 = arith.constant dense<0.000000e+00> : vector<16x16xf32>
    %276 = tpu.matmul %274, %275, %cst_111 {dimension_numbers = #tpu.dot_dimension_numbers<[1], [1], [0], [0], [0, 0, 1, 0], [], []>} : vector<16x8xbf16>, vector<16x8xbf16>, vector<16x16xf32> -> vector<16x16xf32>
    %277 = arith.addf %276, %0 : vector<16x16xf32>
    %cst_112 = arith.constant dense<0xFF800000> : vector<16xf32>
    %278 = vector.multi_reduction <maximumf>, %277, %cst_112 [1] : vector<16x16xf32> to vector<16xf32>
    %279 = vector.shape_cast %278 : vector<16xf32> to vector<16x1xf32>
    %280 = vector.broadcast %279 : vector<16x1xf32> to vector<16x16xf32>
    %281 = arith.subf %277, %280 : vector<16x16xf32>
    %282 = math.exp %281 : vector<16x16xf32>
    %cst_113 = arith.constant dense<0.000000e+00> : vector<16xf32>
    %283 = vector.multi_reduction <add>, %282, %cst_113 [1] : vector<16x16xf32> to vector<16xf32>
    %284 = vector.shape_cast %283 : vector<16xf32> to vector<16x1xf32>
    %285 = tpu.reciprocal %284 {approx = true} : vector<16x1xf32> -> vector<16x1xf32>
    %286 = vector.broadcast %285 : vector<16x1xf32> to vector<16x16xf32>
    %287 = arith.mulf %282, %286 : vector<16x16xf32>
    %288 = arith.truncf %287 : vector<16x16xf32> to vector<16x16xbf16>
    %289 = vector.extract_strided_slice %222 {offsets = [0, 24], sizes = [16, 8], strides = [1, 1]} : vector<16x32xbf16> to vector<16x8xbf16>
    %cst_114 = arith.constant dense<0.000000e+00> : vector<16x8xf32>
    %290 = tpu.matmul %288, %289, %cst_114 {dimension_numbers = #tpu.dot_dimension_numbers<[1], [0], [0], [1], [0, 0, 1, 1], [], []>} : vector<16x16xbf16>, vector<16x8xbf16>, vector<16x8xf32> -> vector<16x8xf32>
    %291 = tpu.concatenate %239, %256, %273, %290 in 1 : vector<16x8xf32>, vector<16x8xf32>, vector<16x8xf32>, vector<16x8xf32> -> vector<16x32xf32>
    %292 = arith.truncf %291 : vector<16x32xf32> to vector<16x32xbf16>
    %c1_115 = arith.constant 1 : index
    %c0_116 = arith.constant 0 : index
    %c0_117 = arith.constant 0 : index
    %293 = vector.load %arg13[%c1_115, %c0_116, %c0_117] : memref<2x32x32xbf16, #tpu.memory_space<vmem>>, vector<1x32x32xbf16>
    %294 = vector.shape_cast %293 : vector<1x32x32xbf16> to vector<32x32xbf16>
    %cst_118 = arith.constant dense<0.000000e+00> : vector<16x32xf32>
    %295 = tpu.matmul %292, %294, %cst_118 {dimension_numbers = #tpu.dot_dimension_numbers<[1], [0], [0], [1], [0, 0, 1, 1], [], []>} : vector<16x32xbf16>, vector<32x32xbf16>, vector<16x32xf32> -> vector<16x32xf32>
    %c1_119 = arith.constant 1 : index
    %c0_120 = arith.constant 0 : index
    %c0_121 = arith.constant 0 : index
    %296 = vector.load %arg14[%c1_119, %c0_120, %c0_121] : memref<2x1x32xf32, #tpu.memory_space<vmem>>, vector<1x1x32xf32>
    %297 = vector.shape_cast %296 : vector<1x1x32xf32> to vector<1x32xf32>
    %298 = vector.broadcast %297 : vector<1x32xf32> to vector<16x32xf32>
    %299 = arith.addf %295, %298 : vector<16x32xf32>
    %300 = arith.addf %206, %299 : vector<16x32xf32>
    %c1_122 = arith.constant 1 : index
    %c0_123 = arith.constant 0 : index
    %c0_124 = arith.constant 0 : index
    %301 = vector.load %arg15[%c1_122, %c0_123, %c0_124] : memref<2x1x32xf32, #tpu.memory_space<vmem>>, vector<1x1x32xf32>
    %302 = vector.shape_cast %301 : vector<1x1x32xf32> to vector<1x32xf32>
    %c1_125 = arith.constant 1 : index
    %c0_126 = arith.constant 0 : index
    %c0_127 = arith.constant 0 : index
    %303 = vector.load %arg16[%c1_125, %c0_126, %c0_127] : memref<2x1x32xf32, #tpu.memory_space<vmem>>, vector<1x1x32xf32>
    %304 = vector.shape_cast %303 : vector<1x1x32xf32> to vector<1x32xf32>
    %cst_128 = arith.constant dense<0.000000e+00> : vector<16xf32>
    %305 = vector.multi_reduction <add>, %300, %cst_128 [1] : vector<16x32xf32> to vector<16xf32>
    %306 = vector.shape_cast %305 : vector<16xf32> to vector<16x1xf32>
    %cst_129 = arith.constant 3.200000e+01 : f32
    %307 = vector.broadcast %cst_129 : f32 to vector<16x1xf32>
    %308 = arith.divf %306, %307 : vector<16x1xf32>
    %309 = vector.broadcast %308 : vector<16x1xf32> to vector<16x32xf32>
    %310 = arith.subf %300, %309 : vector<16x32xf32>
    %311 = arith.mulf %310, %310 : vector<16x32xf32>
    %cst_130 = arith.constant dense<0.000000e+00> : vector<16xf32>
    %312 = vector.multi_reduction <add>, %311, %cst_130 [1] : vector<16x32xf32> to vector<16xf32>
    %313 = vector.shape_cast %312 : vector<16xf32> to vector<16x1xf32>
    %cst_131 = arith.constant 3.200000e+01 : f32
    %314 = vector.broadcast %cst_131 : f32 to vector<16x1xf32>
    %315 = arith.divf %313, %314 : vector<16x1xf32>
    %316 = vector.broadcast %308 : vector<16x1xf32> to vector<16x32xf32>
    %317 = arith.subf %300, %316 : vector<16x32xf32>
    %cst_132 = arith.constant 9.99999974E-6 : f32
    %318 = vector.broadcast %cst_132 : f32 to vector<16x1xf32>
    %319 = arith.addf %315, %318 : vector<16x1xf32>
    %320 = math.rsqrt %319 : vector<16x1xf32>
    %321 = vector.broadcast %320 : vector<16x1xf32> to vector<16x32xf32>
    %322 = arith.mulf %317, %321 : vector<16x32xf32>
    %323 = vector.broadcast %302 : vector<1x32xf32> to vector<16x32xf32>
    %324 = arith.mulf %322, %323 : vector<16x32xf32>
    %325 = vector.broadcast %304 : vector<1x32xf32> to vector<16x32xf32>
    %326 = arith.addf %324, %325 : vector<16x32xf32>
    %327 = arith.truncf %326 : vector<16x32xf32> to vector<16x32xbf16>
    %c1_133 = arith.constant 1 : index
    %c0_134 = arith.constant 0 : index
    %c0_135 = arith.constant 0 : index
    %328 = vector.load %arg17[%c1_133, %c0_134, %c0_135] : memref<2x32x32xbf16, #tpu.memory_space<vmem>>, vector<1x32x32xbf16>
    %329 = vector.shape_cast %328 : vector<1x32x32xbf16> to vector<32x32xbf16>
    %cst_136 = arith.constant dense<0.000000e+00> : vector<16x32xf32>
    %330 = tpu.matmul %327, %329, %cst_136 {dimension_numbers = #tpu.dot_dimension_numbers<[1], [0], [0], [1], [0, 0, 1, 1], [], []>} : vector<16x32xbf16>, vector<32x32xbf16>, vector<16x32xf32> -> vector<16x32xf32>
    %c1_137 = arith.constant 1 : index
    %c0_138 = arith.constant 0 : index
    %c0_139 = arith.constant 0 : index
    %331 = vector.load %arg18[%c1_137, %c0_138, %c0_139] : memref<2x1x32xf32, #tpu.memory_space<vmem>>, vector<1x1x32xf32>
    %332 = vector.shape_cast %331 : vector<1x1x32xf32> to vector<1x32xf32>
    %333 = vector.broadcast %332 : vector<1x32xf32> to vector<16x32xf32>
    %334 = arith.addf %330, %333 : vector<16x32xf32>
    %cst_140 = arith.constant 0.000000e+00 : f32
    %335 = vector.broadcast %cst_140 : f32 to vector<16x32xf32>
    %336 = arith.maximumf %334, %335 : vector<16x32xf32>
    %337 = arith.truncf %336 : vector<16x32xf32> to vector<16x32xbf16>
    %c1_141 = arith.constant 1 : index
    %c0_142 = arith.constant 0 : index
    %c0_143 = arith.constant 0 : index
    %338 = vector.load %arg19[%c1_141, %c0_142, %c0_143] : memref<2x32x32xbf16, #tpu.memory_space<vmem>>, vector<1x32x32xbf16>
    %339 = vector.shape_cast %338 : vector<1x32x32xbf16> to vector<32x32xbf16>
    %cst_144 = arith.constant dense<0.000000e+00> : vector<16x32xf32>
    %340 = tpu.matmul %337, %339, %cst_144 {dimension_numbers = #tpu.dot_dimension_numbers<[1], [0], [0], [1], [0, 0, 1, 1], [], []>} : vector<16x32xbf16>, vector<32x32xbf16>, vector<16x32xf32> -> vector<16x32xf32>
    %c1_145 = arith.constant 1 : index
    %c0_146 = arith.constant 0 : index
    %c0_147 = arith.constant 0 : index
    %341 = vector.load %arg20[%c1_145, %c0_146, %c0_147] : memref<2x1x32xf32, #tpu.memory_space<vmem>>, vector<1x1x32xf32>
    %342 = vector.shape_cast %341 : vector<1x1x32xf32> to vector<1x32xf32>
    %343 = vector.broadcast %342 : vector<1x32xf32> to vector<16x32xf32>
    %344 = arith.addf %340, %343 : vector<16x32xf32>
    %345 = arith.addf %326, %344 : vector<16x32xf32>
    %c1_148 = arith.constant 1 : index
    %c0_149 = arith.constant 0 : index
    %c0_150 = arith.constant 0 : index
    %346 = vector.load %arg21[%c1_148, %c0_149, %c0_150] : memref<2x1x32xf32, #tpu.memory_space<vmem>>, vector<1x1x32xf32>
    %347 = vector.shape_cast %346 : vector<1x1x32xf32> to vector<1x32xf32>
    %c1_151 = arith.constant 1 : index
    %c0_152 = arith.constant 0 : index
    %c0_153 = arith.constant 0 : index
    %348 = vector.load %arg22[%c1_151, %c0_152, %c0_153] : memref<2x1x32xf32, #tpu.memory_space<vmem>>, vector<1x1x32xf32>
    %349 = vector.shape_cast %348 : vector<1x1x32xf32> to vector<1x32xf32>
    %cst_154 = arith.constant dense<0.000000e+00> : vector<16xf32>
    %350 = vector.multi_reduction <add>, %345, %cst_154 [1] : vector<16x32xf32> to vector<16xf32>
    %351 = vector.shape_cast %350 : vector<16xf32> to vector<16x1xf32>
    %cst_155 = arith.constant 3.200000e+01 : f32
    %352 = vector.broadcast %cst_155 : f32 to vector<16x1xf32>
    %353 = arith.divf %351, %352 : vector<16x1xf32>
    %354 = vector.broadcast %353 : vector<16x1xf32> to vector<16x32xf32>
    %355 = arith.subf %345, %354 : vector<16x32xf32>
    %356 = arith.mulf %355, %355 : vector<16x32xf32>
    %cst_156 = arith.constant dense<0.000000e+00> : vector<16xf32>
    %357 = vector.multi_reduction <add>, %356, %cst_156 [1] : vector<16x32xf32> to vector<16xf32>
    %358 = vector.shape_cast %357 : vector<16xf32> to vector<16x1xf32>
    %cst_157 = arith.constant 3.200000e+01 : f32
    %359 = vector.broadcast %cst_157 : f32 to vector<16x1xf32>
    %360 = arith.divf %358, %359 : vector<16x1xf32>
    %361 = vector.broadcast %353 : vector<16x1xf32> to vector<16x32xf32>
    %362 = arith.subf %345, %361 : vector<16x32xf32>
    %cst_158 = arith.constant 9.99999974E-6 : f32
    %363 = vector.broadcast %cst_158 : f32 to vector<16x1xf32>
    %364 = arith.addf %360, %363 : vector<16x1xf32>
    %365 = math.rsqrt %364 : vector<16x1xf32>
    %366 = vector.broadcast %365 : vector<16x1xf32> to vector<16x32xf32>
    %367 = arith.mulf %362, %366 : vector<16x32xf32>
    %368 = vector.broadcast %347 : vector<1x32xf32> to vector<16x32xf32>
    %369 = arith.mulf %367, %368 : vector<16x32xf32>
    %370 = vector.broadcast %349 : vector<1x32xf32> to vector<16x32xf32>
    %371 = arith.addf %369, %370 : vector<16x32xf32>
    %c0_159 = arith.constant 0 : index
    %c0_160 = arith.constant 0 : index
    %372 = vector.load %arg4[%c0_159, %c0_160] : memref<16x1xf32, #tpu.memory_space<vmem>>, vector<16x1xf32>
    %373 = vector.broadcast %372 : vector<16x1xf32> to vector<16x32xf32>
    %374 = arith.addf %371, %373 : vector<16x32xf32>
    %375 = vector.extract_strided_slice %374 {offsets = [0, 0], sizes = [8, 32], strides = [1, 1]} : vector<16x32xf32> to vector<8x32xf32>
    %cst_161 = arith.constant dense<0xFF800000> : vector<32xf32>
    %376 = vector.multi_reduction <maximumf>, %375, %cst_161 [0] : vector<8x32xf32> to vector<32xf32>
    %377 = vector.shape_cast %376 : vector<32xf32> to vector<1x32xf32>
    %378 = vector.extract_strided_slice %374 {offsets = [8, 0], sizes = [8, 32], strides = [1, 1]} : vector<16x32xf32> to vector<8x32xf32>
    %cst_162 = arith.constant dense<0xFF800000> : vector<32xf32>
    %379 = vector.multi_reduction <maximumf>, %378, %cst_162 [0] : vector<8x32xf32> to vector<32xf32>
    %380 = vector.shape_cast %379 : vector<32xf32> to vector<1x32xf32>
    %381 = tpu.concatenate %377, %380 in 0 : vector<1x32xf32>, vector<1x32xf32> -> vector<2x32xf32>
    %382 = arith.truncf %381 : vector<2x32xf32> to vector<2x32xbf16>
    %c0_163 = arith.constant 0 : index
    %c0_164 = arith.constant 0 : index
    %383 = vector.load %arg23[%c0_163, %c0_164] : memref<32x16xbf16, #tpu.memory_space<vmem>>, vector<32x16xbf16>
    %cst_165 = arith.constant dense<0.000000e+00> : vector<2x16xf32>
    %384 = tpu.matmul %382, %383, %cst_165 {dimension_numbers = #tpu.dot_dimension_numbers<[1], [0], [0], [1], [0, 0, 1, 1], [], []>} : vector<2x32xbf16>, vector<32x16xbf16>, vector<2x16xf32> -> vector<2x16xf32>
    %c0_166 = arith.constant 0 : index
    %c0_167 = arith.constant 0 : index
    %385 = vector.load %arg24[%c0_166, %c0_167] : memref<2x16xf32, #tpu.memory_space<vmem>>, vector<2x16xf32>
    tpu.vector_store %arg24[%c0_166, %c0_167], %384 {strides = array<i32>} : memref<2x16xf32, #tpu.memory_space<vmem>>, vector<2x16xf32>,
    return
  }
  func.func @transform_0(%arg0: i32) -> (i32, i32) {
    %c0_i32 = arith.constant 0 : i32
    %c0_i32_0 = arith.constant 0 : i32
    %c0_i32_1 = arith.constant 0 : i32
    return %c0_i32, %c0_i32_0 : i32, i32
  }
  func.func @transform_1(%arg0: i32) -> (i32, i32) {
    %c0_i32 = arith.constant 0 : i32
    %c0_i32_0 = arith.constant 0 : i32
    %c0_i32_1 = arith.constant 0 : i32
    return %c0_i32, %c0_i32_0 : i32, i32
  }
  func.func @transform_2(%arg0: i32) -> (i32, i32) {
    %c0_i32 = arith.constant 0 : i32
    %c0_i32_0 = arith.constant 0 : i32
    %c0_i32_1 = arith.constant 0 : i32
    return %c0_i32, %c0_i32_0 : i32, i32
  }
  func.func @transform_3(%arg0: i32) -> (i32, i32) {
    %c0_i32 = arith.constant 0 : i32
    %c0_i32_0 = arith.constant 0 : i32
    %c0_i32_1 = arith.constant 0 : i32
    return %c0_i32, %c0_i32_0 : i32, i32
  }
  func.func @transform_4(%arg0: i32) -> (i32, i32) {
    %c0_i32 = arith.constant 0 : i32
    %c0_i32_0 = arith.constant 0 : i32
    %c0_i32_1 = arith.constant 0 : i32
    return %c0_i32, %c0_i32_0 : i32, i32
  }
  func.func @transform_5(%arg0: i32) -> (i32, i32) {
    %c0_i32 = arith.constant 0 : i32
    %c0_i32_0 = arith.constant 0 : i32
    %c0_i32_1 = arith.constant 0 : i32
    return %c0_i32, %c0_i32_0 : i32, i32
  }
  func.func @transform_6(%arg0: i32) -> (i32, i32) {
    %c0_i32 = arith.constant 0 : i32
    %c0_i32_0 = arith.constant 0 : i32
    %c0_i32_1 = arith.constant 0 : i32
    return %c0_i32, %c0_i32_0 : i32, i32
  }
  func.func @transform_7(%arg0: i32) -> (i32, i32) {
    %c0_i32 = arith.constant 0 : i32
    %c0_i32_0 = arith.constant 0 : i32
    %c0_i32_1 = arith.constant 0 : i32
    return %c0_i32, %c0_i32_0 : i32, i32
  }
  func.func @transform_8(%arg0: i32) -> (i32, i32) {
    %c0_i32 = arith.constant 0 : i32
    %c0_i32_0 = arith.constant 0 : i32
    %c0_i32_1 = arith.constant 0 : i32
    return %c0_i32, %c0_i32_0 : i32, i32
  }
  func.func @transform_9(%arg0: i32) -> (i32, i32) {
    %c0_i32 = arith.constant 0 : i32
    %c0_i32_0 = arith.constant 0 : i32
    %c0_i32_1 = arith.constant 0 : i32
    return %c0_i32, %c0_i32_0 : i32, i32
  }
  func.func @transform_10(%arg0: i32) -> (i32, i32, i32) {
    %c0_i32 = arith.constant 0 : i32
    %c0_i32_0 = arith.constant 0 : i32
    %c0_i32_1 = arith.constant 0 : i32
    %c0_i32_2 = arith.constant 0 : i32
    return %c0_i32, %c0_i32_0, %c0_i32_1 : i32, i32, i32
  }
  func.func @transform_11(%arg0: i32) -> (i32, i32, i32) {
    %c0_i32 = arith.constant 0 : i32
    %c0_i32_0 = arith.constant 0 : i32
    %c0_i32_1 = arith.constant 0 : i32
    %c0_i32_2 = arith.constant 0 : i32
    return %c0_i32, %c0_i32_0, %c0_i32_1 : i32, i32, i32
  }
  func.func @transform_12(%arg0: i32) -> (i32, i32, i32) {
    %c0_i32 = arith.constant 0 : i32
    %c0_i32_0 = arith.constant 0 : i32
    %c0_i32_1 = arith.constant 0 : i32
    %c0_i32_2 = arith.constant 0 : i32
    return %c0_i32, %c0_i32_0, %c0_i32_1 : i32, i32, i32
  }
  func.func @transform_13(%arg0: i32) -> (i32, i32, i32) {
    %c0_i32 = arith.constant 0 : i32
    %c0_i32_0 = arith.constant 0 : i32
    %c0_i32_1 = arith.constant 0 : i32
    %c0_i32_2 = arith.constant 0 : i32
    return %c0_i32, %c0_i32_0, %c0_i32_1 : i32, i32, i32
  }
  func.func @transform_14(%arg0: i32) -> (i32, i32, i32) {
    %c0_i32 = arith.constant 0 : i32
    %c0_i32_0 = arith.constant 0 : i32
    %c0_i32_1 = arith.constant 0 : i32
    %c0_i32_2 = arith.constant 0 : i32
    return %c0_i32, %c0_i32_0, %c0_i32_1 : i32, i32, i32
  }
  func.func @transform_15(%arg0: i32) -> (i32, i32, i32) {
    %c0_i32 = arith.constant 0 : i32
    %c0_i32_0 = arith.constant 0 : i32
    %c0_i32_1 = arith.constant 0 : i32
    %c0_i32_2 = arith.constant 0 : i32
    return %c0_i32, %c0_i32_0, %c0_i32_1 : i32, i32, i32
  }
  func.func @transform_16(%arg0: i32) -> (i32, i32, i32) {
    %c0_i32 = arith.constant 0 : i32
    %c0_i32_0 = arith.constant 0 : i32
    %c0_i32_1 = arith.constant 0 : i32
    %c0_i32_2 = arith.constant 0 : i32
    return %c0_i32, %c0_i32_0, %c0_i32_1 : i32, i32, i32
  }
  func.func @transform_17(%arg0: i32) -> (i32, i32, i32) {
    %c0_i32 = arith.constant 0 : i32
    %c0_i32_0 = arith.constant 0 : i32
    %c0_i32_1 = arith.constant 0 : i32
    %c0_i32_2 = arith.constant 0 : i32
    return %c0_i32, %c0_i32_0, %c0_i32_1 : i32, i32, i32
  }
  func.func @transform_18(%arg0: i32) -> (i32, i32, i32) {
    %c0_i32 = arith.constant 0 : i32
    %c0_i32_0 = arith.constant 0 : i32
    %c0_i32_1 = arith.constant 0 : i32
    %c0_i32_2 = arith.constant 0 : i32
    return %c0_i32, %c0_i32_0, %c0_i32_1 : i32, i32, i32
  }
  func.func @transform_19(%arg0: i32) -> (i32, i32, i32) {
    %c0_i32 = arith.constant 0 : i32
    %c0_i32_0 = arith.constant 0 : i32
    %c0_i32_1 = arith.constant 0 : i32
    %c0_i32_2 = arith.constant 0 : i32
    return %c0_i32, %c0_i32_0, %c0_i32_1 : i32, i32, i32
  }
  func.func @transform_20(%arg0: i32) -> (i32, i32, i32) {
    %c0_i32 = arith.constant 0 : i32
    %c0_i32_0 = arith.constant 0 : i32
    %c0_i32_1 = arith.constant 0 : i32
    %c0_i32_2 = arith.constant 0 : i32
    return %c0_i32, %c0_i32_0, %c0_i32_1 : i32, i32, i32
  }
  func.func @transform_21(%arg0: i32) -> (i32, i32, i32) {
    %c0_i32 = arith.constant 0 : i32
    %c0_i32_0 = arith.constant 0 : i32
    %c0_i32_1 = arith.constant 0 : i32
    %c0_i32_2 = arith.constant 0 : i32
    return %c0_i32, %c0_i32_0, %c0_i32_1 : i32, i32, i32
  }
  func.func @transform_22(%arg0: i32) -> (i32, i32) {
    %c0_i32 = arith.constant 0 : i32
    %c0_i32_0 = arith.constant 0 : i32
    %c0_i32_1 = arith.constant 0 : i32
    return %c0_i32, %c0_i32_0 : i32, i32
  }
  func.func @transform_23(%arg0: i32) -> (i32, i32) {
    %c0_i32 = arith.constant 0 : i32
    %c0_i32_0 = arith.constant 0 : i32
    %c0_i32_1 = arith.constant 0 : i32
    return %c0_i32, %c0_i32_0 : i32, i32
  }
}

</mosaic_0001>

<llo_original>
// kernel: downstream_forward.2
$region0: #{downstream_forward.2}
  #allocation0 [shape = 'u32[]', space=smem, size = 0x4, offset = 0x4, fixed_abs, tag = 'smem constant byte address 0x4 - core index']
  #allocation1 [shape = 'u32[144,128]{1,0:T(1,128)}', space=vmem, size = 0x12000, scoped, tag = 'internal scratch']
  %s0 = inlined_call_operand.vmem [shape: f32[16,12], index: 0, kind: input, shape index: {}]
  %s1 = inlined_call_operand.vmem [shape: f32[16,32], index: 1, kind: input, shape index: {}]
  %s2 = inlined_call_operand.vmem [shape: f32[16,16], index: 2, kind: input, shape index: {}]
  %s3 = inlined_call_operand.vmem [shape: f32[16,1], index: 3, kind: input, shape index: {}]
  %s4 = inlined_call_operand.vmem [shape: bf16[12,32], index: 4, kind: input, shape index: {}]
  %s5 = inlined_call_operand.vmem [shape: f32[1,32], index: 5, kind: input, shape index: {}]
  %s6 = inlined_call_operand.vmem [shape: f32[1,32], index: 6, kind: input, shape index: {}]
  %s7 = inlined_call_operand.vmem [shape: f32[1,32], index: 7, kind: input, shape index: {}]
  %s8 = inlined_call_operand.vmem [shape: bf16[32,32], index: 8, kind: input, shape index: {}]
  %s9 = inlined_call_operand.vmem [shape: f32[1,32], index: 9, kind: input, shape index: {}]
  %s10 = inlined_call_operand.vmem [shape: bf16[2,32,96], index: 10, kind: input, shape index: {}]
  %s11 = inlined_call_operand.vmem [shape: f32[2,1,96], index: 11, kind: input, shape index: {}]
  %s12 = inlined_call_operand.vmem [shape: bf16[2,32,32], index: 12, kind: input, shape index: {}]
  %s13 = inlined_call_operand.vmem [shape: f32[2,1,32], index: 13, kind: input, shape index: {}]
  %s14 = inlined_call_operand.vmem [shape: f32[2,1,32], index: 14, kind: input, shape index: {}]
  %s15 = inlined_call_operand.vmem [shape: f32[2,1,32], index: 15, kind: input, shape index: {}]
  %s16 = inlined_call_operand.vmem [shape: bf16[2,32,32], index: 16, kind: input, shape index: {}]
  %s17 = inlined_call_operand.vmem [shape: f32[2,1,32], index: 17, kind: input, shape index: {}]
  %s18 = inlined_call_operand.vmem [shape: bf16[2,32,32], index: 18, kind: input, shape index: {}]
  %s19 = inlined_call_operand.vmem [shape: f32[2,1,32], index: 19, kind: input, shape index: {}]
  %s20 = inlined_call_operand.vmem [shape: f32[2,1,32], index: 20, kind: input, shape index: {}]
  %s21 = inlined_call_operand.vmem [shape: f32[2,1,32], index: 21, kind: input, shape index: {}]
  %s22 = inlined_call_operand.vmem [shape: bf16[32,16], index: 22, kind: input, shape index: {}]
  %s23 = inlined_call_operand.vmem [shape: f32[2,16], index: 23, kind: output, shape index: {}]
  %s24 = sld [smem:[#allocation0]]
  $region102: #{downstream_forward.2} parent=0
    _
  %s26 = ssub.s32 1, %s24
  %s27 = scalar_select 0, %s26, %s24
  // Predicated region
  $region2: #{downstream_forward.2} parent=0 // pred_check
    _
  $region3: #{downstream_forward.2} parent=0 // pred_check_branch
    %29 = sbr.rel (0) target = $region5
  $region4: #{downstream_forward.2} parent=0 // pred_region
    _
  $region5: #{downstream_forward.2} parent=0 // pred_fallthru
    _
  // Predicated region
  $region6: #{downstream_forward.2} parent=0 // pred_check
    _
  $region7: #{downstream_forward.2} parent=0 // pred_check_branch
    %31 = sbr.rel (0) target = $region9
  $region8: #{downstream_forward.2} parent=0 // pred_region
    _
  $region9: #{downstream_forward.2} parent=0 // pred_fallthru
    _
  // Predicated region
  $region10: #{downstream_forward.2} parent=0 // pred_check
    _
  $region11: #{downstream_forward.2} parent=0 // pred_check_branch
    %33 = sbr.rel (0) target = $region13
  $region12: #{downstream_forward.2} parent=0 // pred_region
    _
  $region13: #{downstream_forward.2} parent=0 // pred_fallthru
    _
  // Predicated region
  $region14: #{downstream_forward.2} parent=0 // pred_check
    _
  $region15: #{downstream_forward.2} parent=0 // pred_check_branch
    %35 = sbr.rel (0) target = $region17
  $region16: #{downstream_forward.2} parent=0 // pred_region
    _
  $region17: #{downstream_forward.2} parent=0 // pred_fallthru
    _
  // Predicated region
  $region18: #{downstream_forward.2} parent=0 // pred_check
    _
  $region19: #{downstream_forward.2} parent=0 // pred_check_branch
    %37 = sbr.rel (0) target = $region21
  $region20: #{downstream_forward.2} parent=0 // pred_region
    _
  $region21: #{downstream_forward.2} parent=0 // pred_fallthru
    _
  // Predicated region
  $region22: #{downstream_forward.2} parent=0 // pred_check
    _
  $region23: #{downstream_forward.2} parent=0 // pred_check_branch
    %39 = sbr.rel (0) target = $region25
  $region24: #{downstream_forward.2} parent=0 // pred_region
    _
  $region25: #{downstream_forward.2} parent=0 // pred_fallthru
    _
  // Predicated region
  $region26: #{downstream_forward.2} parent=0 // pred_check
    _
  $region27: #{downstream_forward.2} parent=0 // pred_check_branch
    %41 = sbr.rel (0) target = $region29
  $region28: #{downstream_forward.2} parent=0 // pred_region
    _
  $region29: #{downstream_forward.2} parent=0 // pred_fallthru
    _
  // Predicated region
  $region30: #{downstream_forward.2} parent=0 // pred_check
    _
  $region31: #{downstream_forward.2} parent=0 // pred_check_branch
    %43 = sbr.rel (0) target = $region33
  $region32: #{downstream_forward.2} parent=0 // pred_region
    _
  $region33: #{downstream_forward.2} parent=0 // pred_fallthru
    _
  // Predicated region
  $region34: #{downstream_forward.2} parent=0 // pred_check
    _
  $region35: #{downstream_forward.2} parent=0 // pred_check_branch
    %45 = sbr.rel (0) target = $region37
  $region36: #{downstream_forward.2} parent=0 // pred_region
    _
  $region37: #{downstream_forward.2} parent=0 // pred_fallthru
    _
  // Predicated region
  $region38: #{downstream_forward.2} parent=0 // pred_check
    _
  $region39: #{downstream_forward.2} parent=0 // pred_check_branch
    %47 = sbr.rel (0) target = $region41
  $region40: #{downstream_forward.2} parent=0 // pred_region
    _
  $region41: #{downstream_forward.2} parent=0 // pred_fallthru
    _
  // Predicated region
  $region42: #{downstream_forward.2} parent=0 // pred_check
    _
  $region43: #{downstream_forward.2} parent=0 // pred_check_branch
    %49 = sbr.rel (0) target = $region45
  $region44: #{downstream_forward.2} parent=0 // pred_region
    _
  $region45: #{downstream_forward.2} parent=0 // pred_fallthru
    _
  // Predicated region
  $region46: #{downstream_forward.2} parent=0 // pred_check
    _
  $region47: #{downstream_forward.2} parent=0 // pred_check_branch
    %51 = sbr.rel (0) target = $region49
  $region48: #{downstream_forward.2} parent=0 // pred_region
    _
  $region49: #{downstream_forward.2} parent=0 // pred_fallthru
    _
  // Predicated region
  $region50: #{downstream_forward.2} parent=0 // pred_check
    _
  $region51: #{downstream_forward.2} parent=0 // pred_check_branch
    %53 = sbr.rel (0) target = $region53
  $region52: #{downstream_forward.2} parent=0 // pred_region
    _
  $region53: #{downstream_forward.2} parent=0 // pred_fallthru
    _
  // Predicated region
  $region54: #{downstream_forward.2} parent=0 // pred_check
    _
  $region55: #{downstream_forward.2} parent=0 // pred_check_branch
    %55 = sbr.rel (0) target = $region57
  $region56: #{downstream_forward.2} parent=0 // pred_region
    _
  $region57: #{downstream_forward.2} parent=0 // pred_fallthru
    _
  // Predicated region
  $region58: #{downstream_forward.2} parent=0 // pred_check
    _
  $region59: #{downstream_forward.2} parent=0 // pred_check_branch
    %57 = sbr.rel (0) target = $region61
  $region60: #{downstream_forward.2} parent=0 // pred_region
    _
  $region61: #{downstream_forward.2} parent=0 // pred_fallthru
    _
  // Predicated region
  $region62: #{downstream_forward.2} parent=0 // pred_check
    _
  $region63: #{downstream_forward.2} parent=0 // pred_check_branch
    %59 = sbr.rel (0) target = $region65
  $region64: #{downstream_forward.2} parent=0 // pred_region
    _
  $region65: #{downstream_forward.2} parent=0 // pred_fallthru
    _
  // Predicated region
  $region66: #{downstream_forward.2} parent=0 // pred_check
    _
  $region67: #{downstream_forward.2} parent=0 // pred_check_branch
    %61 = sbr.rel (0) target = $region69
  $region68: #{downstream_forward.2} parent=0 // pred_region
    _
  $region69: #{downstream_forward.2} parent=0 // pred_fallthru
    _
  // Predicated region
  $region70: #{downstream_forward.2} parent=0 // pred_check
    _
  $region71: #{downstream_forward.2} parent=0 // pred_check_branch
    %63 = sbr.rel (0) target = $region73
  $region72: #{downstream_forward.2} parent=0 // pred_region
    _
  $region73: #{downstream_forward.2} parent=0 // pred_fallthru
    _
  // Predicated region
  $region74: #{downstream_forward.2} parent=0 // pred_check
    _
  $region75: #{downstream_forward.2} parent=0 // pred_check_branch
    %65 = sbr.rel (0) target = $region77
  $region76: #{downstream_forward.2} parent=0 // pred_region
    _
  $region77: #{downstream_forward.2} parent=0 // pred_fallthru
    _
  // Predicated region
  $region78: #{downstream_forward.2} parent=0 // pred_check
    _
  $region79: #{downstream_forward.2} parent=0 // pred_check_branch
    %67 = sbr.rel (0) target = $region81
  $region80: #{downstream_forward.2} parent=0 // pred_region
    _
  $region81: #{downstream_forward.2} parent=0 // pred_fallthru
    _
  // Predicated region
  $region82: #{downstream_forward.2} parent=0 // pred_check
    _
  $region83: #{downstream_forward.2} parent=0 // pred_check_branch
    %69 = sbr.rel (0) target = $region85
  $region84: #{downstream_forward.2} parent=0 // pred_region
    _
  $region85: #{downstream_forward.2} parent=0 // pred_fallthru
    _
  // Predicated region
  $region86: #{downstream_forward.2} parent=0 // pred_check
    _
  $region87: #{downstream_forward.2} parent=0 // pred_check_branch
    %71 = sbr.rel (0) target = $region89
  $region88: #{downstream_forward.2} parent=0 // pred_region
    _
  $region89: #{downstream_forward.2} parent=0 // pred_fallthru
    _
  // Predicated region
  $region90: #{downstream_forward.2} parent=0 // pred_check
    _
  $region91: #{downstream_forward.2} parent=0 // pred_check_branch
    %73 = sbr.rel (0) target = $region93
  $region92: #{downstream_forward.2} parent=0 // pred_region
    _
  $region93: #{downstream_forward.2} parent=0 // pred_fallthru
    _
  %v75 = vld [vmem:[%s2] sm:$0xff]
  %v76 = vld [vmem:[%s2 + $0x8] sm:$0xff]
  %v77 = vld [vmem:[%s0] sm:$0xff]
  %v78 = vld [vmem:[%s0 + $0x8] sm:$0xff]
  %v79 = vpack.c.bf16 %v78, %v77
  %v80 = vld [vmem:[%s4] sm:$0xf]
  %v81 = vld [vmem:[%s4 + $0x4] sm:$0x3]
  %v82 = vld [vmem:[%s5] sm:$0x1]
  %v84 = vlaneseq
  %v85 = vshrl.u32 %v84, 7
  %v86 = vsub.s32 0, %v85
  %v87 = vrot.slane %v82, %v86
  %v91 = vunpack.c.l.b16 %v80
  %v92 = vunpack.c.l.b16 %v81
  %v93 = vpack.c.b16 %v92, %v91
  %vm94 = vcmask 97280
  %v96 = vsel %vm94, %v79, 0
  %vm98 = vcmask 1045504
  %v100 = vsel %vm98, %v93, 0
  %102 = vmatprep.subr.bf16.mxu0 0
  %103 = vmatpush1.bf16.msra.mxu0 %v100
  %104 = vmatprep.subr.bf16.mxu0 0
  %105 = vmatpush1.bf16.msra.mxu0 0
  %106 = vmatprep.subr.bf16.mxu0 0
  %107 = vmatpush1.bf16.msra.mxu0 0
  %108 = vmatprep.subr.bf16.mxu0 0
  %109 = vmatpush1.bf16.msra.mxu0 0
  %110 = vmatprep.subr.bf16.mxu0 0
  %111 = vmatpush1.bf16.msra.mxu0 0
  %112 = vmatprep.subr.bf16.mxu0 0
  %113 = vmatpush1.bf16.msra.mxu0 0
  %114 = vmatprep.subr.bf16.mxu0 0
  %115 = vmatpush1.bf16.msra.mxu0 0
  %116 = vmatprep.subr.bf16.mxu0 0
  %117 = vmatpush1.bf16.msra.mxu0 0
  %118 = vmatprep.subr.bf16.mxu0 0
  %119 = vmatpush1.bf16.msra.mxu0 0
  %120 = vmatprep.subr.bf16.mxu0 0
  %121 = vmatpush1.bf16.msra.mxu0 0
  %122 = vmatprep.subr.bf16.mxu0 0
  %123 = vmatpush1.bf16.msra.mxu0 0
  %124 = vmatprep.subr.bf16.mxu0 0
  %125 = vmatpush1.bf16.msra.mxu0 0
  %126 = vmatprep.subr.bf16.mxu0 0
  %127 = vmatpush1.bf16.msra.mxu0 0
  %128 = vmatprep.subr.bf16.mxu0 0
  %129 = vmatpush1.bf16.msra.mxu0 0
  %130 = vmatprep.subr.bf16.mxu0 0
  %131 = vmatpush1.bf16.msra.mxu0 0
  %132 = vmatprep.subr.bf16.mxu0 0
  %133 = vmatpush1.bf16.msra.mxu0 0
  %134 = vmatprep.mubr.bf16.mxu0 0
  %135 = vmatmul.mubr.bf16.gmra.mrb[0].mxu0 %v96
  %v136 = vpop.f32.mrb[0].mxu0
  %v137 = vadd.f32 %v87, %v136
  %v138 = vpop.f32.mrb[0].mxu0
  %v139 = vpop.f32.mrb[0].mxu0
  %v140 = vadd.f32 %v87, %v139
  %v141 = vpop.f32.mrb[0].mxu0
  %142 = vdwg.mxu0
  %v143 = vld [vmem:[%s6] sm:$0x1]
  %v144 = vld [vmem:[%s7] sm:$0x1]
  %vm145 = vcmask 261120
  %v146 = vsel %vm145, %v137, 0.0
  %147 = vadd.xlane.f32.xlu0 %v146
  %v148 = vpop.xlane.xlu0 %147
  %v149 = vsel %vm145, %v140, 0.0
  %150 = vadd.xlane.f32.xlu0 %v149
  %v151 = vpop.xlane.xlu0 %150
  %v152 = vrcp.pop 32.0
  %v153 = vmul.f32 %v148, %v152
  %v154 = vmul.f32 %v151, %v152
  %v155 = vsub.f32 %v137, %v153
  %v156 = vsub.f32 %v140, %v154
  %v157 = vmul.f32 %v155, %v155
  %v158 = vmul.f32 %v156, %v156
  %v159 = vsel %vm145, %v157, 0.0
  %160 = vadd.xlane.f32.xlu0 %v159
  %v161 = vpop.xlane.xlu0 %160
  %v162 = vsel %vm145, %v158, 0.0
  %163 = vadd.xlane.f32.xlu0 %v162
  %v164 = vpop.xlane.xlu0 %163
  %v165 = vmul.f32 %v161, %v152
  %v166 = vmul.f32 %v164, %v152
  %v167 = vadd.f32 %v165, 1e-05
  %v168 = vadd.f32 %v166, 1e-05
  %v169 = vrsqrt.pop %v167
  %v170 = vrsqrt.pop %v168
  %v171 = vmul.f32 %v155, %v169
  %v172 = vmul.f32 %v156, %v170
  %v174 = vlaneseq
  %v175 = vshrl.u32 %v174, 7
  %v176 = vsub.s32 0, %v175
  %v177 = vrot.slane %v143, %v176
  %v179 = vmul.f32 %v171, %v177
  %v180 = vmul.f32 %v172, %v177
  %v182 = vlaneseq
  %v183 = vshrl.u32 %v182, 7
  %v184 = vsub.s32 0, %v183
  %v185 = vrot.slane %v144, %v184
  %v187 = vadd.f32 %v179, %v185
  %v188 = vadd.f32 %v180, %v185
  %v189 = vmax.f32 %v187, 0.0
  %v190 = vmax.f32 %v188, 0.0
  %v191 = vpack.c.bf16 %v190, %v189
  %v192 = vld [vmem:[%s8] sm:$0xf]
  %v193 = vld [vmem:[%s8 + $0x4] sm:$0xf]
  %v194 = vld [vmem:[%s8 + $0x8] sm:$0xf]
  %v195 = vld [vmem:[%s8 + $0xc] sm:$0xf]
  %v196 = vld [vmem:[%s9] sm:$0x1]
  %v198 = vlaneseq
  %v199 = vshrl.u32 %v198, 7
  %v200 = vsub.s32 0, %v199
  %v201 = vrot.slane %v196, %v200
  %v207 = vunpack.c.l.b16 %v192
  %v208 = vunpack.c.l.b16 %v193
  %v209 = vunpack.c.l.b16 %v194
  %v210 = vunpack.c.l.b16 %v195
  %v211 = vpack.c.b16 %v208, %v207
  %v212 = vpack.c.b16 %v210, %v209
  %v216 = vsel %vm145, %v191, 0
  %218 = vmatprep.subr.bf16.mxu0 0
  %219 = vmatpush1.bf16.msra.mxu0 %v211
  %220 = vmatprep.subr.bf16.mxu0 0
  %221 = vmatpush1.bf16.msra.mxu0 %v212
  %222 = vmatprep.subr.bf16.mxu0 0
  %223 = vmatpush1.bf16.msra.mxu0 0
  %224 = vmatprep.subr.bf16.mxu0 0
  %225 = vmatpush1.bf16.msra.mxu0 0
  %226 = vmatprep.subr.bf16.mxu0 0
  %227 = vmatpush1.bf16.msra.mxu0 0
  %228 = vmatprep.subr.bf16.mxu0 0
  %229 = vmatpush1.bf16.msra.mxu0 0
  %230 = vmatprep.subr.bf16.mxu0 0
  %231 = vmatpush1.bf16.msra.mxu0 0
  %232 = vmatprep.subr.bf16.mxu0 0
  %233 = vmatpush1.bf16.msra.mxu0 0
  %234 = vmatprep.subr.bf16.mxu0 0
  %235 = vmatpush1.bf16.msra.mxu0 0
  %236 = vmatprep.subr.bf16.mxu0 0
  %237 = vmatpush1.bf16.msra.mxu0 0
  %238 = vmatprep.subr.bf16.mxu0 0
  %239 = vmatpush1.bf16.msra.mxu0 0
  %240 = vmatprep.subr.bf16.mxu0 0
  %241 = vmatpush1.bf16.msra.mxu0 0
  %242 = vmatprep.subr.bf16.mxu0 0
  %243 = vmatpush1.bf16.msra.mxu0 0
  %244 = vmatprep.subr.bf16.mxu0 0
  %245 = vmatpush1.bf16.msra.mxu0 0
  %246 = vmatprep.subr.bf16.mxu0 0
  %247 = vmatpush1.bf16.msra.mxu0 0
  %248 = vmatprep.subr.bf16.mxu0 0
  %249 = vmatpush1.bf16.msra.mxu0 0
  %250 = vmatprep.mubr.bf16.mxu0 0
  %251 = vmatmul.mubr.bf16.gmra.mrb[0].mxu0 %v216
  %v252 = vpop.f32.mrb[0].mxu0
  %v253 = vadd.f32 %v201, %v252
  %v254 = vpop.f32.mrb[0].mxu0
  %v255 = vpop.f32.mrb[0].mxu0
  %v256 = vadd.f32 %v201, %v255
  %v257 = vpop.f32.mrb[0].mxu0
  %258 = vdwg.mxu0
  %v259 = vld [vmem:[%s1] sm:$0xff]
  %v260 = vld [vmem:[%s1 + $0x8] sm:$0xff]
  %v261 = vadd.f32 %v253, %v259
  %v262 = vadd.f32 %v256, %v260
  %v263 = vpack.c.bf16 %v262, %v261
  %v264 = vld [vmem:[%s10] sm:$0xf]
  %v265 = vld [vmem:[%s10 + $0x4] sm:$0xf]
  %v266 = vld [vmem:[%s10 + $0x8] sm:$0xf]
  %v267 = vld [vmem:[%s10 + $0xc] sm:$0xf]
  %v268 = vld [vmem:[%s11] sm:$0x1]
  %v270 = vlaneseq
  %v271 = vshrl.u32 %v270, 7
  %v272 = vsub.s32 0, %v271
  %v273 = vrot.slane %v268, %v272
  %v279 = vunpack.c.l.b16 %v264
  %v280 = vunpack.c.l.b16 %v265
  %v281 = vunpack.c.l.b16 %v266
  %v282 = vunpack.c.l.b16 %v267
  %v283 = vpack.c.b16 %v280, %v279
  %v284 = vpack.c.b16 %v282, %v281
  %v288 = vsel %vm145, %v263, 0
  %290 = vmatprep.subr.bf16.mxu0 0
  %291 = vmatpush1.bf16.msra.mxu0 %v283
  %292 = vmatprep.subr.bf16.mxu0 0
  %293 = vmatpush1.bf16.msra.mxu0 %v284
  %294 = vmatprep.subr.bf16.mxu0 0
  %295 = vmatpush1.bf16.msra.mxu0 0
  %296 = vmatprep.subr.bf16.mxu0 0
  %297 = vmatpush1.bf16.msra.mxu0 0
  %298 = vmatprep.subr.bf16.mxu0 0
  %299 = vmatpush1.bf16.msra.mxu0 0
  %300 = vmatprep.subr.bf16.mxu0 0
  %301 = vmatpush1.bf16.msra.mxu0 0
  %302 = vmatprep.subr.bf16.mxu0 0
  %303 = vmatpush1.bf16.msra.mxu0 0
  %304 = vmatprep.subr.bf16.mxu0 0
  %305 = vmatpush1.bf16.msra.mxu0 0
  %306 = vmatprep.subr.bf16.mxu0 0
  %307 = vmatpush1.bf16.msra.mxu0 0
  %308 = vmatprep.subr.bf16.mxu0 0
  %309 = vmatpush1.bf16.msra.mxu0 0
  %310 = vmatprep.subr.bf16.mxu0 0
  %311 = vmatpush1.bf16.msra.mxu0 0
  %312 = vmatprep.subr.bf16.mxu0 0
  %313 = vmatpush1.bf16.msra.mxu0 0
  %314 = vmatprep.subr.bf16.mxu0 0
  %315 = vmatpush1.bf16.msra.mxu0 0
  %316 = vmatprep.subr.bf16.mxu0 0
  %317 = vmatpush1.bf16.msra.mxu0 0
  %318 = vmatprep.subr.bf16.mxu0 0
  %319 = vmatpush1.bf16.msra.mxu0 0
  %320 = vmatprep.subr.bf16.mxu0 0
  %321 = vmatpush1.bf16.msra.mxu0 0
  %322 = vmatprep.mubr.bf16.mxu0 0
  %323 = vmatmul.mubr.bf16.gmra.mrb[0].mxu0 %v288
  %v324 = vpop.f32.mrb[0].mxu0
  %v325 = vadd.f32 %v273, %v324
  %v326 = vpop.f32.mrb[0].mxu0
  %v327 = vpop.f32.mrb[0].mxu0
  %v328 = vadd.f32 %v273, %v327
  %v329 = vpop.f32.mrb[0].mxu0
  %330 = vdwg.mxu0
  %v331 = vmul.f32 %v325, 0.35355338
  %v332 = vmul.f32 %v328, 0.35355338
  %v333 = vpack.c.bf16 %v332, %v331
  %v334 = vpack.c.bf16 %v328, %v325
  %336 = vrot.lane.b32.xlu0 %v334, 96
  %v337 = vpop.permute.xlu0 %336
  %vm338 = vcmask 64512
  %v340 = vsel %vm338, %v333, 0
  %v343 = vsel %vm338, %v337, 0
  %345 = vmatprep.subr.bf16.mxu0 0
  %346 = vmatpush1.bf16.xpose.msra.mxu0 %v343
  %347 = vmatprep.subr.bf16.mxu0 0
  %348 = vmatpush1.bf16.xpose.msra.mxu0 0
  %349 = vmatprep.subr.bf16.mxu0 0
  %350 = vmatpush1.bf16.xpose.msra.mxu0 0
  %351 = vmatprep.subr.bf16.mxu0 0
  %352 = vmatpush1.bf16.xpose.msra.mxu0 0
  %353 = vmatprep.subr.bf16.mxu0 0
  %354 = vmatpush1.bf16.xpose.msra.mxu0 0
  %355 = vmatprep.subr.bf16.mxu0 0
  %356 = vmatpush1.bf16.xpose.msra.mxu0 0
  %357 = vmatprep.subr.bf16.mxu0 0
  %358 = vmatpush1.bf16.xpose.msra.mxu0 0
  %359 = vmatprep.subr.bf16.mxu0 0
  %360 = vmatpush1.bf16.xpose.msra.mxu0 0
  %361 = vmatprep.subr.bf16.mxu0 0
  %362 = vmatpush1.bf16.xpose.msra.mxu0 0
  %363 = vmatprep.subr.bf16.mxu0 0
  %364 = vmatpush1.bf16.xpose.msra.mxu0 0
  %365 = vmatprep.subr.bf16.mxu0 0
  %366 = vmatpush1.bf16.xpose.msra.mxu0 0
  %367 = vmatprep.subr.bf16.mxu0 0
  %368 = vmatpush1.bf16.xpose.msra.mxu0 0
  %369 = vmatprep.subr.bf16.mxu0 0
  %370 = vmatpush1.bf16.xpose.msra.mxu0 0
  %371 = vmatprep.subr.bf16.mxu0 0
  %372 = vmatpush1.bf16.xpose.msra.mxu0 0
  %373 = vmatprep.subr.bf16.mxu0 0
  %374 = vmatpush1.bf16.xpose.msra.mxu0 0
  %375 = vmatprep.subr.bf16.mxu0 0
  %376 = vmatpush1.bf16.xpose.msra.mxu0 0
  %377 = vmatprep.mubr.bf16.mxu0 0
  %378 = vmatmul.mubr.bf16.gmra.mrb[0].mxu0 %v340
  %v379 = vpop.f32.mrb[0].mxu0
  %v380 = vadd.f32 %v75, %v379
  %v381 = vpop.f32.mrb[0].mxu0
  %v382 = vpop.f32.mrb[0].mxu0
  %v383 = vadd.f32 %v76, %v382
  %v384 = vpop.f32.mrb[0].mxu0
  %385 = vdwg.mxu0
  %vm386 = vcmask 130048
  %v387 = vsel %vm386, %v380, -inf
  %388 = vmax.xlane.f32.xlu0 %v387
  %v389 = vpop.xlane.xlu0 %388
  %v390 = vsel %vm386, %v383, -inf
  %391 = vmax.xlane.f32.xlu0 %v390
  %v392 = vpop.xlane.xlu0 %391
  %v393 = vsub.f32 %v380, %v389
  %v394 = vsub.f32 %v383, %v392
  %v395 = vmul.f32 %v393, 1.442695
  %v396 = vpow.pop %v395
  %v397 = vmul.f32 %v394, 1.442695
  %v398 = vpow.pop %v397
  %v399 = vsel %vm386, %v396, 0.0
  %400 = vadd.xlane.f32.xlu0 %v399
  %v401 = vpop.xlane.xlu0 %400
  %v402 = vsel %vm386, %v398, 0.0
  %403 = vadd.xlane.f32.xlu0 %v402
  %v404 = vpop.xlane.xlu0 %403
  %v405 = vrcp.pop %v401
  %v406 = vrcp.pop %v404
  %v407 = vmul.f32 %v396, %v405
  %v408 = vmul.f32 %v398, %v406
  %v409 = vpack.c.bf16 %v408, %v407
  %410 = vrot.lane.b32.xlu0 %v334, 64
  %v411 = vpop.permute.xlu0 %410
  %v414 = vsel %vm386, %v409, 0
  %416 = vmatprep.subr.bf16.mxu0 0
  %417 = vmatpush1.bf16.msra.mxu0 %v411
  %418 = vmatprep.subr.bf16.mxu0 0
  %419 = vmatpush1.bf16.msra.mxu0 0
  %420 = vmatprep.subr.bf16.mxu0 0
  %421 = vmatpush1.bf16.msra.mxu0 0
  %422 = vmatprep.subr.bf16.mxu0 0
  %423 = vmatpush1.bf16.msra.mxu0 0
  %424 = vmatprep.subr.bf16.mxu0 0
  %425 = vmatpush1.bf16.msra.mxu0 0
  %426 = vmatprep.subr.bf16.mxu0 0
  %427 = vmatpush1.bf16.msra.mxu0 0
  %428 = vmatprep.subr.bf16.mxu0 0
  %429 = vmatpush1.bf16.msra.mxu0 0
  %430 = vmatprep.subr.bf16.mxu0 0
  %431 = vmatpush1.bf16.msra.mxu0 0
  %432 = vmatprep.subr.bf16.mxu0 0
  %433 = vmatpush1.bf16.msra.mxu0 0
  %434 = vmatprep.subr.bf16.mxu0 0
  %435 = vmatpush1.bf16.msra.mxu0 0
  %436 = vmatprep.subr.bf16.mxu0 0
  %437 = vmatpush1.bf16.msra.mxu0 0
  %438 = vmatprep.subr.bf16.mxu0 0
  %439 = vmatpush1.bf16.msra.mxu0 0
  %440 = vmatprep.subr.bf16.mxu0 0
  %441 = vmatpush1.bf16.msra.mxu0 0
  %442 = vmatprep.subr.bf16.mxu0 0
  %443 = vmatpush1.bf16.msra.mxu0 0
  %444 = vmatprep.subr.bf16.mxu0 0
  %445 = vmatpush1.bf16.msra.mxu0 0
  %446 = vmatprep.subr.bf16.mxu0 0
  %447 = vmatpush1.bf16.msra.mxu0 0
  %448 = vmatprep.mubr.bf16.mxu0 0
  %449 = vmatmul.mubr.bf16.gmra.mrb[0].mxu0 %v414
  %v450 = vpop.f32.mrb[0].mxu0
  %v451 = vadd.f32 0.0, %v450
  %v452 = vpop.f32.mrb[0].mxu0
  %v453 = vpop.f32.mrb[0].mxu0
  %v454 = vadd.f32 0.0, %v453
  %v455 = vpop.f32.mrb[0].mxu0
  %456 = vdwg.mxu0
  %458 = vrot.lane.b32.xlu0 %v333, 120
  %v459 = vpop.permute.xlu0 %458
  %460 = vrot.lane.b32.xlu0 %v334, 88
  %v461 = vpop.permute.xlu0 %460
  %v463 = vsel %vm338, %v459, 0
  %v466 = vsel %vm338, %v461, 0
  %468 = vmatprep.subr.bf16.mxu0 0
  %469 = vmatpush1.bf16.xpose.msra.mxu0 %v466
  %470 = vmatprep.subr.bf16.mxu0 0
  %471 = vmatpush1.bf16.xpose.msra.mxu0 0
  %472 = vmatprep.subr.bf16.mxu0 0
  %473 = vmatpush1.bf16.xpose.msra.mxu0 0
  %474 = vmatprep.subr.bf16.mxu0 0
  %475 = vmatpush1.bf16.xpose.msra.mxu0 0
  %476 = vmatprep.subr.bf16.mxu0 0
  %477 = vmatpush1.bf16.xpose.msra.mxu0 0
  %478 = vmatprep.subr.bf16.mxu0 0
  %479 = vmatpush1.bf16.xpose.msra.mxu0 0
  %480 = vmatprep.subr.bf16.mxu0 0
  %481 = vmatpush1.bf16.xpose.msra.mxu0 0
  %482 = vmatprep.subr.bf16.mxu0 0
  %483 = vmatpush1.bf16.xpose.msra.mxu0 0
  %484 = vmatprep.subr.bf16.mxu0 0
  %485 = vmatpush1.bf16.xpose.msra.mxu0 0
  %486 = vmatprep.subr.bf16.mxu0 0
  %487 = vmatpush1.bf16.xpose.msra.mxu0 0
  %488 = vmatprep.subr.bf16.mxu0 0
  %489 = vmatpush1.bf16.xpose.msra.mxu0 0
  %490 = vmatprep.subr.bf16.mxu0 0
  %491 = vmatpush1.bf16.xpose.msra.mxu0 0
  %492 = vmatprep.subr.bf16.mxu0 0
  %493 = vmatpush1.bf16.xpose.msra.mxu0 0
  %494 = vmatprep.subr.bf16.mxu0 0
  %495 = vmatpush1.bf16.xpose.msra.mxu0 0
  %496 = vmatprep.subr.bf16.mxu0 0
  %497 = vmatpush1.bf16.xpose.msra.mxu0 0
  %498 = vmatprep.subr.bf16.mxu0 0
  %499 = vmatpush1.bf16.xpose.msra.mxu0 0
  %500 = vmatprep.mubr.bf16.mxu0 0
  %501 = vmatmul.mubr.bf16.gmra.mrb[0].mxu0 %v463
  %v502 = vpop.f32.mrb[0].mxu0
  %v503 = vadd.f32 %v75, %v502
  %v504 = vpop.f32.mrb[0].mxu0
  %v505 = vpop.f32.mrb[0].mxu0
  %v506 = vadd.f32 %v76, %v505
  %v507 = vpop.f32.mrb[0].mxu0
  %508 = vdwg.mxu0
  %v509 = vsel %vm386, %v503, -inf
  %510 = vmax.xlane.f32.xlu0 %v509
  %v511 = vpop.xlane.xlu0 %510
  %v512 = vsel %vm386, %v506, -inf
  %513 = vmax.xlane.f32.xlu0 %v512
  %v514 = vpop.xlane.xlu0 %513
  %v515 = vsub.f32 %v503, %v511
  %v516 = vsub.f32 %v506, %v514
  %v517 = vmul.f32 %v515, 1.442695
  %v518 = vpow.pop %v517
  %v519 = vmul.f32 %v516, 1.442695
  %v520 = vpow.pop %v519
  %v521 = vsel %vm386, %v518, 0.0
  %522 = vadd.xlane.f32.xlu0 %v521
  %v523 = vpop.xlane.xlu0 %522
  %v524 = vsel %vm386, %v520, 0.0
  %525 = vadd.xlane.f32.xlu0 %v524
  %v526 = vpop.xlane.xlu0 %525
  %v527 = vrcp.pop %v523
  %v528 = vrcp.pop %v526
  %v529 = vmul.f32 %v518, %v527
  %v530 = vmul.f32 %v520, %v528
  %v531 = vpack.c.bf16 %v530, %v529
  %532 = vrot.lane.b32.xlu0 %v334, 56
  %v533 = vpop.permute.xlu0 %532
  %v536 = vsel %vm386, %v531, 0
  %538 = vmatprep.subr.bf16.mxu0 0
  %539 = vmatpush1.bf16.msra.mxu0 %v533
  %540 = vmatprep.subr.bf16.mxu0 0
  %541 = vmatpush1.bf16.msra.mxu0 0
  %542 = vmatprep.subr.bf16.mxu0 0
  %543 = vmatpush1.bf16.msra.mxu0 0
  %544 = vmatprep.subr.bf16.mxu0 0
  %545 = vmatpush1.bf16.msra.mxu0 0
  %546 = vmatprep.subr.bf16.mxu0 0
  %547 = vmatpush1.bf16.msra.mxu0 0
  %548 = vmatprep.subr.bf16.mxu0 0
  %549 = vmatpush1.bf16.msra.mxu0 0
  %550 = vmatprep.subr.bf16.mxu0 0
  %551 = vmatpush1.bf16.msra.mxu0 0
  %552 = vmatprep.subr.bf16.mxu0 0
  %553 = vmatpush1.bf16.msra.mxu0 0
  %554 = vmatprep.subr.bf16.mxu0 0
  %555 = vmatpush1.bf16.msra.mxu0 0
  %556 = vmatprep.subr.bf16.mxu0 0
  %557 = vmatpush1.bf16.msra.mxu0 0
  %558 = vmatprep.subr.bf16.mxu0 0
  %559 = vmatpush1.bf16.msra.mxu0 0
  %560 = vmatprep.subr.bf16.mxu0 0
  %561 = vmatpush1.bf16.msra.mxu0 0
  %562 = vmatprep.subr.bf16.mxu0 0
  %563 = vmatpush1.bf16.msra.mxu0 0
  %564 = vmatprep.subr.bf16.mxu0 0
  %565 = vmatpush1.bf16.msra.mxu0 0
  %566 = vmatprep.subr.bf16.mxu0 0
  %567 = vmatpush1.bf16.msra.mxu0 0
  %568 = vmatprep.subr.bf16.mxu0 0
  %569 = vmatpush1.bf16.msra.mxu0 0
  %570 = vmatprep.mubr.bf16.mxu0 0
  %571 = vmatmul.mubr.bf16.gmra.mrb[0].mxu0 %v536
  %v572 = vpop.f32.mrb[0].mxu0
  %v573 = vadd.f32 0.0, %v572
  %v574 = vpop.f32.mrb[0].mxu0
  %v575 = vpop.f32.mrb[0].mxu0
  %v576 = vadd.f32 0.0, %v575
  %v577 = vpop.f32.mrb[0].mxu0
  %578 = vdwg.mxu0
  %579 = vrot.lane.b32.xlu0 %v333, 112
  %v580 = vpop.permute.xlu0 %579
  %581 = vrot.lane.b32.xlu0 %v334, 80
  %v582 = vpop.permute.xlu0 %581
  %v584 = vsel %vm338, %v580, 0
  %v587 = vsel %vm338, %v582, 0
  %589 = vmatprep.subr.bf16.mxu0 0
  %590 = vmatpush1.bf16.xpose.msra.mxu0 %v587
  %591 = vmatprep.subr.bf16.mxu0 0
  %592 = vmatpush1.bf16.xpose.msra.mxu0 0
  %593 = vmatprep.subr.bf16.mxu0 0
  %594 = vmatpush1.bf16.xpose.msra.mxu0 0
  %595 = vmatprep.subr.bf16.mxu0 0
  %596 = vmatpush1.bf16.xpose.msra.mxu0 0
  %597 = vmatprep.subr.bf16.mxu0 0
  %598 = vmatpush1.bf16.xpose.msra.mxu0 0
  %599 = vmatprep.subr.bf16.mxu0 0
  %600 = vmatpush1.bf16.xpose.msra.mxu0 0
  %601 = vmatprep.subr.bf16.mxu0 0
  %602 = vmatpush1.bf16.xpose.msra.mxu0 0
  %603 = vmatprep.subr.bf16.mxu0 0
  %604 = vmatpush1.bf16.xpose.msra.mxu0 0
  %605 = vmatprep.subr.bf16.mxu0 0
  %606 = vmatpush1.bf16.xpose.msra.mxu0 0
  %607 = vmatprep.subr.bf16.mxu0 0
  %608 = vmatpush1.bf16.xpose.msra.mxu0 0
  %609 = vmatprep.subr.bf16.mxu0 0
  %610 = vmatpush1.bf16.xpose.msra.mxu0 0
  %611 = vmatprep.subr.bf16.mxu0 0
  %612 = vmatpush1.bf16.xpose.msra.mxu0 0
  %613 = vmatprep.subr.bf16.mxu0 0
  %614 = vmatpush1.bf16.xpose.msra.mxu0 0
  %615 = vmatprep.subr.bf16.mxu0 0
  %616 = vmatpush1.bf16.xpose.msra.mxu0 0
  %617 = vmatprep.subr.bf16.mxu0 0
  %618 = vmatpush1.bf16.xpose.msra.mxu0 0
  %619 = vmatprep.subr.bf16.mxu0 0
  %620 = vmatpush1.bf16.xpose.msra.mxu0 0
  %621 = vmatprep.mubr.bf16.mxu0 0
  %622 = vmatmul.mubr.bf16.gmra.mrb[0].mxu0 %v584
  %v623 = vpop.f32.mrb[0].mxu0
  %v624 = vadd.f32 %v75, %v623
  %v625 = vpop.f32.mrb[0].mxu0
  %v626 = vpop.f32.mrb[0].mxu0
  %v627 = vadd.f32 %v76, %v626
  %v628 = vpop.f32.mrb[0].mxu0
  %629 = vdwg.mxu0
  %v630 = vsel %vm386, %v624, -inf
  %631 = vmax.xlane.f32.xlu0 %v630
  %v632 = vpop.xlane.xlu0 %631
  %v633 = vsel %vm386, %v627, -inf
  %634 = vmax.xlane.f32.xlu0 %v633
  %v635 = vpop.xlane.xlu0 %634
  %v636 = vsub.f32 %v624, %v632
  %v637 = vsub.f32 %v627, %v635
  %v638 = vmul.f32 %v636, 1.442695
  %v639 = vpow.pop %v638
  %v640 = vmul.f32 %v637, 1.442695
  %v641 = vpow.pop %v640
  %v642 = vsel %vm386, %v639, 0.0
  %643 = vadd.xlane.f32.xlu0 %v642
  %v644 = vpop.xlane.xlu0 %643
  %v645 = vsel %vm386, %v641, 0.0
  %646 = vadd.xlane.f32.xlu0 %v645
  %v647 = vpop.xlane.xlu0 %646
  %v648 = vrcp.pop %v644
  %v649 = vrcp.pop %v647
  %v650 = vmul.f32 %v639, %v648
  %v651 = vmul.f32 %v641, %v649
  %v652 = vpack.c.bf16 %v651, %v650
  %653 = vrot.lane.b32.xlu0 %v334, 48
  %v654 = vpop.permute.xlu0 %653
  %v657 = vsel %vm386, %v652, 0
  %659 = vmatprep.subr.bf16.mxu0 0
  %660 = vmatpush1.bf16.msra.mxu0 %v654
  %661 = vmatprep.subr.bf16.mxu0 0
  %662 = vmatpush1.bf16.msra.mxu0 0
  %663 = vmatprep.subr.bf16.mxu0 0
  %664 = vmatpush1.bf16.msra.mxu0 0
  %665 = vmatprep.subr.bf16.mxu0 0
  %666 = vmatpush1.bf16.msra.mxu0 0
  %667 = vmatprep.subr.bf16.mxu0 0
  %668 = vmatpush1.bf16.msra.mxu0 0
  %669 = vmatprep.subr.bf16.mxu0 0
  %670 = vmatpush1.bf16.msra.mxu0 0
  %671 = vmatprep.subr.bf16.mxu0 0
  %672 = vmatpush1.bf16.msra.mxu0 0
  %673 = vmatprep.subr.bf16.mxu0 0
  %674 = vmatpush1.bf16.msra.mxu0 0
  %675 = vmatprep.subr.bf16.mxu0 0
  %676 = vmatpush1.bf16.msra.mxu0 0
  %677 = vmatprep.subr.bf16.mxu0 0
  %678 = vmatpush1.bf16.msra.mxu0 0
  %679 = vmatprep.subr.bf16.mxu0 0
  %680 = vmatpush1.bf16.msra.mxu0 0
  %681 = vmatprep.subr.bf16.mxu0 0
  %682 = vmatpush1.bf16.msra.mxu0 0
  %683 = vmatprep.subr.bf16.mxu0 0
  %684 = vmatpush1.bf16.msra.mxu0 0
  %685 = vmatprep.subr.bf16.mxu0 0
  %686 = vmatpush1.bf16.msra.mxu0 0
  %687 = vmatprep.subr.bf16.mxu0 0
  %688 = vmatpush1.bf16.msra.mxu0 0
  %689 = vmatprep.subr.bf16.mxu0 0
  %690 = vmatpush1.bf16.msra.mxu0 0
  %691 = vmatprep.mubr.bf16.mxu0 0
  %692 = vmatmul.mubr.bf16.gmra.mrb[0].mxu0 %v657
  %v693 = vpop.f32.mrb[0].mxu0
  %v694 = vadd.f32 0.0, %v693
  %v695 = vpop.f32.mrb[0].mxu0
  %v696 = vpop.f32.mrb[0].mxu0
  %v697 = vadd.f32 0.0, %v696
  %v698 = vpop.f32.mrb[0].mxu0
  %699 = vdwg.mxu0
  %700 = vrot.lane.b32.xlu0 %v333, 104
  %v701 = vpop.permute.xlu0 %700
  %702 = vrot.lane.b32.xlu0 %v334, 72
  %v703 = vpop.permute.xlu0 %702
  %v705 = vsel %vm338, %v701, 0
  %v708 = vsel %vm338, %v703, 0
  %710 = vmatprep.subr.bf16.mxu0 0
  %711 = vmatpush1.bf16.xpose.msra.mxu0 %v708
  %712 = vmatprep.subr.bf16.mxu0 0
  %713 = vmatpush1.bf16.xpose.msra.mxu0 0
  %714 = vmatprep.subr.bf16.mxu0 0
  %715 = vmatpush1.bf16.xpose.msra.mxu0 0
  %716 = vmatprep.subr.bf16.mxu0 0
  %717 = vmatpush1.bf16.xpose.msra.mxu0 0
  %718 = vmatprep.subr.bf16.mxu0 0
  %719 = vmatpush1.bf16.xpose.msra.mxu0 0
  %720 = vmatprep.subr.bf16.mxu0 0
  %721 = vmatpush1.bf16.xpose.msra.mxu0 0
  %722 = vmatprep.subr.bf16.mxu0 0
  %723 = vmatpush1.bf16.xpose.msra.mxu0 0
  %724 = vmatprep.subr.bf16.mxu0 0
  %725 = vmatpush1.bf16.xpose.msra.mxu0 0
  %726 = vmatprep.subr.bf16.mxu0 0
  %727 = vmatpush1.bf16.xpose.msra.mxu0 0
  %728 = vmatprep.subr.bf16.mxu0 0
  %729 = vmatpush1.bf16.xpose.msra.mxu0 0
  %730 = vmatprep.subr.bf16.mxu0 0
  %731 = vmatpush1.bf16.xpose.msra.mxu0 0
  %732 = vmatprep.subr.bf16.mxu0 0
  %733 = vmatpush1.bf16.xpose.msra.mxu0 0
  %734 = vmatprep.subr.bf16.mxu0 0
  %735 = vmatpush1.bf16.xpose.msra.mxu0 0
  %736 = vmatprep.subr.bf16.mxu0 0
  %737 = vmatpush1.bf16.xpose.msra.mxu0 0
  %738 = vmatprep.subr.bf16.mxu0 0
  %739 = vmatpush1.bf16.xpose.msra.mxu0 0
  %740 = vmatprep.subr.bf16.mxu0 0
  %741 = vmatpush1.bf16.xpose.msra.mxu0 0
  %742 = vmatprep.mubr.bf16.mxu0 0
  %743 = vmatmul.mubr.bf16.gmra.mrb[0].mxu0 %v705
  %v744 = vpop.f32.mrb[0].mxu0
  %v745 = vadd.f32 %v75, %v744
  %v746 = vpop.f32.mrb[0].mxu0
  %v747 = vpop.f32.mrb[0].mxu0
  %v748 = vadd.f32 %v76, %v747
  %v749 = vpop.f32.mrb[0].mxu0
  %750 = vdwg.mxu0
  %v751 = vsel %vm386, %v745, -inf
  %752 = vmax.xlane.f32.xlu0 %v751
  %v753 = vpop.xlane.xlu0 %752
  %v754 = vsel %vm386, %v748, -inf
  %755 = vmax.xlane.f32.xlu0 %v754
  %v756 = vpop.xlane.xlu0 %755
  %v757 = vsub.f32 %v745, %v753
  %v758 = vsub.f32 %v748, %v756
  %v759 = vmul.f32 %v757, 1.442695
  %v760 = vpow.pop %v759
  %v761 = vmul.f32 %v758, 1.442695
  %v762 = vpow.pop %v761
  %v763 = vsel %vm386, %v760, 0.0
  %764 = vadd.xlane.f32.xlu0 %v763
  %v765 = vpop.xlane.xlu0 %764
  %v766 = vsel %vm386, %v762, 0.0
  %767 = vadd.xlane.f32.xlu0 %v766
  %v768 = vpop.xlane.xlu0 %767
  %v769 = vrcp.pop %v765
  %v770 = vrcp.pop %v768
  %v771 = vmul.f32 %v760, %v769
  %v772 = vmul.f32 %v762, %v770
  %v773 = vpack.c.bf16 %v772, %v771
  %774 = vrot.lane.b32.xlu0 %v334, 40
  %v775 = vpop.permute.xlu0 %774
  %v778 = vsel %vm386, %v773, 0
  %780 = vmatprep.subr.bf16.mxu0 0
  %781 = vmatpush1.bf16.msra.mxu0 %v775
  %782 = vmatprep.subr.bf16.mxu0 0
  %783 = vmatpush1.bf16.msra.mxu0 0
  %784 = vmatprep.subr.bf16.mxu0 0
  %785 = vmatpush1.bf16.msra.mxu0 0
  %786 = vmatprep.subr.bf16.mxu0 0
  %787 = vmatpush1.bf16.msra.mxu0 0
  %788 = vmatprep.subr.bf16.mxu0 0
  %789 = vmatpush1.bf16.msra.mxu0 0
  %790 = vmatprep.subr.bf16.mxu0 0
  %791 = vmatpush1.bf16.msra.mxu0 0
  %792 = vmatprep.subr.bf16.mxu0 0
  %793 = vmatpush1.bf16.msra.mxu0 0
  %794 = vmatprep.subr.bf16.mxu0 0
  %795 = vmatpush1.bf16.msra.mxu0 0
  %796 = vmatprep.subr.bf16.mxu0 0
  %797 = vmatpush1.bf16.msra.mxu0 0
  %798 = vmatprep.subr.bf16.mxu0 0
  %799 = vmatpush1.bf16.msra.mxu0 0
  %800 = vmatprep.subr.bf16.mxu0 0
  %801 = vmatpush1.bf16.msra.mxu0 0
  %802 = vmatprep.subr.bf16.mxu0 0
  %803 = vmatpush1.bf16.msra.mxu0 0
  %804 = vmatprep.subr.bf16.mxu0 0
  %805 = vmatpush1.bf16.msra.mxu0 0
  %806 = vmatprep.subr.bf16.mxu0 0
  %807 = vmatpush1.bf16.msra.mxu0 0
  %808 = vmatprep.subr.bf16.mxu0 0
  %809 = vmatpush1.bf16.msra.mxu0 0
  %810 = vmatprep.subr.bf16.mxu0 0
  %811 = vmatpush1.bf16.msra.mxu0 0
  %812 = vmatprep.mubr.bf16.mxu0 0
  %813 = vmatmul.mubr.bf16.gmra.mrb[0].mxu0 %v778
  %v814 = vpop.f32.mrb[0].mxu0
  %v815 = vadd.f32 0.0, %v814
  %v816 = vpop.f32.mrb[0].mxu0
  %v817 = vpop.f32.mrb[0].mxu0
  %v818 = vadd.f32 0.0, %v817
  %v819 = vpop.f32.mrb[0].mxu0
  %820 = vdwg.mxu0
  %823 = vrot.lane.b32.xlu0 %v573, 8
  %v824 = vpop.permute.xlu0 %823
  %825 = vrot.lane.b32.xlu0 %v576, 8
  %v826 = vpop.permute.xlu0 %825
  %831 = vrot.lane.b32.xlu0 %v694, 16
  %v832 = vpop.permute.xlu0 %831
  %833 = vrot.lane.b32.xlu0 %v697, 16
  %v834 = vpop.permute.xlu0 %833
  %839 = vrot.lane.b32.xlu0 %v815, 24
  %v840 = vpop.permute.xlu0 %839
  %841 = vrot.lane.b32.xlu0 %v818, 24
  %v842 = vpop.permute.xlu0 %841
  %v845 = vsel %vm338, %v451, %v824
  %v846 = vsel %vm338, %v454, %v826
  %v847 = vsel %vm386, %v845, %v832
  %v848 = vsel %vm386, %v846, %v834
  %vm849 = vcmask 195584
  %v850 = vsel %vm849, %v847, %v840
  %v851 = vsel %vm849, %v848, %v842
  %v852 = vpack.c.bf16 %v851, %v850
  %v853 = vld [vmem:[%s12] sm:$0xf]
  %v854 = vld [vmem:[%s12 + $0x4] sm:$0xf]
  %v855 = vld [vmem:[%s12 + $0x8] sm:$0xf]
  %v856 = vld [vmem:[%s12 + $0xc] sm:$0xf]
  %v857 = vld [vmem:[%s13] sm:$0x1]
  %v859 = vlaneseq
  %v860 = vshrl.u32 %v859, 7
  %v861 = vsub.s32 0, %v860
  %v862 = vrot.slane %v857, %v861
  %v868 = vunpack.c.l.b16 %v853
  %v869 = vunpack.c.l.b16 %v854
  %v870 = vunpack.c.l.b16 %v855
  %v871 = vunpack.c.l.b16 %v856
  %v872 = vpack.c.b16 %v869, %v868
  %v873 = vpack.c.b16 %v871, %v870
  %v877 = vsel %vm145, %v852, 0
  %879 = vmatprep.subr.bf16.mxu0 0
  %880 = vmatpush1.bf16.msra.mxu0 %v872
  %881 = vmatprep.subr.bf16.mxu0 0
  %882 = vmatpush1.bf16.msra.mxu0 %v873
  %883 = vmatprep.subr.bf16.mxu0 0
  %884 = vmatpush1.bf16.msra.mxu0 0
  %885 = vmatprep.subr.bf16.mxu0 0
  %886 = vmatpush1.bf16.msra.mxu0 0
  %887 = vmatprep.subr.bf16.mxu0 0
  %888 = vmatpush1.bf16.msra.mxu0 0
  %889 = vmatprep.subr.bf16.mxu0 0
  %890 = vmatpush1.bf16.msra.mxu0 0
  %891 = vmatprep.subr.bf16.mxu0 0
  %892 = vmatpush1.bf16.msra.mxu0 0
  %893 = vmatprep.subr.bf16.mxu0 0
  %894 = vmatpush1.bf16.msra.mxu0 0
  %895 = vmatprep.subr.bf16.mxu0 0
  %896 = vmatpush1.bf16.msra.mxu0 0
  %897 = vmatprep.subr.bf16.mxu0 0
  %898 = vmatpush1.bf16.msra.mxu0 0
  %899 = vmatprep.subr.bf16.mxu0 0
  %900 = vmatpush1.bf16.msra.mxu0 0
  %901 = vmatprep.subr.bf16.mxu0 0
  %902 = vmatpush1.bf16.msra.mxu0 0
  %903 = vmatprep.subr.bf16.mxu0 0
  %904 = vmatpush1.bf16.msra.mxu0 0
  %905 = vmatprep.subr.bf16.mxu0 0
  %906 = vmatpush1.bf16.msra.mxu0 0
  %907 = vmatprep.subr.bf16.mxu0 0
  %908 = vmatpush1.bf16.msra.mxu0 0
  %909 = vmatprep.subr.bf16.mxu0 0
  %910 = vmatpush1.bf16.msra.mxu0 0
  %911 = vmatprep.mubr.bf16.mxu0 0
  %912 = vmatmul.mubr.bf16.gmra.mrb[0].mxu0 %v877
  %v913 = vpop.f32.mrb[0].mxu0
  %v914 = vadd.f32 %v862, %v913
  %v915 = vpop.f32.mrb[0].mxu0
  %v916 = vpop.f32.mrb[0].mxu0
  %v917 = vadd.f32 %v862, %v916
  %v918 = vpop.f32.mrb[0].mxu0
  %919 = vdwg.mxu0
  %v920 = vadd.f32 %v261, %v914
  %v921 = vadd.f32 %v262, %v917
  %v922 = vld [vmem:[%s14] sm:$0x1]
  %v923 = vld [vmem:[%s15] sm:$0x1]
  %v924 = vsel %vm145, %v920, 0.0
  %925 = vadd.xlane.f32.xlu0 %v924
  %v926 = vpop.xlane.xlu0 %925
  %v927 = vsel %vm145, %v921, 0.0
  %928 = vadd.xlane.f32.xlu0 %v927
  %v929 = vpop.xlane.xlu0 %928
  %v930 = vmul.f32 %v926, %v152
  %v931 = vmul.f32 %v929, %v152
  %v932 = vsub.f32 %v920, %v930
  %v933 = vsub.f32 %v921, %v931
  %v934 = vmul.f32 %v932, %v932
  %v935 = vmul.f32 %v933, %v933
  %v936 = vsel %vm145, %v934, 0.0
  %937 = vadd.xlane.f32.xlu0 %v936
  %v938 = vpop.xlane.xlu0 %937
  %v939 = vsel %vm145, %v935, 0.0
  %940 = vadd.xlane.f32.xlu0 %v939
  %v941 = vpop.xlane.xlu0 %940
  %v942 = vmul.f32 %v938, %v152
  %v943 = vmul.f32 %v941, %v152
  %v944 = vadd.f32 %v942, 1e-05
  %v945 = vadd.f32 %v943, 1e-05
  %v946 = vrsqrt.pop %v944
  %v947 = vrsqrt.pop %v945
  %v948 = vmul.f32 %v932, %v946
  %v949 = vmul.f32 %v933, %v947
  %v951 = vlaneseq
  %v952 = vshrl.u32 %v951, 7
  %v953 = vsub.s32 0, %v952
  %v954 = vrot.slane %v922, %v953
  %v956 = vmul.f32 %v948, %v954
  %v957 = vmul.f32 %v949, %v954
  %v959 = vlaneseq
  %v960 = vshrl.u32 %v959, 7
  %v961 = vsub.s32 0, %v960
  %v962 = vrot.slane %v923, %v961
  %v964 = vadd.f32 %v956, %v962
  %v965 = vadd.f32 %v957, %v962
  %v966 = vpack.c.bf16 %v965, %v964
  %v967 = vld [vmem:[%s16] sm:$0xf]
  %v968 = vld [vmem:[%s16 + $0x4] sm:$0xf]
  %v969 = vld [vmem:[%s16 + $0x8] sm:$0xf]
  %v970 = vld [vmem:[%s16 + $0xc] sm:$0xf]
  %v971 = vld [vmem:[%s17] sm:$0x1]
  %v973 = vlaneseq
  %v974 = vshrl.u32 %v973, 7
  %v975 = vsub.s32 0, %v974
  %v976 = vrot.slane %v971, %v975
  %v982 = vunpack.c.l.b16 %v967
  %v983 = vunpack.c.l.b16 %v968
  %v984 = vunpack.c.l.b16 %v969
  %v985 = vunpack.c.l.b16 %v970
  %v986 = vpack.c.b16 %v983, %v982
  %v987 = vpack.c.b16 %v985, %v984
  %v991 = vsel %vm145, %v966, 0
  %993 = vmatprep.subr.bf16.mxu0 0
  %994 = vmatpush1.bf16.msra.mxu0 %v986
  %995 = vmatprep.subr.bf16.mxu0 0
  %996 = vmatpush1.bf16.msra.mxu0 %v987
  %997 = vmatprep.subr.bf16.mxu0 0
  %998 = vmatpush1.bf16.msra.mxu0 0
  %999 = vmatprep.subr.bf16.mxu0 0
  %1000 = vmatpush1.bf16.msra.mxu0 0
  %1001 = vmatprep.subr.bf16.mxu0 0
  %1002 = vmatpush1.bf16.msra.mxu0 0
  %1003 = vmatprep.subr.bf16.mxu0 0
  %1004 = vmatpush1.bf16.msra.mxu0 0
  %1005 = vmatprep.subr.bf16.mxu0 0
  %1006 = vmatpush1.bf16.msra.mxu0 0
  %1007 = vmatprep.subr.bf16.mxu0 0
  %1008 = vmatpush1.bf16.msra.mxu0 0
  %1009 = vmatprep.subr.bf16.mxu0 0
  %1010 = vmatpush1.bf16.msra.mxu0 0
  %1011 = vmatprep.subr.bf16.mxu0 0
  %1012 = vmatpush1.bf16.msra.mxu0 0
  %1013 = vmatprep.subr.bf16.mxu0 0
  %1014 = vmatpush1.bf16.msra.mxu0 0
  %1015 = vmatprep.subr.bf16.mxu0 0
  %1016 = vmatpush1.bf16.msra.mxu0 0
  %1017 = vmatprep.subr.bf16.mxu0 0
  %1018 = vmatpush1.bf16.msra.mxu0 0
  %1019 = vmatprep.subr.bf16.mxu0 0
  %1020 = vmatpush1.bf16.msra.mxu0 0
  %1021 = vmatprep.subr.bf16.mxu0 0
  %1022 = vmatpush1.bf16.msra.mxu0 0
  %1023 = vmatprep.subr.bf16.mxu0 0
  %1024 = vmatpush1.bf16.msra.mxu0 0
  %1025 = vmatprep.mubr.bf16.mxu0 0
  %1026 = vmatmul.mubr.bf16.gmra.mrb[0].mxu0 %v991
  %v1027 = vpop.f32.mrb[0].mxu0
  %v1028 = vadd.f32 %v976, %v1027
  %v1029 = vpop.f32.mrb[0].mxu0
  %v1030 = vpop.f32.mrb[0].mxu0
  %v1031 = vadd.f32 %v976, %v1030
  %v1032 = vpop.f32.mrb[0].mxu0
  %1033 = vdwg.mxu0
  %v1034 = vmax.f32 %v1028, 0.0
  %v1035 = vmax.f32 %v1031, 0.0
  %v1036 = vpack.c.bf16 %v1035, %v1034
  %v1037 = vld [vmem:[%s18] sm:$0xf]
  %v1038 = vld [vmem:[%s18 + $0x4] sm:$0xf]
  %v1039 = vld [vmem:[%s18 + $0x8] sm:$0xf]
  %v1040 = vld [vmem:[%s18 + $0xc] sm:$0xf]
  %v1041 = vld [vmem:[%s19] sm:$0x1]
  %v1043 = vlaneseq
  %v1044 = vshrl.u32 %v1043, 7
  %v1045 = vsub.s32 0, %v1044
  %v1046 = vrot.slane %v1041, %v1045
  %v1052 = vunpack.c.l.b16 %v1037
  %v1053 = vunpack.c.l.b16 %v1038
  %v1054 = vunpack.c.l.b16 %v1039
  %v1055 = vunpack.c.l.b16 %v1040
  %v1056 = vpack.c.b16 %v1053, %v1052
  %v1057 = vpack.c.b16 %v1055, %v1054
  %v1061 = vsel %vm145, %v1036, 0
  %1063 = vmatprep.subr.bf16.mxu0 0
  %1064 = vmatpush1.bf16.msra.mxu0 %v1056
  %1065 = vmatprep.subr.bf16.mxu0 0
  %1066 = vmatpush1.bf16.msra.mxu0 %v1057
  %1067 = vmatprep.subr.bf16.mxu0 0
  %1068 = vmatpush1.bf16.msra.mxu0 0
  %1069 = vmatprep.subr.bf16.mxu0 0
  %1070 = vmatpush1.bf16.msra.mxu0 0
  %1071 = vmatprep.subr.bf16.mxu0 0
  %1072 = vmatpush1.bf16.msra.mxu0 0
  %1073 = vmatprep.subr.bf16.mxu0 0
  %1074 = vmatpush1.bf16.msra.mxu0 0
  %1075 = vmatprep.subr.bf16.mxu0 0
  %1076 = vmatpush1.bf16.msra.mxu0 0
  %1077 = vmatprep.subr.bf16.mxu0 0
  %1078 = vmatpush1.bf16.msra.mxu0 0
  %1079 = vmatprep.subr.bf16.mxu0 0
  %1080 = vmatpush1.bf16.msra.mxu0 0
  %1081 = vmatprep.subr.bf16.mxu0 0
  %1082 = vmatpush1.bf16.msra.mxu0 0
  %1083 = vmatprep.subr.bf16.mxu0 0
  %1084 = vmatpush1.bf16.msra.mxu0 0
  %1085 = vmatprep.subr.bf16.mxu0 0
  %1086 = vmatpush1.bf16.msra.mxu0 0
  %1087 = vmatprep.subr.bf16.mxu0 0
  %1088 = vmatpush1.bf16.msra.mxu0 0
  %1089 = vmatprep.subr.bf16.mxu0 0
  %1090 = vmatpush1.bf16.msra.mxu0 0
  %1091 = vmatprep.subr.bf16.mxu0 0
  %1092 = vmatpush1.bf16.msra.mxu0 0
  %1093 = vmatprep.subr.bf16.mxu0 0
  %1094 = vmatpush1.bf16.msra.mxu0 0
  %1095 = vmatprep.mubr.bf16.mxu0 0
  %1096 = vmatmul.mubr.bf16.gmra.mrb[0].mxu0 %v1061
  %v1097 = vpop.f32.mrb[0].mxu0
  %v1098 = vadd.f32 %v1046, %v1097
  %v1099 = vpop.f32.mrb[0].mxu0
  %v1100 = vpop.f32.mrb[0].mxu0
  %v1101 = vadd.f32 %v1046, %v1100
  %v1102 = vpop.f32.mrb[0].mxu0
  %1103 = vdwg.mxu0
  %v1104 = vadd.f32 %v964, %v1098
  %v1105 = vadd.f32 %v965, %v1101
  %v1106 = vld [vmem:[%s20] sm:$0x1]
  %v1107 = vld [vmem:[%s21] sm:$0x1]
  %v1108 = vsel %vm145, %v1104, 0.0
  %1109 = vadd.xlane.f32.xlu0 %v1108
  %v1110 = vpop.xlane.xlu0 %1109
  %v1111 = vsel %vm145, %v1105, 0.0
  %1112 = vadd.xlane.f32.xlu0 %v1111
  %v1113 = vpop.xlane.xlu0 %1112
  %v1114 = vmul.f32 %v1110, %v152
  %v1115 = vmul.f32 %v1113, %v152
  %v1116 = vsub.f32 %v1104, %v1114
  %v1117 = vsub.f32 %v1105, %v1115
  %v1118 = vmul.f32 %v1116, %v1116
  %v1119 = vmul.f32 %v1117, %v1117
  %v1120 = vsel %vm145, %v1118, 0.0
  %1121 = vadd.xlane.f32.xlu0 %v1120
  %v1122 = vpop.xlane.xlu0 %1121
  %v1123 = vsel %vm145, %v1119, 0.0
  %1124 = vadd.xlane.f32.xlu0 %v1123
  %v1125 = vpop.xlane.xlu0 %1124
  %v1126 = vmul.f32 %v1122, %v152
  %v1127 = vmul.f32 %v1125, %v152
  %v1128 = vadd.f32 %v1126, 1e-05
  %v1129 = vadd.f32 %v1127, 1e-05
  %v1130 = vrsqrt.pop %v1128
  %v1131 = vrsqrt.pop %v1129
  %v1132 = vmul.f32 %v1116, %v1130
  %v1133 = vmul.f32 %v1117, %v1131
  %v1135 = vlaneseq
  %v1136 = vshrl.u32 %v1135, 7
  %v1137 = vsub.s32 0, %v1136
  %v1138 = vrot.slane %v1106, %v1137
  %v1140 = vmul.f32 %v1132, %v1138
  %v1141 = vmul.f32 %v1133, %v1138
  %v1143 = vlaneseq
  %v1144 = vshrl.u32 %v1143, 7
  %v1145 = vsub.s32 0, %v1144
  %v1146 = vrot.slane %v1107, %v1145
  %v1148 = vadd.f32 %v1140, %v1146
  %v1149 = vadd.f32 %v1141, %v1146
  %v1150 = vpack.c.bf16 %v1149, %v1148
  %s1151 = scalar_lea.vmem %s10, 16
  %v1152 = vld [vmem:[%s1151] sm:$0xf]
  %v1153 = vld [vmem:[%s1151 + $0x4] sm:$0xf]
  %v1154 = vld [vmem:[%s1151 + $0x8] sm:$0xf]
  %v1155 = vld [vmem:[%s1151 + $0xc] sm:$0xf]
  %s1156 = scalar_lea.vmem %s11, 1
  %v1157 = vld [vmem:[%s1156] sm:$0x1]
  %v1159 = vlaneseq
  %v1160 = vshrl.u32 %v1159, 7
  %v1161 = vsub.s32 0, %v1160
  %v1162 = vrot.slane %v1157, %v1161
  %v1168 = vunpack.c.l.b16 %v1152
  %v1169 = vunpack.c.l.b16 %v1153
  %v1170 = vunpack.c.l.b16 %v1154
  %v1171 = vunpack.c.l.b16 %v1155
  %v1172 = vpack.c.b16 %v1169, %v1168
  %v1173 = vpack.c.b16 %v1171, %v1170
  %v1177 = vsel %vm145, %v1150, 0
  %1179 = vmatprep.subr.bf16.mxu0 0
  %1180 = vmatpush1.bf16.msra.mxu0 %v1172
  %1181 = vmatprep.subr.bf16.mxu0 0
  %1182 = vmatpush1.bf16.msra.mxu0 %v1173
  %1183 = vmatprep.subr.bf16.mxu0 0
  %1184 = vmatpush1.bf16.msra.mxu0 0
  %1185 = vmatprep.subr.bf16.mxu0 0
  %1186 = vmatpush1.bf16.msra.mxu0 0
  %1187 = vmatprep.subr.bf16.mxu0 0
  %1188 = vmatpush1.bf16.msra.mxu0 0
  %1189 = vmatprep.subr.bf16.mxu0 0
  %1190 = vmatpush1.bf16.msra.mxu0 0
  %1191 = vmatprep.subr.bf16.mxu0 0
  %1192 = vmatpush1.bf16.msra.mxu0 0
  %1193 = vmatprep.subr.bf16.mxu0 0
  %1194 = vmatpush1.bf16.msra.mxu0 0
  %1195 = vmatprep.subr.bf16.mxu0 0
  %1196 = vmatpush1.bf16.msra.mxu0 0
  %1197 = vmatprep.subr.bf16.mxu0 0
  %1198 = vmatpush1.bf16.msra.mxu0 0
  %1199 = vmatprep.subr.bf16.mxu0 0
  %1200 = vmatpush1.bf16.msra.mxu0 0
  %1201 = vmatprep.subr.bf16.mxu0 0
  %1202 = vmatpush1.bf16.msra.mxu0 0
  %1203 = vmatprep.subr.bf16.mxu0 0
  %1204 = vmatpush1.bf16.msra.mxu0 0
  %1205 = vmatprep.subr.bf16.mxu0 0
  %1206 = vmatpush1.bf16.msra.mxu0 0
  %1207 = vmatprep.subr.bf16.mxu0 0
  %1208 = vmatpush1.bf16.msra.mxu0 0
  %1209 = vmatprep.subr.bf16.mxu0 0
  %1210 = vmatpush1.bf16.msra.mxu0 0
  %1211 = vmatprep.mubr.bf16.mxu0 0
  %1212 = vmatmul.mubr.bf16.gmra.mrb[0].mxu0 %v1177
  %v1213 = vpop.f32.mrb[0].mxu0
  %v1214 = vadd.f32 %v1162, %v1213
  %v1215 = vpop.f32.mrb[0].mxu0
  %v1216 = vpop.f32.mrb[0].mxu0
  %v1217 = vadd.f32 %v1162, %v1216
  %v1218 = vpop.f32.mrb[0].mxu0
  %1219 = vdwg.mxu0
  %v1220 = vmul.f32 %v1214, 0.35355338
  %v1221 = vmul.f32 %v1217, 0.35355338
  %v1222 = vpack.c.bf16 %v1221, %v1220
  %v1223 = vpack.c.bf16 %v1217, %v1214
  %1225 = vrot.lane.b32.xlu0 %v1223, 96
  %v1226 = vpop.permute.xlu0 %1225
  %v1228 = vsel %vm338, %v1222, 0
  %v1231 = vsel %vm338, %v1226, 0
  %1233 = vmatprep.subr.bf16.mxu0 0
  %1234 = vmatpush1.bf16.xpose.msra.mxu0 %v1231
  %1235 = vmatprep.subr.bf16.mxu0 0
  %1236 = vmatpush1.bf16.xpose.msra.mxu0 0
  %1237 = vmatprep.subr.bf16.mxu0 0
  %1238 = vmatpush1.bf16.xpose.msra.mxu0 0
  %1239 = vmatprep.subr.bf16.mxu0 0
  %1240 = vmatpush1.bf16.xpose.msra.mxu0 0
  %1241 = vmatprep.subr.bf16.mxu0 0
  %1242 = vmatpush1.bf16.xpose.msra.mxu0 0
  %1243 = vmatprep.subr.bf16.mxu0 0
  %1244 = vmatpush1.bf16.xpose.msra.mxu0 0
  %1245 = vmatprep.subr.bf16.mxu0 0
  %1246 = vmatpush1.bf16.xpose.msra.mxu0 0
  %1247 = vmatprep.subr.bf16.mxu0 0
  %1248 = vmatpush1.bf16.xpose.msra.mxu0 0
  %1249 = vmatprep.subr.bf16.mxu0 0
  %1250 = vmatpush1.bf16.xpose.msra.mxu0 0
  %1251 = vmatprep.subr.bf16.mxu0 0
  %1252 = vmatpush1.bf16.xpose.msra.mxu0 0
  %1253 = vmatprep.subr.bf16.mxu0 0
  %1254 = vmatpush1.bf16.xpose.msra.mxu0 0
  %1255 = vmatprep.subr.bf16.mxu0 0
  %1256 = vmatpush1.bf16.xpose.msra.mxu0 0
  %1257 = vmatprep.subr.bf16.mxu0 0
  %1258 = vmatpush1.bf16.xpose.msra.mxu0 0
  %1259 = vmatprep.subr.bf16.mxu0 0
  %1260 = vmatpush1.bf16.xpose.msra.mxu0 0
  %1261 = vmatprep.subr.bf16.mxu0 0
  %1262 = vmatpush1.bf16.xpose.msra.mxu0 0
  %1263 = vmatprep.subr.bf16.mxu0 0
  %1264 = vmatpush1.bf16.xpose.msra.mxu0 0
  %1265 = vmatprep.mubr.bf16.mxu0 0
  %1266 = vmatmul.mubr.bf16.gmra.mrb[0].mxu0 %v1228
  %v1267 = vpop.f32.mrb[0].mxu0
  %v1268 = vadd.f32 %v75, %v1267
  %v1269 = vpop.f32.mrb[0].mxu0
  %v1270 = vpop.f32.mrb[0].mxu0
  %v1271 = vadd.f32 %v76, %v1270
  %v1272 = vpop.f32.mrb[0].mxu0
  %1273 = vdwg.mxu0
  %v1274 = vsel %vm386, %v1268, -inf
  %1275 = vmax.xlane.f32.xlu0 %v1274
  %v1276 = vpop.xlane.xlu0 %1275
  %v1277 = vsel %vm386, %v1271, -inf
  %1278 = vmax.xlane.f32.xlu0 %v1277
  %v1279 = vpop.xlane.xlu0 %1278
  %v1280 = vsub.f32 %v1268, %v1276
  %v1281 = vsub.f32 %v1271, %v1279
  %v1282 = vmul.f32 %v1280, 1.442695
  %v1283 = vpow.pop %v1282
  %v1284 = vmul.f32 %v1281, 1.442695
  %v1285 = vpow.pop %v1284
  %v1286 = vsel %vm386, %v1283, 0.0
  %1287 = vadd.xlane.f32.xlu0 %v1286
  %v1288 = vpop.xlane.xlu0 %1287
  %v1289 = vsel %vm386, %v1285, 0.0
  %1290 = vadd.xlane.f32.xlu0 %v1289
  %v1291 = vpop.xlane.xlu0 %1290
  %v1292 = vrcp.pop %v1288
  %v1293 = vrcp.pop %v1291
  %v1294 = vmul.f32 %v1283, %v1292
  %v1295 = vmul.f32 %v1285, %v1293
  %v1296 = vpack.c.bf16 %v1295, %v1294
  %1297 = vrot.lane.b32.xlu0 %v1223, 64
  %v1298 = vpop.permute.xlu0 %1297
  %v1301 = vsel %vm386, %v1296, 0
  %1303 = vmatprep.subr.bf16.mxu0 0
  %1304 = vmatpush1.bf16.msra.mxu0 %v1298
  %1305 = vmatprep.subr.bf16.mxu0 0
  %1306 = vmatpush1.bf16.msra.mxu0 0
  %1307 = vmatprep.subr.bf16.mxu0 0
  %1308 = vmatpush1.bf16.msra.mxu0 0
  %1309 = vmatprep.subr.bf16.mxu0 0
  %1310 = vmatpush1.bf16.msra.mxu0 0
  %1311 = vmatprep.subr.bf16.mxu0 0
  %1312 = vmatpush1.bf16.msra.mxu0 0
  %1313 = vmatprep.subr.bf16.mxu0 0
  %1314 = vmatpush1.bf16.msra.mxu0 0
  %1315 = vmatprep.subr.bf16.mxu0 0
  %1316 = vmatpush1.bf16.msra.mxu0 0
  %1317 = vmatprep.subr.bf16.mxu0 0
  %1318 = vmatpush1.bf16.msra.mxu0 0
  %1319 = vmatprep.subr.bf16.mxu0 0
  %1320 = vmatpush1.bf16.msra.mxu0 0
  %1321 = vmatprep.subr.bf16.mxu0 0
  %1322 = vmatpush1.bf16.msra.mxu0 0
  %1323 = vmatprep.subr.bf16.mxu0 0
  %1324 = vmatpush1.bf16.msra.mxu0 0
  %1325 = vmatprep.subr.bf16.mxu0 0
  %1326 = vmatpush1.bf16.msra.mxu0 0
  %1327 = vmatprep.subr.bf16.mxu0 0
  %1328 = vmatpush1.bf16.msra.mxu0 0
  %1329 = vmatprep.subr.bf16.mxu0 0
  %1330 = vmatpush1.bf16.msra.mxu0 0
  %1331 = vmatprep.subr.bf16.mxu0 0
  %1332 = vmatpush1.bf16.msra.mxu0 0
  %1333 = vmatprep.subr.bf16.mxu0 0
  %1334 = vmatpush1.bf16.msra.mxu0 0
  %1335 = vmatprep.mubr.bf16.mxu0 0
  %1336 = vmatmul.mubr.bf16.gmra.mrb[0].mxu0 %v1301
  %v1337 = vpop.f32.mrb[0].mxu0
  %v1338 = vadd.f32 0.0, %v1337
  %v1339 = vpop.f32.mrb[0].mxu0
  %v1340 = vpop.f32.mrb[0].mxu0
  %v1341 = vadd.f32 0.0, %v1340
  %v1342 = vpop.f32.mrb[0].mxu0
  %1343 = vdwg.mxu0
  %1345 = vrot.lane.b32.xlu0 %v1222, 120
  %v1346 = vpop.permute.xlu0 %1345
  %1347 = vrot.lane.b32.xlu0 %v1223, 88
  %v1348 = vpop.permute.xlu0 %1347
  %v1350 = vsel %vm338, %v1346, 0
  %v1353 = vsel %vm338, %v1348, 0
  %1355 = vmatprep.subr.bf16.mxu0 0
  %1356 = vmatpush1.bf16.xpose.msra.mxu0 %v1353
  %1357 = vmatprep.subr.bf16.mxu0 0
  %1358 = vmatpush1.bf16.xpose.msra.mxu0 0
  %1359 = vmatprep.subr.bf16.mxu0 0
  %1360 = vmatpush1.bf16.xpose.msra.mxu0 0
  %1361 = vmatprep.subr.bf16.mxu0 0
  %1362 = vmatpush1.bf16.xpose.msra.mxu0 0
  %1363 = vmatprep.subr.bf16.mxu0 0
  %1364 = vmatpush1.bf16.xpose.msra.mxu0 0
  %1365 = vmatprep.subr.bf16.mxu0 0
  %1366 = vmatpush1.bf16.xpose.msra.mxu0 0
  %1367 = vmatprep.subr.bf16.mxu0 0
  %1368 = vmatpush1.bf16.xpose.msra.mxu0 0
  %1369 = vmatprep.subr.bf16.mxu0 0
  %1370 = vmatpush1.bf16.xpose.msra.mxu0 0
  %1371 = vmatprep.subr.bf16.mxu0 0
  %1372 = vmatpush1.bf16.xpose.msra.mxu0 0
  %1373 = vmatprep.subr.bf16.mxu0 0
  %1374 = vmatpush1.bf16.xpose.msra.mxu0 0
  %1375 = vmatprep.subr.bf16.mxu0 0
  %1376 = vmatpush1.bf16.xpose.msra.mxu0 0
  %1377 = vmatprep.subr.bf16.mxu0 0
  %1378 = vmatpush1.bf16.xpose.msra.mxu0 0
  %1379 = vmatprep.subr.bf16.mxu0 0
  %1380 = vmatpush1.bf16.xpose.msra.mxu0 0
  %1381 = vmatprep.subr.bf16.mxu0 0
  %1382 = vmatpush1.bf16.xpose.msra.mxu0 0
  %1383 = vmatprep.subr.bf16.mxu0 0
  %1384 = vmatpush1.bf16.xpose.msra.mxu0 0
  %1385 = vmatprep.subr.bf16.mxu0 0
  %1386 = vmatpush1.bf16.xpose.msra.mxu0 0
  %1387 = vmatprep.mubr.bf16.mxu0 0
  %1388 = vmatmul.mubr.bf16.gmra.mrb[0].mxu0 %v1350
  %v1389 = vpop.f32.mrb[0].mxu0
  %v1390 = vadd.f32 %v75, %v1389
  %v1391 = vpop.f32.mrb[0].mxu0
  %v1392 = vpop.f32.mrb[0].mxu0
  %v1393 = vadd.f32 %v76, %v1392
  %v1394 = vpop.f32.mrb[0].mxu0
  %1395 = vdwg.mxu0
  %v1396 = vsel %vm386, %v1390, -inf
  %1397 = vmax.xlane.f32.xlu0 %v1396
  %v1398 = vpop.xlane.xlu0 %1397
  %v1399 = vsel %vm386, %v1393, -inf
  %1400 = vmax.xlane.f32.xlu0 %v1399
  %v1401 = vpop.xlane.xlu0 %1400
  %v1402 = vsub.f32 %v1390, %v1398
  %v1403 = vsub.f32 %v1393, %v1401
  %v1404 = vmul.f32 %v1402, 1.442695
  %v1405 = vpow.pop %v1404
  %v1406 = vmul.f32 %v1403, 1.442695
  %v1407 = vpow.pop %v1406
  %v1408 = vsel %vm386, %v1405, 0.0
  %1409 = vadd.xlane.f32.xlu0 %v1408
  %v1410 = vpop.xlane.xlu0 %1409
  %v1411 = vsel %vm386, %v1407, 0.0
  %1412 = vadd.xlane.f32.xlu0 %v1411
  %v1413 = vpop.xlane.xlu0 %1412
  %v1414 = vrcp.pop %v1410
  %v1415 = vrcp.pop %v1413
  %v1416 = vmul.f32 %v1405, %v1414
  %v1417 = vmul.f32 %v1407, %v1415
  %v1418 = vpack.c.bf16 %v1417, %v1416
  %1419 = vrot.lane.b32.xlu0 %v1223, 56
  %v1420 = vpop.permute.xlu0 %1419
  %v1423 = vsel %vm386, %v1418, 0
  %1425 = vmatprep.subr.bf16.mxu0 0
  %1426 = vmatpush1.bf16.msra.mxu0 %v1420
  %1427 = vmatprep.subr.bf16.mxu0 0
  %1428 = vmatpush1.bf16.msra.mxu0 0
  %1429 = vmatprep.subr.bf16.mxu0 0
  %1430 = vmatpush1.bf16.msra.mxu0 0
  %1431 = vmatprep.subr.bf16.mxu0 0
  %1432 = vmatpush1.bf16.msra.mxu0 0
  %1433 = vmatprep.subr.bf16.mxu0 0
  %1434 = vmatpush1.bf16.msra.mxu0 0
  %1435 = vmatprep.subr.bf16.mxu0 0
  %1436 = vmatpush1.bf16.msra.mxu0 0
  %1437 = vmatprep.subr.bf16.mxu0 0
  %1438 = vmatpush1.bf16.msra.mxu0 0
  %1439 = vmatprep.subr.bf16.mxu0 0
  %1440 = vmatpush1.bf16.msra.mxu0 0
  %1441 = vmatprep.subr.bf16.mxu0 0
  %1442 = vmatpush1.bf16.msra.mxu0 0
  %1443 = vmatprep.subr.bf16.mxu0 0
  %1444 = vmatpush1.bf16.msra.mxu0 0
  %1445 = vmatprep.subr.bf16.mxu0 0
  %1446 = vmatpush1.bf16.msra.mxu0 0
  %1447 = vmatprep.subr.bf16.mxu0 0
  %1448 = vmatpush1.bf16.msra.mxu0 0
  %1449 = vmatprep.subr.bf16.mxu0 0
  %1450 = vmatpush1.bf16.msra.mxu0 0
  %1451 = vmatprep.subr.bf16.mxu0 0
  %1452 = vmatpush1.bf16.msra.mxu0 0
  %1453 = vmatprep.subr.bf16.mxu0 0
  %1454 = vmatpush1.bf16.msra.mxu0 0
  %1455 = vmatprep.subr.bf16.mxu0 0
  %1456 = vmatpush1.bf16.msra.mxu0 0
  %1457 = vmatprep.mubr.bf16.mxu0 0
  %1458 = vmatmul.mubr.bf16.gmra.mrb[0].mxu0 %v1423
  %v1459 = vpop.f32.mrb[0].mxu0
  %v1460 = vadd.f32 0.0, %v1459
  %v1461 = vpop.f32.mrb[0].mxu0
  %v1462 = vpop.f32.mrb[0].mxu0
  %v1463 = vadd.f32 0.0, %v1462
  %v1464 = vpop.f32.mrb[0].mxu0
  %1465 = vdwg.mxu0
  %1466 = vrot.lane.b32.xlu0 %v1222, 112
  %v1467 = vpop.permute.xlu0 %1466
  %1468 = vrot.lane.b32.xlu0 %v1223, 80
  %v1469 = vpop.permute.xlu0 %1468
  %v1471 = vsel %vm338, %v1467, 0
  %v1474 = vsel %vm338, %v1469, 0
  %1476 = vmatprep.subr.bf16.mxu0 0
  %1477 = vmatpush1.bf16.xpose.msra.mxu0 %v1474
  %1478 = vmatprep.subr.bf16.mxu0 0
  %1479 = vmatpush1.bf16.xpose.msra.mxu0 0
  %1480 = vmatprep.subr.bf16.mxu0 0
  %1481 = vmatpush1.bf16.xpose.msra.mxu0 0
  %1482 = vmatprep.subr.bf16.mxu0 0
  %1483 = vmatpush1.bf16.xpose.msra.mxu0 0
  %1484 = vmatprep.subr.bf16.mxu0 0
  %1485 = vmatpush1.bf16.xpose.msra.mxu0 0
  %1486 = vmatprep.subr.bf16.mxu0 0
  %1487 = vmatpush1.bf16.xpose.msra.mxu0 0
  %1488 = vmatprep.subr.bf16.mxu0 0
  %1489 = vmatpush1.bf16.xpose.msra.mxu0 0
  %1490 = vmatprep.subr.bf16.mxu0 0
  %1491 = vmatpush1.bf16.xpose.msra.mxu0 0
  %1492 = vmatprep.subr.bf16.mxu0 0
  %1493 = vmatpush1.bf16.xpose.msra.mxu0 0
  %1494 = vmatprep.subr.bf16.mxu0 0
  %1495 = vmatpush1.bf16.xpose.msra.mxu0 0
  %1496 = vmatprep.subr.bf16.mxu0 0
  %1497 = vmatpush1.bf16.xpose.msra.mxu0 0
  %1498 = vmatprep.subr.bf16.mxu0 0
  %1499 = vmatpush1.bf16.xpose.msra.mxu0 0
  %1500 = vmatprep.subr.bf16.mxu0 0
  %1501 = vmatpush1.bf16.xpose.msra.mxu0 0
  %1502 = vmatprep.subr.bf16.mxu0 0
  %1503 = vmatpush1.bf16.xpose.msra.mxu0 0
  %1504 = vmatprep.subr.bf16.mxu0 0
  %1505 = vmatpush1.bf16.xpose.msra.mxu0 0
  %1506 = vmatprep.subr.bf16.mxu0 0
  %1507 = vmatpush1.bf16.xpose.msra.mxu0 0
  %1508 = vmatprep.mubr.bf16.mxu0 0
  %1509 = vmatmul.mubr.bf16.gmra.mrb[0].mxu0 %v1471
  %v1510 = vpop.f32.mrb[0].mxu0
  %v1511 = vadd.f32 %v75, %v1510
  %v1512 = vpop.f32.mrb[0].mxu0
  %v1513 = vpop.f32.mrb[0].mxu0
  %v1514 = vadd.f32 %v76, %v1513
  %v1515 = vpop.f32.mrb[0].mxu0
  %1516 = vdwg.mxu0
  %v1517 = vsel %vm386, %v1511, -inf
  %1518 = vmax.xlane.f32.xlu0 %v1517
  %v1519 = vpop.xlane.xlu0 %1518
  %v1520 = vsel %vm386, %v1514, -inf
  %1521 = vmax.xlane.f32.xlu0 %v1520
  %v1522 = vpop.xlane.xlu0 %1521
  %v1523 = vsub.f32 %v1511, %v1519
  %v1524 = vsub.f32 %v1514, %v1522
  %v1525 = vmul.f32 %v1523, 1.442695
  %v1526 = vpow.pop %v1525
  %v1527 = vmul.f32 %v1524, 1.442695
  %v1528 = vpow.pop %v1527
  %v1529 = vsel %vm386, %v1526, 0.0
  %1530 = vadd.xlane.f32.xlu0 %v1529
  %v1531 = vpop.xlane.xlu0 %1530
  %v1532 = vsel %vm386, %v1528, 0.0
  %1533 = vadd.xlane.f32.xlu0 %v1532
  %v1534 = vpop.xlane.xlu0 %1533
  %v1535 = vrcp.pop %v1531
  %v1536 = vrcp.pop %v1534
  %v1537 = vmul.f32 %v1526, %v1535
  %v1538 = vmul.f32 %v1528, %v1536
  %v1539 = vpack.c.bf16 %v1538, %v1537
  %1540 = vrot.lane.b32.xlu0 %v1223, 48
  %v1541 = vpop.permute.xlu0 %1540
  %v1544 = vsel %vm386, %v1539, 0
  %1546 = vmatprep.subr.bf16.mxu0 0
  %1547 = vmatpush1.bf16.msra.mxu0 %v1541
  %1548 = vmatprep.subr.bf16.mxu0 0
  %1549 = vmatpush1.bf16.msra.mxu0 0
  %1550 = vmatprep.subr.bf16.mxu0 0
  %1551 = vmatpush1.bf16.msra.mxu0 0
  %1552 = vmatprep.subr.bf16.mxu0 0
  %1553 = vmatpush1.bf16.msra.mxu0 0
  %1554 = vmatprep.subr.bf16.mxu0 0
  %1555 = vmatpush1.bf16.msra.mxu0 0
  %1556 = vmatprep.subr.bf16.mxu0 0
  %1557 = vmatpush1.bf16.msra.mxu0 0
  %1558 = vmatprep.subr.bf16.mxu0 0
  %1559 = vmatpush1.bf16.msra.mxu0 0
  %1560 = vmatprep.subr.bf16.mxu0 0
  %1561 = vmatpush1.bf16.msra.mxu0 0
  %1562 = vmatprep.subr.bf16.mxu0 0
  %1563 = vmatpush1.bf16.msra.mxu0 0
  %1564 = vmatprep.subr.bf16.mxu0 0
  %1565 = vmatpush1.bf16.msra.mxu0 0
  %1566 = vmatprep.subr.bf16.mxu0 0
  %1567 = vmatpush1.bf16.msra.mxu0 0
  %1568 = vmatprep.subr.bf16.mxu0 0
  %1569 = vmatpush1.bf16.msra.mxu0 0
  %1570 = vmatprep.subr.bf16.mxu0 0
  %1571 = vmatpush1.bf16.msra.mxu0 0
  %1572 = vmatprep.subr.bf16.mxu0 0
  %1573 = vmatpush1.bf16.msra.mxu0 0
  %1574 = vmatprep.subr.bf16.mxu0 0
  %1575 = vmatpush1.bf16.msra.mxu0 0
  %1576 = vmatprep.subr.bf16.mxu0 0
  %1577 = vmatpush1.bf16.msra.mxu0 0
  %1578 = vmatprep.mubr.bf16.mxu0 0
  %1579 = vmatmul.mubr.bf16.gmra.mrb[0].mxu0 %v1544
  %v1580 = vpop.f32.mrb[0].mxu0
  %v1581 = vadd.f32 0.0, %v1580
  %v1582 = vpop.f32.mrb[0].mxu0
  %v1583 = vpop.f32.mrb[0].mxu0
  %v1584 = vadd.f32 0.0, %v1583
  %v1585 = vpop.f32.mrb[0].mxu0
  %1586 = vdwg.mxu0
  %1587 = vrot.lane.b32.xlu0 %v1222, 104
  %v1588 = vpop.permute.xlu0 %1587
  %1589 = vrot.lane.b32.xlu0 %v1223, 72
  %v1590 = vpop.permute.xlu0 %1589
  %v1592 = vsel %vm338, %v1588, 0
  %v1595 = vsel %vm338, %v1590, 0
  %1597 = vmatprep.subr.bf16.mxu0 0
  %1598 = vmatpush1.bf16.xpose.msra.mxu0 %v1595
  %1599 = vmatprep.subr.bf16.mxu0 0
  %1600 = vmatpush1.bf16.xpose.msra.mxu0 0
  %1601 = vmatprep.subr.bf16.mxu0 0
  %1602 = vmatpush1.bf16.xpose.msra.mxu0 0
  %1603 = vmatprep.subr.bf16.mxu0 0
  %1604 = vmatpush1.bf16.xpose.msra.mxu0 0
  %1605 = vmatprep.subr.bf16.mxu0 0
  %1606 = vmatpush1.bf16.xpose.msra.mxu0 0
  %1607 = vmatprep.subr.bf16.mxu0 0
  %1608 = vmatpush1.bf16.xpose.msra.mxu0 0
  %1609 = vmatprep.subr.bf16.mxu0 0
  %1610 = vmatpush1.bf16.xpose.msra.mxu0 0
  %1611 = vmatprep.subr.bf16.mxu0 0
  %1612 = vmatpush1.bf16.xpose.msra.mxu0 0
  %1613 = vmatprep.subr.bf16.mxu0 0
  %1614 = vmatpush1.bf16.xpose.msra.mxu0 0
  %1615 = vmatprep.subr.bf16.mxu0 0
  %1616 = vmatpush1.bf16.xpose.msra.mxu0 0
  %1617 = vmatprep.subr.bf16.mxu0 0
  %1618 = vmatpush1.bf16.xpose.msra.mxu0 0
  %1619 = vmatprep.subr.bf16.mxu0 0
  %1620 = vmatpush1.bf16.xpose.msra.mxu0 0
  %1621 = vmatprep.subr.bf16.mxu0 0
  %1622 = vmatpush1.bf16.xpose.msra.mxu0 0
  %1623 = vmatprep.subr.bf16.mxu0 0
  %1624 = vmatpush1.bf16.xpose.msra.mxu0 0
  %1625 = vmatprep.subr.bf16.mxu0 0
  %1626 = vmatpush1.bf16.xpose.msra.mxu0 0
  %1627 = vmatprep.subr.bf16.mxu0 0
  %1628 = vmatpush1.bf16.xpose.msra.mxu0 0
  %1629 = vmatprep.mubr.bf16.mxu0 0
  %1630 = vmatmul.mubr.bf16.gmra.mrb[0].mxu0 %v1592
  %v1631 = vpop.f32.mrb[0].mxu0
  %v1632 = vadd.f32 %v75, %v1631
  %v1633 = vpop.f32.mrb[0].mxu0
  %v1634 = vpop.f32.mrb[0].mxu0
  %v1635 = vadd.f32 %v76, %v1634
  %v1636 = vpop.f32.mrb[0].mxu0
  %1637 = vdwg.mxu0
  %v1638 = vsel %vm386, %v1632, -inf
  %1639 = vmax.xlane.f32.xlu0 %v1638
  %v1640 = vpop.xlane.xlu0 %1639
  %v1641 = vsel %vm386, %v1635, -inf
  %1642 = vmax.xlane.f32.xlu0 %v1641
  %v1643 = vpop.xlane.xlu0 %1642
  %v1644 = vsub.f32 %v1632, %v1640
  %v1645 = vsub.f32 %v1635, %v1643
  %v1646 = vmul.f32 %v1644, 1.442695
  %v1647 = vpow.pop %v1646
  %v1648 = vmul.f32 %v1645, 1.442695
  %v1649 = vpow.pop %v1648
  %v1650 = vsel %vm386, %v1647, 0.0
  %1651 = vadd.xlane.f32.xlu0 %v1650
  %v1652 = vpop.xlane.xlu0 %1651
  %v1653 = vsel %vm386, %v1649, 0.0
  %1654 = vadd.xlane.f32.xlu0 %v1653
  %v1655 = vpop.xlane.xlu0 %1654
  %v1656 = vrcp.pop %v1652
  %v1657 = vrcp.pop %v1655
  %v1658 = vmul.f32 %v1647, %v1656
  %v1659 = vmul.f32 %v1649, %v1657
  %v1660 = vpack.c.bf16 %v1659, %v1658
  %1661 = vrot.lane.b32.xlu0 %v1223, 40
  %v1662 = vpop.permute.xlu0 %1661
  %v1665 = vsel %vm386, %v1660, 0
  %1667 = vmatprep.subr.bf16.mxu0 0
  %1668 = vmatpush1.bf16.msra.mxu0 %v1662
  %1669 = vmatprep.subr.bf16.mxu0 0
  %1670 = vmatpush1.bf16.msra.mxu0 0
  %1671 = vmatprep.subr.bf16.mxu0 0
  %1672 = vmatpush1.bf16.msra.mxu0 0
  %1673 = vmatprep.subr.bf16.mxu0 0
  %1674 = vmatpush1.bf16.msra.mxu0 0
  %1675 = vmatprep.subr.bf16.mxu0 0
  %1676 = vmatpush1.bf16.msra.mxu0 0
  %1677 = vmatprep.subr.bf16.mxu0 0
  %1678 = vmatpush1.bf16.msra.mxu0 0
  %1679 = vmatprep.subr.bf16.mxu0 0
  %1680 = vmatpush1.bf16.msra.mxu0 0
  %1681 = vmatprep.subr.bf16.mxu0 0
  %1682 = vmatpush1.bf16.msra.mxu0 0
  %1683 = vmatprep.subr.bf16.mxu0 0
  %1684 = vmatpush1.bf16.msra.mxu0 0
  %1685 = vmatprep.subr.bf16.mxu0 0
  %1686 = vmatpush1.bf16.msra.mxu0 0
  %1687 = vmatprep.subr.bf16.mxu0 0
  %1688 = vmatpush1.bf16.msra.mxu0 0
  %1689 = vmatprep.subr.bf16.mxu0 0
  %1690 = vmatpush1.bf16.msra.mxu0 0
  %1691 = vmatprep.subr.bf16.mxu0 0
  %1692 = vmatpush1.bf16.msra.mxu0 0
  %1693 = vmatprep.subr.bf16.mxu0 0
  %1694 = vmatpush1.bf16.msra.mxu0 0
  %1695 = vmatprep.subr.bf16.mxu0 0
  %1696 = vmatpush1.bf16.msra.mxu0 0
  %1697 = vmatprep.subr.bf16.mxu0 0
  %1698 = vmatpush1.bf16.msra.mxu0 0
  %1699 = vmatprep.mubr.bf16.mxu0 0
  %1700 = vmatmul.mubr.bf16.gmra.mrb[0].mxu0 %v1665
  %v1701 = vpop.f32.mrb[0].mxu0
  %v1702 = vadd.f32 0.0, %v1701
  %v1703 = vpop.f32.mrb[0].mxu0
  %v1704 = vpop.f32.mrb[0].mxu0
  %v1705 = vadd.f32 0.0, %v1704
  %v1706 = vpop.f32.mrb[0].mxu0
  %1707 = vdwg.mxu0
  %1710 = vrot.lane.b32.xlu0 %v1460, 8
  %v1711 = vpop.permute.xlu0 %1710
  %1712 = vrot.lane.b32.xlu0 %v1463, 8
  %v1713 = vpop.permute.xlu0 %1712
  %1718 = vrot.lane.b32.xlu0 %v1581, 16
  %v1719 = vpop.permute.xlu0 %1718
  %1720 = vrot.lane.b32.xlu0 %v1584, 16
  %v1721 = vpop.permute.xlu0 %1720
  %1726 = vrot.lane.b32.xlu0 %v1702, 24
  %v1727 = vpop.permute.xlu0 %1726
  %1728 = vrot.lane.b32.xlu0 %v1705, 24
  %v1729 = vpop.permute.xlu0 %1728
  %v1732 = vsel %vm338, %v1338, %v1711
  %v1733 = vsel %vm338, %v1341, %v1713
  %v1734 = vsel %vm386, %v1732, %v1719
  %v1735 = vsel %vm386, %v1733, %v1721
  %v1736 = vsel %vm849, %v1734, %v1727
  %v1737 = vsel %vm849, %v1735, %v1729
  %v1738 = vpack.c.bf16 %v1737, %v1736
  %s1739 = scalar_lea.vmem %s12, 16
  %v1740 = vld [vmem:[%s1739] sm:$0xf]
  %v1741 = vld [vmem:[%s1739 + $0x4] sm:$0xf]
  %v1742 = vld [vmem:[%s1739 + $0x8] sm:$0xf]
  %v1743 = vld [vmem:[%s1739 + $0xc] sm:$0xf]
  %s1744 = scalar_lea.vmem %s13, 1
  %v1745 = vld [vmem:[%s1744] sm:$0x1]
  %v1747 = vlaneseq
  %v1748 = vshrl.u32 %v1747, 7
  %v1749 = vsub.s32 0, %v1748
  %v1750 = vrot.slane %v1745, %v1749
  %v1756 = vunpack.c.l.b16 %v1740
  %v1757 = vunpack.c.l.b16 %v1741
  %v1758 = vunpack.c.l.b16 %v1742
  %v1759 = vunpack.c.l.b16 %v1743
  %v1760 = vpack.c.b16 %v1757, %v1756
  %v1761 = vpack.c.b16 %v1759, %v1758
  %v1765 = vsel %vm145, %v1738, 0
  %1767 = vmatprep.subr.bf16.mxu0 0
  %1768 = vmatpush1.bf16.msra.mxu0 %v1760
  %1769 = vmatprep.subr.bf16.mxu0 0
  %1770 = vmatpush1.bf16.msra.mxu0 %v1761
  %1771 = vmatprep.subr.bf16.mxu0 0
  %1772 = vmatpush1.bf16.msra.mxu0 0
  %1773 = vmatprep.subr.bf16.mxu0 0
  %1774 = vmatpush1.bf16.msra.mxu0 0
  %1775 = vmatprep.subr.bf16.mxu0 0
  %1776 = vmatpush1.bf16.msra.mxu0 0
  %1777 = vmatprep.subr.bf16.mxu0 0
  %1778 = vmatpush1.bf16.msra.mxu0 0
  %1779 = vmatprep.subr.bf16.mxu0 0
  %1780 = vmatpush1.bf16.msra.mxu0 0
  %1781 = vmatprep.subr.bf16.mxu0 0
  %1782 = vmatpush1.bf16.msra.mxu0 0
  %1783 = vmatprep.subr.bf16.mxu0 0
  %1784 = vmatpush1.bf16.msra.mxu0 0
  %1785 = vmatprep.subr.bf16.mxu0 0
  %1786 = vmatpush1.bf16.msra.mxu0 0
  %1787 = vmatprep.subr.bf16.mxu0 0
  %1788 = vmatpush1.bf16.msra.mxu0 0
  %1789 = vmatprep.subr.bf16.mxu0 0
  %1790 = vmatpush1.bf16.msra.mxu0 0
  %1791 = vmatprep.subr.bf16.mxu0 0
  %1792 = vmatpush1.bf16.msra.mxu0 0
  %1793 = vmatprep.subr.bf16.mxu0 0
  %1794 = vmatpush1.bf16.msra.mxu0 0
  %1795 = vmatprep.subr.bf16.mxu0 0
  %1796 = vmatpush1.bf16.msra.mxu0 0
  %1797 = vmatprep.subr.bf16.mxu0 0
  %1798 = vmatpush1.bf16.msra.mxu0 0
  %1799 = vmatprep.mubr.bf16.mxu0 0
  %1800 = vmatmul.mubr.bf16.gmra.mrb[0].mxu0 %v1765
  %v1801 = vpop.f32.mrb[0].mxu0
  %v1802 = vadd.f32 %v1750, %v1801
  %v1803 = vpop.f32.mrb[0].mxu0
  %v1804 = vpop.f32.mrb[0].mxu0
  %v1805 = vadd.f32 %v1750, %v1804
  %v1806 = vpop.f32.mrb[0].mxu0
  %1807 = vdwg.mxu0
  %v1808 = vadd.f32 %v1148, %v1802
  %v1809 = vadd.f32 %v1149, %v1805
  %s1810 = scalar_lea.vmem %s14, 1
  %v1811 = vld [vmem:[%s1810] sm:$0x1]
  %s1812 = scalar_lea.vmem %s15, 1
  %v1813 = vld [vmem:[%s1812] sm:$0x1]
  %v1814 = vsel %vm145, %v1808, 0.0
  %1815 = vadd.xlane.f32.xlu0 %v1814
  %v1816 = vpop.xlane.xlu0 %1815
  %v1817 = vsel %vm145, %v1809, 0.0
  %1818 = vadd.xlane.f32.xlu0 %v1817
  %v1819 = vpop.xlane.xlu0 %1818
  %v1820 = vmul.f32 %v1816, %v152
  %v1821 = vmul.f32 %v1819, %v152
  %v1822 = vsub.f32 %v1808, %v1820
  %v1823 = vsub.f32 %v1809, %v1821
  %v1824 = vmul.f32 %v1822, %v1822
  %v1825 = vmul.f32 %v1823, %v1823
  %v1826 = vsel %vm145, %v1824, 0.0
  %1827 = vadd.xlane.f32.xlu0 %v1826
  %v1828 = vpop.xlane.xlu0 %1827
  %v1829 = vsel %vm145, %v1825, 0.0
  %1830 = vadd.xlane.f32.xlu0 %v1829
  %v1831 = vpop.xlane.xlu0 %1830
  %v1832 = vmul.f32 %v1828, %v152
  %v1833 = vmul.f32 %v1831, %v152
  %v1834 = vadd.f32 %v1832, 1e-05
  %v1835 = vadd.f32 %v1833, 1e-05
  %v1836 = vrsqrt.pop %v1834
  %v1837 = vrsqrt.pop %v1835
  %v1838 = vmul.f32 %v1822, %v1836
  %v1839 = vmul.f32 %v1823, %v1837
  %v1841 = vlaneseq
  %v1842 = vshrl.u32 %v1841, 7
  %v1843 = vsub.s32 0, %v1842
  %v1844 = vrot.slane %v1811, %v1843
  %v1846 = vmul.f32 %v1838, %v1844
  %v1847 = vmul.f32 %v1839, %v1844
  %v1849 = vlaneseq
  %v1850 = vshrl.u32 %v1849, 7
  %v1851 = vsub.s32 0, %v1850
  %v1852 = vrot.slane %v1813, %v1851
  %v1854 = vadd.f32 %v1846, %v1852
  %v1855 = vadd.f32 %v1847, %v1852
  %v1856 = vpack.c.bf16 %v1855, %v1854
  %s1857 = scalar_lea.vmem %s16, 16
  %v1858 = vld [vmem:[%s1857] sm:$0xf]
  %v1859 = vld [vmem:[%s1857 + $0x4] sm:$0xf]
  %v1860 = vld [vmem:[%s1857 + $0x8] sm:$0xf]
  %v1861 = vld [vmem:[%s1857 + $0xc] sm:$0xf]
  %s1862 = scalar_lea.vmem %s17, 1
  %v1863 = vld [vmem:[%s1862] sm:$0x1]
  %v1865 = vlaneseq
  %v1866 = vshrl.u32 %v1865, 7
  %v1867 = vsub.s32 0, %v1866
  %v1868 = vrot.slane %v1863, %v1867
  %v1874 = vunpack.c.l.b16 %v1858
  %v1875 = vunpack.c.l.b16 %v1859
  %v1876 = vunpack.c.l.b16 %v1860
  %v1877 = vunpack.c.l.b16 %v1861
  %v1878 = vpack.c.b16 %v1875, %v1874
  %v1879 = vpack.c.b16 %v1877, %v1876
  %v1883 = vsel %vm145, %v1856, 0
  %1885 = vmatprep.subr.bf16.mxu0 0
  %1886 = vmatpush1.bf16.msra.mxu0 %v1878
  %1887 = vmatprep.subr.bf16.mxu0 0
  %1888 = vmatpush1.bf16.msra.mxu0 %v1879
  %1889 = vmatprep.subr.bf16.mxu0 0
  %1890 = vmatpush1.bf16.msra.mxu0 0
  %1891 = vmatprep.subr.bf16.mxu0 0
  %1892 = vmatpush1.bf16.msra.mxu0 0
  %1893 = vmatprep.subr.bf16.mxu0 0
  %1894 = vmatpush1.bf16.msra.mxu0 0
  %1895 = vmatprep.subr.bf16.mxu0 0
  %1896 = vmatpush1.bf16.msra.mxu0 0
  %1897 = vmatprep.subr.bf16.mxu0 0
  %1898 = vmatpush1.bf16.msra.mxu0 0
  %1899 = vmatprep.subr.bf16.mxu0 0
  %1900 = vmatpush1.bf16.msra.mxu0 0
  %1901 = vmatprep.subr.bf16.mxu0 0
  %1902 = vmatpush1.bf16.msra.mxu0 0
  %1903 = vmatprep.subr.bf16.mxu0 0
  %1904 = vmatpush1.bf16.msra.mxu0 0
  %1905 = vmatprep.subr.bf16.mxu0 0
  %1906 = vmatpush1.bf16.msra.mxu0 0
  %1907 = vmatprep.subr.bf16.mxu0 0
  %1908 = vmatpush1.bf16.msra.mxu0 0
  %1909 = vmatprep.subr.bf16.mxu0 0
  %1910 = vmatpush1.bf16.msra.mxu0 0
  %1911 = vmatprep.subr.bf16.mxu0 0
  %1912 = vmatpush1.bf16.msra.mxu0 0
  %1913 = vmatprep.subr.bf16.mxu0 0
  %1914 = vmatpush1.bf16.msra.mxu0 0
  %1915 = vmatprep.subr.bf16.mxu0 0
  %1916 = vmatpush1.bf16.msra.mxu0 0
  %1917 = vmatprep.mubr.bf16.mxu0 0
  %1918 = vmatmul.mubr.bf16.gmra.mrb[0].mxu0 %v1883
  %v1919 = vpop.f32.mrb[0].mxu0
  %v1920 = vadd.f32 %v1868, %v1919
  %v1921 = vpop.f32.mrb[0].mxu0
  %v1922 = vpop.f32.mrb[0].mxu0
  %v1923 = vadd.f32 %v1868, %v1922
  %v1924 = vpop.f32.mrb[0].mxu0
  %1925 = vdwg.mxu0
  %v1926 = vmax.f32 %v1920, 0.0
  %v1927 = vmax.f32 %v1923, 0.0
  %v1928 = vpack.c.bf16 %v1927, %v1926
  %s1929 = scalar_lea.vmem %s18, 16
  %v1930 = vld [vmem:[%s1929] sm:$0xf]
  %v1931 = vld [vmem:[%s1929 + $0x4] sm:$0xf]
  %v1932 = vld [vmem:[%s1929 + $0x8] sm:$0xf]
  %v1933 = vld [vmem:[%s1929 + $0xc] sm:$0xf]
  %s1934 = scalar_lea.vmem %s19, 1
  %v1935 = vld [vmem:[%s1934] sm:$0x1]
  %v1937 = vlaneseq
  %v1938 = vshrl.u32 %v1937, 7
  %v1939 = vsub.s32 0, %v1938
  %v1940 = vrot.slane %v1935, %v1939
  %v1946 = vunpack.c.l.b16 %v1930
  %v1947 = vunpack.c.l.b16 %v1931
  %v1948 = vunpack.c.l.b16 %v1932
  %v1949 = vunpack.c.l.b16 %v1933
  %v1950 = vpack.c.b16 %v1947, %v1946
  %v1951 = vpack.c.b16 %v1949, %v1948
  %v1955 = vsel %vm145, %v1928, 0
  %1957 = vmatprep.subr.bf16.mxu0 0
  %1958 = vmatpush1.bf16.msra.mxu0 %v1950
  %1959 = vmatprep.subr.bf16.mxu0 0
  %1960 = vmatpush1.bf16.msra.mxu0 %v1951
  %1961 = vmatprep.subr.bf16.mxu0 0
  %1962 = vmatpush1.bf16.msra.mxu0 0
  %1963 = vmatprep.subr.bf16.mxu0 0
  %1964 = vmatpush1.bf16.msra.mxu0 0
  %1965 = vmatprep.subr.bf16.mxu0 0
  %1966 = vmatpush1.bf16.msra.mxu0 0
  %1967 = vmatprep.subr.bf16.mxu0 0
  %1968 = vmatpush1.bf16.msra.mxu0 0
  %1969 = vmatprep.subr.bf16.mxu0 0
  %1970 = vmatpush1.bf16.msra.mxu0 0
  %1971 = vmatprep.subr.bf16.mxu0 0
  %1972 = vmatpush1.bf16.msra.mxu0 0
  %1973 = vmatprep.subr.bf16.mxu0 0
  %1974 = vmatpush1.bf16.msra.mxu0 0
  %1975 = vmatprep.subr.bf16.mxu0 0
  %1976 = vmatpush1.bf16.msra.mxu0 0
  %1977 = vmatprep.subr.bf16.mxu0 0
  %1978 = vmatpush1.bf16.msra.mxu0 0
  %1979 = vmatprep.subr.bf16.mxu0 0
  %1980 = vmatpush1.bf16.msra.mxu0 0
  %1981 = vmatprep.subr.bf16.mxu0 0
  %1982 = vmatpush1.bf16.msra.mxu0 0
  %1983 = vmatprep.subr.bf16.mxu0 0
  %1984 = vmatpush1.bf16.msra.mxu0 0
  %1985 = vmatprep.subr.bf16.mxu0 0
  %1986 = vmatpush1.bf16.msra.mxu0 0
  %1987 = vmatprep.subr.bf16.mxu0 0
  %1988 = vmatpush1.bf16.msra.mxu0 0
  %1989 = vmatprep.mubr.bf16.mxu0 0
  %1990 = vmatmul.mubr.bf16.gmra.mrb[0].mxu0 %v1955
  %v1991 = vpop.f32.mrb[0].mxu0
  %v1992 = vadd.f32 %v1940, %v1991
  %v1993 = vpop.f32.mrb[0].mxu0
  %v1994 = vpop.f32.mrb[0].mxu0
  %v1995 = vadd.f32 %v1940, %v1994
  %v1996 = vpop.f32.mrb[0].mxu0
  %1997 = vdwg.mxu0
  %v1998 = vadd.f32 %v1854, %v1992
  %v1999 = vadd.f32 %v1855, %v1995
  %s2000 = scalar_lea.vmem %s20, 1
  %v2001 = vld [vmem:[%s2000] sm:$0x1]
  %s2002 = scalar_lea.vmem %s21, 1
  %v2003 = vld [vmem:[%s2002] sm:$0x1]
  %v2004 = vsel %vm145, %v1998, 0.0
  %2005 = vadd.xlane.f32.xlu0 %v2004
  %v2006 = vpop.xlane.xlu0 %2005
  %v2007 = vsel %vm145, %v1999, 0.0
  %2008 = vadd.xlane.f32.xlu0 %v2007
  %v2009 = vpop.xlane.xlu0 %2008
  %v2010 = vmul.f32 %v2006, %v152
  %v2011 = vmul.f32 %v2009, %v152
  %v2012 = vsub.f32 %v1998, %v2010
  %v2013 = vsub.f32 %v1999, %v2011
  %v2014 = vmul.f32 %v2012, %v2012
  %v2015 = vmul.f32 %v2013, %v2013
  %v2016 = vsel %vm145, %v2014, 0.0
  %2017 = vadd.xlane.f32.xlu0 %v2016
  %v2018 = vpop.xlane.xlu0 %2017
  %v2019 = vsel %vm145, %v2015, 0.0
  %2020 = vadd.xlane.f32.xlu0 %v2019
  %v2021 = vpop.xlane.xlu0 %2020
  %v2022 = vmul.f32 %v2018, %v152
  %v2023 = vmul.f32 %v2021, %v152
  %v2024 = vadd.f32 %v2022, 1e-05
  %v2025 = vadd.f32 %v2023, 1e-05
  %v2026 = vrsqrt.pop %v2024
  %v2027 = vrsqrt.pop %v2025
  %v2028 = vmul.f32 %v2012, %v2026
  %v2029 = vmul.f32 %v2013, %v2027
  %v2031 = vlaneseq
  %v2032 = vshrl.u32 %v2031, 7
  %v2033 = vsub.s32 0, %v2032
  %v2034 = vrot.slane %v2001, %v2033
  %v2036 = vmul.f32 %v2028, %v2034
  %v2037 = vmul.f32 %v2029, %v2034
  %v2039 = vlaneseq
  %v2040 = vshrl.u32 %v2039, 7
  %v2041 = vsub.s32 0, %v2040
  %v2042 = vrot.slane %v2003, %v2041
  %v2044 = vadd.f32 %v2036, %v2042
  %v2045 = vadd.f32 %v2037, %v2042
  %v2046 = vld [vmem:[%s3] sm:$0xff]
  %v2047 = vld [vmem:[%s3 + $0x8] sm:$0xff]
  %2049 = vset.pattern.permute.xlu0 0
  %2050 = vperm.xlu0 %2049, %v2046
  %v2051 = vpop.permute.xlu0 %2050
  %2054 = vset.pattern.permute.xlu0 0
  %2055 = vperm.xlu0 %2054, %v2047
  %v2056 = vpop.permute.xlu0 %2055
  %v2058 = vadd.f32 %v2044, %v2051
  %v2059 = vadd.f32 %v2045, %v2056
  %v2060 = vsel %vm145, %v2058, -inf
  %v2061 = vrot.slane %v2060, 4
  %v2062 = vmax.f32 %v2060, %v2061
  %v2063 = vrot.slane %v2062, 2
  %v2064 = vmax.f32 %v2062, %v2063
  %v2065 = vrot.slane %v2064, 1
  %v2066 = vmax.f32 %v2064, %v2065
  %v2067 = vsel %vm145, %v2059, -inf
  %v2068 = vrot.slane %v2067, 4
  %v2069 = vmax.f32 %v2067, %v2068
  %v2070 = vrot.slane %v2069, 2
  %v2071 = vmax.f32 %v2069, %v2070
  %v2072 = vrot.slane %v2071, 1
  %v2073 = vmax.f32 %v2071, %v2072
  %vm2074 = vcmask 1040384
  %v2075 = vsel %vm2074, %v2066, %v2073
  %v2076 = vpack.c.bf16 %v2075, %v2075
  %v2077 = vld [vmem:[%s22] sm:$0xf]
  %v2078 = vld [vmem:[%s22 + $0x4] sm:$0xf]
  %v2079 = vld [vmem:[%s22 + $0x8] sm:$0xf]
  %v2080 = vld [vmem:[%s22 + $0xc] sm:$0xf]
  %v2085 = vunpack.c.l.b16 %v2077
  %v2086 = vunpack.c.l.b16 %v2078
  %v2087 = vunpack.c.l.b16 %v2079
  %v2088 = vunpack.c.l.b16 %v2080
  %v2089 = vpack.c.b16 %v2086, %v2085
  %v2090 = vpack.c.b16 %v2088, %v2087
  %v2094 = vsel %vm145, %v2076, 0
  %2096 = vmatprep.subr.bf16.mxu0 0
  %2097 = vmatpush1.bf16.msra.mxu0 %v2089
  %2098 = vmatprep.subr.bf16.mxu0 0
  %2099 = vmatpush1.bf16.msra.mxu0 %v2090
  %2100 = vmatprep.subr.bf16.mxu0 0
  %2101 = vmatpush1.bf16.msra.mxu0 0
  %2102 = vmatprep.subr.bf16.mxu0 0
  %2103 = vmatpush1.bf16.msra.mxu0 0
  %2104 = vmatprep.subr.bf16.mxu0 0
  %2105 = vmatpush1.bf16.msra.mxu0 0
  %2106 = vmatprep.subr.bf16.mxu0 0
  %2107 = vmatpush1.bf16.msra.mxu0 0
  %2108 = vmatprep.subr.bf16.mxu0 0
  %2109 = vmatpush1.bf16.msra.mxu0 0
  %2110 = vmatprep.subr.bf16.mxu0 0
  %2111 = vmatpush1.bf16.msra.mxu0 0
  %2112 = vmatprep.subr.bf16.mxu0 0
  %2113 = vmatpush1.bf16.msra.mxu0 0
  %2114 = vmatprep.subr.bf16.mxu0 0
  %2115 = vmatpush1.bf16.msra.mxu0 0
  %2116 = vmatprep.subr.bf16.mxu0 0
  %2117 = vmatpush1.bf16.msra.mxu0 0
  %2118 = vmatprep.subr.bf16.mxu0 0
  %2119 = vmatpush1.bf16.msra.mxu0 0
  %2120 = vmatprep.subr.bf16.mxu0 0
  %2121 = vmatpush1.bf16.msra.mxu0 0
  %2122 = vmatprep.subr.bf16.mxu0 0
  %2123 = vmatpush1.bf16.msra.mxu0 0
  %2124 = vmatprep.subr.bf16.mxu0 0
  %2125 = vmatpush1.bf16.msra.mxu0 0
  %2126 = vmatprep.subr.bf16.mxu0 0
  %2127 = vmatpush1.bf16.msra.mxu0 0
  %2128 = vmatprep.mubr.bf16.mxu0 0
  %2129 = vmatmul.mubr.bf16.gmra.mrb[0].mxu0 %v2094
  %v2130 = vpop.f32.mrb[0].mxu0
  %v2131 = vadd.f32 0.0, %v2130
  %v2132 = vpop.f32.mrb[0].mxu0
  %v2133 = vpop.f32.mrb[0].mxu0
  %v2134 = vpop.f32.mrb[0].mxu0
  %2135 = vdwg.mxu0
  %vm2136 = vcmask 123904
  %2137 = vst.msk [vmem:[%s23] sm:$0x3] %vm2136, %v2131
  // Predicated region
  $region94: #{downstream_forward.2} parent=0 // pred_check
    _
  $region95: #{downstream_forward.2} parent=0 // pred_check_branch
    %2139 = sbr.rel (0) target = $region97
  $region96: #{downstream_forward.2} parent=0 // pred_region
    _
  $region97: #{downstream_forward.2} parent=0 // pred_fallthru
    _
  // Predicated region
  $region98: #{downstream_forward.2} parent=0 // pred_check
    _
  $region99: #{downstream_forward.2} parent=0 // pred_check_branch
    %2141 = sbr.rel (0) target = $region101
  $region100: #{downstream_forward.2} parent=0 // pred_region
    _
  $region101: #{downstream_forward.2} parent=0 // pred_fallthru
    _

// kernel: downstream_forward.3
$region0: #{downstream_forward.3}
  #allocation0 [shape = 'u32[]', space=smem, size = 0x4, offset = 0x4, fixed_abs, tag = 'smem constant byte address 0x4 - core index']
  #allocation1 [shape = 'u32[144,128]{1,0:T(1,128)}', space=vmem, size = 0x12000, scoped, tag = 'internal scratch']
  %s0 = inlined_call_operand.vmem [shape: f32[112,24], index: 0, kind: input, shape index: {}]
  %s1 = inlined_call_operand.vmem [shape: f32[112,32], index: 1, kind: input, shape index: {}]
  %s2 = inlined_call_operand.vmem [shape: f32[112,112], index: 2, kind: input, shape index: {}]
  %s3 = inlined_call_operand.vmem [shape: f32[112,1], index: 3, kind: input, shape index: {}]
  %s4 = inlined_call_operand.vmem [shape: bf16[24,32], index: 4, kind: input, shape index: {}]
  %s5 = inlined_call_operand.vmem [shape: f32[1,32], index: 5, kind: input, shape index: {}]
  %s6 = inlined_call_operand.vmem [shape: f32[1,32], index: 6, kind: input, shape index: {}]
  %s7 = inlined_call_operand.vmem [shape: f32[1,32], index: 7, kind: input, shape index: {}]
  %s8 = inlined_call_operand.vmem [shape: bf16[32,32], index: 8, kind: input, shape index: {}]
  %s9 = inlined_call_operand.vmem [shape: f32[1,32], index: 9, kind: input, shape index: {}]
  %s10 = inlined_call_operand.vmem [shape: bf16[2,32,96], index: 10, kind: input, shape index: {}]
  %s11 = inlined_call_operand.vmem [shape: f32[2,1,96], index: 11, kind: input, shape index: {}]
  %s12 = inlined_call_operand.vmem [shape: bf16[2,32,32], index: 12, kind: input, shape index: {}]
  %s13 = inlined_call_operand.vmem [shape: f32[2,1,32], index: 13, kind: input, shape index: {}]
  %s14 = inlined_call_operand.vmem [shape: f32[2,1,32], index: 14, kind: input, shape index: {}]
  %s15 = inlined_call_operand.vmem [shape: f32[2,1,32], index: 15, kind: input, shape index: {}]
  %s16 = inlined_call_operand.vmem [shape: bf16[2,32,32], index: 16, kind: input, shape index: {}]
  %s17 = inlined_call_operand.vmem [shape: f32[2,1,32], index: 17, kind: input, shape index: {}]
  %s18 = inlined_call_operand.vmem [shape: bf16[2,32,32], index: 18, kind: input, shape index: {}]
  %s19 = inlined_call_operand.vmem [shape: f32[2,1,32], index: 19, kind: input, shape index: {}]
  %s20 = inlined_call_operand.vmem [shape: f32[2,1,32], index: 20, kind: input, shape index: {}]
  %s21 = inlined_call_operand.vmem [shape: f32[2,1,32], index: 21, kind: input, shape index: {}]
  %s22 = inlined_call_operand.vmem [shape: bf16[32,16], index: 22, kind: input, shape index: {}]
  %s23 = inlined_call_operand.vmem [shape: f32[2,16], index: 23, kind: output, shape index: {}]
  %s24 = sld [smem:[#allocation0]]
  $region102: #{downstream_forward.3} parent=0
    _
  %s26 = ssub.s32 1, %s24
  %s27 = scalar_select 0, %s26, %s24
  // Predicated region
  $region2: #{downstream_forward.3} parent=0 // pred_check
    _
  $region3: #{downstream_forward.3} parent=0 // pred_check_branch
    %29 = sbr.rel (0) target = $region5
  $region4: #{downstream_forward.3} parent=0 // pred_region
    _
  $region5: #{downstream_forward.3} parent=0 // pred_fallthru
    _
  // Predicated region
  $region6: #{downstream_forward.3} parent=0 // pred_check
    _
  $region7: #{downstream_forward.3} parent=0 // pred_check_branch
    %31 = sbr.rel (0) target = $region9
  $region8: #{downstream_forward.3} parent=0 // pred_region
    _
  $region9: #{downstream_forward.3} parent=0 // pred_fallthru
    _
  // Predicated region
  $region10: #{downstream_forward.3} parent=0 // pred_check
    _
  $region11: #{downstream_forward.3} parent=0 // pred_check_branch
    %33 = sbr.rel (0) target = $region13
  $region12: #{downstream_forward.3} parent=0 // pred_region
    _
  $region13: #{downstream_forward.3} parent=0 // pred_fallthru
    _
  // Predicated region
  $region14: #{downstream_forward.3} parent=0 // pred_check
    _
  $region15: #{downstream_forward.3} parent=0 // pred_check_branch
    %35 = sbr.rel (0) target = $region17
  $region16: #{downstream_forward.3} parent=0 // pred_region
    _
  $region17: #{downstream_forward.3} parent=0 // pred_fallthru
    _
  // Predicated region
  $region18: #{downstream_forward.3} parent=0 // pred_check
    _
  $region19: #{downstream_forward.3} parent=0 // pred_check_branch
    %37 = sbr.rel (0) target = $region21
  $region20: #{downstream_forward.3} parent=0 // pred_region
    _
  $region21: #{downstream_forward.3} parent=0 // pred_fallthru
    _
  // Predicated region
  $region22: #{downstream_forward.3} parent=0 // pred_check
    _
  $region23: #{downstream_forward.3} parent=0 // pred_check_branch
    %39 = sbr.rel (0) target = $region25
  $region24: #{downstream_forward.3} parent=0 // pred_region
    _
  $region25: #{downstream_forward.3} parent=0 // pred_fallthru
    _
  // Predicated region
  $region26: #{downstream_forward.3} parent=0 // pred_check
    _
  $region27: #{downstream_forward.3} parent=0 // pred_check_branch
    %41 = sbr.rel (0) target = $region29
  $region28: #{downstream_forward.3} parent=0 // pred_region
    _
  $region29: #{downstream_forward.3} parent=0 // pred_fallthru
    _
  // Predicated region
  $region30: #{downstream_forward.3} parent=0 // pred_check
    _
  $region31: #{downstream_forward.3} parent=0 // pred_check_branch
    %43 = sbr.rel (0) target = $region33
  $region32: #{downstream_forward.3} parent=0 // pred_region
    _
  $region33: #{downstream_forward.3} parent=0 // pred_fallthru
    _
  // Predicated region
  $region34: #{downstream_forward.3} parent=0 // pred_check
    _
  $region35: #{downstream_forward.3} parent=0 // pred_check_branch
    %45 = sbr.rel (0) target = $region37
  $region36: #{downstream_forward.3} parent=0 // pred_region
    _
  $region37: #{downstream_forward.3} parent=0 // pred_fallthru
    _
  // Predicated region
  $region38: #{downstream_forward.3} parent=0 // pred_check
    _
  $region39: #{downstream_forward.3} parent=0 // pred_check_branch
    %47 = sbr.rel (0) target = $region41
  $region40: #{downstream_forward.3} parent=0 // pred_region
    _
  $region41: #{downstream_forward.3} parent=0 // pred_fallthru
    _
  // Predicated region
  $region42: #{downstream_forward.3} parent=0 // pred_check
    _
  $region43: #{downstream_forward.3} parent=0 // pred_check_branch
    %49 = sbr.rel (0) target = $region45
  $region44: #{downstream_forward.3} parent=0 // pred_region
    _
  $region45: #{downstream_forward.3} parent=0 // pred_fallthru
    _
  // Predicated region
  $region46: #{downstream_forward.3} parent=0 // pred_check
    _
  $region47: #{downstream_forward.3} parent=0 // pred_check_branch
    %51 = sbr.rel (0) target = $region49
  $region48: #{downstream_forward.3} parent=0 // pred_region
    _
  $region49: #{downstream_forward.3} parent=0 // pred_fallthru
    _
  // Predicated region
  $region50: #{downstream_forward.3} parent=0 // pred_check
    _
  $region51: #{downstream_forward.3} parent=0 // pred_check_branch
    %53 = sbr.rel (0) target = $region53
  $region52: #{downstream_forward.3} parent=0 // pred_region
    _
  $region53: #{downstream_forward.3} parent=0 // pred_fallthru
    _
  // Predicated region
  $region54: #{downstream_forward.3} parent=0 // pred_check
    _
  $region55: #{downstream_forward.3} parent=0 // pred_check_branch
    %55 = sbr.rel (0) target = $region57
  $region56: #{downstream_forward.3} parent=0 // pred_region
    _
  $region57: #{downstream_forward.3} parent=0 // pred_fallthru
    _
  // Predicated region
  $region58: #{downstream_forward.3} parent=0 // pred_check
    _
  $region59: #{downstream_forward.3} parent=0 // pred_check_branch
    %57 = sbr.rel (0) target = $region61
  $region60: #{downstream_forward.3} parent=0 // pred_region
    _
  $region61: #{downstream_forward.3} parent=0 // pred_fallthru
    _
  // Predicated region
  $region62: #{downstream_forward.3} parent=0 // pred_check
    _
  $region63: #{downstream_forward.3} parent=0 // pred_check_branch
    %59 = sbr.rel (0) target = $region65
  $region64: #{downstream_forward.3} parent=0 // pred_region
    _
  $region65: #{downstream_forward.3} parent=0 // pred_fallthru
    _
  // Predicated region
  $region66: #{downstream_forward.3} parent=0 // pred_check
    _
  $region67: #{downstream_forward.3} parent=0 // pred_check_branch
    %61 = sbr.rel (0) target = $region69
  $region68: #{downstream_forward.3} parent=0 // pred_region
    _
  $region69: #{downstream_forward.3} parent=0 // pred_fallthru
    _
  // Predicated region
  $region70: #{downstream_forward.3} parent=0 // pred_check
    _
  $region71: #{downstream_forward.3} parent=0 // pred_check_branch
    %63 = sbr.rel (0) target = $region73
  $region72: #{downstream_forward.3} parent=0 // pred_region
    _
  $region73: #{downstream_forward.3} parent=0 // pred_fallthru
    _
  // Predicated region
  $region74: #{downstream_forward.3} parent=0 // pred_check
    _
  $region75: #{downstream_forward.3} parent=0 // pred_check_branch
    %65 = sbr.rel (0) target = $region77
  $region76: #{downstream_forward.3} parent=0 // pred_region
    _
  $region77: #{downstream_forward.3} parent=0 // pred_fallthru
    _
  // Predicated region
  $region78: #{downstream_forward.3} parent=0 // pred_check
    _
  $region79: #{downstream_forward.3} parent=0 // pred_check_branch
    %67 = sbr.rel (0) target = $region81
  $region80: #{downstream_forward.3} parent=0 // pred_region
    _
  $region81: #{downstream_forward.3} parent=0 // pred_fallthru
    _
  // Predicated region
  $region82: #{downstream_forward.3} parent=0 // pred_check
    _
  $region83: #{downstream_forward.3} parent=0 // pred_check_branch
    %69 = sbr.rel (0) target = $region85
  $region84: #{downstream_forward.3} parent=0 // pred_region
    _
  $region85: #{downstream_forward.3} parent=0 // pred_fallthru
    _
  // Predicated region
  $region86: #{downstream_forward.3} parent=0 // pred_check
    _
  $region87: #{downstream_forward.3} parent=0 // pred_check_branch
    %71 = sbr.rel (0) target = $region89
  $region88: #{downstream_forward.3} parent=0 // pred_region
    _
  $region89: #{downstream_forward.3} parent=0 // pred_fallthru
    _
  // Predicated region
  $region90: #{downstream_forward.3} parent=0 // pred_check
    _
  $region91: #{downstream_forward.3} parent=0 // pred_check_branch
    %73 = sbr.rel (0) target = $region93
  $region92: #{downstream_forward.3} parent=0 // pred_region
    _
  $region93: #{downstream_forward.3} parent=0 // pred_fallthru
    _
  %v75 = vld [vmem:[%s2] sm:$0xff]
  %v76 = vld [vmem:[%s2 + $0x8] sm:$0xff]
  %v77 = vld [vmem:[%s2 + $0x10] sm:$0xff]
  %v78 = vld [vmem:[%s2 + $0x18] sm:$0xff]
  %v79 = vld [vmem:[%s2 + $0x20] sm:$0xff]
  %v80 = vld [vmem:[%s2 + $0x28] sm:$0xff]
  %v81 = vld [vmem:[%s2 + $0x30] sm:$0xff]
  %v82 = vld [vmem:[%s2 + $0x38] sm:$0xff]
  %v83 = vld [vmem:[%s2 + $0x40] sm:$0xff]
  %v84 = vld [vmem:[%s2 + $0x48] sm:$0xff]
  %v85 = vld [vmem:[%s2 + $0x50] sm:$0xff]
  %v86 = vld [vmem:[%s2 + $0x58] sm:$0xff]
  %v87 = vld [vmem:[%s2 + $0x60] sm:$0xff]
  %v88 = vld [vmem:[%s2 + $0x68] sm:$0xff]
  %v89 = vld [vmem:[%s0] sm:$0xff]
  %v90 = vld [vmem:[%s0 + $0x8] sm:$0xff]
  %v91 = vld [vmem:[%s0 + $0x10] sm:$0xff]
  %v92 = vld [vmem:[%s0 + $0x18] sm:$0xff]
  %v93 = vld [vmem:[%s0 + $0x20] sm:$0xff]
  %v94 = vld [vmem:[%s0 + $0x28] sm:$0xff]
  %v95 = vld [vmem:[%s0 + $0x30] sm:$0xff]
  %v96 = vld [vmem:[%s0 + $0x38] sm:$0xff]
  %v97 = vld [vmem:[%s0 + $0x40] sm:$0xff]
  %v98 = vld [vmem:[%s0 + $0x48] sm:$0xff]
  %v99 = vld [vmem:[%s0 + $0x50] sm:$0xff]
  %v100 = vld [vmem:[%s0 + $0x58] sm:$0xff]
  %v101 = vld [vmem:[%s0 + $0x60] sm:$0xff]
  %v102 = vld [vmem:[%s0 + $0x68] sm:$0xff]
  %v103 = vpack.c.bf16 %v90, %v89
  %v104 = vpack.c.bf16 %v92, %v91
  %v105 = vpack.c.bf16 %v94, %v93
  %v106 = vpack.c.bf16 %v96, %v95
  %v107 = vpack.c.bf16 %v98, %v97
  %v108 = vpack.c.bf16 %v100, %v99
  %v109 = vpack.c.bf16 %v102, %v101
  %v110 = vld [vmem:[%s4] sm:$0xf]
  %v111 = vld [vmem:[%s4 + $0x4] sm:$0xf]
  %v112 = vld [vmem:[%s4 + $0x8] sm:$0xf]
  %v113 = vld [vmem:[%s5] sm:$0x1]
  %v115 = vlaneseq
  %v116 = vshrl.u32 %v115, 7
  %v117 = vsub.s32 0, %v116
  %v118 = vrot.slane %v113, %v117
  %v123 = vunpack.c.l.b16 %v110
  %v124 = vunpack.c.l.b16 %v111
  %v125 = vunpack.c.l.b16 %v112
  %v126 = vpack.c.b16 %v124, %v123
  %v127 = vpack.c.b16 %v125, %v125
  %vm129 = vcmask 195584
  %v131 = vsel %vm129, %v103, 0
  %v134 = vsel %vm129, %v104, 0
  %v137 = vsel %vm129, %v105, 0
  %v140 = vsel %vm129, %v106, 0
  %v143 = vsel %vm129, %v107, 0
  %v146 = vsel %vm129, %v108, 0
  %v149 = vsel %vm129, %v109, 0
  %vm151 = vcmask 1043456
  %v153 = vsel %vm151, %v127, 0
  %155 = vmatprep.subr.bf16.mxu0 0
  %156 = vmatpush1.bf16.msra.mxu0 %v126
  %157 = vmatprep.subr.bf16.mxu0 0
  %158 = vmatpush1.bf16.msra.mxu0 %v153
  %159 = vmatprep.subr.bf16.mxu0 0
  %160 = vmatpush1.bf16.msra.mxu0 0
  %161 = vmatprep.subr.bf16.mxu0 0
  %162 = vmatpush1.bf16.msra.mxu0 0
  %163 = vmatprep.subr.bf16.mxu0 0
  %164 = vmatpush1.bf16.msra.mxu0 0
  %165 = vmatprep.subr.bf16.mxu0 0
  %166 = vmatpush1.bf16.msra.mxu0 0
  %167 = vmatprep.subr.bf16.mxu0 0
  %168 = vmatpush1.bf16.msra.mxu0 0
  %169 = vmatprep.subr.bf16.mxu0 0
  %170 = vmatpush1.bf16.msra.mxu0 0
  %171 = vmatprep.subr.bf16.mxu0 0
  %172 = vmatpush1.bf16.msra.mxu0 0
  %173 = vmatprep.subr.bf16.mxu0 0
  %174 = vmatpush1.bf16.msra.mxu0 0
  %175 = vmatprep.subr.bf16.mxu0 0
  %176 = vmatpush1.bf16.msra.mxu0 0
  %177 = vmatprep.subr.bf16.mxu0 0
  %178 = vmatpush1.bf16.msra.mxu0 0
  %179 = vmatprep.subr.bf16.mxu0 0
  %180 = vmatpush1.bf16.msra.mxu0 0
  %181 = vmatprep.subr.bf16.mxu0 0
  %182 = vmatpush1.bf16.msra.mxu0 0
  %183 = vmatprep.subr.bf16.mxu0 0
  %184 = vmatpush1.bf16.msra.mxu0 0
  %185 = vmatprep.subr.bf16.mxu0 0
  %186 = vmatpush1.bf16.msra.mxu0 0
  %187 = vmatprep.mubr.bf16.mxu0 0
  %188 = vmatmul.mubr.bf16.gmra.mrb[0].mxu0 %v131
  %v189 = vpop.f32.mrb[0].mxu0
  %v190 = vadd.f32 %v118, %v189
  %v191 = vpop.f32.mrb[0].mxu0
  %v192 = vpop.f32.mrb[0].mxu0
  %v193 = vadd.f32 %v118, %v192
  %v194 = vpop.f32.mrb[0].mxu0
  %195 = vmatprep.mubr.bf16.mxu0 0
  %196 = vmatmul.mubr.bf16.gmra.mrb[0].mxu0 %v134
  %v197 = vpop.f32.mrb[0].mxu0
  %v198 = vadd.f32 %v118, %v197
  %v199 = vpop.f32.mrb[0].mxu0
  %v200 = vpop.f32.mrb[0].mxu0
  %v201 = vadd.f32 %v118, %v200
  %v202 = vpop.f32.mrb[0].mxu0
  %203 = vmatprep.mubr.bf16.mxu0 0
  %204 = vmatmul.mubr.bf16.gmra.mrb[0].mxu0 %v137
  %v205 = vpop.f32.mrb[0].mxu0
  %v206 = vadd.f32 %v118, %v205
  %v207 = vpop.f32.mrb[0].mxu0
  %v208 = vpop.f32.mrb[0].mxu0
  %v209 = vadd.f32 %v118, %v208
  %v210 = vpop.f32.mrb[0].mxu0
  %211 = vmatprep.mubr.bf16.mxu0 0
  %212 = vmatmul.mubr.bf16.gmra.mrb[0].mxu0 %v140
  %v213 = vpop.f32.mrb[0].mxu0
  %v214 = vadd.f32 %v118, %v213
  %v215 = vpop.f32.mrb[0].mxu0
  %v216 = vpop.f32.mrb[0].mxu0
  %v217 = vadd.f32 %v118, %v216
  %v218 = vpop.f32.mrb[0].mxu0
  %219 = vmatprep.mubr.bf16.mxu0 0
  %220 = vmatmul.mubr.bf16.gmra.mrb[0].mxu0 %v143
  %v221 = vpop.f32.mrb[0].mxu0
  %v222 = vadd.f32 %v118, %v221
  %v223 = vpop.f32.mrb[0].mxu0
  %v224 = vpop.f32.mrb[0].mxu0
  %v225 = vadd.f32 %v118, %v224
  %v226 = vpop.f32.mrb[0].mxu0
  %227 = vmatprep.mubr.bf16.mxu0 0
  %228 = vmatmul.mubr.bf16.gmra.mrb[0].mxu0 %v146
  %v229 = vpop.f32.mrb[0].mxu0
  %v230 = vadd.f32 %v118, %v229
  %v231 = vpop.f32.mrb[0].mxu0
  %v232 = vpop.f32.mrb[0].mxu0
  %v233 = vadd.f32 %v118, %v232
  %v234 = vpop.f32.mrb[0].mxu0
  %235 = vmatprep.mubr.bf16.mxu0 0
  %236 = vmatmul.mubr.bf16.gmra.mrb[0].mxu0 %v149
  %v237 = vpop.f32.mrb[0].mxu0
  %v238 = vadd.f32 %v118, %v237
  %v239 = vpop.f32.mrb[0].mxu0
  %v240 = vpop.f32.mrb[0].mxu0
  %v241 = vadd.f32 %v118, %v240
  %v242 = vpop.f32.mrb[0].mxu0
  %243 = vdwg.mxu0
  %v244 = vld [vmem:[%s6] sm:$0x1]
  %v245 = vld [vmem:[%s7] sm:$0x1]
  %vm246 = vcmask 261120
  %v247 = vsel %vm246, %v190, 0.0
  %248 = vadd.xlane.f32.xlu0 %v247
  %v249 = vpop.xlane.xlu0 %248
  %v250 = vsel %vm246, %v193, 0.0
  %251 = vadd.xlane.f32.xlu0 %v250
  %v252 = vpop.xlane.xlu0 %251
  %v253 = vsel %vm246, %v198, 0.0
  %254 = vadd.xlane.f32.xlu0 %v253
  %v255 = vpop.xlane.xlu0 %254
  %v256 = vsel %vm246, %v201, 0.0
  %257 = vadd.xlane.f32.xlu0 %v256
  %v258 = vpop.xlane.xlu0 %257
  %v259 = vsel %vm246, %v206, 0.0
  %260 = vadd.xlane.f32.xlu0 %v259
  %v261 = vpop.xlane.xlu0 %260
  %v262 = vsel %vm246, %v209, 0.0
  %263 = vadd.xlane.f32.xlu0 %v262
  %v264 = vpop.xlane.xlu0 %263
  %v265 = vsel %vm246, %v214, 0.0
  %266 = vadd.xlane.f32.xlu0 %v265
  %v267 = vpop.xlane.xlu0 %266
  %v268 = vsel %vm246, %v217, 0.0
  %269 = vadd.xlane.f32.xlu0 %v268
  %v270 = vpop.xlane.xlu0 %269
  %v271 = vsel %vm246, %v222, 0.0
  %272 = vadd.xlane.f32.xlu0 %v271
  %v273 = vpop.xlane.xlu0 %272
  %v274 = vsel %vm246, %v225, 0.0
  %275 = vadd.xlane.f32.xlu0 %v274
  %v276 = vpop.xlane.xlu0 %275
  %v277 = vsel %vm246, %v230, 0.0
  %278 = vadd.xlane.f32.xlu0 %v277
  %v279 = vpop.xlane.xlu0 %278
  %v280 = vsel %vm246, %v233, 0.0
  %281 = vadd.xlane.f32.xlu0 %v280
  %v282 = vpop.xlane.xlu0 %281
  %v283 = vsel %vm246, %v238, 0.0
  %284 = vadd.xlane.f32.xlu0 %v283
  %v285 = vpop.xlane.xlu0 %284
  %v286 = vsel %vm246, %v241, 0.0
  %287 = vadd.xlane.f32.xlu0 %v286
  %v288 = vpop.xlane.xlu0 %287
  %v289 = vrcp.pop 32.0
  %v290 = vmul.f32 %v249, %v289
  %v291 = vmul.f32 %v252, %v289
  %v292 = vmul.f32 %v255, %v289
  %v293 = vmul.f32 %v258, %v289
  %v294 = vmul.f32 %v261, %v289
  %v295 = vmul.f32 %v264, %v289
  %v296 = vmul.f32 %v267, %v289
  %v297 = vmul.f32 %v270, %v289
  %v298 = vmul.f32 %v273, %v289
  %v299 = vmul.f32 %v276, %v289
  %v300 = vmul.f32 %v279, %v289
  %v301 = vmul.f32 %v282, %v289
  %v302 = vmul.f32 %v285, %v289
  %v303 = vmul.f32 %v288, %v289
  %v304 = vsub.f32 %v190, %v290
  %v305 = vsub.f32 %v193, %v291
  %v306 = vsub.f32 %v198, %v292
  %v307 = vsub.f32 %v201, %v293
  %v308 = vsub.f32 %v206, %v294
  %v309 = vsub.f32 %v209, %v295
  %v310 = vsub.f32 %v214, %v296
  %v311 = vsub.f32 %v217, %v297
  %v312 = vsub.f32 %v222, %v298
  %v313 = vsub.f32 %v225, %v299
  %v314 = vsub.f32 %v230, %v300
  %v315 = vsub.f32 %v233, %v301
  %v316 = vsub.f32 %v238, %v302
  %v317 = vsub.f32 %v241, %v303
  %v318 = vmul.f32 %v304, %v304
  %v319 = vmul.f32 %v305, %v305
  %v320 = vmul.f32 %v306, %v306
  %v321 = vmul.f32 %v307, %v307
  %v322 = vmul.f32 %v308, %v308
  %v323 = vmul.f32 %v309, %v309
  %v324 = vmul.f32 %v310, %v310
  %v325 = vmul.f32 %v311, %v311
  %v326 = vmul.f32 %v312, %v312
  %v327 = vmul.f32 %v313, %v313
  %v328 = vmul.f32 %v314, %v314
  %v329 = vmul.f32 %v315, %v315
  %v330 = vmul.f32 %v316, %v316
  %v331 = vmul.f32 %v317, %v317
  %v332 = vsel %vm246, %v318, 0.0
  %333 = vadd.xlane.f32.xlu0 %v332
  %v334 = vpop.xlane.xlu0 %333
  %v335 = vsel %vm246, %v319, 0.0
  %336 = vadd.xlane.f32.xlu0 %v335
  %v337 = vpop.xlane.xlu0 %336
  %v338 = vsel %vm246, %v320, 0.0
  %339 = vadd.xlane.f32.xlu0 %v338
  %v340 = vpop.xlane.xlu0 %339
  %v341 = vsel %vm246, %v321, 0.0
  %342 = vadd.xlane.f32.xlu0 %v341
  %v343 = vpop.xlane.xlu0 %342
  %v344 = vsel %vm246, %v322, 0.0
  %345 = vadd.xlane.f32.xlu0 %v344
  %v346 = vpop.xlane.xlu0 %345
  %v347 = vsel %vm246, %v323, 0.0
  %348 = vadd.xlane.f32.xlu0 %v347
  %v349 = vpop.xlane.xlu0 %348
  %v350 = vsel %vm246, %v324, 0.0
  %351 = vadd.xlane.f32.xlu0 %v350
  %v352 = vpop.xlane.xlu0 %351
  %v353 = vsel %vm246, %v325, 0.0
  %354 = vadd.xlane.f32.xlu0 %v353
  %v355 = vpop.xlane.xlu0 %354
  %v356 = vsel %vm246, %v326, 0.0
  %357 = vadd.xlane.f32.xlu0 %v356
  %v358 = vpop.xlane.xlu0 %357
  %v359 = vsel %vm246, %v327, 0.0
  %360 = vadd.xlane.f32.xlu0 %v359
  %v361 = vpop.xlane.xlu0 %360
  %v362 = vsel %vm246, %v328, 0.0
  %363 = vadd.xlane.f32.xlu0 %v362
  %v364 = vpop.xlane.xlu0 %363
  %v365 = vsel %vm246, %v329, 0.0
  %366 = vadd.xlane.f32.xlu0 %v365
  %v367 = vpop.xlane.xlu0 %366
  %v368 = vsel %vm246, %v330, 0.0
  %369 = vadd.xlane.f32.xlu0 %v368
  %v370 = vpop.xlane.xlu0 %369
  %v371 = vsel %vm246, %v331, 0.0
  %372 = vadd.xlane.f32.xlu0 %v371
  %v373 = vpop.xlane.xlu0 %372
  %v374 = vmul.f32 %v334, %v289
  %v375 = vmul.f32 %v337, %v289
  %v376 = vmul.f32 %v340, %v289
  %v377 = vmul.f32 %v343, %v289
  %v378 = vmul.f32 %v346, %v289
  %v379 = vmul.f32 %v349, %v289
  %v380 = vmul.f32 %v352, %v289
  %v381 = vmul.f32 %v355, %v289
  %v382 = vmul.f32 %v358, %v289
  %v383 = vmul.f32 %v361, %v289
  %v384 = vmul.f32 %v364, %v289
  %v385 = vmul.f32 %v367, %v289
  %v386 = vmul.f32 %v370, %v289
  %v387 = vmul.f32 %v373, %v289
  %v388 = vadd.f32 %v374, 1e-05
  %v389 = vadd.f32 %v375, 1e-05
  %v390 = vadd.f32 %v376, 1e-05
  %v391 = vadd.f32 %v377, 1e-05
  %v392 = vadd.f32 %v378, 1e-05
  %v393 = vadd.f32 %v379, 1e-05
  %v394 = vadd.f32 %v380, 1e-05
  %v395 = vadd.f32 %v381, 1e-05
  %v396 = vadd.f32 %v382, 1e-05
  %v397 = vadd.f32 %v383, 1e-05
  %v398 = vadd.f32 %v384, 1e-05
  %v399 = vadd.f32 %v385, 1e-05
  %v400 = vadd.f32 %v386, 1e-05
  %v401 = vadd.f32 %v387, 1e-05
  %v402 = vrsqrt.pop %v388
  %v403 = vrsqrt.pop %v389
  %v404 = vrsqrt.pop %v390
  %v405 = vrsqrt.pop %v391
  %v406 = vrsqrt.pop %v392
  %v407 = vrsqrt.pop %v393
  %v408 = vrsqrt.pop %v394
  %v409 = vrsqrt.pop %v395
  %v410 = vrsqrt.pop %v396
  %v411 = vrsqrt.pop %v397
  %v412 = vrsqrt.pop %v398
  %v413 = vrsqrt.pop %v399
  %v414 = vrsqrt.pop %v400
  %v415 = vrsqrt.pop %v401
  %v416 = vmul.f32 %v304, %v402
  %v417 = vmul.f32 %v305, %v403
  %v418 = vmul.f32 %v306, %v404
  %v419 = vmul.f32 %v307, %v405
  %v420 = vmul.f32 %v308, %v406
  %v421 = vmul.f32 %v309, %v407
  %v422 = vmul.f32 %v310, %v408
  %v423 = vmul.f32 %v311, %v409
  %v424 = vmul.f32 %v312, %v410
  %v425 = vmul.f32 %v313, %v411
  %v426 = vmul.f32 %v314, %v412
  %v427 = vmul.f32 %v315, %v413
  %v428 = vmul.f32 %v316, %v414
  %v429 = vmul.f32 %v317, %v415
  %v431 = vlaneseq
  %v432 = vshrl.u32 %v431, 7
  %v433 = vsub.s32 0, %v432
  %v434 = vrot.slane %v244, %v433
  %v436 = vmul.f32 %v416, %v434
  %v437 = vmul.f32 %v417, %v434
  %v438 = vmul.f32 %v418, %v434
  %v439 = vmul.f32 %v419, %v434
  %v440 = vmul.f32 %v420, %v434
  %v441 = vmul.f32 %v421, %v434
  %v442 = vmul.f32 %v422, %v434
  %v443 = vmul.f32 %v423, %v434
  %v444 = vmul.f32 %v424, %v434
  %v445 = vmul.f32 %v425, %v434
  %v446 = vmul.f32 %v426, %v434
  %v447 = vmul.f32 %v427, %v434
  %v448 = vmul.f32 %v428, %v434
  %v449 = vmul.f32 %v429, %v434
  %v451 = vlaneseq
  %v452 = vshrl.u32 %v451, 7
  %v453 = vsub.s32 0, %v452
  %v454 = vrot.slane %v245, %v453
  %v456 = vadd.f32 %v436, %v454
  %v457 = vadd.f32 %v437, %v454
  %v458 = vadd.f32 %v438, %v454
  %v459 = vadd.f32 %v439, %v454
  %v460 = vadd.f32 %v440, %v454
  %v461 = vadd.f32 %v441, %v454
  %v462 = vadd.f32 %v442, %v454
  %v463 = vadd.f32 %v443, %v454
  %v464 = vadd.f32 %v444, %v454
  %v465 = vadd.f32 %v445, %v454
  %v466 = vadd.f32 %v446, %v454
  %v467 = vadd.f32 %v447, %v454
  %v468 = vadd.f32 %v448, %v454
  %v469 = vadd.f32 %v449, %v454
  %v470 = vmax.f32 %v456, 0.0
  %v471 = vmax.f32 %v457, 0.0
  %v472 = vmax.f32 %v458, 0.0
  %v473 = vmax.f32 %v459, 0.0
  %v474 = vmax.f32 %v460, 0.0
  %v475 = vmax.f32 %v461, 0.0
  %v476 = vmax.f32 %v462, 0.0
  %v477 = vmax.f32 %v463, 0.0
  %v478 = vmax.f32 %v464, 0.0
  %v479 = vmax.f32 %v465, 0.0
  %v480 = vmax.f32 %v466, 0.0
  %v481 = vmax.f32 %v467, 0.0
  %v482 = vmax.f32 %v468, 0.0
  %v483 = vmax.f32 %v469, 0.0
  %v484 = vpack.c.bf16 %v471, %v470
  %v485 = vpack.c.bf16 %v473, %v472
  %v486 = vpack.c.bf16 %v475, %v474
  %v487 = vpack.c.bf16 %v477, %v476
  %v488 = vpack.c.bf16 %v479, %v478
  %v489 = vpack.c.bf16 %v481, %v480
  %v490 = vpack.c.bf16 %v483, %v482
  %v491 = vld [vmem:[%s8] sm:$0xf]
  %v492 = vld [vmem:[%s8 + $0x4] sm:$0xf]
  %v493 = vld [vmem:[%s8 + $0x8] sm:$0xf]
  %v494 = vld [vmem:[%s8 + $0xc] sm:$0xf]
  %v495 = vld [vmem:[%s9] sm:$0x1]
  %v497 = vlaneseq
  %v498 = vshrl.u32 %v497, 7
  %v499 = vsub.s32 0, %v498
  %v500 = vrot.slane %v495, %v499
  %v506 = vunpack.c.l.b16 %v491
  %v507 = vunpack.c.l.b16 %v492
  %v508 = vunpack.c.l.b16 %v493
  %v509 = vunpack.c.l.b16 %v494
  %v510 = vpack.c.b16 %v507, %v506
  %v511 = vpack.c.b16 %v509, %v508
  %v515 = vsel %vm246, %v484, 0
  %v518 = vsel %vm246, %v485, 0
  %v521 = vsel %vm246, %v486, 0
  %v524 = vsel %vm246, %v487, 0
  %v527 = vsel %vm246, %v488, 0
  %v530 = vsel %vm246, %v489, 0
  %v533 = vsel %vm246, %v490, 0
  %535 = vmatprep.subr.bf16.mxu0 0
  %536 = vmatpush1.bf16.msra.mxu0 %v510
  %537 = vmatprep.subr.bf16.mxu0 0
  %538 = vmatpush1.bf16.msra.mxu0 %v511
  %539 = vmatprep.subr.bf16.mxu0 0
  %540 = vmatpush1.bf16.msra.mxu0 0
  %541 = vmatprep.subr.bf16.mxu0 0
  %542 = vmatpush1.bf16.msra.mxu0 0
  %543 = vmatprep.subr.bf16.mxu0 0
  %544 = vmatpush1.bf16.msra.mxu0 0
  %545 = vmatprep.subr.bf16.mxu0 0
  %546 = vmatpush1.bf16.msra.mxu0 0
  %547 = vmatprep.subr.bf16.mxu0 0
  %548 = vmatpush1.bf16.msra.mxu0 0
  %549 = vmatprep.subr.bf16.mxu0 0
  %550 = vmatpush1.bf16.msra.mxu0 0
  %551 = vmatprep.subr.bf16.mxu0 0
  %552 = vmatpush1.bf16.msra.mxu0 0
  %553 = vmatprep.subr.bf16.mxu0 0
  %554 = vmatpush1.bf16.msra.mxu0 0
  %555 = vmatprep.subr.bf16.mxu0 0
  %556 = vmatpush1.bf16.msra.mxu0 0
  %557 = vmatprep.subr.bf16.mxu0 0
  %558 = vmatpush1.bf16.msra.mxu0 0
  %559 = vmatprep.subr.bf16.mxu0 0
  %560 = vmatpush1.bf16.msra.mxu0 0
  %561 = vmatprep.subr.bf16.mxu0 0
  %562 = vmatpush1.bf16.msra.mxu0 0
  %563 = vmatprep.subr.bf16.mxu0 0
  %564 = vmatpush1.bf16.msra.mxu0 0
  %565 = vmatprep.subr.bf16.mxu0 0
  %566 = vmatpush1.bf16.msra.mxu0 0
  %567 = vmatprep.mubr.bf16.mxu0 0
  %568 = vmatmul.mubr.bf16.gmra.mrb[0].mxu0 %v515
  %v569 = vpop.f32.mrb[0].mxu0
  %v570 = vadd.f32 %v500, %v569
  %v571 = vpop.f32.mrb[0].mxu0
  %v572 = vpop.f32.mrb[0].mxu0
  %v573 = vadd.f32 %v500, %v572
  %v574 = vpop.f32.mrb[0].mxu0
  %575 = vmatprep.mubr.bf16.mxu0 0
  %576 = vmatmul.mubr.bf16.gmra.mrb[0].mxu0 %v518
  %v577 = vpop.f32.mrb[0].mxu0
  %v578 = vadd.f32 %v500, %v577
  %v579 = vpop.f32.mrb[0].mxu0
  %v580 = vpop.f32.mrb[0].mxu0
  %v581 = vadd.f32 %v500, %v580
  %v582 = vpop.f32.mrb[0].mxu0
  %583 = vmatprep.mubr.bf16.mxu0 0
  %584 = vmatmul.mubr.bf16.gmra.mrb[0].mxu0 %v521
  %v585 = vpop.f32.mrb[0].mxu0
  %v586 = vadd.f32 %v500, %v585
  %v587 = vpop.f32.mrb[0].mxu0
  %v588 = vpop.f32.mrb[0].mxu0
  %v589 = vadd.f32 %v500, %v588
  %v590 = vpop.f32.mrb[0].mxu0
  %591 = vmatprep.mubr.bf16.mxu0 0
  %592 = vmatmul.mubr.bf16.gmra.mrb[0].mxu0 %v524
  %v593 = vpop.f32.mrb[0].mxu0
  %v594 = vadd.f32 %v500, %v593
  %v595 = vpop.f32.mrb[0].mxu0
  %v596 = vpop.f32.mrb[0].mxu0
  %v597 = vadd.f32 %v500, %v596
  %v598 = vpop.f32.mrb[0].mxu0
  %599 = vmatprep.mubr.bf16.mxu0 0
  %600 = vmatmul.mubr.bf16.gmra.mrb[0].mxu0 %v527
  %v601 = vpop.f32.mrb[0].mxu0
  %v602 = vadd.f32 %v500, %v601
  %v603 = vpop.f32.mrb[0].mxu0
  %v604 = vpop.f32.mrb[0].mxu0
  %v605 = vadd.f32 %v500, %v604
  %v606 = vpop.f32.mrb[0].mxu0
  %607 = vmatprep.mubr.bf16.mxu0 0
  %608 = vmatmul.mubr.bf16.gmra.mrb[0].mxu0 %v530
  %v609 = vpop.f32.mrb[0].mxu0
  %v610 = vadd.f32 %v500, %v609
  %v611 = vpop.f32.mrb[0].mxu0
  %v612 = vpop.f32.mrb[0].mxu0
  %v613 = vadd.f32 %v500, %v612
  %v614 = vpop.f32.mrb[0].mxu0
  %615 = vmatprep.mubr.bf16.mxu0 0
  %616 = vmatmul.mubr.bf16.gmra.mrb[0].mxu0 %v533
  %v617 = vpop.f32.mrb[0].mxu0
  %v618 = vadd.f32 %v500, %v617
  %v619 = vpop.f32.mrb[0].mxu0
  %v620 = vpop.f32.mrb[0].mxu0
  %v621 = vadd.f32 %v500, %v620
  %v622 = vpop.f32.mrb[0].mxu0
  %623 = vdwg.mxu0
  %v624 = vld [vmem:[%s1] sm:$0xff]
  %v625 = vld [vmem:[%s1 + $0x8] sm:$0xff]
  %v626 = vld [vmem:[%s1 + $0x10] sm:$0xff]
  %v627 = vld [vmem:[%s1 + $0x18] sm:$0xff]
  %v628 = vld [vmem:[%s1 + $0x20] sm:$0xff]
  %v629 = vld [vmem:[%s1 + $0x28] sm:$0xff]
  %v630 = vld [vmem:[%s1 + $0x30] sm:$0xff]
  %v631 = vld [vmem:[%s1 + $0x38] sm:$0xff]
  %v632 = vld [vmem:[%s1 + $0x40] sm:$0xff]
  %v633 = vld [vmem:[%s1 + $0x48] sm:$0xff]
  %v634 = vld [vmem:[%s1 + $0x50] sm:$0xff]
  %v635 = vld [vmem:[%s1 + $0x58] sm:$0xff]
  %v636 = vld [vmem:[%s1 + $0x60] sm:$0xff]
  %v637 = vld [vmem:[%s1 + $0x68] sm:$0xff]
  %v638 = vadd.f32 %v570, %v624
  %v639 = vadd.f32 %v573, %v625
  %v640 = vadd.f32 %v578, %v626
  %v641 = vadd.f32 %v581, %v627
  %v642 = vadd.f32 %v586, %v628
  %v643 = vadd.f32 %v589, %v629
  %v644 = vadd.f32 %v594, %v630
  %v645 = vadd.f32 %v597, %v631
  %v646 = vadd.f32 %v602, %v632
  %v647 = vadd.f32 %v605, %v633
  %v648 = vadd.f32 %v610, %v634
  %v649 = vadd.f32 %v613, %v635
  %v650 = vadd.f32 %v618, %v636
  %v651 = vadd.f32 %v621, %v637
  %v652 = vpack.c.bf16 %v639, %v638
  %v653 = vpack.c.bf16 %v641, %v640
  %v654 = vpack.c.bf16 %v643, %v642
  %v655 = vpack.c.bf16 %v645, %v644
  %v656 = vpack.c.bf16 %v647, %v646
  %v657 = vpack.c.bf16 %v649, %v648
  %v658 = vpack.c.bf16 %v651, %v650
  %v659 = vld [vmem:[%s10] sm:$0xf]
  %v660 = vld [vmem:[%s10 + $0x4] sm:$0xf]
  %v661 = vld [vmem:[%s10 + $0x8] sm:$0xf]
  %v662 = vld [vmem:[%s10 + $0xc] sm:$0xf]
  %v663 = vld [vmem:[%s11] sm:$0x1]
  %v665 = vlaneseq
  %v666 = vshrl.u32 %v665, 7
  %v667 = vsub.s32 0, %v666
  %v668 = vrot.slane %v663, %v667
  %v674 = vunpack.c.l.b16 %v659
  %v675 = vunpack.c.l.b16 %v660
  %v676 = vunpack.c.l.b16 %v661
  %v677 = vunpack.c.l.b16 %v662
  %v678 = vpack.c.b16 %v675, %v674
  %v679 = vpack.c.b16 %v677, %v676
  %v683 = vsel %vm246, %v652, 0
  %v686 = vsel %vm246, %v653, 0
  %v689 = vsel %vm246, %v654, 0
  %v692 = vsel %vm246, %v655, 0
  %v695 = vsel %vm246, %v656, 0
  %v698 = vsel %vm246, %v657, 0
  %v701 = vsel %vm246, %v658, 0
  %703 = vmatprep.subr.bf16.mxu0 0
  %704 = vmatpush1.bf16.msra.mxu0 %v678
  %705 = vmatprep.subr.bf16.mxu0 0
  %706 = vmatpush1.bf16.msra.mxu0 %v679
  %707 = vmatprep.subr.bf16.mxu0 0
  %708 = vmatpush1.bf16.msra.mxu0 0
  %709 = vmatprep.subr.bf16.mxu0 0
  %710 = vmatpush1.bf16.msra.mxu0 0
  %711 = vmatprep.subr.bf16.mxu0 0
  %712 = vmatpush1.bf16.msra.mxu0 0
  %713 = vmatprep.subr.bf16.mxu0 0
  %714 = vmatpush1.bf16.msra.mxu0 0
  %715 = vmatprep.subr.bf16.mxu0 0
  %716 = vmatpush1.bf16.msra.mxu0 0
  %717 = vmatprep.subr.bf16.mxu0 0
  %718 = vmatpush1.bf16.msra.mxu0 0
  %719 = vmatprep.subr.bf16.mxu0 0
  %720 = vmatpush1.bf16.msra.mxu0 0
  %721 = vmatprep.subr.bf16.mxu0 0
  %722 = vmatpush1.bf16.msra.mxu0 0
  %723 = vmatprep.subr.bf16.mxu0 0
  %724 = vmatpush1.bf16.msra.mxu0 0
  %725 = vmatprep.subr.bf16.mxu0 0
  %726 = vmatpush1.bf16.msra.mxu0 0
  %727 = vmatprep.subr.bf16.mxu0 0
  %728 = vmatpush1.bf16.msra.mxu0 0
  %729 = vmatprep.subr.bf16.mxu0 0
  %730 = vmatpush1.bf16.msra.mxu0 0
  %731 = vmatprep.subr.bf16.mxu0 0
  %732 = vmatpush1.bf16.msra.mxu0 0
  %733 = vmatprep.subr.bf16.mxu0 0
  %734 = vmatpush1.bf16.msra.mxu0 0
  %735 = vmatprep.mubr.bf16.mxu0 0
  %736 = vmatmul.mubr.bf16.gmra.mrb[0].mxu0 %v683
  %v737 = vpop.f32.mrb[0].mxu0
  %v738 = vadd.f32 %v668, %v737
  %v739 = vpop.f32.mrb[0].mxu0
  %v740 = vpop.f32.mrb[0].mxu0
  %v741 = vadd.f32 %v668, %v740
  %v742 = vpop.f32.mrb[0].mxu0
  %743 = vmatprep.mubr.bf16.mxu0 0
  %744 = vmatmul.mubr.bf16.gmra.mrb[0].mxu0 %v686
  %v745 = vpop.f32.mrb[0].mxu0
  %v746 = vadd.f32 %v668, %v745
  %v747 = vpop.f32.mrb[0].mxu0
  %v748 = vpop.f32.mrb[0].mxu0
  %v749 = vadd.f32 %v668, %v748
  %v750 = vpop.f32.mrb[0].mxu0
  %751 = vmatprep.mubr.bf16.mxu0 0
  %752 = vmatmul.mubr.bf16.gmra.mrb[0].mxu0 %v689
  %v753 = vpop.f32.mrb[0].mxu0
  %v754 = vadd.f32 %v668, %v753
  %v755 = vpop.f32.mrb[0].mxu0
  %v756 = vpop.f32.mrb[0].mxu0
  %v757 = vadd.f32 %v668, %v756
  %v758 = vpop.f32.mrb[0].mxu0
  %759 = vmatprep.mubr.bf16.mxu0 0
  %760 = vmatmul.mubr.bf16.gmra.mrb[0].mxu0 %v692
  %v761 = vpop.f32.mrb[0].mxu0
  %v762 = vadd.f32 %v668, %v761
  %v763 = vpop.f32.mrb[0].mxu0
  %v764 = vpop.f32.mrb[0].mxu0
  %v765 = vadd.f32 %v668, %v764
  %v766 = vpop.f32.mrb[0].mxu0
  %767 = vmatprep.mubr.bf16.mxu0 0
  %768 = vmatmul.mubr.bf16.gmra.mrb[0].mxu0 %v695
  %v769 = vpop.f32.mrb[0].mxu0
  %v770 = vadd.f32 %v668, %v769
  %v771 = vpop.f32.mrb[0].mxu0
  %v772 = vpop.f32.mrb[0].mxu0
  %v773 = vadd.f32 %v668, %v772
  %v774 = vpop.f32.mrb[0].mxu0
  %775 = vmatprep.mubr.bf16.mxu0 0
  %776 = vmatmul.mubr.bf16.gmra.mrb[0].mxu0 %v698
  %v777 = vpop.f32.mrb[0].mxu0
  %v778 = vadd.f32 %v668, %v777
  %v779 = vpop.f32.mrb[0].mxu0
  %v780 = vpop.f32.mrb[0].mxu0
  %v781 = vadd.f32 %v668, %v780
  %v782 = vpop.f32.mrb[0].mxu0
  %783 = vmatprep.mubr.bf16.mxu0 0
  %784 = vmatmul.mubr.bf16.gmra.mrb[0].mxu0 %v701
  %v785 = vpop.f32.mrb[0].mxu0
  %v786 = vadd.f32 %v668, %v785
  %v787 = vpop.f32.mrb[0].mxu0
  %v788 = vpop.f32.mrb[0].mxu0
  %v789 = vadd.f32 %v668, %v788
  %v790 = vpop.f32.mrb[0].mxu0
  %791 = vdwg.mxu0
  %v792 = vmul.f32 %v738, 0.35355338
  %v793 = vmul.f32 %v741, 0.35355338
  %v794 = vmul.f32 %v746, 0.35355338
  %v795 = vmul.f32 %v749, 0.35355338
  %v796 = vmul.f32 %v754, 0.35355338
  %v797 = vmul.f32 %v757, 0.35355338
  %v798 = vmul.f32 %v762, 0.35355338
  %v799 = vmul.f32 %v765, 0.35355338
  %v800 = vmul.f32 %v770, 0.35355338
  %v801 = vmul.f32 %v773, 0.35355338
  %v802 = vmul.f32 %v778, 0.35355338
  %v803 = vmul.f32 %v781, 0.35355338
  %v804 = vmul.f32 %v786, 0.35355338
  %v805 = vmul.f32 %v789, 0.35355338
  %v806 = vpack.c.bf16 %v793, %v792
  %v807 = vpack.c.bf16 %v795, %v794
  %v808 = vpack.c.bf16 %v797, %v796
  %v809 = vpack.c.bf16 %v799, %v798
  %v810 = vpack.c.bf16 %v801, %v800
  %v811 = vpack.c.bf16 %v803, %v802
  %v812 = vpack.c.bf16 %v805, %v804
  %v813 = vpack.c.bf16 %v741, %v738
  %v814 = vpack.c.bf16 %v749, %v746
  %v815 = vpack.c.bf16 %v757, %v754
  %v816 = vpack.c.bf16 %v765, %v762
  %v817 = vpack.c.bf16 %v773, %v770
  %v818 = vpack.c.bf16 %v781, %v778
  %v819 = vpack.c.bf16 %v789, %v786
  %827 = vrot.lane.b32.xlu0 %v813, 96
  %v828 = vpop.permute.xlu0 %827
  %829 = vrot.lane.b32.xlu0 %v814, 96
  %v830 = vpop.permute.xlu0 %829
  %831 = vrot.lane.b32.xlu0 %v815, 96
  %v832 = vpop.permute.xlu0 %831
  %833 = vrot.lane.b32.xlu0 %v816, 96
  %v834 = vpop.permute.xlu0 %833
  %835 = vrot.lane.b32.xlu0 %v817, 96
  %v836 = vpop.permute.xlu0 %835
  %837 = vrot.lane.b32.xlu0 %v818, 96
  %v838 = vpop.permute.xlu0 %837
  %839 = vrot.lane.b32.xlu0 %v819, 96
  %v840 = vpop.permute.xlu0 %839
  %vm841 = vcmask 64512
  %v843 = vsel %vm841, %v806, 0
  %v846 = vsel %vm841, %v807, 0
  %v849 = vsel %vm841, %v808, 0
  %v852 = vsel %vm841, %v809, 0
  %v855 = vsel %vm841, %v810, 0
  %v858 = vsel %vm841, %v811, 0
  %v861 = vsel %vm841, %v812, 0
  %v864 = vsel %vm841, %v828, 0
  %v867 = vsel %vm841, %v830, 0
  %v870 = vsel %vm841, %v832, 0
  %v873 = vsel %vm841, %v834, 0
  %v876 = vsel %vm841, %v836, 0
  %v879 = vsel %vm841, %v838, 0
  %v882 = vsel %vm841, %v840, 0
  %884 = vmatprep.subr.bf16.mxu0 0
  %885 = vmatpush1.bf16.xpose.msra.mxu0 %v864
  %886 = vmatprep.subr.bf16.mxu0 0
  %887 = vmatpush1.bf16.xpose.msra.mxu0 %v867
  %888 = vmatprep.subr.bf16.mxu0 0
  %889 = vmatpush1.bf16.xpose.msra.mxu0 %v870
  %890 = vmatprep.subr.bf16.mxu0 0
  %891 = vmatpush1.bf16.xpose.msra.mxu0 %v873
  %892 = vmatprep.subr.bf16.mxu0 0
  %893 = vmatpush1.bf16.xpose.msra.mxu0 %v876
  %894 = vmatprep.subr.bf16.mxu0 0
  %895 = vmatpush1.bf16.xpose.msra.mxu0 %v879
  %896 = vmatprep.subr.bf16.mxu0 0
  %897 = vmatpush1.bf16.xpose.msra.mxu0 %v882
  %898 = vmatprep.subr.bf16.mxu0 0
  %899 = vmatpush1.bf16.xpose.msra.mxu0 0
  %900 = vmatprep.subr.bf16.mxu0 0
  %901 = vmatpush1.bf16.xpose.msra.mxu0 0
  %902 = vmatprep.subr.bf16.mxu0 0
  %903 = vmatpush1.bf16.xpose.msra.mxu0 0
  %904 = vmatprep.subr.bf16.mxu0 0
  %905 = vmatpush1.bf16.xpose.msra.mxu0 0
  %906 = vmatprep.subr.bf16.mxu0 0
  %907 = vmatpush1.bf16.xpose.msra.mxu0 0
  %908 = vmatprep.subr.bf16.mxu0 0
  %909 = vmatpush1.bf16.xpose.msra.mxu0 0
  %910 = vmatprep.subr.bf16.mxu0 0
  %911 = vmatpush1.bf16.xpose.msra.mxu0 0
  %912 = vmatprep.subr.bf16.mxu0 0
  %913 = vmatpush1.bf16.xpose.msra.mxu0 0
  %914 = vmatprep.subr.bf16.mxu0 0
  %915 = vmatpush1.bf16.xpose.msra.mxu0 0
  %916 = vmatprep.mubr.bf16.mxu0 0
  %917 = vmatmul.mubr.bf16.gmra.mrb[0].mxu0 %v843
  %v918 = vpop.f32.mrb[0].mxu0
  %v919 = vadd.f32 %v75, %v918
  %v920 = vpop.f32.mrb[0].mxu0
  %v921 = vpop.f32.mrb[0].mxu0
  %v922 = vadd.f32 %v76, %v921
  %v923 = vpop.f32.mrb[0].mxu0
  %924 = vmatprep.mubr.bf16.mxu0 0
  %925 = vmatmul.mubr.bf16.gmra.mrb[0].mxu0 %v846
  %v926 = vpop.f32.mrb[0].mxu0
  %v927 = vadd.f32 %v77, %v926
  %v928 = vpop.f32.mrb[0].mxu0
  %v929 = vpop.f32.mrb[0].mxu0
  %v930 = vadd.f32 %v78, %v929
  %v931 = vpop.f32.mrb[0].mxu0
  %932 = vmatprep.mubr.bf16.mxu0 0
  %933 = vmatmul.mubr.bf16.gmra.mrb[0].mxu0 %v849
  %v934 = vpop.f32.mrb[0].mxu0
  %v935 = vadd.f32 %v79, %v934
  %v936 = vpop.f32.mrb[0].mxu0
  %v937 = vpop.f32.mrb[0].mxu0
  %v938 = vadd.f32 %v80, %v937
  %v939 = vpop.f32.mrb[0].mxu0
  %940 = vmatprep.mubr.bf16.mxu0 0
  %941 = vmatmul.mubr.bf16.gmra.mrb[0].mxu0 %v852
  %v942 = vpop.f32.mrb[0].mxu0
  %v943 = vadd.f32 %v81, %v942
  %v944 = vpop.f32.mrb[0].mxu0
  %v945 = vpop.f32.mrb[0].mxu0
  %v946 = vadd.f32 %v82, %v945
  %v947 = vpop.f32.mrb[0].mxu0
  %948 = vmatprep.mubr.bf16.mxu0 0
  %949 = vmatmul.mubr.bf16.gmra.mrb[0].mxu0 %v855
  %v950 = vpop.f32.mrb[0].mxu0
  %v951 = vadd.f32 %v83, %v950
  %v952 = vpop.f32.mrb[0].mxu0
  %v953 = vpop.f32.mrb[0].mxu0
  %v954 = vadd.f32 %v84, %v953
  %v955 = vpop.f32.mrb[0].mxu0
  %956 = vmatprep.mubr.bf16.mxu0 0
  %957 = vmatmul.mubr.bf16.gmra.mrb[0].mxu0 %v858
  %v958 = vpop.f32.mrb[0].mxu0
  %v959 = vadd.f32 %v85, %v958
  %v960 = vpop.f32.mrb[0].mxu0
  %v961 = vpop.f32.mrb[0].mxu0
  %v962 = vadd.f32 %v86, %v961
  %v963 = vpop.f32.mrb[0].mxu0
  %964 = vmatprep.mubr.bf16.mxu0 0
  %965 = vmatmul.mubr.bf16.gmra.mrb[0].mxu0 %v861
  %v966 = vpop.f32.mrb[0].mxu0
  %v967 = vadd.f32 %v87, %v966
  %v968 = vpop.f32.mrb[0].mxu0
  %v969 = vpop.f32.mrb[0].mxu0
  %v970 = vadd.f32 %v88, %v969
  %v971 = vpop.f32.mrb[0].mxu0
  %972 = vdwg.mxu0
  %vm973 = vcmask 916480
  %v974 = vsel %vm973, %v919, -inf
  %975 = vmax.xlane.f32.xlu0 %v974
  %v976 = vpop.xlane.xlu0 %975
  %v977 = vsel %vm973, %v922, -inf
  %978 = vmax.xlane.f32.xlu0 %v977
  %v979 = vpop.xlane.xlu0 %978
  %v980 = vsel %vm973, %v927, -inf
  %981 = vmax.xlane.f32.xlu0 %v980
  %v982 = vpop.xlane.xlu0 %981
  %v983 = vsel %vm973, %v930, -inf
  %984 = vmax.xlane.f32.xlu0 %v983
  %v985 = vpop.xlane.xlu0 %984
  %v986 = vsel %vm973, %v935, -inf
  %987 = vmax.xlane.f32.xlu0 %v986
  %v988 = vpop.xlane.xlu0 %987
  %v989 = vsel %vm973, %v938, -inf
  %990 = vmax.xlane.f32.xlu0 %v989
  %v991 = vpop.xlane.xlu0 %990
  %v992 = vsel %vm973, %v943, -inf
  %993 = vmax.xlane.f32.xlu0 %v992
  %v994 = vpop.xlane.xlu0 %993
  %v995 = vsel %vm973, %v946, -inf
  %996 = vmax.xlane.f32.xlu0 %v995
  %v997 = vpop.xlane.xlu0 %996
  %v998 = vsel %vm973, %v951, -inf
  %999 = vmax.xlane.f32.xlu0 %v998
  %v1000 = vpop.xlane.xlu0 %999
  %v1001 = vsel %vm973, %v954, -inf
  %1002 = vmax.xlane.f32.xlu0 %v1001
  %v1003 = vpop.xlane.xlu0 %1002
  %v1004 = vsel %vm973, %v959, -inf
  %1005 = vmax.xlane.f32.xlu0 %v1004
  %v1006 = vpop.xlane.xlu0 %1005
  %v1007 = vsel %vm973, %v962, -inf
  %1008 = vmax.xlane.f32.xlu0 %v1007
  %v1009 = vpop.xlane.xlu0 %1008
  %v1010 = vsel %vm973, %v967, -inf
  %1011 = vmax.xlane.f32.xlu0 %v1010
  %v1012 = vpop.xlane.xlu0 %1011
  %v1013 = vsel %vm973, %v970, -inf
  %1014 = vmax.xlane.f32.xlu0 %v1013
  %v1015 = vpop.xlane.xlu0 %1014
  %v1016 = vsub.f32 %v919, %v976
  %v1017 = vsub.f32 %v922, %v979
  %v1018 = vsub.f32 %v927, %v982
  %v1019 = vsub.f32 %v930, %v985
  %v1020 = vsub.f32 %v935, %v988
  %v1021 = vsub.f32 %v938, %v991
  %v1022 = vsub.f32 %v943, %v994
  %v1023 = vsub.f32 %v946, %v997
  %v1024 = vsub.f32 %v951, %v1000
  %v1025 = vsub.f32 %v954, %v1003
  %v1026 = vsub.f32 %v959, %v1006
  %v1027 = vsub.f32 %v962, %v1009
  %v1028 = vsub.f32 %v967, %v1012
  %v1029 = vsub.f32 %v970, %v1015
  %v1030 = vmul.f32 %v1016, 1.442695
  %v1031 = vpow.pop %v1030
  %v1032 = vmul.f32 %v1017, 1.442695
  %v1033 = vpow.pop %v1032
  %v1034 = vmul.f32 %v1018, 1.442695
  %v1035 = vpow.pop %v1034
  %v1036 = vmul.f32 %v1019, 1.442695
  %v1037 = vpow.pop %v1036
  %v1038 = vmul.f32 %v1020, 1.442695
  %v1039 = vpow.pop %v1038
  %v1040 = vmul.f32 %v1021, 1.442695
  %v1041 = vpow.pop %v1040
  %v1042 = vmul.f32 %v1022, 1.442695
  %v1043 = vpow.pop %v1042
  %v1044 = vmul.f32 %v1023, 1.442695
  %v1045 = vpow.pop %v1044
  %v1046 = vmul.f32 %v1024, 1.442695
  %v1047 = vpow.pop %v1046
  %v1048 = vmul.f32 %v1025, 1.442695
  %v1049 = vpow.pop %v1048
  %v1050 = vmul.f32 %v1026, 1.442695
  %v1051 = vpow.pop %v1050
  %v1052 = vmul.f32 %v1027, 1.442695
  %v1053 = vpow.pop %v1052
  %v1054 = vmul.f32 %v1028, 1.442695
  %v1055 = vpow.pop %v1054
  %v1056 = vmul.f32 %v1029, 1.442695
  %v1057 = vpow.pop %v1056
  %v1058 = vsel %vm973, %v1031, 0.0
  %1059 = vadd.xlane.f32.xlu0 %v1058
  %v1060 = vpop.xlane.xlu0 %1059
  %v1061 = vsel %vm973, %v1033, 0.0
  %1062 = vadd.xlane.f32.xlu0 %v1061
  %v1063 = vpop.xlane.xlu0 %1062
  %v1064 = vsel %vm973, %v1035, 0.0
  %1065 = vadd.xlane.f32.xlu0 %v1064
  %v1066 = vpop.xlane.xlu0 %1065
  %v1067 = vsel %vm973, %v1037, 0.0
  %1068 = vadd.xlane.f32.xlu0 %v1067
  %v1069 = vpop.xlane.xlu0 %1068
  %v1070 = vsel %vm973, %v1039, 0.0
  %1071 = vadd.xlane.f32.xlu0 %v1070
  %v1072 = vpop.xlane.xlu0 %1071
  %v1073 = vsel %vm973, %v1041, 0.0
  %1074 = vadd.xlane.f32.xlu0 %v1073
  %v1075 = vpop.xlane.xlu0 %1074
  %v1076 = vsel %vm973, %v1043, 0.0
  %1077 = vadd.xlane.f32.xlu0 %v1076
  %v1078 = vpop.xlane.xlu0 %1077
  %v1079 = vsel %vm973, %v1045, 0.0
  %1080 = vadd.xlane.f32.xlu0 %v1079
  %v1081 = vpop.xlane.xlu0 %1080
  %v1082 = vsel %vm973, %v1047, 0.0
  %1083 = vadd.xlane.f32.xlu0 %v1082
  %v1084 = vpop.xlane.xlu0 %1083
  %v1085 = vsel %vm973, %v1049, 0.0
  %1086 = vadd.xlane.f32.xlu0 %v1085
  %v1087 = vpop.xlane.xlu0 %1086
  %v1088 = vsel %vm973, %v1051, 0.0
  %1089 = vadd.xlane.f32.xlu0 %v1088
  %v1090 = vpop.xlane.xlu0 %1089
  %v1091 = vsel %vm973, %v1053, 0.0
  %1092 = vadd.xlane.f32.xlu0 %v1091
  %v1093 = vpop.xlane.xlu0 %1092
  %v1094 = vsel %vm973, %v1055, 0.0
  %1095 = vadd.xlane.f32.xlu0 %v1094
  %v1096 = vpop.xlane.xlu0 %1095
  %v1097 = vsel %vm973, %v1057, 0.0
  %1098 = vadd.xlane.f32.xlu0 %v1097
  %v1099 = vpop.xlane.xlu0 %1098
  %v1100 = vrcp.pop %v1060
  %v1101 = vrcp.pop %v1063
  %v1102 = vrcp.pop %v1066
  %v1103 = vrcp.pop %v1069
  %v1104 = vrcp.pop %v1072
  %v1105 = vrcp.pop %v1075
  %v1106 = vrcp.pop %v1078
  %v1107 = vrcp.pop %v1081
  %v1108 = vrcp.pop %v1084
  %v1109 = vrcp.pop %v1087
  %v1110 = vrcp.pop %v1090
  %v1111 = vrcp.pop %v1093
  %v1112 = vrcp.pop %v1096
  %v1113 = vrcp.pop %v1099
  %v1114 = vmul.f32 %v1031, %v1100
  %v1115 = vmul.f32 %v1033, %v1101
  %v1116 = vmul.f32 %v1035, %v1102
  %v1117 = vmul.f32 %v1037, %v1103
  %v1118 = vmul.f32 %v1039, %v1104
  %v1119 = vmul.f32 %v1041, %v1105
  %v1120 = vmul.f32 %v1043, %v1106
  %v1121 = vmul.f32 %v1045, %v1107
  %v1122 = vmul.f32 %v1047, %v1108
  %v1123 = vmul.f32 %v1049, %v1109
  %v1124 = vmul.f32 %v1051, %v1110
  %v1125 = vmul.f32 %v1053, %v1111
  %v1126 = vmul.f32 %v1055, %v1112
  %v1127 = vmul.f32 %v1057, %v1113
  %v1128 = vpack.c.bf16 %v1115, %v1114
  %v1129 = vpack.c.bf16 %v1117, %v1116
  %v1130 = vpack.c.bf16 %v1119, %v1118
  %v1131 = vpack.c.bf16 %v1121, %v1120
  %v1132 = vpack.c.bf16 %v1123, %v1122
  %v1133 = vpack.c.bf16 %v1125, %v1124
  %v1134 = vpack.c.bf16 %v1127, %v1126
  %1135 = vrot.lane.b32.xlu0 %v813, 64
  %v1136 = vpop.permute.xlu0 %1135
  %1137 = vrot.lane.b32.xlu0 %v814, 64
  %v1138 = vpop.permute.xlu0 %1137
  %1139 = vrot.lane.b32.xlu0 %v815, 64
  %v1140 = vpop.permute.xlu0 %1139
  %1141 = vrot.lane.b32.xlu0 %v816, 64
  %v1142 = vpop.permute.xlu0 %1141
  %1143 = vrot.lane.b32.xlu0 %v817, 64
  %v1144 = vpop.permute.xlu0 %1143
  %1145 = vrot.lane.b32.xlu0 %v818, 64
  %v1146 = vpop.permute.xlu0 %1145
  %1147 = vrot.lane.b32.xlu0 %v819, 64
  %v1148 = vpop.permute.xlu0 %1147
  %v1157 = vsel %vm973, %v1128, 0
  %v1160 = vsel %vm973, %v1129, 0
  %v1163 = vsel %vm973, %v1130, 0
  %v1166 = vsel %vm973, %v1131, 0
  %v1169 = vsel %vm973, %v1132, 0
  %v1172 = vsel %vm973, %v1133, 0
  %v1175 = vsel %vm973, %v1134, 0
  %1177 = vmatprep.subr.bf16.mxu0 0
  %1178 = vmatpush1.bf16.msra.mxu0 %v1136
  %1179 = vmatprep.subr.bf16.mxu0 0
  %1180 = vmatpush1.bf16.msra.mxu0 %v1138
  %1181 = vmatprep.subr.bf16.mxu0 0
  %1182 = vmatpush1.bf16.msra.mxu0 %v1140
  %1183 = vmatprep.subr.bf16.mxu0 0
  %1184 = vmatpush1.bf16.msra.mxu0 %v1142
  %1185 = vmatprep.subr.bf16.mxu0 0
  %1186 = vmatpush1.bf16.msra.mxu0 %v1144
  %1187 = vmatprep.subr.bf16.mxu0 0
  %1188 = vmatpush1.bf16.msra.mxu0 %v1146
  %1189 = vmatprep.subr.bf16.mxu0 0
  %1190 = vmatpush1.bf16.msra.mxu0 %v1148
  %1191 = vmatprep.subr.bf16.mxu0 0
  %1192 = vmatpush1.bf16.msra.mxu0 0
  %1193 = vmatprep.subr.bf16.mxu0 0
  %1194 = vmatpush1.bf16.msra.mxu0 0
  %1195 = vmatprep.subr.bf16.mxu0 0
  %1196 = vmatpush1.bf16.msra.mxu0 0
  %1197 = vmatprep.subr.bf16.mxu0 0
  %1198 = vmatpush1.bf16.msra.mxu0 0
  %1199 = vmatprep.subr.bf16.mxu0 0
  %1200 = vmatpush1.bf16.msra.mxu0 0
  %1201 = vmatprep.subr.bf16.mxu0 0
  %1202 = vmatpush1.bf16.msra.mxu0 0
  %1203 = vmatprep.subr.bf16.mxu0 0
  %1204 = vmatpush1.bf16.msra.mxu0 0
  %1205 = vmatprep.subr.bf16.mxu0 0
  %1206 = vmatpush1.bf16.msra.mxu0 0
  %1207 = vmatprep.subr.bf16.mxu0 0
  %1208 = vmatpush1.bf16.msra.mxu0 0
  %1209 = vmatprep.mubr.bf16.mxu0 0
  %1210 = vmatmul.mubr.bf16.gmra.mrb[0].mxu0 %v1157
  %v1211 = vpop.f32.mrb[0].mxu0
  %v1212 = vadd.f32 0.0, %v1211
  %v1213 = vpop.f32.mrb[0].mxu0
  %v1214 = vpop.f32.mrb[0].mxu0
  %v1215 = vadd.f32 0.0, %v1214
  %v1216 = vpop.f32.mrb[0].mxu0
  %1217 = vmatprep.mubr.bf16.mxu0 0
  %1218 = vmatmul.mubr.bf16.gmra.mrb[0].mxu0 %v1160
  %v1219 = vpop.f32.mrb[0].mxu0
  %v1220 = vadd.f32 0.0, %v1219
  %v1221 = vpop.f32.mrb[0].mxu0
  %v1222 = vpop.f32.mrb[0].mxu0
  %v1223 = vadd.f32 0.0, %v1222
  %v1224 = vpop.f32.mrb[0].mxu0
  %1225 = vmatprep.mubr.bf16.mxu0 0
  %1226 = vmatmul.mubr.bf16.gmra.mrb[0].mxu0 %v1163
  %v1227 = vpop.f32.mrb[0].mxu0
  %v1228 = vadd.f32 0.0, %v1227
  %v1229 = vpop.f32.mrb[0].mxu0
  %v1230 = vpop.f32.mrb[0].mxu0
  %v1231 = vadd.f32 0.0, %v1230
  %v1232 = vpop.f32.mrb[0].mxu0
  %1233 = vmatprep.mubr.bf16.mxu0 0
  %1234 = vmatmul.mubr.bf16.gmra.mrb[0].mxu0 %v1166
  %v1235 = vpop.f32.mrb[0].mxu0
  %v1236 = vadd.f32 0.0, %v1235
  %v1237 = vpop.f32.mrb[0].mxu0
  %v1238 = vpop.f32.mrb[0].mxu0
  %v1239 = vadd.f32 0.0, %v1238
  %v1240 = vpop.f32.mrb[0].mxu0
  %1241 = vmatprep.mubr.bf16.mxu0 0
  %1242 = vmatmul.mubr.bf16.gmra.mrb[0].mxu0 %v1169
  %v1243 = vpop.f32.mrb[0].mxu0
  %v1244 = vadd.f32 0.0, %v1243
  %v1245 = vpop.f32.mrb[0].mxu0
  %v1246 = vpop.f32.mrb[0].mxu0
  %v1247 = vadd.f32 0.0, %v1246
  %v1248 = vpop.f32.mrb[0].mxu0
  %1249 = vmatprep.mubr.bf16.mxu0 0
  %1250 = vmatmul.mubr.bf16.gmra.mrb[0].mxu0 %v1172
  %v1251 = vpop.f32.mrb[0].mxu0
  %v1252 = vadd.f32 0.0, %v1251
  %v1253 = vpop.f32.mrb[0].mxu0
  %v1254 = vpop.f32.mrb[0].mxu0
  %v1255 = vadd.f32 0.0, %v1254
  %v1256 = vpop.f32.mrb[0].mxu0
  %1257 = vmatprep.mubr.bf16.mxu0 0
  %1258 = vmatmul.mubr.bf16.gmra.mrb[0].mxu0 %v1175
  %v1259 = vpop.f32.mrb[0].mxu0
  %v1260 = vadd.f32 0.0, %v1259
  %v1261 = vpop.f32.mrb[0].mxu0
  %v1262 = vpop.f32.mrb[0].mxu0
  %v1263 = vadd.f32 0.0, %v1262
  %v1264 = vpop.f32.mrb[0].mxu0
  %1265 = vdwg.mxu0
  %1273 = vrot.lane.b32.xlu0 %v806, 120
  %v1274 = vpop.permute.xlu0 %1273
  %1275 = vrot.lane.b32.xlu0 %v807, 120
  %v1276 = vpop.permute.xlu0 %1275
  %1277 = vrot.lane.b32.xlu0 %v808, 120
  %v1278 = vpop.permute.xlu0 %1277
  %1279 = vrot.lane.b32.xlu0 %v809, 120
  %v1280 = vpop.permute.xlu0 %1279
  %1281 = vrot.lane.b32.xlu0 %v810, 120
  %v1282 = vpop.permute.xlu0 %1281
  %1283 = vrot.lane.b32.xlu0 %v811, 120
  %v1284 = vpop.permute.xlu0 %1283
  %1285 = vrot.lane.b32.xlu0 %v812, 120
  %v1286 = vpop.permute.xlu0 %1285
  %1287 = vrot.lane.b32.xlu0 %v813, 88
  %v1288 = vpop.permute.xlu0 %1287
  %1289 = vrot.lane.b32.xlu0 %v814, 88
  %v1290 = vpop.permute.xlu0 %1289
  %1291 = vrot.lane.b32.xlu0 %v815, 88
  %v1292 = vpop.permute.xlu0 %1291
  %1293 = vrot.lane.b32.xlu0 %v816, 88
  %v1294 = vpop.permute.xlu0 %1293
  %1295 = vrot.lane.b32.xlu0 %v817, 88
  %v1296 = vpop.permute.xlu0 %1295
  %1297 = vrot.lane.b32.xlu0 %v818, 88
  %v1298 = vpop.permute.xlu0 %1297
  %1299 = vrot.lane.b32.xlu0 %v819, 88
  %v1300 = vpop.permute.xlu0 %1299
  %v1302 = vsel %vm841, %v1274, 0
  %v1305 = vsel %vm841, %v1276, 0
  %v1308 = vsel %vm841, %v1278, 0
  %v1311 = vsel %vm841, %v1280, 0
  %v1314 = vsel %vm841, %v1282, 0
  %v1317 = vsel %vm841, %v1284, 0
  %v1320 = vsel %vm841, %v1286, 0
  %v1323 = vsel %vm841, %v1288, 0
  %v1326 = vsel %vm841, %v1290, 0
  %v1329 = vsel %vm841, %v1292, 0
  %v1332 = vsel %vm841, %v1294, 0
  %v1335 = vsel %vm841, %v1296, 0
  %v1338 = vsel %vm841, %v1298, 0
  %v1341 = vsel %vm841, %v1300, 0
  %1343 = vmatprep.subr.bf16.mxu0 0
  %1344 = vmatpush1.bf16.xpose.msra.mxu0 %v1323
  %1345 = vmatprep.subr.bf16.mxu0 0
  %1346 = vmatpush1.bf16.xpose.msra.mxu0 %v1326
  %1347 = vmatprep.subr.bf16.mxu0 0
  %1348 = vmatpush1.bf16.xpose.msra.mxu0 %v1329
  %1349 = vmatprep.subr.bf16.mxu0 0
  %1350 = vmatpush1.bf16.xpose.msra.mxu0 %v1332
  %1351 = vmatprep.subr.bf16.mxu0 0
  %1352 = vmatpush1.bf16.xpose.msra.mxu0 %v1335
  %1353 = vmatprep.subr.bf16.mxu0 0
  %1354 = vmatpush1.bf16.xpose.msra.mxu0 %v1338
  %1355 = vmatprep.subr.bf16.mxu0 0
  %1356 = vmatpush1.bf16.xpose.msra.mxu0 %v1341
  %1357 = vmatprep.subr.bf16.mxu0 0
  %1358 = vmatpush1.bf16.xpose.msra.mxu0 0
  %1359 = vmatprep.subr.bf16.mxu0 0
  %1360 = vmatpush1.bf16.xpose.msra.mxu0 0
  %1361 = vmatprep.subr.bf16.mxu0 0
  %1362 = vmatpush1.bf16.xpose.msra.mxu0 0
  %1363 = vmatprep.subr.bf16.mxu0 0
  %1364 = vmatpush1.bf16.xpose.msra.mxu0 0
  %1365 = vmatprep.subr.bf16.mxu0 0
  %1366 = vmatpush1.bf16.xpose.msra.mxu0 0
  %1367 = vmatprep.subr.bf16.mxu0 0
  %1368 = vmatpush1.bf16.xpose.msra.mxu0 0
  %1369 = vmatprep.subr.bf16.mxu0 0
  %1370 = vmatpush1.bf16.xpose.msra.mxu0 0
  %1371 = vmatprep.subr.bf16.mxu0 0
  %1372 = vmatpush1.bf16.xpose.msra.mxu0 0
  %1373 = vmatprep.subr.bf16.mxu0 0
  %1374 = vmatpush1.bf16.xpose.msra.mxu0 0
  %1375 = vmatprep.mubr.bf16.mxu0 0
  %1376 = vmatmul.mubr.bf16.gmra.mrb[0].mxu0 %v1302
  %v1377 = vpop.f32.mrb[0].mxu0
  %v1378 = vadd.f32 %v75, %v1377
  %v1379 = vpop.f32.mrb[0].mxu0
  %v1380 = vpop.f32.mrb[0].mxu0
  %v1381 = vadd.f32 %v76, %v1380
  %v1382 = vpop.f32.mrb[0].mxu0
  %1383 = vmatprep.mubr.bf16.mxu0 0
  %1384 = vmatmul.mubr.bf16.gmra.mrb[0].mxu0 %v1305
  %v1385 = vpop.f32.mrb[0].mxu0
  %v1386 = vadd.f32 %v77, %v1385
  %v1387 = vpop.f32.mrb[0].mxu0
  %v1388 = vpop.f32.mrb[0].mxu0
  %v1389 = vadd.f32 %v78, %v1388
  %v1390 = vpop.f32.mrb[0].mxu0
  %1391 = vmatprep.mubr.bf16.mxu0 0
  %1392 = vmatmul.mubr.bf16.gmra.mrb[0].mxu0 %v1308
  %v1393 = vpop.f32.mrb[0].mxu0
  %v1394 = vadd.f32 %v79, %v1393
  %v1395 = vpop.f32.mrb[0].mxu0
  %v1396 = vpop.f32.mrb[0].mxu0
  %v1397 = vadd.f32 %v80, %v1396
  %v1398 = vpop.f32.mrb[0].mxu0
  %1399 = vmatprep.mubr.bf16.mxu0 0
  %1400 = vmatmul.mubr.bf16.gmra.mrb[0].mxu0 %v1311
  %v1401 = vpop.f32.mrb[0].mxu0
  %v1402 = vadd.f32 %v81, %v1401
  %v1403 = vpop.f32.mrb[0].mxu0
  %v1404 = vpop.f32.mrb[0].mxu0
  %v1405 = vadd.f32 %v82, %v1404
  %v1406 = vpop.f32.mrb[0].mxu0
  %1407 = vmatprep.mubr.bf16.mxu0 0
  %1408 = vmatmul.mubr.bf16.gmra.mrb[0].mxu0 %v1314
  %v1409 = vpop.f32.mrb[0].mxu0
  %v1410 = vadd.f32 %v83, %v1409
  %v1411 = vpop.f32.mrb[0].mxu0
  %v1412 = vpop.f32.mrb[0].mxu0
  %v1413 = vadd.f32 %v84, %v1412
  %v1414 = vpop.f32.mrb[0].mxu0
  %1415 = vmatprep.mubr.bf16.mxu0 0
  %1416 = vmatmul.mubr.bf16.gmra.mrb[0].mxu0 %v1317
  %v1417 = vpop.f32.mrb[0].mxu0
  %v1418 = vadd.f32 %v85, %v1417
  %v1419 = vpop.f32.mrb[0].mxu0
  %v1420 = vpop.f32.mrb[0].mxu0
  %v1421 = vadd.f32 %v86, %v1420
  %v1422 = vpop.f32.mrb[0].mxu0
  %1423 = vmatprep.mubr.bf16.mxu0 0
  %1424 = vmatmul.mubr.bf16.gmra.mrb[0].mxu0 %v1320
  %v1425 = vpop.f32.mrb[0].mxu0
  %v1426 = vadd.f32 %v87, %v1425
  %v1427 = vpop.f32.mrb[0].mxu0
  %v1428 = vpop.f32.mrb[0].mxu0
  %v1429 = vadd.f32 %v88, %v1428
  %v1430 = vpop.f32.mrb[0].mxu0
  %1431 = vdwg.mxu0
  %v1432 = vsel %vm973, %v1378, -inf
  %1433 = vmax.xlane.f32.xlu0 %v1432
  %v1434 = vpop.xlane.xlu0 %1433
  %v1435 = vsel %vm973, %v1381, -inf
  %1436 = vmax.xlane.f32.xlu0 %v1435
  %v1437 = vpop.xlane.xlu0 %1436
  %v1438 = vsel %vm973, %v1386, -inf
  %1439 = vmax.xlane.f32.xlu0 %v1438
  %v1440 = vpop.xlane.xlu0 %1439
  %v1441 = vsel %vm973, %v1389, -inf
  %1442 = vmax.xlane.f32.xlu0 %v1441
  %v1443 = vpop.xlane.xlu0 %1442
  %v1444 = vsel %vm973, %v1394, -inf
  %1445 = vmax.xlane.f32.xlu0 %v1444
  %v1446 = vpop.xlane.xlu0 %1445
  %v1447 = vsel %vm973, %v1397, -inf
  %1448 = vmax.xlane.f32.xlu0 %v1447
  %v1449 = vpop.xlane.xlu0 %1448
  %v1450 = vsel %vm973, %v1402, -inf
  %1451 = vmax.xlane.f32.xlu0 %v1450
  %v1452 = vpop.xlane.xlu0 %1451
  %v1453 = vsel %vm973, %v1405, -inf
  %1454 = vmax.xlane.f32.xlu0 %v1453
  %v1455 = vpop.xlane.xlu0 %1454
  %v1456 = vsel %vm973, %v1410, -inf
  %1457 = vmax.xlane.f32.xlu0 %v1456
  %v1458 = vpop.xlane.xlu0 %1457
  %v1459 = vsel %vm973, %v1413, -inf
  %1460 = vmax.xlane.f32.xlu0 %v1459
  %v1461 = vpop.xlane.xlu0 %1460
  %v1462 = vsel %vm973, %v1418, -inf
  %1463 = vmax.xlane.f32.xlu0 %v1462
  %v1464 = vpop.xlane.xlu0 %1463
  %v1465 = vsel %vm973, %v1421, -inf
  %1466 = vmax.xlane.f32.xlu0 %v1465
  %v1467 = vpop.xlane.xlu0 %1466
  %v1468 = vsel %vm973, %v1426, -inf
  %1469 = vmax.xlane.f32.xlu0 %v1468
  %v1470 = vpop.xlane.xlu0 %1469
  %v1471 = vsel %vm973, %v1429, -inf
  %1472 = vmax.xlane.f32.xlu0 %v1471
  %v1473 = vpop.xlane.xlu0 %1472
  %v1474 = vsub.f32 %v1378, %v1434
  %v1475 = vsub.f32 %v1381, %v1437
  %v1476 = vsub.f32 %v1386, %v1440
  %v1477 = vsub.f32 %v1389, %v1443
  %v1478 = vsub.f32 %v1394, %v1446
  %v1479 = vsub.f32 %v1397, %v1449
  %v1480 = vsub.f32 %v1402, %v1452
  %v1481 = vsub.f32 %v1405, %v1455
  %v1482 = vsub.f32 %v1410, %v1458
  %v1483 = vsub.f32 %v1413, %v1461
  %v1484 = vsub.f32 %v1418, %v1464
  %v1485 = vsub.f32 %v1421, %v1467
  %v1486 = vsub.f32 %v1426, %v1470
  %v1487 = vsub.f32 %v1429, %v1473
  %v1488 = vmul.f32 %v1474, 1.442695
  %v1489 = vpow.pop %v1488
  %v1490 = vmul.f32 %v1475, 1.442695
  %v1491 = vpow.pop %v1490
  %v1492 = vmul.f32 %v1476, 1.442695
  %v1493 = vpow.pop %v1492
  %v1494 = vmul.f32 %v1477, 1.442695
  %v1495 = vpow.pop %v1494
  %v1496 = vmul.f32 %v1478, 1.442695
  %v1497 = vpow.pop %v1496
  %v1498 = vmul.f32 %v1479, 1.442695
  %v1499 = vpow.pop %v1498
  %v1500 = vmul.f32 %v1480, 1.442695
  %v1501 = vpow.pop %v1500
  %v1502 = vmul.f32 %v1481, 1.442695
  %v1503 = vpow.pop %v1502
  %v1504 = vmul.f32 %v1482, 1.442695
  %v1505 = vpow.pop %v1504
  %v1506 = vmul.f32 %v1483, 1.442695
  %v1507 = vpow.pop %v1506
  %v1508 = vmul.f32 %v1484, 1.442695
  %v1509 = vpow.pop %v1508
  %v1510 = vmul.f32 %v1485, 1.442695
  %v1511 = vpow.pop %v1510
  %v1512 = vmul.f32 %v1486, 1.442695
  %v1513 = vpow.pop %v1512
  %v1514 = vmul.f32 %v1487, 1.442695
  %v1515 = vpow.pop %v1514
  %v1516 = vsel %vm973, %v1489, 0.0
  %1517 = vadd.xlane.f32.xlu0 %v1516
  %v1518 = vpop.xlane.xlu0 %1517
  %v1519 = vsel %vm973, %v1491, 0.0
  %1520 = vadd.xlane.f32.xlu0 %v1519
  %v1521 = vpop.xlane.xlu0 %1520
  %v1522 = vsel %vm973, %v1493, 0.0
  %1523 = vadd.xlane.f32.xlu0 %v1522
  %v1524 = vpop.xlane.xlu0 %1523
  %v1525 = vsel %vm973, %v1495, 0.0
  %1526 = vadd.xlane.f32.xlu0 %v1525
  %v1527 = vpop.xlane.xlu0 %1526
  %v1528 = vsel %vm973, %v1497, 0.0
  %1529 = vadd.xlane.f32.xlu0 %v1528
  %v1530 = vpop.xlane.xlu0 %1529
  %v1531 = vsel %vm973, %v1499, 0.0
  %1532 = vadd.xlane.f32.xlu0 %v1531
  %v1533 = vpop.xlane.xlu0 %1532
  %v1534 = vsel %vm973, %v1501, 0.0
  %1535 = vadd.xlane.f32.xlu0 %v1534
  %v1536 = vpop.xlane.xlu0 %1535
  %v1537 = vsel %vm973, %v1503, 0.0
  %1538 = vadd.xlane.f32.xlu0 %v1537
  %v1539 = vpop.xlane.xlu0 %1538
  %v1540 = vsel %vm973, %v1505, 0.0
  %1541 = vadd.xlane.f32.xlu0 %v1540
  %v1542 = vpop.xlane.xlu0 %1541
  %v1543 = vsel %vm973, %v1507, 0.0
  %1544 = vadd.xlane.f32.xlu0 %v1543
  %v1545 = vpop.xlane.xlu0 %1544
  %v1546 = vsel %vm973, %v1509, 0.0
  %1547 = vadd.xlane.f32.xlu0 %v1546
  %v1548 = vpop.xlane.xlu0 %1547
  %v1549 = vsel %vm973, %v1511, 0.0
  %1550 = vadd.xlane.f32.xlu0 %v1549
  %v1551 = vpop.xlane.xlu0 %1550
  %v1552 = vsel %vm973, %v1513, 0.0
  %1553 = vadd.xlane.f32.xlu0 %v1552
  %v1554 = vpop.xlane.xlu0 %1553
  %v1555 = vsel %vm973, %v1515, 0.0
  %1556 = vadd.xlane.f32.xlu0 %v1555
  %v1557 = vpop.xlane.xlu0 %1556
  %v1558 = vrcp.pop %v1518
  %v1559 = vrcp.pop %v1521
  %v1560 = vrcp.pop %v1524
  %v1561 = vrcp.pop %v1527
  %v1562 = vrcp.pop %v1530
  %v1563 = vrcp.pop %v1533
  %v1564 = vrcp.pop %v1536
  %v1565 = vrcp.pop %v1539
  %v1566 = vrcp.pop %v1542
  %v1567 = vrcp.pop %v1545
  %v1568 = vrcp.pop %v1548
  %v1569 = vrcp.pop %v1551
  %v1570 = vrcp.pop %v1554
  %v1571 = vrcp.pop %v1557
  %v1572 = vmul.f32 %v1489, %v1558
  %v1573 = vmul.f32 %v1491, %v1559
  %v1574 = vmul.f32 %v1493, %v1560
  %v1575 = vmul.f32 %v1495, %v1561
  %v1576 = vmul.f32 %v1497, %v1562
  %v1577 = vmul.f32 %v1499, %v1563
  %v1578 = vmul.f32 %v1501, %v1564
  %v1579 = vmul.f32 %v1503, %v1565
  %v1580 = vmul.f32 %v1505, %v1566
  %v1581 = vmul.f32 %v1507, %v1567
  %v1582 = vmul.f32 %v1509, %v1568
  %v1583 = vmul.f32 %v1511, %v1569
  %v1584 = vmul.f32 %v1513, %v1570
  %v1585 = vmul.f32 %v1515, %v1571
  %v1586 = vpack.c.bf16 %v1573, %v1572
  %v1587 = vpack.c.bf16 %v1575, %v1574
  %v1588 = vpack.c.bf16 %v1577, %v1576
  %v1589 = vpack.c.bf16 %v1579, %v1578
  %v1590 = vpack.c.bf16 %v1581, %v1580
  %v1591 = vpack.c.bf16 %v1583, %v1582
  %v1592 = vpack.c.bf16 %v1585, %v1584
  %1593 = vrot.lane.b32.xlu0 %v813, 56
  %v1594 = vpop.permute.xlu0 %1593
  %1595 = vrot.lane.b32.xlu0 %v814, 56
  %v1596 = vpop.permute.xlu0 %1595
  %1597 = vrot.lane.b32.xlu0 %v815, 56
  %v1598 = vpop.permute.xlu0 %1597
  %1599 = vrot.lane.b32.xlu0 %v816, 56
  %v1600 = vpop.permute.xlu0 %1599
  %1601 = vrot.lane.b32.xlu0 %v817, 56
  %v1602 = vpop.permute.xlu0 %1601
  %1603 = vrot.lane.b32.xlu0 %v818, 56
  %v1604 = vpop.permute.xlu0 %1603
  %1605 = vrot.lane.b32.xlu0 %v819, 56
  %v1606 = vpop.permute.xlu0 %1605
  %v1615 = vsel %vm973, %v1586, 0
  %v1618 = vsel %vm973, %v1587, 0
  %v1621 = vsel %vm973, %v1588, 0
  %v1624 = vsel %vm973, %v1589, 0
  %v1627 = vsel %vm973, %v1590, 0
  %v1630 = vsel %vm973, %v1591, 0
  %v1633 = vsel %vm973, %v1592, 0
  %1635 = vmatprep.subr.bf16.mxu0 0
  %1636 = vmatpush1.bf16.msra.mxu0 %v1594
  %1637 = vmatprep.subr.bf16.mxu0 0
  %1638 = vmatpush1.bf16.msra.mxu0 %v1596
  %1639 = vmatprep.subr.bf16.mxu0 0
  %1640 = vmatpush1.bf16.msra.mxu0 %v1598
  %1641 = vmatprep.subr.bf16.mxu0 0
  %1642 = vmatpush1.bf16.msra.mxu0 %v1600
  %1643 = vmatprep.subr.bf16.mxu0 0
  %1644 = vmatpush1.bf16.msra.mxu0 %v1602
  %1645 = vmatprep.subr.bf16.mxu0 0
  %1646 = vmatpush1.bf16.msra.mxu0 %v1604
  %1647 = vmatprep.subr.bf16.mxu0 0
  %1648 = vmatpush1.bf16.msra.mxu0 %v1606
  %1649 = vmatprep.subr.bf16.mxu0 0
  %1650 = vmatpush1.bf16.msra.mxu0 0
  %1651 = vmatprep.subr.bf16.mxu0 0
  %1652 = vmatpush1.bf16.msra.mxu0 0
  %1653 = vmatprep.subr.bf16.mxu0 0
  %1654 = vmatpush1.bf16.msra.mxu0 0
  %1655 = vmatprep.subr.bf16.mxu0 0
  %1656 = vmatpush1.bf16.msra.mxu0 0
  %1657 = vmatprep.subr.bf16.mxu0 0
  %1658 = vmatpush1.bf16.msra.mxu0 0
  %1659 = vmatprep.subr.bf16.mxu0 0
  %1660 = vmatpush1.bf16.msra.mxu0 0
  %1661 = vmatprep.subr.bf16.mxu0 0
  %1662 = vmatpush1.bf16.msra.mxu0 0
  %1663 = vmatprep.subr.bf16.mxu0 0
  %1664 = vmatpush1.bf16.msra.mxu0 0
  %1665 = vmatprep.subr.bf16.mxu0 0
  %1666 = vmatpush1.bf16.msra.mxu0 0
  %1667 = vmatprep.mubr.bf16.mxu0 0
  %1668 = vmatmul.mubr.bf16.gmra.mrb[0].mxu0 %v1615
  %v1669 = vpop.f32.mrb[0].mxu0
  %v1670 = vadd.f32 0.0, %v1669
  %v1671 = vpop.f32.mrb[0].mxu0
  %v1672 = vpop.f32.mrb[0].mxu0
  %v1673 = vadd.f32 0.0, %v1672
  %v1674 = vpop.f32.mrb[0].mxu0
  %1675 = vmatprep.mubr.bf16.mxu0 0
  %1676 = vmatmul.mubr.bf16.gmra.mrb[0].mxu0 %v1618
  %v1677 = vpop.f32.mrb[0].mxu0
  %v1678 = vadd.f32 0.0, %v1677
  %v1679 = vpop.f32.mrb[0].mxu0
  %v1680 = vpop.f32.mrb[0].mxu0
  %v1681 = vadd.f32 0.0, %v1680
  %v1682 = vpop.f32.mrb[0].mxu0
  %1683 = vmatprep.mubr.bf16.mxu0 0
  %1684 = vmatmul.mubr.bf16.gmra.mrb[0].mxu0 %v1621
  %v1685 = vpop.f32.mrb[0].mxu0
  %v1686 = vadd.f32 0.0, %v1685
  %v1687 = vpop.f32.mrb[0].mxu0
  %v1688 = vpop.f32.mrb[0].mxu0
  %v1689 = vadd.f32 0.0, %v1688
  %v1690 = vpop.f32.mrb[0].mxu0
  %1691 = vmatprep.mubr.bf16.mxu0 0
  %1692 = vmatmul.mubr.bf16.gmra.mrb[0].mxu0 %v1624
  %v1693 = vpop.f32.mrb[0].mxu0
  %v1694 = vadd.f32 0.0, %v1693
  %v1695 = vpop.f32.mrb[0].mxu0
  %v1696 = vpop.f32.mrb[0].mxu0
  %v1697 = vadd.f32 0.0, %v1696
  %v1698 = vpop.f32.mrb[0].mxu0
  %1699 = vmatprep.mubr.bf16.mxu0 0
  %1700 = vmatmul.mubr.bf16.gmra.mrb[0].mxu0 %v1627
  %v1701 = vpop.f32.mrb[0].mxu0
  %v1702 = vadd.f32 0.0, %v1701
  %v1703 = vpop.f32.mrb[0].mxu0
  %v1704 = vpop.f32.mrb[0].mxu0
  %v1705 = vadd.f32 0.0, %v1704
  %v1706 = vpop.f32.mrb[0].mxu0
  %1707 = vmatprep.mubr.bf16.mxu0 0
  %1708 = vmatmul.mubr.bf16.gmra.mrb[0].mxu0 %v1630
  %v1709 = vpop.f32.mrb[0].mxu0
  %v1710 = vadd.f32 0.0, %v1709
  %v1711 = vpop.f32.mrb[0].mxu0
  %v1712 = vpop.f32.mrb[0].mxu0
  %v1713 = vadd.f32 0.0, %v1712
  %v1714 = vpop.f32.mrb[0].mxu0
  %1715 = vmatprep.mubr.bf16.mxu0 0
  %1716 = vmatmul.mubr.bf16.gmra.mrb[0].mxu0 %v1633
  %v1717 = vpop.f32.mrb[0].mxu0
  %v1718 = vadd.f32 0.0, %v1717
  %v1719 = vpop.f32.mrb[0].mxu0
  %v1720 = vpop.f32.mrb[0].mxu0
  %v1721 = vadd.f32 0.0, %v1720
  %v1722 = vpop.f32.mrb[0].mxu0
  %1723 = vdwg.mxu0
  %1724 = vrot.lane.b32.xlu0 %v806, 112
  %v1725 = vpop.permute.xlu0 %1724
  %1726 = vrot.lane.b32.xlu0 %v807, 112
  %v1727 = vpop.permute.xlu0 %1726
  %1728 = vrot.lane.b32.xlu0 %v808, 112
  %v1729 = vpop.permute.xlu0 %1728
  %1730 = vrot.lane.b32.xlu0 %v809, 112
  %v1731 = vpop.permute.xlu0 %1730
  %1732 = vrot.lane.b32.xlu0 %v810, 112
  %v1733 = vpop.permute.xlu0 %1732
  %1734 = vrot.lane.b32.xlu0 %v811, 112
  %v1735 = vpop.permute.xlu0 %1734
  %1736 = vrot.lane.b32.xlu0 %v812, 112
  %v1737 = vpop.permute.xlu0 %1736
  %1738 = vrot.lane.b32.xlu0 %v813, 80
  %v1739 = vpop.permute.xlu0 %1738
  %1740 = vrot.lane.b32.xlu0 %v814, 80
  %v1741 = vpop.permute.xlu0 %1740
  %1742 = vrot.lane.b32.xlu0 %v815, 80
  %v1743 = vpop.permute.xlu0 %1742
  %1744 = vrot.lane.b32.xlu0 %v816, 80
  %v1745 = vpop.permute.xlu0 %1744
  %1746 = vrot.lane.b32.xlu0 %v817, 80
  %v1747 = vpop.permute.xlu0 %1746
  %1748 = vrot.lane.b32.xlu0 %v818, 80
  %v1749 = vpop.permute.xlu0 %1748
  %1750 = vrot.lane.b32.xlu0 %v819, 80
  %v1751 = vpop.permute.xlu0 %1750
  %v1753 = vsel %vm841, %v1725, 0
  %v1756 = vsel %vm841, %v1727, 0
  %v1759 = vsel %vm841, %v1729, 0
  %v1762 = vsel %vm841, %v1731, 0
  %v1765 = vsel %vm841, %v1733, 0
  %v1768 = vsel %vm841, %v1735, 0
  %v1771 = vsel %vm841, %v1737, 0
  %v1774 = vsel %vm841, %v1739, 0
  %v1777 = vsel %vm841, %v1741, 0
  %v1780 = vsel %vm841, %v1743, 0
  %v1783 = vsel %vm841, %v1745, 0
  %v1786 = vsel %vm841, %v1747, 0
  %v1789 = vsel %vm841, %v1749, 0
  %v1792 = vsel %vm841, %v1751, 0
  %1794 = vmatprep.subr.bf16.mxu0 0
  %1795 = vmatpush1.bf16.xpose.msra.mxu0 %v1774
  %1796 = vmatprep.subr.bf16.mxu0 0
  %1797 = vmatpush1.bf16.xpose.msra.mxu0 %v1777
  %1798 = vmatprep.subr.bf16.mxu0 0
  %1799 = vmatpush1.bf16.xpose.msra.mxu0 %v1780
  %1800 = vmatprep.subr.bf16.mxu0 0
  %1801 = vmatpush1.bf16.xpose.msra.mxu0 %v1783
  %1802 = vmatprep.subr.bf16.mxu0 0
  %1803 = vmatpush1.bf16.xpose.msra.mxu0 %v1786
  %1804 = vmatprep.subr.bf16.mxu0 0
  %1805 = vmatpush1.bf16.xpose.msra.mxu0 %v1789
  %1806 = vmatprep.subr.bf16.mxu0 0
  %1807 = vmatpush1.bf16.xpose.msra.mxu0 %v1792
  %1808 = vmatprep.subr.bf16.mxu0 0
  %1809 = vmatpush1.bf16.xpose.msra.mxu0 0
  %1810 = vmatprep.subr.bf16.mxu0 0
  %1811 = vmatpush1.bf16.xpose.msra.mxu0 0
  %1812 = vmatprep.subr.bf16.mxu0 0
  %1813 = vmatpush1.bf16.xpose.msra.mxu0 0
  %1814 = vmatprep.subr.bf16.mxu0 0
  %1815 = vmatpush1.bf16.xpose.msra.mxu0 0
  %1816 = vmatprep.subr.bf16.mxu0 0
  %1817 = vmatpush1.bf16.xpose.msra.mxu0 0
  %1818 = vmatprep.subr.bf16.mxu0 0
  %1819 = vmatpush1.bf16.xpose.msra.mxu0 0
  %1820 = vmatprep.subr.bf16.mxu0 0
  %1821 = vmatpush1.bf16.xpose.msra.mxu0 0
  %1822 = vmatprep.subr.bf16.mxu0 0
  %1823 = vmatpush1.bf16.xpose.msra.mxu0 0
  %1824 = vmatprep.subr.bf16.mxu0 0
  %1825 = vmatpush1.bf16.xpose.msra.mxu0 0
  %1826 = vmatprep.mubr.bf16.mxu0 0
  %1827 = vmatmul.mubr.bf16.gmra.mrb[0].mxu0 %v1753
  %v1828 = vpop.f32.mrb[0].mxu0
  %v1829 = vadd.f32 %v75, %v1828
  %v1830 = vpop.f32.mrb[0].mxu0
  %v1831 = vpop.f32.mrb[0].mxu0
  %v1832 = vadd.f32 %v76, %v1831
  %v1833 = vpop.f32.mrb[0].mxu0
  %1834 = vmatprep.mubr.bf16.mxu0 0
  %1835 = vmatmul.mubr.bf16.gmra.mrb[0].mxu0 %v1756
  %v1836 = vpop.f32.mrb[0].mxu0
  %v1837 = vadd.f32 %v77, %v1836
  %v1838 = vpop.f32.mrb[0].mxu0
  %v1839 = vpop.f32.mrb[0].mxu0
  %v1840 = vadd.f32 %v78, %v1839
  %v1841 = vpop.f32.mrb[0].mxu0
  %1842 = vmatprep.mubr.bf16.mxu0 0
  %1843 = vmatmul.mubr.bf16.gmra.mrb[0].mxu0 %v1759
  %v1844 = vpop.f32.mrb[0].mxu0
  %v1845 = vadd.f32 %v79, %v1844
  %v1846 = vpop.f32.mrb[0].mxu0
  %v1847 = vpop.f32.mrb[0].mxu0
  %v1848 = vadd.f32 %v80, %v1847
  %v1849 = vpop.f32.mrb[0].mxu0
  %1850 = vmatprep.mubr.bf16.mxu0 0
  %1851 = vmatmul.mubr.bf16.gmra.mrb[0].mxu0 %v1762
  %v1852 = vpop.f32.mrb[0].mxu0
  %v1853 = vadd.f32 %v81, %v1852
  %v1854 = vpop.f32.mrb[0].mxu0
  %v1855 = vpop.f32.mrb[0].mxu0
  %v1856 = vadd.f32 %v82, %v1855
  %v1857 = vpop.f32.mrb[0].mxu0
  %1858 = vmatprep.mubr.bf16.mxu0 0
  %1859 = vmatmul.mubr.bf16.gmra.mrb[0].mxu0 %v1765
  %v1860 = vpop.f32.mrb[0].mxu0
  %v1861 = vadd.f32 %v83, %v1860
  %v1862 = vpop.f32.mrb[0].mxu0
  %v1863 = vpop.f32.mrb[0].mxu0
  %v1864 = vadd.f32 %v84, %v1863
  %v1865 = vpop.f32.mrb[0].mxu0
  %1866 = vmatprep.mubr.bf16.mxu0 0
  %1867 = vmatmul.mubr.bf16.gmra.mrb[0].mxu0 %v1768
  %v1868 = vpop.f32.mrb[0].mxu0
  %v1869 = vadd.f32 %v85, %v1868
  %v1870 = vpop.f32.mrb[0].mxu0
  %v1871 = vpop.f32.mrb[0].mxu0
  %v1872 = vadd.f32 %v86, %v1871
  %v1873 = vpop.f32.mrb[0].mxu0
  %1874 = vmatprep.mubr.bf16.mxu0 0
  %1875 = vmatmul.mubr.bf16.gmra.mrb[0].mxu0 %v1771
  %v1876 = vpop.f32.mrb[0].mxu0
  %v1877 = vadd.f32 %v87, %v1876
  %v1878 = vpop.f32.mrb[0].mxu0
  %v1879 = vpop.f32.mrb[0].mxu0
  %v1880 = vadd.f32 %v88, %v1879
  %v1881 = vpop.f32.mrb[0].mxu0
  %1882 = vdwg.mxu0
  %v1883 = vsel %vm973, %v1829, -inf
  %1884 = vmax.xlane.f32.xlu0 %v1883
  %v1885 = vpop.xlane.xlu0 %1884
  %v1886 = vsel %vm973, %v1832, -inf
  %1887 = vmax.xlane.f32.xlu0 %v1886
  %v1888 = vpop.xlane.xlu0 %1887
  %v1889 = vsel %vm973, %v1837, -inf
  %1890 = vmax.xlane.f32.xlu0 %v1889
  %v1891 = vpop.xlane.xlu0 %1890
  %v1892 = vsel %vm973, %v1840, -inf
  %1893 = vmax.xlane.f32.xlu0 %v1892
  %v1894 = vpop.xlane.xlu0 %1893
  %v1895 = vsel %vm973, %v1845, -inf
  %1896 = vmax.xlane.f32.xlu0 %v1895
  %v1897 = vpop.xlane.xlu0 %1896
  %v1898 = vsel %vm973, %v1848, -inf
  %1899 = vmax.xlane.f32.xlu0 %v1898
  %v1900 = vpop.xlane.xlu0 %1899
  %v1901 = vsel %vm973, %v1853, -inf
  %1902 = vmax.xlane.f32.xlu0 %v1901
  %v1903 = vpop.xlane.xlu0 %1902
  %v1904 = vsel %vm973, %v1856, -inf
  %1905 = vmax.xlane.f32.xlu0 %v1904
  %v1906 = vpop.xlane.xlu0 %1905
  %v1907 = vsel %vm973, %v1861, -inf
  %1908 = vmax.xlane.f32.xlu0 %v1907
  %v1909 = vpop.xlane.xlu0 %1908
  %v1910 = vsel %vm973, %v1864, -inf
  %1911 = vmax.xlane.f32.xlu0 %v1910
  %v1912 = vpop.xlane.xlu0 %1911
  %v1913 = vsel %vm973, %v1869, -inf
  %1914 = vmax.xlane.f32.xlu0 %v1913
  %v1915 = vpop.xlane.xlu0 %1914
  %v1916 = vsel %vm973, %v1872, -inf
  %1917 = vmax.xlane.f32.xlu0 %v1916
  %v1918 = vpop.xlane.xlu0 %1917
  %v1919 = vsel %vm973, %v1877, -inf
  %1920 = vmax.xlane.f32.xlu0 %v1919
  %v1921 = vpop.xlane.xlu0 %1920
  %v1922 = vsel %vm973, %v1880, -inf
  %1923 = vmax.xlane.f32.xlu0 %v1922
  %v1924 = vpop.xlane.xlu0 %1923
  %v1925 = vsub.f32 %v1829, %v1885
  %v1926 = vsub.f32 %v1832, %v1888
  %v1927 = vsub.f32 %v1837, %v1891
  %v1928 = vsub.f32 %v1840, %v1894
  %v1929 = vsub.f32 %v1845, %v1897
  %v1930 = vsub.f32 %v1848, %v1900
  %v1931 = vsub.f32 %v1853, %v1903
  %v1932 = vsub.f32 %v1856, %v1906
  %v1933 = vsub.f32 %v1861, %v1909
  %v1934 = vsub.f32 %v1864, %v1912
  %v1935 = vsub.f32 %v1869, %v1915
  %v1936 = vsub.f32 %v1872, %v1918
  %v1937 = vsub.f32 %v1877, %v1921
  %v1938 = vsub.f32 %v1880, %v1924
  %v1939 = vmul.f32 %v1925, 1.442695
  %v1940 = vpow.pop %v1939
  %v1941 = vmul.f32 %v1926, 1.442695
  %v1942 = vpow.pop %v1941
  %v1943 = vmul.f32 %v1927, 1.442695
  %v1944 = vpow.pop %v1943
  %v1945 = vmul.f32 %v1928, 1.442695
  %v1946 = vpow.pop %v1945
  %v1947 = vmul.f32 %v1929, 1.442695
  %v1948 = vpow.pop %v1947
  %v1949 = vmul.f32 %v1930, 1.442695
  %v1950 = vpow.pop %v1949
  %v1951 = vmul.f32 %v1931, 1.442695
  %v1952 = vpow.pop %v1951
  %v1953 = vmul.f32 %v1932, 1.442695
  %v1954 = vpow.pop %v1953
  %v1955 = vmul.f32 %v1933, 1.442695
  %v1956 = vpow.pop %v1955
  %v1957 = vmul.f32 %v1934, 1.442695
  %v1958 = vpow.pop %v1957
  %v1959 = vmul.f32 %v1935, 1.442695
  %v1960 = vpow.pop %v1959
  %v1961 = vmul.f32 %v1936, 1.442695
  %v1962 = vpow.pop %v1961
  %v1963 = vmul.f32 %v1937, 1.442695
  %v1964 = vpow.pop %v1963
  %v1965 = vmul.f32 %v1938, 1.442695
  %v1966 = vpow.pop %v1965
  %v1967 = vsel %vm973, %v1940, 0.0
  %1968 = vadd.xlane.f32.xlu0 %v1967
  %v1969 = vpop.xlane.xlu0 %1968
  %v1970 = vsel %vm973, %v1942, 0.0
  %1971 = vadd.xlane.f32.xlu0 %v1970
  %v1972 = vpop.xlane.xlu0 %1971
  %v1973 = vsel %vm973, %v1944, 0.0
  %1974 = vadd.xlane.f32.xlu0 %v1973
  %v1975 = vpop.xlane.xlu0 %1974
  %v1976 = vsel %vm973, %v1946, 0.0
  %1977 = vadd.xlane.f32.xlu0 %v1976
  %v1978 = vpop.xlane.xlu0 %1977
  %v1979 = vsel %vm973, %v1948, 0.0
  %1980 = vadd.xlane.f32.xlu0 %v1979
  %v1981 = vpop.xlane.xlu0 %1980
  %v1982 = vsel %vm973, %v1950, 0.0
  %1983 = vadd.xlane.f32.xlu0 %v1982
  %v1984 = vpop.xlane.xlu0 %1983
  %v1985 = vsel %vm973, %v1952, 0.0
  %1986 = vadd.xlane.f32.xlu0 %v1985
  %v1987 = vpop.xlane.xlu0 %1986
  %v1988 = vsel %vm973, %v1954, 0.0
  %1989 = vadd.xlane.f32.xlu0 %v1988
  %v1990 = vpop.xlane.xlu0 %1989
  %v1991 = vsel %vm973, %v1956, 0.0
  %1992 = vadd.xlane.f32.xlu0 %v1991
  %v1993 = vpop.xlane.xlu0 %1992
  %v1994 = vsel %vm973, %v1958, 0.0
  %1995 = vadd.xlane.f32.xlu0 %v1994
  %v1996 = vpop.xlane.xlu0 %1995
  %v1997 = vsel %vm973, %v1960, 0.0
  %1998 = vadd.xlane.f32.xlu0 %v1997
  %v1999 = vpop.xlane.xlu0 %1998
  %v2000 = vsel %vm973, %v1962, 0.0
  %2001 = vadd.xlane.f32.xlu0 %v2000
  %v2002 = vpop.xlane.xlu0 %2001
  %v2003 = vsel %vm973, %v1964, 0.0
  %2004 = vadd.xlane.f32.xlu0 %v2003
  %v2005 = vpop.xlane.xlu0 %2004
  %v2006 = vsel %vm973, %v1966, 0.0
  %2007 = vadd.xlane.f32.xlu0 %v2006
  %v2008 = vpop.xlane.xlu0 %2007
  %v2009 = vrcp.pop %v1969
  %v2010 = vrcp.pop %v1972
  %v2011 = vrcp.pop %v1975
  %v2012 = vrcp.pop %v1978
  %v2013 = vrcp.pop %v1981
  %v2014 = vrcp.pop %v1984
  %v2015 = vrcp.pop %v1987
  %v2016 = vrcp.pop %v1990
  %v2017 = vrcp.pop %v1993
  %v2018 = vrcp.pop %v1996
  %v2019 = vrcp.pop %v1999
  %v2020 = vrcp.pop %v2002
  %v2021 = vrcp.pop %v2005
  %v2022 = vrcp.pop %v2008
  %v2023 = vmul.f32 %v1940, %v2009
  %v2024 = vmul.f32 %v1942, %v2010
  %v2025 = vmul.f32 %v1944, %v2011
  %v2026 = vmul.f32 %v1946, %v2012
  %v2027 = vmul.f32 %v1948, %v2013
  %v2028 = vmul.f32 %v1950, %v2014
  %v2029 = vmul.f32 %v1952, %v2015
  %v2030 = vmul.f32 %v1954, %v2016
  %v2031 = vmul.f32 %v1956, %v2017
  %v2032 = vmul.f32 %v1958, %v2018
  %v2033 = vmul.f32 %v1960, %v2019
  %v2034 = vmul.f32 %v1962, %v2020
  %v2035 = vmul.f32 %v1964, %v2021
  %v2036 = vmul.f32 %v1966, %v2022
  %v2037 = vpack.c.bf16 %v2024, %v2023
  %v2038 = vpack.c.bf16 %v2026, %v2025
  %v2039 = vpack.c.bf16 %v2028, %v2027
  %v2040 = vpack.c.bf16 %v2030, %v2029
  %v2041 = vpack.c.bf16 %v2032, %v2031
  %v2042 = vpack.c.bf16 %v2034, %v2033
  %v2043 = vpack.c.bf16 %v2036, %v2035
  %2044 = vrot.lane.b32.xlu0 %v813, 48
  %v2045 = vpop.permute.xlu0 %2044
  %2046 = vrot.lane.b32.xlu0 %v814, 48
  %v2047 = vpop.permute.xlu0 %2046
  %2048 = vrot.lane.b32.xlu0 %v815, 48
  %v2049 = vpop.permute.xlu0 %2048
  %2050 = vrot.lane.b32.xlu0 %v816, 48
  %v2051 = vpop.permute.xlu0 %2050
  %2052 = vrot.lane.b32.xlu0 %v817, 48
  %v2053 = vpop.permute.xlu0 %2052
  %2054 = vrot.lane.b32.xlu0 %v818, 48
  %v2055 = vpop.permute.xlu0 %2054
  %2056 = vrot.lane.b32.xlu0 %v819, 48
  %v2057 = vpop.permute.xlu0 %2056
  %v2066 = vsel %vm973, %v2037, 0
  %v2069 = vsel %vm973, %v2038, 0
  %v2072 = vsel %vm973, %v2039, 0
  %v2075 = vsel %vm973, %v2040, 0
  %v2078 = vsel %vm973, %v2041, 0
  %v2081 = vsel %vm973, %v2042, 0
  %v2084 = vsel %vm973, %v2043, 0
  %2086 = vmatprep.subr.bf16.mxu0 0
  %2087 = vmatpush1.bf16.msra.mxu0 %v2045
  %2088 = vmatprep.subr.bf16.mxu0 0
  %2089 = vmatpush1.bf16.msra.mxu0 %v2047
  %2090 = vmatprep.subr.bf16.mxu0 0
  %2091 = vmatpush1.bf16.msra.mxu0 %v2049
  %2092 = vmatprep.subr.bf16.mxu0 0
  %2093 = vmatpush1.bf16.msra.mxu0 %v2051
  %2094 = vmatprep.subr.bf16.mxu0 0
  %2095 = vmatpush1.bf16.msra.mxu0 %v2053
  %2096 = vmatprep.subr.bf16.mxu0 0
  %2097 = vmatpush1.bf16.msra.mxu0 %v2055
  %2098 = vmatprep.subr.bf16.mxu0 0
  %2099 = vmatpush1.bf16.msra.mxu0 %v2057
  %2100 = vmatprep.subr.bf16.mxu0 0
  %2101 = vmatpush1.bf16.msra.mxu0 0
  %2102 = vmatprep.subr.bf16.mxu0 0
  %2103 = vmatpush1.bf16.msra.mxu0 0
  %2104 = vmatprep.subr.bf16.mxu0 0
  %2105 = vmatpush1.bf16.msra.mxu0 0
  %2106 = vmatprep.subr.bf16.mxu0 0
  %2107 = vmatpush1.bf16.msra.mxu0 0
  %2108 = vmatprep.subr.bf16.mxu0 0
  %2109 = vmatpush1.bf16.msra.mxu0 0
  %2110 = vmatprep.subr.bf16.mxu0 0
  %2111 = vmatpush1.bf16.msra.mxu0 0
  %2112 = vmatprep.subr.bf16.mxu0 0
  %2113 = vmatpush1.bf16.msra.mxu0 0
  %2114 = vmatprep.subr.bf16.mxu0 0
  %2115 = vmatpush1.bf16.msra.mxu0 0
  %2116 = vmatprep.subr.bf16.mxu0 0
  %2117 = vmatpush1.bf16.msra.mxu0 0
  %2118 = vmatprep.mubr.bf16.mxu0 0
  %2119 = vmatmul.mubr.bf16.gmra.mrb[0].mxu0 %v2066
  %v2120 = vpop.f32.mrb[0].mxu0
  %v2121 = vadd.f32 0.0, %v2120
  %v2122 = vpop.f32.mrb[0].mxu0
  %v2123 = vpop.f32.mrb[0].mxu0
  %v2124 = vadd.f32 0.0, %v2123
  %v2125 = vpop.f32.mrb[0].mxu0
  %2126 = vmatprep.mubr.bf16.mxu0 0
  %2127 = vmatmul.mubr.bf16.gmra.mrb[0].mxu0 %v2069
  %v2128 = vpop.f32.mrb[0].mxu0
  %v2129 = vadd.f32 0.0, %v2128
  %v2130 = vpop.f32.mrb[0].mxu0
  %v2131 = vpop.f32.mrb[0].mxu0
  %v2132 = vadd.f32 0.0, %v2131
  %v2133 = vpop.f32.mrb[0].mxu0
  %2134 = vmatprep.mubr.bf16.mxu0 0
  %2135 = vmatmul.mubr.bf16.gmra.mrb[0].mxu0 %v2072
  %v2136 = vpop.f32.mrb[0].mxu0
  %v2137 = vadd.f32 0.0, %v2136
  %v2138 = vpop.f32.mrb[0].mxu0
  %v2139 = vpop.f32.mrb[0].mxu0
  %v2140 = vadd.f32 0.0, %v2139
  %v2141 = vpop.f32.mrb[0].mxu0
  %2142 = vmatprep.mubr.bf16.mxu0 0
  %2143 = vmatmul.mubr.bf16.gmra.mrb[0].mxu0 %v2075
  %v2144 = vpop.f32.mrb[0].mxu0
  %v2145 = vadd.f32 0.0, %v2144
  %v2146 = vpop.f32.mrb[0].mxu0
  %v2147 = vpop.f32.mrb[0].mxu0
  %v2148 = vadd.f32 0.0, %v2147
  %v2149 = vpop.f32.mrb[0].mxu0
  %2150 = vmatprep.mubr.bf16.mxu0 0
  %2151 = vmatmul.mubr.bf16.gmra.mrb[0].mxu0 %v2078
  %v2152 = vpop.f32.mrb[0].mxu0
  %v2153 = vadd.f32 0.0, %v2152
  %v2154 = vpop.f32.mrb[0].mxu0
  %v2155 = vpop.f32.mrb[0].mxu0
  %v2156 = vadd.f32 0.0, %v2155
  %v2157 = vpop.f32.mrb[0].mxu0
  %2158 = vmatprep.mubr.bf16.mxu0 0
  %2159 = vmatmul.mubr.bf16.gmra.mrb[0].mxu0 %v2081
  %v2160 = vpop.f32.mrb[0].mxu0
  %v2161 = vadd.f32 0.0, %v2160
  %v2162 = vpop.f32.mrb[0].mxu0
  %v2163 = vpop.f32.mrb[0].mxu0
  %v2164 = vadd.f32 0.0, %v2163
  %v2165 = vpop.f32.mrb[0].mxu0
  %2166 = vmatprep.mubr.bf16.mxu0 0
  %2167 = vmatmul.mubr.bf16.gmra.mrb[0].mxu0 %v2084
  %v2168 = vpop.f32.mrb[0].mxu0
  %v2169 = vadd.f32 0.0, %v2168
  %v2170 = vpop.f32.mrb[0].mxu0
  %v2171 = vpop.f32.mrb[0].mxu0
  %v2172 = vadd.f32 0.0, %v2171
  %v2173 = vpop.f32.mrb[0].mxu0
  %2174 = vdwg.mxu0
  %2175 = vrot.lane.b32.xlu0 %v806, 104
  %v2176 = vpop.permute.xlu0 %2175
  %2177 = vrot.lane.b32.xlu0 %v807, 104
  %v2178 = vpop.permute.xlu0 %2177
  %2179 = vrot.lane.b32.xlu0 %v808, 104
  %v2180 = vpop.permute.xlu0 %2179
  %2181 = vrot.lane.b32.xlu0 %v809, 104
  %v2182 = vpop.permute.xlu0 %2181
  %2183 = vrot.lane.b32.xlu0 %v810, 104
  %v2184 = vpop.permute.xlu0 %2183
  %2185 = vrot.lane.b32.xlu0 %v811, 104
  %v2186 = vpop.permute.xlu0 %2185
  %2187 = vrot.lane.b32.xlu0 %v812, 104
  %v2188 = vpop.permute.xlu0 %2187
  %2189 = vrot.lane.b32.xlu0 %v813, 72
  %v2190 = vpop.permute.xlu0 %2189
  %2191 = vrot.lane.b32.xlu0 %v814, 72
  %v2192 = vpop.permute.xlu0 %2191
  %2193 = vrot.lane.b32.xlu0 %v815, 72
  %v2194 = vpop.permute.xlu0 %2193
  %2195 = vrot.lane.b32.xlu0 %v816, 72
  %v2196 = vpop.permute.xlu0 %2195
  %2197 = vrot.lane.b32.xlu0 %v817, 72
  %v2198 = vpop.permute.xlu0 %2197
  %2199 = vrot.lane.b32.xlu0 %v818, 72
  %v2200 = vpop.permute.xlu0 %2199
  %2201 = vrot.lane.b32.xlu0 %v819, 72
  %v2202 = vpop.permute.xlu0 %2201
  %v2204 = vsel %vm841, %v2176, 0
  %v2207 = vsel %vm841, %v2178, 0
  %v2210 = vsel %vm841, %v2180, 0
  %v2213 = vsel %vm841, %v2182, 0
  %v2216 = vsel %vm841, %v2184, 0
  %v2219 = vsel %vm841, %v2186, 0
  %v2222 = vsel %vm841, %v2188, 0
  %v2225 = vsel %vm841, %v2190, 0
  %v2228 = vsel %vm841, %v2192, 0
  %v2231 = vsel %vm841, %v2194, 0
  %v2234 = vsel %vm841, %v2196, 0
  %v2237 = vsel %vm841, %v2198, 0
  %v2240 = vsel %vm841, %v2200, 0
  %v2243 = vsel %vm841, %v2202, 0
  %2245 = vmatprep.subr.bf16.mxu0 0
  %2246 = vmatpush1.bf16.xpose.msra.mxu0 %v2225
  %2247 = vmatprep.subr.bf16.mxu0 0
  %2248 = vmatpush1.bf16.xpose.msra.mxu0 %v2228
  %2249 = vmatprep.subr.bf16.mxu0 0
  %2250 = vmatpush1.bf16.xpose.msra.mxu0 %v2231
  %2251 = vmatprep.subr.bf16.mxu0 0
  %2252 = vmatpush1.bf16.xpose.msra.mxu0 %v2234
  %2253 = vmatprep.subr.bf16.mxu0 0
  %2254 = vmatpush1.bf16.xpose.msra.mxu0 %v2237
  %2255 = vmatprep.subr.bf16.mxu0 0
  %2256 = vmatpush1.bf16.xpose.msra.mxu0 %v2240
  %2257 = vmatprep.subr.bf16.mxu0 0
  %2258 = vmatpush1.bf16.xpose.msra.mxu0 %v2243
  %2259 = vmatprep.subr.bf16.mxu0 0
  %2260 = vmatpush1.bf16.xpose.msra.mxu0 0
  %2261 = vmatprep.subr.bf16.mxu0 0
  %2262 = vmatpush1.bf16.xpose.msra.mxu0 0
  %2263 = vmatprep.subr.bf16.mxu0 0
  %2264 = vmatpush1.bf16.xpose.msra.mxu0 0
  %2265 = vmatprep.subr.bf16.mxu0 0
  %2266 = vmatpush1.bf16.xpose.msra.mxu0 0
  %2267 = vmatprep.subr.bf16.mxu0 0
  %2268 = vmatpush1.bf16.xpose.msra.mxu0 0
  %2269 = vmatprep.subr.bf16.mxu0 0
  %2270 = vmatpush1.bf16.xpose.msra.mxu0 0
  %2271 = vmatprep.subr.bf16.mxu0 0
  %2272 = vmatpush1.bf16.xpose.msra.mxu0 0
  %2273 = vmatprep.subr.bf16.mxu0 0
  %2274 = vmatpush1.bf16.xpose.msra.mxu0 0
  %2275 = vmatprep.subr.bf16.mxu0 0
  %2276 = vmatpush1.bf16.xpose.msra.mxu0 0
  %2277 = vmatprep.mubr.bf16.mxu0 0
  %2278 = vmatmul.mubr.bf16.gmra.mrb[0].mxu0 %v2204
  %v2279 = vpop.f32.mrb[0].mxu0
  %v2280 = vadd.f32 %v75, %v2279
  %v2281 = vpop.f32.mrb[0].mxu0
  %v2282 = vpop.f32.mrb[0].mxu0
  %v2283 = vadd.f32 %v76, %v2282
  %v2284 = vpop.f32.mrb[0].mxu0
  %2285 = vmatprep.mubr.bf16.mxu0 0
  %2286 = vmatmul.mubr.bf16.gmra.mrb[0].mxu0 %v2207
  %v2287 = vpop.f32.mrb[0].mxu0
  %v2288 = vadd.f32 %v77, %v2287
  %v2289 = vpop.f32.mrb[0].mxu0
  %v2290 = vpop.f32.mrb[0].mxu0
  %v2291 = vadd.f32 %v78, %v2290
  %v2292 = vpop.f32.mrb[0].mxu0
  %2293 = vmatprep.mubr.bf16.mxu0 0
  %2294 = vmatmul.mubr.bf16.gmra.mrb[0].mxu0 %v2210
  %v2295 = vpop.f32.mrb[0].mxu0
  %v2296 = vadd.f32 %v79, %v2295
  %v2297 = vpop.f32.mrb[0].mxu0
  %v2298 = vpop.f32.mrb[0].mxu0
  %v2299 = vadd.f32 %v80, %v2298
  %v2300 = vpop.f32.mrb[0].mxu0
  %2301 = vmatprep.mubr.bf16.mxu0 0
  %2302 = vmatmul.mubr.bf16.gmra.mrb[0].mxu0 %v2213
  %v2303 = vpop.f32.mrb[0].mxu0
  %v2304 = vadd.f32 %v81, %v2303
  %v2305 = vpop.f32.mrb[0].mxu0
  %v2306 = vpop.f32.mrb[0].mxu0
  %v2307 = vadd.f32 %v82, %v2306
  %v2308 = vpop.f32.mrb[0].mxu0
  %2309 = vmatprep.mubr.bf16.mxu0 0
  %2310 = vmatmul.mubr.bf16.gmra.mrb[0].mxu0 %v2216
  %v2311 = vpop.f32.mrb[0].mxu0
  %v2312 = vadd.f32 %v83, %v2311
  %v2313 = vpop.f32.mrb[0].mxu0
  %v2314 = vpop.f32.mrb[0].mxu0
  %v2315 = vadd.f32 %v84, %v2314
  %v2316 = vpop.f32.mrb[0].mxu0
  %2317 = vmatprep.mubr.bf16.mxu0 0
  %2318 = vmatmul.mubr.bf16.gmra.mrb[0].mxu0 %v2219
  %v2319 = vpop.f32.mrb[0].mxu0
  %v2320 = vadd.f32 %v85, %v2319
  %v2321 = vpop.f32.mrb[0].mxu0
  %v2322 = vpop.f32.mrb[0].mxu0
  %v2323 = vadd.f32 %v86, %v2322
  %v2324 = vpop.f32.mrb[0].mxu0
  %2325 = vmatprep.mubr.bf16.mxu0 0
  %2326 = vmatmul.mubr.bf16.gmra.mrb[0].mxu0 %v2222
  %v2327 = vpop.f32.mrb[0].mxu0
  %v2328 = vadd.f32 %v87, %v2327
  %v2329 = vpop.f32.mrb[0].mxu0
  %v2330 = vpop.f32.mrb[0].mxu0
  %v2331 = vadd.f32 %v88, %v2330
  %v2332 = vpop.f32.mrb[0].mxu0
  %2333 = vdwg.mxu0
  %v2334 = vsel %vm973, %v2280, -inf
  %2335 = vmax.xlane.f32.xlu0 %v2334
  %v2336 = vpop.xlane.xlu0 %2335
  %v2337 = vsel %vm973, %v2283, -inf
  %2338 = vmax.xlane.f32.xlu0 %v2337
  %v2339 = vpop.xlane.xlu0 %2338
  %v2340 = vsel %vm973, %v2288, -inf
  %2341 = vmax.xlane.f32.xlu0 %v2340
  %v2342 = vpop.xlane.xlu0 %2341
  %v2343 = vsel %vm973, %v2291, -inf
  %2344 = vmax.xlane.f32.xlu0 %v2343
  %v2345 = vpop.xlane.xlu0 %2344
  %v2346 = vsel %vm973, %v2296, -inf
  %2347 = vmax.xlane.f32.xlu0 %v2346
  %v2348 = vpop.xlane.xlu0 %2347
  %v2349 = vsel %vm973, %v2299, -inf
  %2350 = vmax.xlane.f32.xlu0 %v2349
  %v2351 = vpop.xlane.xlu0 %2350
  %v2352 = vsel %vm973, %v2304, -inf
  %2353 = vmax.xlane.f32.xlu0 %v2352
  %v2354 = vpop.xlane.xlu0 %2353
  %v2355 = vsel %vm973, %v2307, -inf
  %2356 = vmax.xlane.f32.xlu0 %v2355
  %v2357 = vpop.xlane.xlu0 %2356
  %v2358 = vsel %vm973, %v2312, -inf
  %2359 = vmax.xlane.f32.xlu0 %v2358
  %v2360 = vpop.xlane.xlu0 %2359
  %v2361 = vsel %vm973, %v2315, -inf
  %2362 = vmax.xlane.f32.xlu0 %v2361
  %v2363 = vpop.xlane.xlu0 %2362
  %v2364 = vsel %vm973, %v2320, -inf
  %2365 = vmax.xlane.f32.xlu0 %v2364
  %v2366 = vpop.xlane.xlu0 %2365
  %v2367 = vsel %vm973, %v2323, -inf
  %2368 = vmax.xlane.f32.xlu0 %v2367
  %v2369 = vpop.xlane.xlu0 %2368
  %v2370 = vsel %vm973, %v2328, -inf
  %2371 = vmax.xlane.f32.xlu0 %v2370
  %v2372 = vpop.xlane.xlu0 %2371
  %v2373 = vsel %vm973, %v2331, -inf
  %2374 = vmax.xlane.f32.xlu0 %v2373
  %v2375 = vpop.xlane.xlu0 %2374
  %v2376 = vsub.f32 %v2280, %v2336
  %v2377 = vsub.f32 %v2283, %v2339
  %v2378 = vsub.f32 %v2288, %v2342
  %v2379 = vsub.f32 %v2291, %v2345
  %v2380 = vsub.f32 %v2296, %v2348
  %v2381 = vsub.f32 %v2299, %v2351
  %v2382 = vsub.f32 %v2304, %v2354
  %v2383 = vsub.f32 %v2307, %v2357
  %v2384 = vsub.f32 %v2312, %v2360
  %v2385 = vsub.f32 %v2315, %v2363
  %v2386 = vsub.f32 %v2320, %v2366
  %v2387 = vsub.f32 %v2323, %v2369
  %v2388 = vsub.f32 %v2328, %v2372
  %v2389 = vsub.f32 %v2331, %v2375
  %v2390 = vmul.f32 %v2376, 1.442695
  %v2391 = vpow.pop %v2390
  %v2392 = vmul.f32 %v2377, 1.442695
  %v2393 = vpow.pop %v2392
  %v2394 = vmul.f32 %v2378, 1.442695
  %v2395 = vpow.pop %v2394
  %v2396 = vmul.f32 %v2379, 1.442695
  %v2397 = vpow.pop %v2396
  %v2398 = vmul.f32 %v2380, 1.442695
  %v2399 = vpow.pop %v2398
  %v2400 = vmul.f32 %v2381, 1.442695
  %v2401 = vpow.pop %v2400
  %v2402 = vmul.f32 %v2382, 1.442695
  %v2403 = vpow.pop %v2402
  %v2404 = vmul.f32 %v2383, 1.442695
  %v2405 = vpow.pop %v2404
  %v2406 = vmul.f32 %v2384, 1.442695
  %v2407 = vpow.pop %v2406
  %v2408 = vmul.f32 %v2385, 1.442695
  %v2409 = vpow.pop %v2408
  %v2410 = vmul.f32 %v2386, 1.442695
  %v2411 = vpow.pop %v2410
  %v2412 = vmul.f32 %v2387, 1.442695
  %v2413 = vpow.pop %v2412
  %v2414 = vmul.f32 %v2388, 1.442695
  %v2415 = vpow.pop %v2414
  %v2416 = vmul.f32 %v2389, 1.442695
  %v2417 = vpow.pop %v2416
  %v2418 = vsel %vm973, %v2391, 0.0
  %2419 = vadd.xlane.f32.xlu0 %v2418
  %v2420 = vpop.xlane.xlu0 %2419
  %v2421 = vsel %vm973, %v2393, 0.0
  %2422 = vadd.xlane.f32.xlu0 %v2421
  %v2423 = vpop.xlane.xlu0 %2422
  %v2424 = vsel %vm973, %v2395, 0.0
  %2425 = vadd.xlane.f32.xlu0 %v2424
  %v2426 = vpop.xlane.xlu0 %2425
  %v2427 = vsel %vm973, %v2397, 0.0
  %2428 = vadd.xlane.f32.xlu0 %v2427
  %v2429 = vpop.xlane.xlu0 %2428
  %v2430 = vsel %vm973, %v2399, 0.0
  %2431 = vadd.xlane.f32.xlu0 %v2430
  %v2432 = vpop.xlane.xlu0 %2431
  %v2433 = vsel %vm973, %v2401, 0.0
  %2434 = vadd.xlane.f32.xlu0 %v2433
  %v2435 = vpop.xlane.xlu0 %2434
  %v2436 = vsel %vm973, %v2403, 0.0
  %2437 = vadd.xlane.f32.xlu0 %v2436
  %v2438 = vpop.xlane.xlu0 %2437
  %v2439 = vsel %vm973, %v2405, 0.0
  %2440 = vadd.xlane.f32.xlu0 %v2439
  %v2441 = vpop.xlane.xlu0 %2440
  %v2442 = vsel %vm973, %v2407, 0.0
  %2443 = vadd.xlane.f32.xlu0 %v2442
  %v2444 = vpop.xlane.xlu0 %2443
  %v2445 = vsel %vm973, %v2409, 0.0
  %2446 = vadd.xlane.f32.xlu0 %v2445
  %v2447 = vpop.xlane.xlu0 %2446
  %v2448 = vsel %vm973, %v2411, 0.0
  %2449 = vadd.xlane.f32.xlu0 %v2448
  %v2450 = vpop.xlane.xlu0 %2449
  %v2451 = vsel %vm973, %v2413, 0.0
  %2452 = vadd.xlane.f32.xlu0 %v2451
  %v2453 = vpop.xlane.xlu0 %2452
  %v2454 = vsel %vm973, %v2415, 0.0
  %2455 = vadd.xlane.f32.xlu0 %v2454
  %v2456 = vpop.xlane.xlu0 %2455
  %v2457 = vsel %vm973, %v2417, 0.0
  %2458 = vadd.xlane.f32.xlu0 %v2457
  %v2459 = vpop.xlane.xlu0 %2458
  %v2460 = vrcp.pop %v2420
  %v2461 = vrcp.pop %v2423
  %v2462 = vrcp.pop %v2426
  %v2463 = vrcp.pop %v2429
  %v2464 = vrcp.pop %v2432
  %v2465 = vrcp.pop %v2435
  %v2466 = vrcp.pop %v2438
  %v2467 = vrcp.pop %v2441
  %v2468 = vrcp.pop %v2444
  %v2469 = vrcp.pop %v2447
  %v2470 = vrcp.pop %v2450
  %v2471 = vrcp.pop %v2453
  %v2472 = vrcp.pop %v2456
  %v2473 = vrcp.pop %v2459
  %v2474 = vmul.f32 %v2391, %v2460
  %v2475 = vmul.f32 %v2393, %v2461
  %v2476 = vmul.f32 %v2395, %v2462
  %v2477 = vmul.f32 %v2397, %v2463
  %v2478 = vmul.f32 %v2399, %v2464
  %v2479 = vmul.f32 %v2401, %v2465
  %v2480 = vmul.f32 %v2403, %v2466
  %v2481 = vmul.f32 %v2405, %v2467
  %v2482 = vmul.f32 %v2407, %v2468
  %v2483 = vmul.f32 %v2409, %v2469
  %v2484 = vmul.f32 %v2411, %v2470
  %v2485 = vmul.f32 %v2413, %v2471
  %v2486 = vmul.f32 %v2415, %v2472
  %v2487 = vmul.f32 %v2417, %v2473
  %v2488 = vpack.c.bf16 %v2475, %v2474
  %v2489 = vpack.c.bf16 %v2477, %v2476
  %v2490 = vpack.c.bf16 %v2479, %v2478
  %v2491 = vpack.c.bf16 %v2481, %v2480
  %v2492 = vpack.c.bf16 %v2483, %v2482
  %v2493 = vpack.c.bf16 %v2485, %v2484
  %v2494 = vpack.c.bf16 %v2487, %v2486
  %2495 = vrot.lane.b32.xlu0 %v813, 40
  %v2496 = vpop.permute.xlu0 %2495
  %2497 = vrot.lane.b32.xlu0 %v814, 40
  %v2498 = vpop.permute.xlu0 %2497
  %2499 = vrot.lane.b32.xlu0 %v815, 40
  %v2500 = vpop.permute.xlu0 %2499
  %2501 = vrot.lane.b32.xlu0 %v816, 40
  %v2502 = vpop.permute.xlu0 %2501
  %2503 = vrot.lane.b32.xlu0 %v817, 40
  %v2504 = vpop.permute.xlu0 %2503
  %2505 = vrot.lane.b32.xlu0 %v818, 40
  %v2506 = vpop.permute.xlu0 %2505
  %2507 = vrot.lane.b32.xlu0 %v819, 40
  %v2508 = vpop.permute.xlu0 %2507
  %v2517 = vsel %vm973, %v2488, 0
  %v2520 = vsel %vm973, %v2489, 0
  %v2523 = vsel %vm973, %v2490, 0
  %v2526 = vsel %vm973, %v2491, 0
  %v2529 = vsel %vm973, %v2492, 0
  %v2532 = vsel %vm973, %v2493, 0
  %v2535 = vsel %vm973, %v2494, 0
  %2537 = vmatprep.subr.bf16.mxu0 0
  %2538 = vmatpush1.bf16.msra.mxu0 %v2496
  %2539 = vmatprep.subr.bf16.mxu0 0
  %2540 = vmatpush1.bf16.msra.mxu0 %v2498
  %2541 = vmatprep.subr.bf16.mxu0 0
  %2542 = vmatpush1.bf16.msra.mxu0 %v2500
  %2543 = vmatprep.subr.bf16.mxu0 0
  %2544 = vmatpush1.bf16.msra.mxu0 %v2502
  %2545 = vmatprep.subr.bf16.mxu0 0
  %2546 = vmatpush1.bf16.msra.mxu0 %v2504
  %2547 = vmatprep.subr.bf16.mxu0 0
  %2548 = vmatpush1.bf16.msra.mxu0 %v2506
  %2549 = vmatprep.subr.bf16.mxu0 0
  %2550 = vmatpush1.bf16.msra.mxu0 %v2508
  %2551 = vmatprep.subr.bf16.mxu0 0
  %2552 = vmatpush1.bf16.msra.mxu0 0
  %2553 = vmatprep.subr.bf16.mxu0 0
  %2554 = vmatpush1.bf16.msra.mxu0 0
  %2555 = vmatprep.subr.bf16.mxu0 0
  %2556 = vmatpush1.bf16.msra.mxu0 0
  %2557 = vmatprep.subr.bf16.mxu0 0
  %2558 = vmatpush1.bf16.msra.mxu0 0
  %2559 = vmatprep.subr.bf16.mxu0 0
  %2560 = vmatpush1.bf16.msra.mxu0 0
  %2561 = vmatprep.subr.bf16.mxu0 0
  %2562 = vmatpush1.bf16.msra.mxu0 0
  %2563 = vmatprep.subr.bf16.mxu0 0
  %2564 = vmatpush1.bf16.msra.mxu0 0
  %2565 = vmatprep.subr.bf16.mxu0 0
  %2566 = vmatpush1.bf16.msra.mxu0 0
  %2567 = vmatprep.subr.bf16.mxu0 0
  %2568 = vmatpush1.bf16.msra.mxu0 0
  %2569 = vmatprep.mubr.bf16.mxu0 0
  %2570 = vmatmul.mubr.bf16.gmra.mrb[0].mxu0 %v2517
  %v2571 = vpop.f32.mrb[0].mxu0
  %v2572 = vadd.f32 0.0, %v2571
  %v2573 = vpop.f32.mrb[0].mxu0
  %v2574 = vpop.f32.mrb[0].mxu0
  %v2575 = vadd.f32 0.0, %v2574
  %v2576 = vpop.f32.mrb[0].mxu0
  %2577 = vmatprep.mubr.bf16.mxu0 0
  %2578 = vmatmul.mubr.bf16.gmra.mrb[0].mxu0 %v2520
  %v2579 = vpop.f32.mrb[0].mxu0
  %v2580 = vadd.f32 0.0, %v2579
  %v2581 = vpop.f32.mrb[0].mxu0
  %v2582 = vpop.f32.mrb[0].mxu0
  %v2583 = vadd.f32 0.0, %v2582
  %v2584 = vpop.f32.mrb[0].mxu0
  %2585 = vmatprep.mubr.bf16.mxu0 0
  %2586 = vmatmul.mubr.bf16.gmra.mrb[0].mxu0 %v2523
  %v2587 = vpop.f32.mrb[0].mxu0
  %v2588 = vadd.f32 0.0, %v2587
  %v2589 = vpop.f32.mrb[0].mxu0
  %v2590 = vpop.f32.mrb[0].mxu0
  %v2591 = vadd.f32 0.0, %v2590
  %v2592 = vpop.f32.mrb[0].mxu0
  %2593 = vmatprep.mubr.bf16.mxu0 0
  %2594 = vmatmul.mubr.bf16.gmra.mrb[0].mxu0 %v2526
  %v2595 = vpop.f32.mrb[0].mxu0
  %v2596 = vadd.f32 0.0, %v2595
  %v2597 = vpop.f32.mrb[0].mxu0
  %v2598 = vpop.f32.mrb[0].mxu0
  %v2599 = vadd.f32 0.0, %v2598
  %v2600 = vpop.f32.mrb[0].mxu0
  %2601 = vmatprep.mubr.bf16.mxu0 0
  %2602 = vmatmul.mubr.bf16.gmra.mrb[0].mxu0 %v2529
  %v2603 = vpop.f32.mrb[0].mxu0
  %v2604 = vadd.f32 0.0, %v2603
  %v2605 = vpop.f32.mrb[0].mxu0
  %v2606 = vpop.f32.mrb[0].mxu0
  %v2607 = vadd.f32 0.0, %v2606
  %v2608 = vpop.f32.mrb[0].mxu0
  %2609 = vmatprep.mubr.bf16.mxu0 0
  %2610 = vmatmul.mubr.bf16.gmra.mrb[0].mxu0 %v2532
  %v2611 = vpop.f32.mrb[0].mxu0
  %v2612 = vadd.f32 0.0, %v2611
  %v2613 = vpop.f32.mrb[0].mxu0
  %v2614 = vpop.f32.mrb[0].mxu0
  %v2615 = vadd.f32 0.0, %v2614
  %v2616 = vpop.f32.mrb[0].mxu0
  %2617 = vmatprep.mubr.bf16.mxu0 0
  %2618 = vmatmul.mubr.bf16.gmra.mrb[0].mxu0 %v2535
  %v2619 = vpop.f32.mrb[0].mxu0
  %v2620 = vadd.f32 0.0, %v2619
  %v2621 = vpop.f32.mrb[0].mxu0
  %v2622 = vpop.f32.mrb[0].mxu0
  %v2623 = vadd.f32 0.0, %v2622
  %v2624 = vpop.f32.mrb[0].mxu0
  %2625 = vdwg.mxu0
  %2640 = vrot.lane.b32.xlu0 %v1670, 8
  %v2641 = vpop.permute.xlu0 %2640
  %2642 = vrot.lane.b32.xlu0 %v1673, 8
  %v2643 = vpop.permute.xlu0 %2642
  %2644 = vrot.lane.b32.xlu0 %v1678, 8
  %v2645 = vpop.permute.xlu0 %2644
  %2646 = vrot.lane.b32.xlu0 %v1681, 8
  %v2647 = vpop.permute.xlu0 %2646
  %2648 = vrot.lane.b32.xlu0 %v1686, 8
  %v2649 = vpop.permute.xlu0 %2648
  %2650 = vrot.lane.b32.xlu0 %v1689, 8
  %v2651 = vpop.permute.xlu0 %2650
  %2652 = vrot.lane.b32.xlu0 %v1694, 8
  %v2653 = vpop.permute.xlu0 %2652
  %2654 = vrot.lane.b32.xlu0 %v1697, 8
  %v2655 = vpop.permute.xlu0 %2654
  %2656 = vrot.lane.b32.xlu0 %v1702, 8
  %v2657 = vpop.permute.xlu0 %2656
  %2658 = vrot.lane.b32.xlu0 %v1705, 8
  %v2659 = vpop.permute.xlu0 %2658
  %2660 = vrot.lane.b32.xlu0 %v1710, 8
  %v2661 = vpop.permute.xlu0 %2660
  %2662 = vrot.lane.b32.xlu0 %v1713, 8
  %v2663 = vpop.permute.xlu0 %2662
  %2664 = vrot.lane.b32.xlu0 %v1718, 8
  %v2665 = vpop.permute.xlu0 %2664
  %2666 = vrot.lane.b32.xlu0 %v1721, 8
  %v2667 = vpop.permute.xlu0 %2666
  %2696 = vrot.lane.b32.xlu0 %v2121, 16
  %v2697 = vpop.permute.xlu0 %2696
  %2698 = vrot.lane.b32.xlu0 %v2124, 16
  %v2699 = vpop.permute.xlu0 %2698
  %2700 = vrot.lane.b32.xlu0 %v2129, 16
  %v2701 = vpop.permute.xlu0 %2700
  %2702 = vrot.lane.b32.xlu0 %v2132, 16
  %v2703 = vpop.permute.xlu0 %2702
  %2704 = vrot.lane.b32.xlu0 %v2137, 16
  %v2705 = vpop.permute.xlu0 %2704
  %2706 = vrot.lane.b32.xlu0 %v2140, 16
  %v2707 = vpop.permute.xlu0 %2706
  %2708 = vrot.lane.b32.xlu0 %v2145, 16
  %v2709 = vpop.permute.xlu0 %2708
  %2710 = vrot.lane.b32.xlu0 %v2148, 16
  %v2711 = vpop.permute.xlu0 %2710
  %2712 = vrot.lane.b32.xlu0 %v2153, 16
  %v2713 = vpop.permute.xlu0 %2712
  %2714 = vrot.lane.b32.xlu0 %v2156, 16
  %v2715 = vpop.permute.xlu0 %2714
  %2716 = vrot.lane.b32.xlu0 %v2161, 16
  %v2717 = vpop.permute.xlu0 %2716
  %2718 = vrot.lane.b32.xlu0 %v2164, 16
  %v2719 = vpop.permute.xlu0 %2718
  %2720 = vrot.lane.b32.xlu0 %v2169, 16
  %v2721 = vpop.permute.xlu0 %2720
  %2722 = vrot.lane.b32.xlu0 %v2172, 16
  %v2723 = vpop.permute.xlu0 %2722
  %2752 = vrot.lane.b32.xlu0 %v2572, 24
  %v2753 = vpop.permute.xlu0 %2752
  %2754 = vrot.lane.b32.xlu0 %v2575, 24
  %v2755 = vpop.permute.xlu0 %2754
  %2756 = vrot.lane.b32.xlu0 %v2580, 24
  %v2757 = vpop.permute.xlu0 %2756
  %2758 = vrot.lane.b32.xlu0 %v2583, 24
  %v2759 = vpop.permute.xlu0 %2758
  %2760 = vrot.lane.b32.xlu0 %v2588, 24
  %v2761 = vpop.permute.xlu0 %2760
  %2762 = vrot.lane.b32.xlu0 %v2591, 24
  %v2763 = vpop.permute.xlu0 %2762
  %2764 = vrot.lane.b32.xlu0 %v2596, 24
  %v2765 = vpop.permute.xlu0 %2764
  %2766 = vrot.lane.b32.xlu0 %v2599, 24
  %v2767 = vpop.permute.xlu0 %2766
  %2768 = vrot.lane.b32.xlu0 %v2604, 24
  %v2769 = vpop.permute.xlu0 %2768
  %2770 = vrot.lane.b32.xlu0 %v2607, 24
  %v2771 = vpop.permute.xlu0 %2770
  %2772 = vrot.lane.b32.xlu0 %v2612, 24
  %v2773 = vpop.permute.xlu0 %2772
  %2774 = vrot.lane.b32.xlu0 %v2615, 24
  %v2775 = vpop.permute.xlu0 %2774
  %2776 = vrot.lane.b32.xlu0 %v2620, 24
  %v2777 = vpop.permute.xlu0 %2776
  %2778 = vrot.lane.b32.xlu0 %v2623, 24
  %v2779 = vpop.permute.xlu0 %2778
  %v2794 = vsel %vm841, %v1212, %v2641
  %v2795 = vsel %vm841, %v1215, %v2643
  %v2796 = vsel %vm841, %v1220, %v2645
  %v2797 = vsel %vm841, %v1223, %v2647
  %v2798 = vsel %vm841, %v1228, %v2649
  %v2799 = vsel %vm841, %v1231, %v2651
  %v2800 = vsel %vm841, %v1236, %v2653
  %v2801 = vsel %vm841, %v1239, %v2655
  %v2802 = vsel %vm841, %v1244, %v2657
  %v2803 = vsel %vm841, %v1247, %v2659
  %v2804 = vsel %vm841, %v1252, %v2661
  %v2805 = vsel %vm841, %v1255, %v2663
  %v2806 = vsel %vm841, %v1260, %v2665
  %v2807 = vsel %vm841, %v1263, %v2667
  %vm2808 = vcmask 130048
  %v2809 = vsel %vm2808, %v2794, %v2697
  %v2810 = vsel %vm2808, %v2795, %v2699
  %v2811 = vsel %vm2808, %v2796, %v2701
  %v2812 = vsel %vm2808, %v2797, %v2703
  %v2813 = vsel %vm2808, %v2798, %v2705
  %v2814 = vsel %vm2808, %v2799, %v2707
  %v2815 = vsel %vm2808, %v2800, %v2709
  %v2816 = vsel %vm2808, %v2801, %v2711
  %v2817 = vsel %vm2808, %v2802, %v2713
  %v2818 = vsel %vm2808, %v2803, %v2715
  %v2819 = vsel %vm2808, %v2804, %v2717
  %v2820 = vsel %vm2808, %v2805, %v2719
  %v2821 = vsel %vm2808, %v2806, %v2721
  %v2822 = vsel %vm2808, %v2807, %v2723
  %v2823 = vsel %vm129, %v2809, %v2753
  %v2824 = vsel %vm129, %v2810, %v2755
  %v2825 = vsel %vm129, %v2811, %v2757
  %v2826 = vsel %vm129, %v2812, %v2759
  %v2827 = vsel %vm129, %v2813, %v2761
  %v2828 = vsel %vm129, %v2814, %v2763
  %v2829 = vsel %vm129, %v2815, %v2765
  %v2830 = vsel %vm129, %v2816, %v2767
  %v2831 = vsel %vm129, %v2817, %v2769
  %v2832 = vsel %vm129, %v2818, %v2771
  %v2833 = vsel %vm129, %v2819, %v2773
  %v2834 = vsel %vm129, %v2820, %v2775
  %v2835 = vsel %vm129, %v2821, %v2777
  %v2836 = vsel %vm129, %v2822, %v2779
  %v2837 = vpack.c.bf16 %v2824, %v2823
  %v2838 = vpack.c.bf16 %v2826, %v2825
  %v2839 = vpack.c.bf16 %v2828, %v2827
  %v2840 = vpack.c.bf16 %v2830, %v2829
  %v2841 = vpack.c.bf16 %v2832, %v2831
  %v2842 = vpack.c.bf16 %v2834, %v2833
  %v2843 = vpack.c.bf16 %v2836, %v2835
  %v2844 = vld [vmem:[%s12] sm:$0xf]
  %v2845 = vld [vmem:[%s12 + $0x4] sm:$0xf]
  %v2846 = vld [vmem:[%s12 + $0x8] sm:$0xf]
  %v2847 = vld [vmem:[%s12 + $0xc] sm:$0xf]
  %v2848 = vld [vmem:[%s13] sm:$0x1]
  %v2850 = vlaneseq
  %v2851 = vshrl.u32 %v2850, 7
  %v2852 = vsub.s32 0, %v2851
  %v2853 = vrot.slane %v2848, %v2852
  %v2859 = vunpack.c.l.b16 %v2844
  %v2860 = vunpack.c.l.b16 %v2845
  %v2861 = vunpack.c.l.b16 %v2846
  %v2862 = vunpack.c.l.b16 %v2847
  %v2863 = vpack.c.b16 %v2860, %v2859
  %v2864 = vpack.c.b16 %v2862, %v2861
  %v2868 = vsel %vm246, %v2837, 0
  %v2871 = vsel %vm246, %v2838, 0
  %v2874 = vsel %vm246, %v2839, 0
  %v2877 = vsel %vm246, %v2840, 0
  %v2880 = vsel %vm246, %v2841, 0
  %v2883 = vsel %vm246, %v2842, 0
  %v2886 = vsel %vm246, %v2843, 0
  %2888 = vmatprep.subr.bf16.mxu0 0
  %2889 = vmatpush1.bf16.msra.mxu0 %v2863
  %2890 = vmatprep.subr.bf16.mxu0 0
  %2891 = vmatpush1.bf16.msra.mxu0 %v2864
  %2892 = vmatprep.subr.bf16.mxu0 0
  %2893 = vmatpush1.bf16.msra.mxu0 0
  %2894 = vmatprep.subr.bf16.mxu0 0
  %2895 = vmatpush1.bf16.msra.mxu0 0
  %2896 = vmatprep.subr.bf16.mxu0 0
  %2897 = vmatpush1.bf16.msra.mxu0 0
  %2898 = vmatprep.subr.bf16.mxu0 0
  %2899 = vmatpush1.bf16.msra.mxu0 0
  %2900 = vmatprep.subr.bf16.mxu0 0
  %2901 = vmatpush1.bf16.msra.mxu0 0
  %2902 = vmatprep.subr.bf16.mxu0 0
  %2903 = vmatpush1.bf16.msra.mxu0 0
  %2904 = vmatprep.subr.bf16.mxu0 0
  %2905 = vmatpush1.bf16.msra.mxu0 0
  %2906 = vmatprep.subr.bf16.mxu0 0
  %2907 = vmatpush1.bf16.msra.mxu0 0
  %2908 = vmatprep.subr.bf16.mxu0 0
  %2909 = vmatpush1.bf16.msra.mxu0 0
  %2910 = vmatprep.subr.bf16.mxu0 0
  %2911 = vmatpush1.bf16.msra.mxu0 0
  %2912 = vmatprep.subr.bf16.mxu0 0
  %2913 = vmatpush1.bf16.msra.mxu0 0
  %2914 = vmatprep.subr.bf16.mxu0 0
  %2915 = vmatpush1.bf16.msra.mxu0 0
  %2916 = vmatprep.subr.bf16.mxu0 0
  %2917 = vmatpush1.bf16.msra.mxu0 0
  %2918 = vmatprep.subr.bf16.mxu0 0
  %2919 = vmatpush1.bf16.msra.mxu0 0
  %2920 = vmatprep.mubr.bf16.mxu0 0
  %2921 = vmatmul.mubr.bf16.gmra.mrb[0].mxu0 %v2868
  %v2922 = vpop.f32.mrb[0].mxu0
  %v2923 = vadd.f32 %v2853, %v2922
  %v2924 = vpop.f32.mrb[0].mxu0
  %v2925 = vpop.f32.mrb[0].mxu0
  %v2926 = vadd.f32 %v2853, %v2925
  %v2927 = vpop.f32.mrb[0].mxu0
  %2928 = vmatprep.mubr.bf16.mxu0 0
  %2929 = vmatmul.mubr.bf16.gmra.mrb[0].mxu0 %v2871
  %v2930 = vpop.f32.mrb[0].mxu0
  %v2931 = vadd.f32 %v2853, %v2930
  %v2932 = vpop.f32.mrb[0].mxu0
  %v2933 = vpop.f32.mrb[0].mxu0
  %v2934 = vadd.f32 %v2853, %v2933
  %v2935 = vpop.f32.mrb[0].mxu0
  %2936 = vmatprep.mubr.bf16.mxu0 0
  %2937 = vmatmul.mubr.bf16.gmra.mrb[0].mxu0 %v2874
  %v2938 = vpop.f32.mrb[0].mxu0
  %v2939 = vadd.f32 %v2853, %v2938
  %v2940 = vpop.f32.mrb[0].mxu0
  %v2941 = vpop.f32.mrb[0].mxu0
  %v2942 = vadd.f32 %v2853, %v2941
  %v2943 = vpop.f32.mrb[0].mxu0
  %2944 = vmatprep.mubr.bf16.mxu0 0
  %2945 = vmatmul.mubr.bf16.gmra.mrb[0].mxu0 %v2877
  %v2946 = vpop.f32.mrb[0].mxu0
  %v2947 = vadd.f32 %v2853, %v2946
  %v2948 = vpop.f32.mrb[0].mxu0
  %v2949 = vpop.f32.mrb[0].mxu0
  %v2950 = vadd.f32 %v2853, %v2949
  %v2951 = vpop.f32.mrb[0].mxu0
  %2952 = vmatprep.mubr.bf16.mxu0 0
  %2953 = vmatmul.mubr.bf16.gmra.mrb[0].mxu0 %v2880
  %v2954 = vpop.f32.mrb[0].mxu0
  %v2955 = vadd.f32 %v2853, %v2954
  %v2956 = vpop.f32.mrb[0].mxu0
  %v2957 = vpop.f32.mrb[0].mxu0
  %v2958 = vadd.f32 %v2853, %v2957
  %v2959 = vpop.f32.mrb[0].mxu0
  %2960 = vmatprep.mubr.bf16.mxu0 0
  %2961 = vmatmul.mubr.bf16.gmra.mrb[0].mxu0 %v2883
  %v2962 = vpop.f32.mrb[0].mxu0
  %v2963 = vadd.f32 %v2853, %v2962
  %v2964 = vpop.f32.mrb[0].mxu0
  %v2965 = vpop.f32.mrb[0].mxu0
  %v2966 = vadd.f32 %v2853, %v2965
  %v2967 = vpop.f32.mrb[0].mxu0
  %2968 = vmatprep.mubr.bf16.mxu0 0
  %2969 = vmatmul.mubr.bf16.gmra.mrb[0].mxu0 %v2886
  %v2970 = vpop.f32.mrb[0].mxu0
  %v2971 = vadd.f32 %v2853, %v2970
  %v2972 = vpop.f32.mrb[0].mxu0
  %v2973 = vpop.f32.mrb[0].mxu0
  %v2974 = vadd.f32 %v2853, %v2973
  %v2975 = vpop.f32.mrb[0].mxu0
  %2976 = vdwg.mxu0
  %v2977 = vadd.f32 %v638, %v2923
  %v2978 = vadd.f32 %v639, %v2926
  %v2979 = vadd.f32 %v640, %v2931
  %v2980 = vadd.f32 %v641, %v2934
  %v2981 = vadd.f32 %v642, %v2939
  %v2982 = vadd.f32 %v643, %v2942
  %v2983 = vadd.f32 %v644, %v2947
  %v2984 = vadd.f32 %v645, %v2950
  %v2985 = vadd.f32 %v646, %v2955
  %v2986 = vadd.f32 %v647, %v2958
  %v2987 = vadd.f32 %v648, %v2963
  %v2988 = vadd.f32 %v649, %v2966
  %v2989 = vadd.f32 %v650, %v2971
  %v2990 = vadd.f32 %v651, %v2974
  %v2991 = vld [vmem:[%s14] sm:$0x1]
  %v2992 = vld [vmem:[%s15] sm:$0x1]
  %v2993 = vsel %vm246, %v2977, 0.0
  %2994 = vadd.xlane.f32.xlu0 %v2993
  %v2995 = vpop.xlane.xlu0 %2994
  %v2996 = vsel %vm246, %v2978, 0.0
  %2997 = vadd.xlane.f32.xlu0 %v2996
  %v2998 = vpop.xlane.xlu0 %2997
  %v2999 = vsel %vm246, %v2979, 0.0
  %3000 = vadd.xlane.f32.xlu0 %v2999
  %v3001 = vpop.xlane.xlu0 %3000
  %v3002 = vsel %vm246, %v2980, 0.0
  %3003 = vadd.xlane.f32.xlu0 %v3002
  %v3004 = vpop.xlane.xlu0 %3003
  %v3005 = vsel %vm246, %v2981, 0.0
  %3006 = vadd.xlane.f32.xlu0 %v3005
  %v3007 = vpop.xlane.xlu0 %3006
  %v3008 = vsel %vm246, %v2982, 0.0
  %3009 = vadd.xlane.f32.xlu0 %v3008
  %v3010 = vpop.xlane.xlu0 %3009
  %v3011 = vsel %vm246, %v2983, 0.0
  %3012 = vadd.xlane.f32.xlu0 %v3011
  %v3013 = vpop.xlane.xlu0 %3012
  %v3014 = vsel %vm246, %v2984, 0.0
  %3015 = vadd.xlane.f32.xlu0 %v3014
  %v3016 = vpop.xlane.xlu0 %3015
  %v3017 = vsel %vm246, %v2985, 0.0
  %3018 = vadd.xlane.f32.xlu0 %v3017
  %v3019 = vpop.xlane.xlu0 %3018
  %v3020 = vsel %vm246, %v2986, 0.0
  %3021 = vadd.xlane.f32.xlu0 %v3020
  %v3022 = vpop.xlane.xlu0 %3021
  %v3023 = vsel %vm246, %v2987, 0.0
  %3024 = vadd.xlane.f32.xlu0 %v3023
  %v3025 = vpop.xlane.xlu0 %3024
  %v3026 = vsel %vm246, %v2988, 0.0
  %3027 = vadd.xlane.f32.xlu0 %v3026
  %v3028 = vpop.xlane.xlu0 %3027
  %v3029 = vsel %vm246, %v2989, 0.0
  %3030 = vadd.xlane.f32.xlu0 %v3029
  %v3031 = vpop.xlane.xlu0 %3030
  %v3032 = vsel %vm246, %v2990, 0.0
  %3033 = vadd.xlane.f32.xlu0 %v3032
  %v3034 = vpop.xlane.xlu0 %3033
  %v3035 = vmul.f32 %v2995, %v289
  %v3036 = vmul.f32 %v2998, %v289
  %v3037 = vmul.f32 %v3001, %v289
  %v3038 = vmul.f32 %v3004, %v289
  %v3039 = vmul.f32 %v3007, %v289
  %v3040 = vmul.f32 %v3010, %v289
  %v3041 = vmul.f32 %v3013, %v289
  %v3042 = vmul.f32 %v3016, %v289
  %v3043 = vmul.f32 %v3019, %v289
  %v3044 = vmul.f32 %v3022, %v289
  %v3045 = vmul.f32 %v3025, %v289
  %v3046 = vmul.f32 %v3028, %v289
  %v3047 = vmul.f32 %v3031, %v289
  %v3048 = vmul.f32 %v3034, %v289
  %v3049 = vsub.f32 %v2977, %v3035
  %v3050 = vsub.f32 %v2978, %v3036
  %v3051 = vsub.f32 %v2979, %v3037
  %v3052 = vsub.f32 %v2980, %v3038
  %v3053 = vsub.f32 %v2981, %v3039
  %v3054 = vsub.f32 %v2982, %v3040
  %v3055 = vsub.f32 %v2983, %v3041
  %v3056 = vsub.f32 %v2984, %v3042
  %v3057 = vsub.f32 %v2985, %v3043
  %v3058 = vsub.f32 %v2986, %v3044
  %v3059 = vsub.f32 %v2987, %v3045
  %v3060 = vsub.f32 %v2988, %v3046
  %v3061 = vsub.f32 %v2989, %v3047
  %v3062 = vsub.f32 %v2990, %v3048
  %v3063 = vmul.f32 %v3049, %v3049
  %v3064 = vmul.f32 %v3050, %v3050
  %v3065 = vmul.f32 %v3051, %v3051
  %v3066 = vmul.f32 %v3052, %v3052
  %v3067 = vmul.f32 %v3053, %v3053
  %v3068 = vmul.f32 %v3054, %v3054
  %v3069 = vmul.f32 %v3055, %v3055
  %v3070 = vmul.f32 %v3056, %v3056
  %v3071 = vmul.f32 %v3057, %v3057
  %v3072 = vmul.f32 %v3058, %v3058
  %v3073 = vmul.f32 %v3059, %v3059
  %v3074 = vmul.f32 %v3060, %v3060
  %v3075 = vmul.f32 %v3061, %v3061
  %v3076 = vmul.f32 %v3062, %v3062
  %v3077 = vsel %vm246, %v3063, 0.0
  %3078 = vadd.xlane.f32.xlu0 %v3077
  %v3079 = vpop.xlane.xlu0 %3078
  %v3080 = vsel %vm246, %v3064, 0.0
  %3081 = vadd.xlane.f32.xlu0 %v3080
  %v3082 = vpop.xlane.xlu0 %3081
  %v3083 = vsel %vm246, %v3065, 0.0
  %3084 = vadd.xlane.f32.xlu0 %v3083
  %v3085 = vpop.xlane.xlu0 %3084
  %v3086 = vsel %vm246, %v3066, 0.0
  %3087 = vadd.xlane.f32.xlu0 %v3086
  %v3088 = vpop.xlane.xlu0 %3087
  %v3089 = vsel %vm246, %v3067, 0.0
  %3090 = vadd.xlane.f32.xlu0 %v3089
  %v3091 = vpop.xlane.xlu0 %3090
  %v3092 = vsel %vm246, %v3068, 0.0
  %3093 = vadd.xlane.f32.xlu0 %v3092
  %v3094 = vpop.xlane.xlu0 %3093
  %v3095 = vsel %vm246, %v3069, 0.0
  %3096 = vadd.xlane.f32.xlu0 %v3095
  %v3097 = vpop.xlane.xlu0 %3096
  %v3098 = vsel %vm246, %v3070, 0.0
  %3099 = vadd.xlane.f32.xlu0 %v3098
  %v3100 = vpop.xlane.xlu0 %3099
  %v3101 = vsel %vm246, %v3071, 0.0
  %3102 = vadd.xlane.f32.xlu0 %v3101
  %v3103 = vpop.xlane.xlu0 %3102
  %v3104 = vsel %vm246, %v3072, 0.0
  %3105 = vadd.xlane.f32.xlu0 %v3104
  %v3106 = vpop.xlane.xlu0 %3105
  %v3107 = vsel %vm246, %v3073, 0.0
  %3108 = vadd.xlane.f32.xlu0 %v3107
  %v3109 = vpop.xlane.xlu0 %3108
  %v3110 = vsel %vm246, %v3074, 0.0
  %3111 = vadd.xlane.f32.xlu0 %v3110
  %v3112 = vpop.xlane.xlu0 %3111
  %v3113 = vsel %vm246, %v3075, 0.0
  %3114 = vadd.xlane.f32.xlu0 %v3113
  %v3115 = vpop.xlane.xlu0 %3114
  %v3116 = vsel %vm246, %v3076, 0.0
  %3117 = vadd.xlane.f32.xlu0 %v3116
  %v3118 = vpop.xlane.xlu0 %3117
  %v3119 = vmul.f32 %v3079, %v289
  %v3120 = vmul.f32 %v3082, %v289
  %v3121 = vmul.f32 %v3085, %v289
  %v3122 = vmul.f32 %v3088, %v289
  %v3123 = vmul.f32 %v3091, %v289
  %v3124 = vmul.f32 %v3094, %v289
  %v3125 = vmul.f32 %v3097, %v289
  %v3126 = vmul.f32 %v3100, %v289
  %v3127 = vmul.f32 %v3103, %v289
  %v3128 = vmul.f32 %v3106, %v289
  %v3129 = vmul.f32 %v3109, %v289
  %v3130 = vmul.f32 %v3112, %v289
  %v3131 = vmul.f32 %v3115, %v289
  %v3132 = vmul.f32 %v3118, %v289
  %v3133 = vadd.f32 %v3119, 1e-05
  %v3134 = vadd.f32 %v3120, 1e-05
  %v3135 = vadd.f32 %v3121, 1e-05
  %v3136 = vadd.f32 %v3122, 1e-05
  %v3137 = vadd.f32 %v3123, 1e-05
  %v3138 = vadd.f32 %v3124, 1e-05
  %v3139 = vadd.f32 %v3125, 1e-05
  %v3140 = vadd.f32 %v3126, 1e-05
  %v3141 = vadd.f32 %v3127, 1e-05
  %v3142 = vadd.f32 %v3128, 1e-05
  %v3143 = vadd.f32 %v3129, 1e-05
  %v3144 = vadd.f32 %v3130, 1e-05
  %v3145 = vadd.f32 %v3131, 1e-05
  %v3146 = vadd.f32 %v3132, 1e-05
  %v3147 = vrsqrt.pop %v3133
  %v3148 = vrsqrt.pop %v3134
  %v3149 = vrsqrt.pop %v3135
  %v3150 = vrsqrt.pop %v3136
  %v3151 = vrsqrt.pop %v3137
  %v3152 = vrsqrt.pop %v3138
  %v3153 = vrsqrt.pop %v3139
  %v3154 = vrsqrt.pop %v3140
  %v3155 = vrsqrt.pop %v3141
  %v3156 = vrsqrt.pop %v3142
  %v3157 = vrsqrt.pop %v3143
  %v3158 = vrsqrt.pop %v3144
  %v3159 = vrsqrt.pop %v3145
  %v3160 = vrsqrt.pop %v3146
  %v3161 = vmul.f32 %v3049, %v3147
  %v3162 = vmul.f32 %v3050, %v3148
  %v3163 = vmul.f32 %v3051, %v3149
  %v3164 = vmul.f32 %v3052, %v3150
  %v3165 = vmul.f32 %v3053, %v3151
  %v3166 = vmul.f32 %v3054, %v3152
  %v3167 = vmul.f32 %v3055, %v3153
  %v3168 = vmul.f32 %v3056, %v3154
  %v3169 = vmul.f32 %v3057, %v3155
  %v3170 = vmul.f32 %v3058, %v3156
  %v3171 = vmul.f32 %v3059, %v3157
  %v3172 = vmul.f32 %v3060, %v3158
  %v3173 = vmul.f32 %v3061, %v3159
  %v3174 = vmul.f32 %v3062, %v3160
  %v3176 = vlaneseq
  %v3177 = vshrl.u32 %v3176, 7
  %v3178 = vsub.s32 0, %v3177
  %v3179 = vrot.slane %v2991, %v3178
  %v3181 = vmul.f32 %v3161, %v3179
  %v3182 = vmul.f32 %v3162, %v3179
  %v3183 = vmul.f32 %v3163, %v3179
  %v3184 = vmul.f32 %v3164, %v3179
  %v3185 = vmul.f32 %v3165, %v3179
  %v3186 = vmul.f32 %v3166, %v3179
  %v3187 = vmul.f32 %v3167, %v3179
  %v3188 = vmul.f32 %v3168, %v3179
  %v3189 = vmul.f32 %v3169, %v3179
  %v3190 = vmul.f32 %v3170, %v3179
  %v3191 = vmul.f32 %v3171, %v3179
  %v3192 = vmul.f32 %v3172, %v3179
  %v3193 = vmul.f32 %v3173, %v3179
  %v3194 = vmul.f32 %v3174, %v3179
  %v3196 = vlaneseq
  %v3197 = vshrl.u32 %v3196, 7
  %v3198 = vsub.s32 0, %v3197
  %v3199 = vrot.slane %v2992, %v3198
  %v3201 = vadd.f32 %v3181, %v3199
  %v3202 = vadd.f32 %v3182, %v3199
  %v3203 = vadd.f32 %v3183, %v3199
  %v3204 = vadd.f32 %v3184, %v3199
  %v3205 = vadd.f32 %v3185, %v3199
  %v3206 = vadd.f32 %v3186, %v3199
  %v3207 = vadd.f32 %v3187, %v3199
  %v3208 = vadd.f32 %v3188, %v3199
  %v3209 = vadd.f32 %v3189, %v3199
  %v3210 = vadd.f32 %v3190, %v3199
  %v3211 = vadd.f32 %v3191, %v3199
  %v3212 = vadd.f32 %v3192, %v3199
  %v3213 = vadd.f32 %v3193, %v3199
  %v3214 = vadd.f32 %v3194, %v3199
  %v3215 = vpack.c.bf16 %v3202, %v3201
  %v3216 = vpack.c.bf16 %v3204, %v3203
  %v3217 = vpack.c.bf16 %v3206, %v3205
  %v3218 = vpack.c.bf16 %v3208, %v3207
  %v3219 = vpack.c.bf16 %v3210, %v3209
  %v3220 = vpack.c.bf16 %v3212, %v3211
  %v3221 = vpack.c.bf16 %v3214, %v3213
  %v3222 = vld [vmem:[%s16] sm:$0xf]
  %v3223 = vld [vmem:[%s16 + $0x4] sm:$0xf]
  %v3224 = vld [vmem:[%s16 + $0x8] sm:$0xf]
  %v3225 = vld [vmem:[%s16 + $0xc] sm:$0xf]
  %v3226 = vld [vmem:[%s17] sm:$0x1]
  %v3228 = vlaneseq
  %v3229 = vshrl.u32 %v3228, 7
  %v3230 = vsub.s32 0, %v3229
  %v3231 = vrot.slane %v3226, %v3230
  %v3237 = vunpack.c.l.b16 %v3222
  %v3238 = vunpack.c.l.b16 %v3223
  %v3239 = vunpack.c.l.b16 %v3224
  %v3240 = vunpack.c.l.b16 %v3225
  %v3241 = vpack.c.b16 %v3238, %v3237
  %v3242 = vpack.c.b16 %v3240, %v3239
  %v3246 = vsel %vm246, %v3215, 0
  %v3249 = vsel %vm246, %v3216, 0
  %v3252 = vsel %vm246, %v3217, 0
  %v3255 = vsel %vm246, %v3218, 0
  %v3258 = vsel %vm246, %v3219, 0
  %v3261 = vsel %vm246, %v3220, 0
  %v3264 = vsel %vm246, %v3221, 0
  %3266 = vmatprep.subr.bf16.mxu0 0
  %3267 = vmatpush1.bf16.msra.mxu0 %v3241
  %3268 = vmatprep.subr.bf16.mxu0 0
  %3269 = vmatpush1.bf16.msra.mxu0 %v3242
  %3270 = vmatprep.subr.bf16.mxu0 0
  %3271 = vmatpush1.bf16.msra.mxu0 0
  %3272 = vmatprep.subr.bf16.mxu0 0
  %3273 = vmatpush1.bf16.msra.mxu0 0
  %3274 = vmatprep.subr.bf16.mxu0 0
  %3275 = vmatpush1.bf16.msra.mxu0 0
  %3276 = vmatprep.subr.bf16.mxu0 0
  %3277 = vmatpush1.bf16.msra.mxu0 0
  %3278 = vmatprep.subr.bf16.mxu0 0
  %3279 = vmatpush1.bf16.msra.mxu0 0
  %3280 = vmatprep.subr.bf16.mxu0 0
  %3281 = vmatpush1.bf16.msra.mxu0 0
  %3282 = vmatprep.subr.bf16.mxu0 0
  %3283 = vmatpush1.bf16.msra.mxu0 0
  %3284 = vmatprep.subr.bf16.mxu0 0
  %3285 = vmatpush1.bf16.msra.mxu0 0
  %3286 = vmatprep.subr.bf16.mxu0 0
  %3287 = vmatpush1.bf16.msra.mxu0 0
  %3288 = vmatprep.subr.bf16.mxu0 0
  %3289 = vmatpush1.bf16.msra.mxu0 0
  %3290 = vmatprep.subr.bf16.mxu0 0
  %3291 = vmatpush1.bf16.msra.mxu0 0
  %3292 = vmatprep.subr.bf16.mxu0 0
  %3293 = vmatpush1.bf16.msra.mxu0 0
  %3294 = vmatprep.subr.bf16.mxu0 0
  %3295 = vmatpush1.bf16.msra.mxu0 0
  %3296 = vmatprep.subr.bf16.mxu0 0
  %3297 = vmatpush1.bf16.msra.mxu0 0
  %3298 = vmatprep.mubr.bf16.mxu0 0
  %3299 = vmatmul.mubr.bf16.gmra.mrb[0].mxu0 %v3246
  %v3300 = vpop.f32.mrb[0].mxu0
  %v3301 = vadd.f32 %v3231, %v3300
  %v3302 = vpop.f32.mrb[0].mxu0
  %v3303 = vpop.f32.mrb[0].mxu0
  %v3304 = vadd.f32 %v3231, %v3303
  %v3305 = vpop.f32.mrb[0].mxu0
  %3306 = vmatprep.mubr.bf16.mxu0 0
  %3307 = vmatmul.mubr.bf16.gmra.mrb[0].mxu0 %v3249
  %v3308 = vpop.f32.mrb[0].mxu0
  %v3309 = vadd.f32 %v3231, %v3308
  %v3310 = vpop.f32.mrb[0].mxu0
  %v3311 = vpop.f32.mrb[0].mxu0
  %v3312 = vadd.f32 %v3231, %v3311
  %v3313 = vpop.f32.mrb[0].mxu0
  %3314 = vmatprep.mubr.bf16.mxu0 0
  %3315 = vmatmul.mubr.bf16.gmra.mrb[0].mxu0 %v3252
  %v3316 = vpop.f32.mrb[0].mxu0
  %v3317 = vadd.f32 %v3231, %v3316
  %v3318 = vpop.f32.mrb[0].mxu0
  %v3319 = vpop.f32.mrb[0].mxu0
  %v3320 = vadd.f32 %v3231, %v3319
  %v3321 = vpop.f32.mrb[0].mxu0
  %3322 = vmatprep.mubr.bf16.mxu0 0
  %3323 = vmatmul.mubr.bf16.gmra.mrb[0].mxu0 %v3255
  %v3324 = vpop.f32.mrb[0].mxu0
  %v3325 = vadd.f32 %v3231, %v3324
  %v3326 = vpop.f32.mrb[0].mxu0
  %v3327 = vpop.f32.mrb[0].mxu0
  %v3328 = vadd.f32 %v3231, %v3327
  %v3329 = vpop.f32.mrb[0].mxu0
  %3330 = vmatprep.mubr.bf16.mxu0 0
  %3331 = vmatmul.mubr.bf16.gmra.mrb[0].mxu0 %v3258
  %v3332 = vpop.f32.mrb[0].mxu0
  %v3333 = vadd.f32 %v3231, %v3332
  %v3334 = vpop.f32.mrb[0].mxu0
  %v3335 = vpop.f32.mrb[0].mxu0
  %v3336 = vadd.f32 %v3231, %v3335
  %v3337 = vpop.f32.mrb[0].mxu0
  %3338 = vmatprep.mubr.bf16.mxu0 0
  %3339 = vmatmul.mubr.bf16.gmra.mrb[0].mxu0 %v3261
  %v3340 = vpop.f32.mrb[0].mxu0
  %v3341 = vadd.f32 %v3231, %v3340
  %v3342 = vpop.f32.mrb[0].mxu0
  %v3343 = vpop.f32.mrb[0].mxu0
  %v3344 = vadd.f32 %v3231, %v3343
  %v3345 = vpop.f32.mrb[0].mxu0
  %3346 = vmatprep.mubr.bf16.mxu0 0
  %3347 = vmatmul.mubr.bf16.gmra.mrb[0].mxu0 %v3264
  %v3348 = vpop.f32.mrb[0].mxu0
  %v3349 = vadd.f32 %v3231, %v3348
  %v3350 = vpop.f32.mrb[0].mxu0
  %v3351 = vpop.f32.mrb[0].mxu0
  %v3352 = vadd.f32 %v3231, %v3351
  %v3353 = vpop.f32.mrb[0].mxu0
  %3354 = vdwg.mxu0
  %v3355 = vmax.f32 %v3301, 0.0
  %v3356 = vmax.f32 %v3304, 0.0
  %v3357 = vmax.f32 %v3309, 0.0
  %v3358 = vmax.f32 %v3312, 0.0
  %v3359 = vmax.f32 %v3317, 0.0
  %v3360 = vmax.f32 %v3320, 0.0
  %v3361 = vmax.f32 %v3325, 0.0
  %v3362 = vmax.f32 %v3328, 0.0
  %v3363 = vmax.f32 %v3333, 0.0
  %v3364 = vmax.f32 %v3336, 0.0
  %v3365 = vmax.f32 %v3341, 0.0
  %v3366 = vmax.f32 %v3344, 0.0
  %v3367 = vmax.f32 %v3349, 0.0
  %v3368 = vmax.f32 %v3352, 0.0
  %v3369 = vpack.c.bf16 %v3356, %v3355
  %v3370 = vpack.c.bf16 %v3358, %v3357
  %v3371 = vpack.c.bf16 %v3360, %v3359
  %v3372 = vpack.c.bf16 %v3362, %v3361
  %v3373 = vpack.c.bf16 %v3364, %v3363
  %v3374 = vpack.c.bf16 %v3366, %v3365
  %v3375 = vpack.c.bf16 %v3368, %v3367
  %v3376 = vld [vmem:[%s18] sm:$0xf]
  %v3377 = vld [vmem:[%s18 + $0x4] sm:$0xf]
  %v3378 = vld [vmem:[%s18 + $0x8] sm:$0xf]
  %v3379 = vld [vmem:[%s18 + $0xc] sm:$0xf]
  %v3380 = vld [vmem:[%s19] sm:$0x1]
  %v3382 = vlaneseq
  %v3383 = vshrl.u32 %v3382, 7
  %v3384 = vsub.s32 0, %v3383
  %v3385 = vrot.slane %v3380, %v3384
  %v3391 = vunpack.c.l.b16 %v3376
  %v3392 = vunpack.c.l.b16 %v3377
  %v3393 = vunpack.c.l.b16 %v3378
  %v3394 = vunpack.c.l.b16 %v3379
  %v3395 = vpack.c.b16 %v3392, %v3391
  %v3396 = vpack.c.b16 %v3394, %v3393
  %v3400 = vsel %vm246, %v3369, 0
  %v3403 = vsel %vm246, %v3370, 0
  %v3406 = vsel %vm246, %v3371, 0
  %v3409 = vsel %vm246, %v3372, 0
  %v3412 = vsel %vm246, %v3373, 0
  %v3415 = vsel %vm246, %v3374, 0
  %v3418 = vsel %vm246, %v3375, 0
  %3420 = vmatprep.subr.bf16.mxu0 0
  %3421 = vmatpush1.bf16.msra.mxu0 %v3395
  %3422 = vmatprep.subr.bf16.mxu0 0
  %3423 = vmatpush1.bf16.msra.mxu0 %v3396
  %3424 = vmatprep.subr.bf16.mxu0 0
  %3425 = vmatpush1.bf16.msra.mxu0 0
  %3426 = vmatprep.subr.bf16.mxu0 0
  %3427 = vmatpush1.bf16.msra.mxu0 0
  %3428 = vmatprep.subr.bf16.mxu0 0
  %3429 = vmatpush1.bf16.msra.mxu0 0
  %3430 = vmatprep.subr.bf16.mxu0 0
  %3431 = vmatpush1.bf16.msra.mxu0 0
  %3432 = vmatprep.subr.bf16.mxu0 0
  %3433 = vmatpush1.bf16.msra.mxu0 0
  %3434 = vmatprep.subr.bf16.mxu0 0
  %3435 = vmatpush1.bf16.msra.mxu0 0
  %3436 = vmatprep.subr.bf16.mxu0 0
  %3437 = vmatpush1.bf16.msra.mxu0 0
  %3438 = vmatprep.subr.bf16.mxu0 0
  %3439 = vmatpush1.bf16.msra.mxu0 0
  %3440 = vmatprep.subr.bf16.mxu0 0
  %3441 = vmatpush1.bf16.msra.mxu0 0
  %3442 = vmatprep.subr.bf16.mxu0 0
  %3443 = vmatpush1.bf16.msra.mxu0 0
  %3444 = vmatprep.subr.bf16.mxu0 0
  %3445 = vmatpush1.bf16.msra.mxu0 0
  %3446 = vmatprep.subr.bf16.mxu0 0
  %3447 = vmatpush1.bf16.msra.mxu0 0
  %3448 = vmatprep.subr.bf16.mxu0 0
  %3449 = vmatpush1.bf16.msra.mxu0 0
  %3450 = vmatprep.subr.bf16.mxu0 0
  %3451 = vmatpush1.bf16.msra.mxu0 0
  %3452 = vmatprep.mubr.bf16.mxu0 0
  %3453 = vmatmul.mubr.bf16.gmra.mrb[0].mxu0 %v3400
  %v3454 = vpop.f32.mrb[0].mxu0
  %v3455 = vadd.f32 %v3385, %v3454
  %v3456 = vpop.f32.mrb[0].mxu0
  %v3457 = vpop.f32.mrb[0].mxu0
  %v3458 = vadd.f32 %v3385, %v3457
  %v3459 = vpop.f32.mrb[0].mxu0
  %3460 = vmatprep.mubr.bf16.mxu0 0
  %3461 = vmatmul.mubr.bf16.gmra.mrb[0].mxu0 %v3403
  %v3462 = vpop.f32.mrb[0].mxu0
  %v3463 = vadd.f32 %v3385, %v3462
  %v3464 = vpop.f32.mrb[0].mxu0
  %v3465 = vpop.f32.mrb[0].mxu0
  %v3466 = vadd.f32 %v3385, %v3465
  %v3467 = vpop.f32.mrb[0].mxu0
  %3468 = vmatprep.mubr.bf16.mxu0 0
  %3469 = vmatmul.mubr.bf16.gmra.mrb[0].mxu0 %v3406
  %v3470 = vpop.f32.mrb[0].mxu0
  %v3471 = vadd.f32 %v3385, %v3470
  %v3472 = vpop.f32.mrb[0].mxu0
  %v3473 = vpop.f32.mrb[0].mxu0
  %v3474 = vadd.f32 %v3385, %v3473
  %v3475 = vpop.f32.mrb[0].mxu0
  %3476 = vmatprep.mubr.bf16.mxu0 0
  %3477 = vmatmul.mubr.bf16.gmra.mrb[0].mxu0 %v3409
  %v3478 = vpop.f32.mrb[0].mxu0
  %v3479 = vadd.f32 %v3385, %v3478
  %v3480 = vpop.f32.mrb[0].mxu0
  %v3481 = vpop.f32.mrb[0].mxu0
  %v3482 = vadd.f32 %v3385, %v3481
  %v3483 = vpop.f32.mrb[0].mxu0
  %3484 = vmatprep.mubr.bf16.mxu0 0
  %3485 = vmatmul.mubr.bf16.gmra.mrb[0].mxu0 %v3412
  %v3486 = vpop.f32.mrb[0].mxu0
  %v3487 = vadd.f32 %v3385, %v3486
  %v3488 = vpop.f32.mrb[0].mxu0
  %v3489 = vpop.f32.mrb[0].mxu0
  %v3490 = vadd.f32 %v3385, %v3489
  %v3491 = vpop.f32.mrb[0].mxu0
  %3492 = vmatprep.mubr.bf16.mxu0 0
  %3493 = vmatmul.mubr.bf16.gmra.mrb[0].mxu0 %v3415
  %v3494 = vpop.f32.mrb[0].mxu0
  %v3495 = vadd.f32 %v3385, %v3494
  %v3496 = vpop.f32.mrb[0].mxu0
  %v3497 = vpop.f32.mrb[0].mxu0
  %v3498 = vadd.f32 %v3385, %v3497
  %v3499 = vpop.f32.mrb[0].mxu0
  %3500 = vmatprep.mubr.bf16.mxu0 0
  %3501 = vmatmul.mubr.bf16.gmra.mrb[0].mxu0 %v3418
  %v3502 = vpop.f32.mrb[0].mxu0
  %v3503 = vadd.f32 %v3385, %v3502
  %v3504 = vpop.f32.mrb[0].mxu0
  %v3505 = vpop.f32.mrb[0].mxu0
  %v3506 = vadd.f32 %v3385, %v3505
  %v3507 = vpop.f32.mrb[0].mxu0
  %3508 = vdwg.mxu0
  %v3509 = vadd.f32 %v3201, %v3455
  %v3510 = vadd.f32 %v3202, %v3458
  %v3511 = vadd.f32 %v3203, %v3463
  %v3512 = vadd.f32 %v3204, %v3466
  %v3513 = vadd.f32 %v3205, %v3471
  %v3514 = vadd.f32 %v3206, %v3474
  %v3515 = vadd.f32 %v3207, %v3479
  %v3516 = vadd.f32 %v3208, %v3482
  %v3517 = vadd.f32 %v3209, %v3487
  %v3518 = vadd.f32 %v3210, %v3490
  %v3519 = vadd.f32 %v3211, %v3495
  %v3520 = vadd.f32 %v3212, %v3498
  %v3521 = vadd.f32 %v3213, %v3503
  %v3522 = vadd.f32 %v3214, %v3506
  %v3523 = vld [vmem:[%s20] sm:$0x1]
  %v3524 = vld [vmem:[%s21] sm:$0x1]
  %v3525 = vsel %vm246, %v3509, 0.0
  %3526 = vadd.xlane.f32.xlu0 %v3525
  %v3527 = vpop.xlane.xlu0 %3526
  %v3528 = vsel %vm246, %v3510, 0.0
  %3529 = vadd.xlane.f32.xlu0 %v3528
  %v3530 = vpop.xlane.xlu0 %3529
  %v3531 = vsel %vm246, %v3511, 0.0
  %3532 = vadd.xlane.f32.xlu0 %v3531
  %v3533 = vpop.xlane.xlu0 %3532
  %v3534 = vsel %vm246, %v3512, 0.0
  %3535 = vadd.xlane.f32.xlu0 %v3534
  %v3536 = vpop.xlane.xlu0 %3535
  %v3537 = vsel %vm246, %v3513, 0.0
  %3538 = vadd.xlane.f32.xlu0 %v3537
  %v3539 = vpop.xlane.xlu0 %3538
  %v3540 = vsel %vm246, %v3514, 0.0
  %3541 = vadd.xlane.f32.xlu0 %v3540
  %v3542 = vpop.xlane.xlu0 %3541
  %v3543 = vsel %vm246, %v3515, 0.0
  %3544 = vadd.xlane.f32.xlu0 %v3543
  %v3545 = vpop.xlane.xlu0 %3544
  %v3546 = vsel %vm246, %v3516, 0.0
  %3547 = vadd.xlane.f32.xlu0 %v3546
  %v3548 = vpop.xlane.xlu0 %3547
  %v3549 = vsel %vm246, %v3517, 0.0
  %3550 = vadd.xlane.f32.xlu0 %v3549
  %v3551 = vpop.xlane.xlu0 %3550
  %v3552 = vsel %vm246, %v3518, 0.0
  %3553 = vadd.xlane.f32.xlu0 %v3552
  %v3554 = vpop.xlane.xlu0 %3553
  %v3555 = vsel %vm246, %v3519, 0.0
  %3556 = vadd.xlane.f32.xlu0 %v3555
  %v3557 = vpop.xlane.xlu0 %3556
  %v3558 = vsel %vm246, %v3520, 0.0
  %3559 = vadd.xlane.f32.xlu0 %v3558
  %v3560 = vpop.xlane.xlu0 %3559
  %v3561 = vsel %vm246, %v3521, 0.0
  %3562 = vadd.xlane.f32.xlu0 %v3561
  %v3563 = vpop.xlane.xlu0 %3562
  %v3564 = vsel %vm246, %v3522, 0.0
  %3565 = vadd.xlane.f32.xlu0 %v3564
  %v3566 = vpop.xlane.xlu0 %3565
  %v3567 = vmul.f32 %v3527, %v289
  %v3568 = vmul.f32 %v3530, %v289
  %v3569 = vmul.f32 %v3533, %v289
  %v3570 = vmul.f32 %v3536, %v289
  %v3571 = vmul.f32 %v3539, %v289
  %v3572 = vmul.f32 %v3542, %v289
  %v3573 = vmul.f32 %v3545, %v289
  %v3574 = vmul.f32 %v3548, %v289
  %v3575 = vmul.f32 %v3551, %v289
  %v3576 = vmul.f32 %v3554, %v289
  %v3577 = vmul.f32 %v3557, %v289
  %v3578 = vmul.f32 %v3560, %v289
  %v3579 = vmul.f32 %v3563, %v289
  %v3580 = vmul.f32 %v3566, %v289
  %v3581 = vsub.f32 %v3509, %v3567
  %v3582 = vsub.f32 %v3510, %v3568
  %v3583 = vsub.f32 %v3511, %v3569
  %v3584 = vsub.f32 %v3512, %v3570
  %v3585 = vsub.f32 %v3513, %v3571
  %v3586 = vsub.f32 %v3514, %v3572
  %v3587 = vsub.f32 %v3515, %v3573
  %v3588 = vsub.f32 %v3516, %v3574
  %v3589 = vsub.f32 %v3517, %v3575
  %v3590 = vsub.f32 %v3518, %v3576
  %v3591 = vsub.f32 %v3519, %v3577
  %v3592 = vsub.f32 %v3520, %v3578
  %v3593 = vsub.f32 %v3521, %v3579
  %v3594 = vsub.f32 %v3522, %v3580
  %v3595 = vmul.f32 %v3581, %v3581
  %v3596 = vmul.f32 %v3582, %v3582
  %v3597 = vmul.f32 %v3583, %v3583
  %v3598 = vmul.f32 %v3584, %v3584
  %v3599 = vmul.f32 %v3585, %v3585
  %v3600 = vmul.f32 %v3586, %v3586
  %v3601 = vmul.f32 %v3587, %v3587
  %v3602 = vmul.f32 %v3588, %v3588
  %v3603 = vmul.f32 %v3589, %v3589
  %v3604 = vmul.f32 %v3590, %v3590
  %v3605 = vmul.f32 %v3591, %v3591
  %v3606 = vmul.f32 %v3592, %v3592
  %v3607 = vmul.f32 %v3593, %v3593
  %v3608 = vmul.f32 %v3594, %v3594
  %v3609 = vsel %vm246, %v3595, 0.0
  %3610 = vadd.xlane.f32.xlu0 %v3609
  %v3611 = vpop.xlane.xlu0 %3610
  %v3612 = vsel %vm246, %v3596, 0.0
  %3613 = vadd.xlane.f32.xlu0 %v3612
  %v3614 = vpop.xlane.xlu0 %3613
  %v3615 = vsel %vm246, %v3597, 0.0
  %3616 = vadd.xlane.f32.xlu0 %v3615
  %v3617 = vpop.xlane.xlu0 %3616
  %v3618 = vsel %vm246, %v3598, 0.0
  %3619 = vadd.xlane.f32.xlu0 %v3618
  %v3620 = vpop.xlane.xlu0 %3619
  %v3621 = vsel %vm246, %v3599, 0.0
  %3622 = vadd.xlane.f32.xlu0 %v3621
  %v3623 = vpop.xlane.xlu0 %3622
  %v3624 = vsel %vm246, %v3600, 0.0
  %3625 = vadd.xlane.f32.xlu0 %v3624
  %v3626 = vpop.xlane.xlu0 %3625
  %v3627 = vsel %vm246, %v3601, 0.0
  %3628 = vadd.xlane.f32.xlu0 %v3627
  %v3629 = vpop.xlane.xlu0 %3628
  %v3630 = vsel %vm246, %v3602, 0.0
  %3631 = vadd.xlane.f32.xlu0 %v3630
  %v3632 = vpop.xlane.xlu0 %3631
  %v3633 = vsel %vm246, %v3603, 0.0
  %3634 = vadd.xlane.f32.xlu0 %v3633
  %v3635 = vpop.xlane.xlu0 %3634
  %v3636 = vsel %vm246, %v3604, 0.0
  %3637 = vadd.xlane.f32.xlu0 %v3636
  %v3638 = vpop.xlane.xlu0 %3637
  %v3639 = vsel %vm246, %v3605, 0.0
  %3640 = vadd.xlane.f32.xlu0 %v3639
  %v3641 = vpop.xlane.xlu0 %3640
  %v3642 = vsel %vm246, %v3606, 0.0
  %3643 = vadd.xlane.f32.xlu0 %v3642
  %v3644 = vpop.xlane.xlu0 %3643
  %v3645 = vsel %vm246, %v3607, 0.0
  %3646 = vadd.xlane.f32.xlu0 %v3645
  %v3647 = vpop.xlane.xlu0 %3646
  %v3648 = vsel %vm246, %v3608, 0.0
  %3649 = vadd.xlane.f32.xlu0 %v3648
  %v3650 = vpop.xlane.xlu0 %3649
  %v3651 = vmul.f32 %v3611, %v289
  %v3652 = vmul.f32 %v3614, %v289
  %v3653 = vmul.f32 %v3617, %v289
  %v3654 = vmul.f32 %v3620, %v289
  %v3655 = vmul.f32 %v3623, %v289
  %v3656 = vmul.f32 %v3626, %v289
  %v3657 = vmul.f32 %v3629, %v289
  %v3658 = vmul.f32 %v3632, %v289
  %v3659 = vmul.f32 %v3635, %v289
  %v3660 = vmul.f32 %v3638, %v289
  %v3661 = vmul.f32 %v3641, %v289
  %v3662 = vmul.f32 %v3644, %v289
  %v3663 = vmul.f32 %v3647, %v289
  %v3664 = vmul.f32 %v3650, %v289
  %v3665 = vadd.f32 %v3651, 1e-05
  %v3666 = vadd.f32 %v3652, 1e-05
  %v3667 = vadd.f32 %v3653, 1e-05
  %v3668 = vadd.f32 %v3654, 1e-05
  %v3669 = vadd.f32 %v3655, 1e-05
  %v3670 = vadd.f32 %v3656, 1e-05
  %v3671 = vadd.f32 %v3657, 1e-05
  %v3672 = vadd.f32 %v3658, 1e-05
  %v3673 = vadd.f32 %v3659, 1e-05
  %v3674 = vadd.f32 %v3660, 1e-05
  %v3675 = vadd.f32 %v3661, 1e-05
  %v3676 = vadd.f32 %v3662, 1e-05
  %v3677 = vadd.f32 %v3663, 1e-05
  %v3678 = vadd.f32 %v3664, 1e-05
  %v3679 = vrsqrt.pop %v3665
  %v3680 = vrsqrt.pop %v3666
  %v3681 = vrsqrt.pop %v3667
  %v3682 = vrsqrt.pop %v3668
  %v3683 = vrsqrt.pop %v3669
  %v3684 = vrsqrt.pop %v3670
  %v3685 = vrsqrt.pop %v3671
  %v3686 = vrsqrt.pop %v3672
  %v3687 = vrsqrt.pop %v3673
  %v3688 = vrsqrt.pop %v3674
  %v3689 = vrsqrt.pop %v3675
  %v3690 = vrsqrt.pop %v3676
  %v3691 = vrsqrt.pop %v3677
  %v3692 = vrsqrt.pop %v3678
  %v3693 = vmul.f32 %v3581, %v3679
  %v3694 = vmul.f32 %v3582, %v3680
  %v3695 = vmul.f32 %v3583, %v3681
  %v3696 = vmul.f32 %v3584, %v3682
  %v3697 = vmul.f32 %v3585, %v3683
  %v3698 = vmul.f32 %v3586, %v3684
  %v3699 = vmul.f32 %v3587, %v3685
  %v3700 = vmul.f32 %v3588, %v3686
  %v3701 = vmul.f32 %v3589, %v3687
  %v3702 = vmul.f32 %v3590, %v3688
  %v3703 = vmul.f32 %v3591, %v3689
  %v3704 = vmul.f32 %v3592, %v3690
  %v3705 = vmul.f32 %v3593, %v3691
  %v3706 = vmul.f32 %v3594, %v3692
  %v3708 = vlaneseq
  %v3709 = vshrl.u32 %v3708, 7
  %v3710 = vsub.s32 0, %v3709
  %v3711 = vrot.slane %v3523, %v3710
  %v3713 = vmul.f32 %v3693, %v3711
  %v3714 = vmul.f32 %v3694, %v3711
  %v3715 = vmul.f32 %v3695, %v3711
  %v3716 = vmul.f32 %v3696, %v3711
  %v3717 = vmul.f32 %v3697, %v3711
  %v3718 = vmul.f32 %v3698, %v3711
  %v3719 = vmul.f32 %v3699, %v3711
  %v3720 = vmul.f32 %v3700, %v3711
  %v3721 = vmul.f32 %v3701, %v3711
  %v3722 = vmul.f32 %v3702, %v3711
  %v3723 = vmul.f32 %v3703, %v3711
  %v3724 = vmul.f32 %v3704, %v3711
  %v3725 = vmul.f32 %v3705, %v3711
  %v3726 = vmul.f32 %v3706, %v3711
  %v3728 = vlaneseq
  %v3729 = vshrl.u32 %v3728, 7
  %v3730 = vsub.s32 0, %v3729
  %v3731 = vrot.slane %v3524, %v3730
  %v3733 = vadd.f32 %v3713, %v3731
  %v3734 = vadd.f32 %v3714, %v3731
  %v3735 = vadd.f32 %v3715, %v3731
  %v3736 = vadd.f32 %v3716, %v3731
  %v3737 = vadd.f32 %v3717, %v3731
  %v3738 = vadd.f32 %v3718, %v3731
  %v3739 = vadd.f32 %v3719, %v3731
  %v3740 = vadd.f32 %v3720, %v3731
  %v3741 = vadd.f32 %v3721, %v3731
  %v3742 = vadd.f32 %v3722, %v3731
  %v3743 = vadd.f32 %v3723, %v3731
  %v3744 = vadd.f32 %v3724, %v3731
  %v3745 = vadd.f32 %v3725, %v3731
  %v3746 = vadd.f32 %v3726, %v3731
  %v3747 = vpack.c.bf16 %v3734, %v3733
  %v3748 = vpack.c.bf16 %v3736, %v3735
  %v3749 = vpack.c.bf16 %v3738, %v3737
  %v3750 = vpack.c.bf16 %v3740, %v3739
  %v3751 = vpack.c.bf16 %v3742, %v3741
  %v3752 = vpack.c.bf16 %v3744, %v3743
  %v3753 = vpack.c.bf16 %v3746, %v3745
  %s3754 = scalar_lea.vmem %s10, 16
  %v3755 = vld [vmem:[%s3754] sm:$0xf]
  %v3756 = vld [vmem:[%s3754 + $0x4] sm:$0xf]
  %v3757 = vld [vmem:[%s3754 + $0x8] sm:$0xf]
  %v3758 = vld [vmem:[%s3754 + $0xc] sm:$0xf]
  %s3759 = scalar_lea.vmem %s11, 1
  %v3760 = vld [vmem:[%s3759] sm:$0x1]
  %v3762 = vlaneseq
  %v3763 = vshrl.u32 %v3762, 7
  %v3764 = vsub.s32 0, %v3763
  %v3765 = vrot.slane %v3760, %v3764
  %v3771 = vunpack.c.l.b16 %v3755
  %v3772 = vunpack.c.l.b16 %v3756
  %v3773 = vunpack.c.l.b16 %v3757
  %v3774 = vunpack.c.l.b16 %v3758
  %v3775 = vpack.c.b16 %v3772, %v3771
  %v3776 = vpack.c.b16 %v3774, %v3773
  %v3780 = vsel %vm246, %v3747, 0
  %v3783 = vsel %vm246, %v3748, 0
  %v3786 = vsel %vm246, %v3749, 0
  %v3789 = vsel %vm246, %v3750, 0
  %v3792 = vsel %vm246, %v3751, 0
  %v3795 = vsel %vm246, %v3752, 0
  %v3798 = vsel %vm246, %v3753, 0
  %3800 = vmatprep.subr.bf16.mxu0 0
  %3801 = vmatpush1.bf16.msra.mxu0 %v3775
  %3802 = vmatprep.subr.bf16.mxu0 0
  %3803 = vmatpush1.bf16.msra.mxu0 %v3776
  %3804 = vmatprep.subr.bf16.mxu0 0
  %3805 = vmatpush1.bf16.msra.mxu0 0
  %3806 = vmatprep.subr.bf16.mxu0 0
  %3807 = vmatpush1.bf16.msra.mxu0 0
  %3808 = vmatprep.subr.bf16.mxu0 0
  %3809 = vmatpush1.bf16.msra.mxu0 0
  %3810 = vmatprep.subr.bf16.mxu0 0
  %3811 = vmatpush1.bf16.msra.mxu0 0
  %3812 = vmatprep.subr.bf16.mxu0 0
  %3813 = vmatpush1.bf16.msra.mxu0 0
  %3814 = vmatprep.subr.bf16.mxu0 0
  %3815 = vmatpush1.bf16.msra.mxu0 0
  %3816 = vmatprep.subr.bf16.mxu0 0
  %3817 = vmatpush1.bf16.msra.mxu0 0
  %3818 = vmatprep.subr.bf16.mxu0 0
  %3819 = vmatpush1.bf16.msra.mxu0 0
  %3820 = vmatprep.subr.bf16.mxu0 0
  %3821 = vmatpush1.bf16.msra.mxu0 0
  %3822 = vmatprep.subr.bf16.mxu0 0
  %3823 = vmatpush1.bf16.msra.mxu0 0
  %3824 = vmatprep.subr.bf16.mxu0 0
  %3825 = vmatpush1.bf16.msra.mxu0 0
  %3826 = vmatprep.subr.bf16.mxu0 0
  %3827 = vmatpush1.bf16.msra.mxu0 0
  %3828 = vmatprep.subr.bf16.mxu0 0
  %3829 = vmatpush1.bf16.msra.mxu0 0
  %3830 = vmatprep.subr.bf16.mxu0 0
  %3831 = vmatpush1.bf16.msra.mxu0 0
  %3832 = vmatprep.mubr.bf16.mxu0 0
  %3833 = vmatmul.mubr.bf16.gmra.mrb[0].mxu0 %v3780
  %v3834 = vpop.f32.mrb[0].mxu0
  %v3835 = vadd.f32 %v3765, %v3834
  %v3836 = vpop.f32.mrb[0].mxu0
  %v3837 = vpop.f32.mrb[0].mxu0
  %v3838 = vadd.f32 %v3765, %v3837
  %v3839 = vpop.f32.mrb[0].mxu0
  %3840 = vmatprep.mubr.bf16.mxu0 0
  %3841 = vmatmul.mubr.bf16.gmra.mrb[0].mxu0 %v3783
  %v3842 = vpop.f32.mrb[0].mxu0
  %v3843 = vadd.f32 %v3765, %v3842
  %v3844 = vpop.f32.mrb[0].mxu0
  %v3845 = vpop.f32.mrb[0].mxu0
  %v3846 = vadd.f32 %v3765, %v3845
  %v3847 = vpop.f32.mrb[0].mxu0
  %3848 = vmatprep.mubr.bf16.mxu0 0
  %3849 = vmatmul.mubr.bf16.gmra.mrb[0].mxu0 %v3786
  %v3850 = vpop.f32.mrb[0].mxu0
  %v3851 = vadd.f32 %v3765, %v3850
  %v3852 = vpop.f32.mrb[0].mxu0
  %v3853 = vpop.f32.mrb[0].mxu0
  %v3854 = vadd.f32 %v3765, %v3853
  %v3855 = vpop.f32.mrb[0].mxu0
  %3856 = vmatprep.mubr.bf16.mxu0 0
  %3857 = vmatmul.mubr.bf16.gmra.mrb[0].mxu0 %v3789
  %v3858 = vpop.f32.mrb[0].mxu0
  %v3859 = vadd.f32 %v3765, %v3858
  %v3860 = vpop.f32.mrb[0].mxu0
  %v3861 = vpop.f32.mrb[0].mxu0
  %v3862 = vadd.f32 %v3765, %v3861
  %v3863 = vpop.f32.mrb[0].mxu0
  %3864 = vmatprep.mubr.bf16.mxu0 0
  %3865 = vmatmul.mubr.bf16.gmra.mrb[0].mxu0 %v3792
  %v3866 = vpop.f32.mrb[0].mxu0
  %v3867 = vadd.f32 %v3765, %v3866
  %v3868 = vpop.f32.mrb[0].mxu0
  %v3869 = vpop.f32.mrb[0].mxu0
  %v3870 = vadd.f32 %v3765, %v3869
  %v3871 = vpop.f32.mrb[0].mxu0
  %3872 = vmatprep.mubr.bf16.mxu0 0
  %3873 = vmatmul.mubr.bf16.gmra.mrb[0].mxu0 %v3795
  %v3874 = vpop.f32.mrb[0].mxu0
  %v3875 = vadd.f32 %v3765, %v3874
  %v3876 = vpop.f32.mrb[0].mxu0
  %v3877 = vpop.f32.mrb[0].mxu0
  %v3878 = vadd.f32 %v3765, %v3877
  %v3879 = vpop.f32.mrb[0].mxu0
  %3880 = vmatprep.mubr.bf16.mxu0 0
  %3881 = vmatmul.mubr.bf16.gmra.mrb[0].mxu0 %v3798
  %v3882 = vpop.f32.mrb[0].mxu0
  %v3883 = vadd.f32 %v3765, %v3882
  %v3884 = vpop.f32.mrb[0].mxu0
  %v3885 = vpop.f32.mrb[0].mxu0
  %v3886 = vadd.f32 %v3765, %v3885
  %v3887 = vpop.f32.mrb[0].mxu0
  %3888 = vdwg.mxu0
  %v3889 = vmul.f32 %v3835, 0.35355338
  %v3890 = vmul.f32 %v3838, 0.35355338
  %v3891 = vmul.f32 %v3843, 0.35355338
  %v3892 = vmul.f32 %v3846, 0.35355338
  %v3893 = vmul.f32 %v3851, 0.35355338
  %v3894 = vmul.f32 %v3854, 0.35355338
  %v3895 = vmul.f32 %v3859, 0.35355338
  %v3896 = vmul.f32 %v3862, 0.35355338
  %v3897 = vmul.f32 %v3867, 0.35355338
  %v3898 = vmul.f32 %v3870, 0.35355338
  %v3899 = vmul.f32 %v3875, 0.35355338
  %v3900 = vmul.f32 %v3878, 0.35355338
  %v3901 = vmul.f32 %v3883, 0.35355338
  %v3902 = vmul.f32 %v3886, 0.35355338
  %v3903 = vpack.c.bf16 %v3890, %v3889
  %v3904 = vpack.c.bf16 %v3892, %v3891
  %v3905 = vpack.c.bf16 %v3894, %v3893
  %v3906 = vpack.c.bf16 %v3896, %v3895
  %v3907 = vpack.c.bf16 %v3898, %v3897
  %v3908 = vpack.c.bf16 %v3900, %v3899
  %v3909 = vpack.c.bf16 %v3902, %v3901
  %v3910 = vpack.c.bf16 %v3838, %v3835
  %v3911 = vpack.c.bf16 %v3846, %v3843
  %v3912 = vpack.c.bf16 %v3854, %v3851
  %v3913 = vpack.c.bf16 %v3862, %v3859
  %v3914 = vpack.c.bf16 %v3870, %v3867
  %v3915 = vpack.c.bf16 %v3878, %v3875
  %v3916 = vpack.c.bf16 %v3886, %v3883
  %3924 = vrot.lane.b32.xlu0 %v3910, 96
  %v3925 = vpop.permute.xlu0 %3924
  %3926 = vrot.lane.b32.xlu0 %v3911, 96
  %v3927 = vpop.permute.xlu0 %3926
  %3928 = vrot.lane.b32.xlu0 %v3912, 96
  %v3929 = vpop.permute.xlu0 %3928
  %3930 = vrot.lane.b32.xlu0 %v3913, 96
  %v3931 = vpop.permute.xlu0 %3930
  %3932 = vrot.lane.b32.xlu0 %v3914, 96
  %v3933 = vpop.permute.xlu0 %3932
  %3934 = vrot.lane.b32.xlu0 %v3915, 96
  %v3935 = vpop.permute.xlu0 %3934
  %3936 = vrot.lane.b32.xlu0 %v3916, 96
  %v3937 = vpop.permute.xlu0 %3936
  %v3939 = vsel %vm841, %v3903, 0
  %v3942 = vsel %vm841, %v3904, 0
  %v3945 = vsel %vm841, %v3905, 0
  %v3948 = vsel %vm841, %v3906, 0
  %v3951 = vsel %vm841, %v3907, 0
  %v3954 = vsel %vm841, %v3908, 0
  %v3957 = vsel %vm841, %v3909, 0
  %v3960 = vsel %vm841, %v3925, 0
  %v3963 = vsel %vm841, %v3927, 0
  %v3966 = vsel %vm841, %v3929, 0
  %v3969 = vsel %vm841, %v3931, 0
  %v3972 = vsel %vm841, %v3933, 0
  %v3975 = vsel %vm841, %v3935, 0
  %v3978 = vsel %vm841, %v3937, 0
  %3980 = vmatprep.subr.bf16.mxu0 0
  %3981 = vmatpush1.bf16.xpose.msra.mxu0 %v3960
  %3982 = vmatprep.subr.bf16.mxu0 0
  %3983 = vmatpush1.bf16.xpose.msra.mxu0 %v3963
  %3984 = vmatprep.subr.bf16.mxu0 0
  %3985 = vmatpush1.bf16.xpose.msra.mxu0 %v3966
  %3986 = vmatprep.subr.bf16.mxu0 0
  %3987 = vmatpush1.bf16.xpose.msra.mxu0 %v3969
  %3988 = vmatprep.subr.bf16.mxu0 0
  %3989 = vmatpush1.bf16.xpose.msra.mxu0 %v3972
  %3990 = vmatprep.subr.bf16.mxu0 0
  %3991 = vmatpush1.bf16.xpose.msra.mxu0 %v3975
  %3992 = vmatprep.subr.bf16.mxu0 0
  %3993 = vmatpush1.bf16.xpose.msra.mxu0 %v3978
  %3994 = vmatprep.subr.bf16.mxu0 0
  %3995 = vmatpush1.bf16.xpose.msra.mxu0 0
  %3996 = vmatprep.subr.bf16.mxu0 0
  %3997 = vmatpush1.bf16.xpose.msra.mxu0 0
  %3998 = vmatprep.subr.bf16.mxu0 0
  %3999 = vmatpush1.bf16.xpose.msra.mxu0 0
  %4000 = vmatprep.subr.bf16.mxu0 0
  %4001 = vmatpush1.bf16.xpose.msra.mxu0 0
  %4002 = vmatprep.subr.bf16.mxu0 0
  %4003 = vmatpush1.bf16.xpose.msra.mxu0 0
  %4004 = vmatprep.subr.bf16.mxu0 0
  %4005 = vmatpush1.bf16.xpose.msra.mxu0 0
  %4006 = vmatprep.subr.bf16.mxu0 0
  %4007 = vmatpush1.bf16.xpose.msra.mxu0 0
  %4008 = vmatprep.subr.bf16.mxu0 0
  %4009 = vmatpush1.bf16.xpose.msra.mxu0 0
  %4010 = vmatprep.subr.bf16.mxu0 0
  %4011 = vmatpush1.bf16.xpose.msra.mxu0 0
  %4012 = vmatprep.mubr.bf16.mxu0 0
  %4013 = vmatmul.mubr.bf16.gmra.mrb[0].mxu0 %v3939
  %v4014 = vpop.f32.mrb[0].mxu0
  %v4015 = vadd.f32 %v75, %v4014
  %v4016 = vpop.f32.mrb[0].mxu0
  %v4017 = vpop.f32.mrb[0].mxu0
  %v4018 = vadd.f32 %v76, %v4017
  %v4019 = vpop.f32.mrb[0].mxu0
  %4020 = vmatprep.mubr.bf16.mxu0 0
  %4021 = vmatmul.mubr.bf16.gmra.mrb[0].mxu0 %v3942
  %v4022 = vpop.f32.mrb[0].mxu0
  %v4023 = vadd.f32 %v77, %v4022
  %v4024 = vpop.f32.mrb[0].mxu0
  %v4025 = vpop.f32.mrb[0].mxu0
  %v4026 = vadd.f32 %v78, %v4025
  %v4027 = vpop.f32.mrb[0].mxu0
  %4028 = vmatprep.mubr.bf16.mxu0 0
  %4029 = vmatmul.mubr.bf16.gmra.mrb[0].mxu0 %v3945
  %v4030 = vpop.f32.mrb[0].mxu0
  %v4031 = vadd.f32 %v79, %v4030
  %v4032 = vpop.f32.mrb[0].mxu0
  %v4033 = vpop.f32.mrb[0].mxu0
  %v4034 = vadd.f32 %v80, %v4033
  %v4035 = vpop.f32.mrb[0].mxu0
  %4036 = vmatprep.mubr.bf16.mxu0 0
  %4037 = vmatmul.mubr.bf16.gmra.mrb[0].mxu0 %v3948
  %v4038 = vpop.f32.mrb[0].mxu0
  %v4039 = vadd.f32 %v81, %v4038
  %v4040 = vpop.f32.mrb[0].mxu0
  %v4041 = vpop.f32.mrb[0].mxu0
  %v4042 = vadd.f32 %v82, %v4041
  %v4043 = vpop.f32.mrb[0].mxu0
  %4044 = vmatprep.mubr.bf16.mxu0 0
  %4045 = vmatmul.mubr.bf16.gmra.mrb[0].mxu0 %v3951
  %v4046 = vpop.f32.mrb[0].mxu0
  %v4047 = vadd.f32 %v83, %v4046
  %v4048 = vpop.f32.mrb[0].mxu0
  %v4049 = vpop.f32.mrb[0].mxu0
  %v4050 = vadd.f32 %v84, %v4049
  %v4051 = vpop.f32.mrb[0].mxu0
  %4052 = vmatprep.mubr.bf16.mxu0 0
  %4053 = vmatmul.mubr.bf16.gmra.mrb[0].mxu0 %v3954
  %v4054 = vpop.f32.mrb[0].mxu0
  %v4055 = vadd.f32 %v85, %v4054
  %v4056 = vpop.f32.mrb[0].mxu0
  %v4057 = vpop.f32.mrb[0].mxu0
  %v4058 = vadd.f32 %v86, %v4057
  %v4059 = vpop.f32.mrb[0].mxu0
  %4060 = vmatprep.mubr.bf16.mxu0 0
  %4061 = vmatmul.mubr.bf16.gmra.mrb[0].mxu0 %v3957
  %v4062 = vpop.f32.mrb[0].mxu0
  %v4063 = vadd.f32 %v87, %v4062
  %v4064 = vpop.f32.mrb[0].mxu0
  %v4065 = vpop.f32.mrb[0].mxu0
  %v4066 = vadd.f32 %v88, %v4065
  %v4067 = vpop.f32.mrb[0].mxu0
  %4068 = vdwg.mxu0
  %v4069 = vsel %vm973, %v4015, -inf
  %4070 = vmax.xlane.f32.xlu0 %v4069
  %v4071 = vpop.xlane.xlu0 %4070
  %v4072 = vsel %vm973, %v4018, -inf
  %4073 = vmax.xlane.f32.xlu0 %v4072
  %v4074 = vpop.xlane.xlu0 %4073
  %v4075 = vsel %vm973, %v4023, -inf
  %4076 = vmax.xlane.f32.xlu0 %v4075
  %v4077 = vpop.xlane.xlu0 %4076
  %v4078 = vsel %vm973, %v4026, -inf
  %4079 = vmax.xlane.f32.xlu0 %v4078
  %v4080 = vpop.xlane.xlu0 %4079
  %v4081 = vsel %vm973, %v4031, -inf
  %4082 = vmax.xlane.f32.xlu0 %v4081
  %v4083 = vpop.xlane.xlu0 %4082
  %v4084 = vsel %vm973, %v4034, -inf
  %4085 = vmax.xlane.f32.xlu0 %v4084
  %v4086 = vpop.xlane.xlu0 %4085
  %v4087 = vsel %vm973, %v4039, -inf
  %4088 = vmax.xlane.f32.xlu0 %v4087
  %v4089 = vpop.xlane.xlu0 %4088
  %v4090 = vsel %vm973, %v4042, -inf
  %4091 = vmax.xlane.f32.xlu0 %v4090
  %v4092 = vpop.xlane.xlu0 %4091
  %v4093 = vsel %vm973, %v4047, -inf
  %4094 = vmax.xlane.f32.xlu0 %v4093
  %v4095 = vpop.xlane.xlu0 %4094
  %v4096 = vsel %vm973, %v4050, -inf
  %4097 = vmax.xlane.f32.xlu0 %v4096
  %v4098 = vpop.xlane.xlu0 %4097
  %v4099 = vsel %vm973, %v4055, -inf
  %4100 = vmax.xlane.f32.xlu0 %v4099
  %v4101 = vpop.xlane.xlu0 %4100
  %v4102 = vsel %vm973, %v4058, -inf
  %4103 = vmax.xlane.f32.xlu0 %v4102
  %v4104 = vpop.xlane.xlu0 %4103
  %v4105 = vsel %vm973, %v4063, -inf
  %4106 = vmax.xlane.f32.xlu0 %v4105
  %v4107 = vpop.xlane.xlu0 %4106
  %v4108 = vsel %vm973, %v4066, -inf
  %4109 = vmax.xlane.f32.xlu0 %v4108
  %v4110 = vpop.xlane.xlu0 %4109
  %v4111 = vsub.f32 %v4015, %v4071
  %v4112 = vsub.f32 %v4018, %v4074
  %v4113 = vsub.f32 %v4023, %v4077
  %v4114 = vsub.f32 %v4026, %v4080
  %v4115 = vsub.f32 %v4031, %v4083
  %v4116 = vsub.f32 %v4034, %v4086
  %v4117 = vsub.f32 %v4039, %v4089
  %v4118 = vsub.f32 %v4042, %v4092
  %v4119 = vsub.f32 %v4047, %v4095
  %v4120 = vsub.f32 %v4050, %v4098
  %v4121 = vsub.f32 %v4055, %v4101
  %v4122 = vsub.f32 %v4058, %v4104
  %v4123 = vsub.f32 %v4063, %v4107
  %v4124 = vsub.f32 %v4066, %v4110
  %v4125 = vmul.f32 %v4111, 1.442695
  %v4126 = vpow.pop %v4125
  %v4127 = vmul.f32 %v4112, 1.442695
  %v4128 = vpow.pop %v4127
  %v4129 = vmul.f32 %v4113, 1.442695
  %v4130 = vpow.pop %v4129
  %v4131 = vmul.f32 %v4114, 1.442695
  %v4132 = vpow.pop %v4131
  %v4133 = vmul.f32 %v4115, 1.442695
  %v4134 = vpow.pop %v4133
  %v4135 = vmul.f32 %v4116, 1.442695
  %v4136 = vpow.pop %v4135
  %v4137 = vmul.f32 %v4117, 1.442695
  %v4138 = vpow.pop %v4137
  %v4139 = vmul.f32 %v4118, 1.442695
  %v4140 = vpow.pop %v4139
  %v4141 = vmul.f32 %v4119, 1.442695
  %v4142 = vpow.pop %v4141
  %v4143 = vmul.f32 %v4120, 1.442695
  %v4144 = vpow.pop %v4143
  %v4145 = vmul.f32 %v4121, 1.442695
  %v4146 = vpow.pop %v4145
  %v4147 = vmul.f32 %v4122, 1.442695
  %v4148 = vpow.pop %v4147
  %v4149 = vmul.f32 %v4123, 1.442695
  %v4150 = vpow.pop %v4149
  %v4151 = vmul.f32 %v4124, 1.442695
  %v4152 = vpow.pop %v4151
  %v4153 = vsel %vm973, %v4126, 0.0
  %4154 = vadd.xlane.f32.xlu0 %v4153
  %v4155 = vpop.xlane.xlu0 %4154
  %v4156 = vsel %vm973, %v4128, 0.0
  %4157 = vadd.xlane.f32.xlu0 %v4156
  %v4158 = vpop.xlane.xlu0 %4157
  %v4159 = vsel %vm973, %v4130, 0.0
  %4160 = vadd.xlane.f32.xlu0 %v4159
  %v4161 = vpop.xlane.xlu0 %4160
  %v4162 = vsel %vm973, %v4132, 0.0
  %4163 = vadd.xlane.f32.xlu0 %v4162
  %v4164 = vpop.xlane.xlu0 %4163
  %v4165 = vsel %vm973, %v4134, 0.0
  %4166 = vadd.xlane.f32.xlu0 %v4165
  %v4167 = vpop.xlane.xlu0 %4166
  %v4168 = vsel %vm973, %v4136, 0.0
  %4169 = vadd.xlane.f32.xlu0 %v4168
  %v4170 = vpop.xlane.xlu0 %4169
  %v4171 = vsel %vm973, %v4138, 0.0
  %4172 = vadd.xlane.f32.xlu0 %v4171
  %v4173 = vpop.xlane.xlu0 %4172
  %v4174 = vsel %vm973, %v4140, 0.0
  %4175 = vadd.xlane.f32.xlu0 %v4174
  %v4176 = vpop.xlane.xlu0 %4175
  %v4177 = vsel %vm973, %v4142, 0.0
  %4178 = vadd.xlane.f32.xlu0 %v4177
  %v4179 = vpop.xlane.xlu0 %4178
  %v4180 = vsel %vm973, %v4144, 0.0
  %4181 = vadd.xlane.f32.xlu0 %v4180
  %v4182 = vpop.xlane.xlu0 %4181
  %v4183 = vsel %vm973, %v4146, 0.0
  %4184 = vadd.xlane.f32.xlu0 %v4183
  %v4185 = vpop.xlane.xlu0 %4184
  %v4186 = vsel %vm973, %v4148, 0.0
  %4187 = vadd.xlane.f32.xlu0 %v4186
  %v4188 = vpop.xlane.xlu0 %4187
  %v4189 = vsel %vm973, %v4150, 0.0
  %4190 = vadd.xlane.f32.xlu0 %v4189
  %v4191 = vpop.xlane.xlu0 %4190
  %v4192 = vsel %vm973, %v4152, 0.0
  %4193 = vadd.xlane.f32.xlu0 %v4192
  %v4194 = vpop.xlane.xlu0 %4193
  %v4195 = vrcp.pop %v4155
  %v4196 = vrcp.pop %v4158
  %v4197 = vrcp.pop %v4161
  %v4198 = vrcp.pop %v4164
  %v4199 = vrcp.pop %v4167
  %v4200 = vrcp.pop %v4170
  %v4201 = vrcp.pop %v4173
  %v4202 = vrcp.pop %v4176
  %v4203 = vrcp.pop %v4179
  %v4204 = vrcp.pop %v4182
  %v4205 = vrcp.pop %v4185
  %v4206 = vrcp.pop %v4188
  %v4207 = vrcp.pop %v4191
  %v4208 = vrcp.pop %v4194
  %v4209 = vmul.f32 %v4126, %v4195
  %v4210 = vmul.f32 %v4128, %v4196
  %v4211 = vmul.f32 %v4130, %v4197
  %v4212 = vmul.f32 %v4132, %v4198
  %v4213 = vmul.f32 %v4134, %v4199
  %v4214 = vmul.f32 %v4136, %v4200
  %v4215 = vmul.f32 %v4138, %v4201
  %v4216 = vmul.f32 %v4140, %v4202
  %v4217 = vmul.f32 %v4142, %v4203
  %v4218 = vmul.f32 %v4144, %v4204
  %v4219 = vmul.f32 %v4146, %v4205
  %v4220 = vmul.f32 %v4148, %v4206
  %v4221 = vmul.f32 %v4150, %v4207
  %v4222 = vmul.f32 %v4152, %v4208
  %v4223 = vpack.c.bf16 %v4210, %v4209
  %v4224 = vpack.c.bf16 %v4212, %v4211
  %v4225 = vpack.c.bf16 %v4214, %v4213
  %v4226 = vpack.c.bf16 %v4216, %v4215
  %v4227 = vpack.c.bf16 %v4218, %v4217
  %v4228 = vpack.c.bf16 %v4220, %v4219
  %v4229 = vpack.c.bf16 %v4222, %v4221
  %4230 = vrot.lane.b32.xlu0 %v3910, 64
  %v4231 = vpop.permute.xlu0 %4230
  %4232 = vrot.lane.b32.xlu0 %v3911, 64
  %v4233 = vpop.permute.xlu0 %4232
  %4234 = vrot.lane.b32.xlu0 %v3912, 64
  %v4235 = vpop.permute.xlu0 %4234
  %4236 = vrot.lane.b32.xlu0 %v3913, 64
  %v4237 = vpop.permute.xlu0 %4236
  %4238 = vrot.lane.b32.xlu0 %v3914, 64
  %v4239 = vpop.permute.xlu0 %4238
  %4240 = vrot.lane.b32.xlu0 %v3915, 64
  %v4241 = vpop.permute.xlu0 %4240
  %4242 = vrot.lane.b32.xlu0 %v3916, 64
  %v4243 = vpop.permute.xlu0 %4242
  %v4252 = vsel %vm973, %v4223, 0
  %v4255 = vsel %vm973, %v4224, 0
  %v4258 = vsel %vm973, %v4225, 0
  %v4261 = vsel %vm973, %v4226, 0
  %v4264 = vsel %vm973, %v4227, 0
  %v4267 = vsel %vm973, %v4228, 0
  %v4270 = vsel %vm973, %v4229, 0
  %4272 = vmatprep.subr.bf16.mxu0 0
  %4273 = vmatpush1.bf16.msra.mxu0 %v4231
  %4274 = vmatprep.subr.bf16.mxu0 0
  %4275 = vmatpush1.bf16.msra.mxu0 %v4233
  %4276 = vmatprep.subr.bf16.mxu0 0
  %4277 = vmatpush1.bf16.msra.mxu0 %v4235
  %4278 = vmatprep.subr.bf16.mxu0 0
  %4279 = vmatpush1.bf16.msra.mxu0 %v4237
  %4280 = vmatprep.subr.bf16.mxu0 0
  %4281 = vmatpush1.bf16.msra.mxu0 %v4239
  %4282 = vmatprep.subr.bf16.mxu0 0
  %4283 = vmatpush1.bf16.msra.mxu0 %v4241
  %4284 = vmatprep.subr.bf16.mxu0 0
  %4285 = vmatpush1.bf16.msra.mxu0 %v4243
  %4286 = vmatprep.subr.bf16.mxu0 0
  %4287 = vmatpush1.bf16.msra.mxu0 0
  %4288 = vmatprep.subr.bf16.mxu0 0
  %4289 = vmatpush1.bf16.msra.mxu0 0
  %4290 = vmatprep.subr.bf16.mxu0 0
  %4291 = vmatpush1.bf16.msra.mxu0 0
  %4292 = vmatprep.subr.bf16.mxu0 0
  %4293 = vmatpush1.bf16.msra.mxu0 0
  %4294 = vmatprep.subr.bf16.mxu0 0
  %4295 = vmatpush1.bf16.msra.mxu0 0
  %4296 = vmatprep.subr.bf16.mxu0 0
  %4297 = vmatpush1.bf16.msra.mxu0 0
  %4298 = vmatprep.subr.bf16.mxu0 0
  %4299 = vmatpush1.bf16.msra.mxu0 0
  %4300 = vmatprep.subr.bf16.mxu0 0
  %4301 = vmatpush1.bf16.msra.mxu0 0
  %4302 = vmatprep.subr.bf16.mxu0 0
  %4303 = vmatpush1.bf16.msra.mxu0 0
  %4304 = vmatprep.mubr.bf16.mxu0 0
  %4305 = vmatmul.mubr.bf16.gmra.mrb[0].mxu0 %v4252
  %v4306 = vpop.f32.mrb[0].mxu0
  %v4307 = vadd.f32 0.0, %v4306
  %v4308 = vpop.f32.mrb[0].mxu0
  %v4309 = vpop.f32.mrb[0].mxu0
  %v4310 = vadd.f32 0.0, %v4309
  %v4311 = vpop.f32.mrb[0].mxu0
  %4312 = vmatprep.mubr.bf16.mxu0 0
  %4313 = vmatmul.mubr.bf16.gmra.mrb[0].mxu0 %v4255
  %v4314 = vpop.f32.mrb[0].mxu0
  %v4315 = vadd.f32 0.0, %v4314
  %v4316 = vpop.f32.mrb[0].mxu0
  %v4317 = vpop.f32.mrb[0].mxu0
  %v4318 = vadd.f32 0.0, %v4317
  %v4319 = vpop.f32.mrb[0].mxu0
  %4320 = vmatprep.mubr.bf16.mxu0 0
  %4321 = vmatmul.mubr.bf16.gmra.mrb[0].mxu0 %v4258
  %v4322 = vpop.f32.mrb[0].mxu0
  %v4323 = vadd.f32 0.0, %v4322
  %v4324 = vpop.f32.mrb[0].mxu0
  %v4325 = vpop.f32.mrb[0].mxu0
  %v4326 = vadd.f32 0.0, %v4325
  %v4327 = vpop.f32.mrb[0].mxu0
  %4328 = vmatprep.mubr.bf16.mxu0 0
  %4329 = vmatmul.mubr.bf16.gmra.mrb[0].mxu0 %v4261
  %v4330 = vpop.f32.mrb[0].mxu0
  %v4331 = vadd.f32 0.0, %v4330
  %v4332 = vpop.f32.mrb[0].mxu0
  %v4333 = vpop.f32.mrb[0].mxu0
  %v4334 = vadd.f32 0.0, %v4333
  %v4335 = vpop.f32.mrb[0].mxu0
  %4336 = vmatprep.mubr.bf16.mxu0 0
  %4337 = vmatmul.mubr.bf16.gmra.mrb[0].mxu0 %v4264
  %v4338 = vpop.f32.mrb[0].mxu0
  %v4339 = vadd.f32 0.0, %v4338
  %v4340 = vpop.f32.mrb[0].mxu0
  %v4341 = vpop.f32.mrb[0].mxu0
  %v4342 = vadd.f32 0.0, %v4341
  %v4343 = vpop.f32.mrb[0].mxu0
  %4344 = vmatprep.mubr.bf16.mxu0 0
  %4345 = vmatmul.mubr.bf16.gmra.mrb[0].mxu0 %v4267
  %v4346 = vpop.f32.mrb[0].mxu0
  %v4347 = vadd.f32 0.0, %v4346
  %v4348 = vpop.f32.mrb[0].mxu0
  %v4349 = vpop.f32.mrb[0].mxu0
  %v4350 = vadd.f32 0.0, %v4349
  %v4351 = vpop.f32.mrb[0].mxu0
  %4352 = vmatprep.mubr.bf16.mxu0 0
  %4353 = vmatmul.mubr.bf16.gmra.mrb[0].mxu0 %v4270
  %v4354 = vpop.f32.mrb[0].mxu0
  %v4355 = vadd.f32 0.0, %v4354
  %v4356 = vpop.f32.mrb[0].mxu0
  %v4357 = vpop.f32.mrb[0].mxu0
  %v4358 = vadd.f32 0.0, %v4357
  %v4359 = vpop.f32.mrb[0].mxu0
  %4360 = vdwg.mxu0
  %4368 = vrot.lane.b32.xlu0 %v3903, 120
  %v4369 = vpop.permute.xlu0 %4368
  %4370 = vrot.lane.b32.xlu0 %v3904, 120
  %v4371 = vpop.permute.xlu0 %4370
  %4372 = vrot.lane.b32.xlu0 %v3905, 120
  %v4373 = vpop.permute.xlu0 %4372
  %4374 = vrot.lane.b32.xlu0 %v3906, 120
  %v4375 = vpop.permute.xlu0 %4374
  %4376 = vrot.lane.b32.xlu0 %v3907, 120
  %v4377 = vpop.permute.xlu0 %4376
  %4378 = vrot.lane.b32.xlu0 %v3908, 120
  %v4379 = vpop.permute.xlu0 %4378
  %4380 = vrot.lane.b32.xlu0 %v3909, 120
  %v4381 = vpop.permute.xlu0 %4380
  %4382 = vrot.lane.b32.xlu0 %v3910, 88
  %v4383 = vpop.permute.xlu0 %4382
  %4384 = vrot.lane.b32.xlu0 %v3911, 88
  %v4385 = vpop.permute.xlu0 %4384
  %4386 = vrot.lane.b32.xlu0 %v3912, 88
  %v4387 = vpop.permute.xlu0 %4386
  %4388 = vrot.lane.b32.xlu0 %v3913, 88
  %v4389 = vpop.permute.xlu0 %4388
  %4390 = vrot.lane.b32.xlu0 %v3914, 88
  %v4391 = vpop.permute.xlu0 %4390
  %4392 = vrot.lane.b32.xlu0 %v3915, 88
  %v4393 = vpop.permute.xlu0 %4392
  %4394 = vrot.lane.b32.xlu0 %v3916, 88
  %v4395 = vpop.permute.xlu0 %4394
  %v4397 = vsel %vm841, %v4369, 0
  %v4400 = vsel %vm841, %v4371, 0
  %v4403 = vsel %vm841, %v4373, 0
  %v4406 = vsel %vm841, %v4375, 0
  %v4409 = vsel %vm841, %v4377, 0
  %v4412 = vsel %vm841, %v4379, 0
  %v4415 = vsel %vm841, %v4381, 0
  %v4418 = vsel %vm841, %v4383, 0
  %v4421 = vsel %vm841, %v4385, 0
  %v4424 = vsel %vm841, %v4387, 0
  %v4427 = vsel %vm841, %v4389, 0
  %v4430 = vsel %vm841, %v4391, 0
  %v4433 = vsel %vm841, %v4393, 0
  %v4436 = vsel %vm841, %v4395, 0
  %4438 = vmatprep.subr.bf16.mxu0 0
  %4439 = vmatpush1.bf16.xpose.msra.mxu0 %v4418
  %4440 = vmatprep.subr.bf16.mxu0 0
  %4441 = vmatpush1.bf16.xpose.msra.mxu0 %v4421
  %4442 = vmatprep.subr.bf16.mxu0 0
  %4443 = vmatpush1.bf16.xpose.msra.mxu0 %v4424
  %4444 = vmatprep.subr.bf16.mxu0 0
  %4445 = vmatpush1.bf16.xpose.msra.mxu0 %v4427
  %4446 = vmatprep.subr.bf16.mxu0 0
  %4447 = vmatpush1.bf16.xpose.msra.mxu0 %v4430
  %4448 = vmatprep.subr.bf16.mxu0 0
  %4449 = vmatpush1.bf16.xpose.msra.mxu0 %v4433
  %4450 = vmatprep.subr.bf16.mxu0 0
  %4451 = vmatpush1.bf16.xpose.msra.mxu0 %v4436
  %4452 = vmatprep.subr.bf16.mxu0 0
  %4453 = vmatpush1.bf16.xpose.msra.mxu0 0
  %4454 = vmatprep.subr.bf16.mxu0 0
  %4455 = vmatpush1.bf16.xpose.msra.mxu0 0
  %4456 = vmatprep.subr.bf16.mxu0 0
  %4457 = vmatpush1.bf16.xpose.msra.mxu0 0
  %4458 = vmatprep.subr.bf16.mxu0 0
  %4459 = vmatpush1.bf16.xpose.msra.mxu0 0
  %4460 = vmatprep.subr.bf16.mxu0 0
  %4461 = vmatpush1.bf16.xpose.msra.mxu0 0
  %4462 = vmatprep.subr.bf16.mxu0 0
  %4463 = vmatpush1.bf16.xpose.msra.mxu0 0
  %4464 = vmatprep.subr.bf16.mxu0 0
  %4465 = vmatpush1.bf16.xpose.msra.mxu0 0
  %4466 = vmatprep.subr.bf16.mxu0 0
  %4467 = vmatpush1.bf16.xpose.msra.mxu0 0
  %4468 = vmatprep.subr.bf16.mxu0 0
  %4469 = vmatpush1.bf16.xpose.msra.mxu0 0
  %4470 = vmatprep.mubr.bf16.mxu0 0
  %4471 = vmatmul.mubr.bf16.gmra.mrb[0].mxu0 %v4397
  %v4472 = vpop.f32.mrb[0].mxu0
  %v4473 = vadd.f32 %v75, %v4472
  %v4474 = vpop.f32.mrb[0].mxu0
  %v4475 = vpop.f32.mrb[0].mxu0
  %v4476 = vadd.f32 %v76, %v4475
  %v4477 = vpop.f32.mrb[0].mxu0
  %4478 = vmatprep.mubr.bf16.mxu0 0
  %4479 = vmatmul.mubr.bf16.gmra.mrb[0].mxu0 %v4400
  %v4480 = vpop.f32.mrb[0].mxu0
  %v4481 = vadd.f32 %v77, %v4480
  %v4482 = vpop.f32.mrb[0].mxu0
  %v4483 = vpop.f32.mrb[0].mxu0
  %v4484 = vadd.f32 %v78, %v4483
  %v4485 = vpop.f32.mrb[0].mxu0
  %4486 = vmatprep.mubr.bf16.mxu0 0
  %4487 = vmatmul.mubr.bf16.gmra.mrb[0].mxu0 %v4403
  %v4488 = vpop.f32.mrb[0].mxu0
  %v4489 = vadd.f32 %v79, %v4488
  %v4490 = vpop.f32.mrb[0].mxu0
  %v4491 = vpop.f32.mrb[0].mxu0
  %v4492 = vadd.f32 %v80, %v4491
  %v4493 = vpop.f32.mrb[0].mxu0
  %4494 = vmatprep.mubr.bf16.mxu0 0
  %4495 = vmatmul.mubr.bf16.gmra.mrb[0].mxu0 %v4406
  %v4496 = vpop.f32.mrb[0].mxu0
  %v4497 = vadd.f32 %v81, %v4496
  %v4498 = vpop.f32.mrb[0].mxu0
  %v4499 = vpop.f32.mrb[0].mxu0
  %v4500 = vadd.f32 %v82, %v4499
  %v4501 = vpop.f32.mrb[0].mxu0
  %4502 = vmatprep.mubr.bf16.mxu0 0
  %4503 = vmatmul.mubr.bf16.gmra.mrb[0].mxu0 %v4409
  %v4504 = vpop.f32.mrb[0].mxu0
  %v4505 = vadd.f32 %v83, %v4504
  %v4506 = vpop.f32.mrb[0].mxu0
  %v4507 = vpop.f32.mrb[0].mxu0
  %v4508 = vadd.f32 %v84, %v4507
  %v4509 = vpop.f32.mrb[0].mxu0
  %4510 = vmatprep.mubr.bf16.mxu0 0
  %4511 = vmatmul.mubr.bf16.gmra.mrb[0].mxu0 %v4412
  %v4512 = vpop.f32.mrb[0].mxu0
  %v4513 = vadd.f32 %v85, %v4512
  %v4514 = vpop.f32.mrb[0].mxu0
  %v4515 = vpop.f32.mrb[0].mxu0
  %v4516 = vadd.f32 %v86, %v4515
  %v4517 = vpop.f32.mrb[0].mxu0
  %4518 = vmatprep.mubr.bf16.mxu0 0
  %4519 = vmatmul.mubr.bf16.gmra.mrb[0].mxu0 %v4415
  %v4520 = vpop.f32.mrb[0].mxu0
  %v4521 = vadd.f32 %v87, %v4520
  %v4522 = vpop.f32.mrb[0].mxu0
  %v4523 = vpop.f32.mrb[0].mxu0
  %v4524 = vadd.f32 %v88, %v4523
  %v4525 = vpop.f32.mrb[0].mxu0
  %4526 = vdwg.mxu0
  %v4527 = vsel %vm973, %v4473, -inf
  %4528 = vmax.xlane.f32.xlu0 %v4527
  %v4529 = vpop.xlane.xlu0 %4528
  %v4530 = vsel %vm973, %v4476, -inf
  %4531 = vmax.xlane.f32.xlu0 %v4530
  %v4532 = vpop.xlane.xlu0 %4531
  %v4533 = vsel %vm973, %v4481, -inf
  %4534 = vmax.xlane.f32.xlu0 %v4533
  %v4535 = vpop.xlane.xlu0 %4534
  %v4536 = vsel %vm973, %v4484, -inf
  %4537 = vmax.xlane.f32.xlu0 %v4536
  %v4538 = vpop.xlane.xlu0 %4537
  %v4539 = vsel %vm973, %v4489, -inf
  %4540 = vmax.xlane.f32.xlu0 %v4539
  %v4541 = vpop.xlane.xlu0 %4540
  %v4542 = vsel %vm973, %v4492, -inf
  %4543 = vmax.xlane.f32.xlu0 %v4542
  %v4544 = vpop.xlane.xlu0 %4543
  %v4545 = vsel %vm973, %v4497, -inf
  %4546 = vmax.xlane.f32.xlu0 %v4545
  %v4547 = vpop.xlane.xlu0 %4546
  %v4548 = vsel %vm973, %v4500, -inf
  %4549 = vmax.xlane.f32.xlu0 %v4548
  %v4550 = vpop.xlane.xlu0 %4549
  %v4551 = vsel %vm973, %v4505, -inf
  %4552 = vmax.xlane.f32.xlu0 %v4551
  %v4553 = vpop.xlane.xlu0 %4552
  %v4554 = vsel %vm973, %v4508, -inf
  %4555 = vmax.xlane.f32.xlu0 %v4554
  %v4556 = vpop.xlane.xlu0 %4555
  %v4557 = vsel %vm973, %v4513, -inf
  %4558 = vmax.xlane.f32.xlu0 %v4557
  %v4559 = vpop.xlane.xlu0 %4558
  %v4560 = vsel %vm973, %v4516, -inf
  %4561 = vmax.xlane.f32.xlu0 %v4560
  %v4562 = vpop.xlane.xlu0 %4561
  %v4563 = vsel %vm973, %v4521, -inf
  %4564 = vmax.xlane.f32.xlu0 %v4563
  %v4565 = vpop.xlane.xlu0 %4564
  %v4566 = vsel %vm973, %v4524, -inf
  %4567 = vmax.xlane.f32.xlu0 %v4566
  %v4568 = vpop.xlane.xlu0 %4567
  %v4569 = vsub.f32 %v4473, %v4529
  %v4570 = vsub.f32 %v4476, %v4532
  %v4571 = vsub.f32 %v4481, %v4535
  %v4572 = vsub.f32 %v4484, %v4538
  %v4573 = vsub.f32 %v4489, %v4541
  %v4574 = vsub.f32 %v4492, %v4544
  %v4575 = vsub.f32 %v4497, %v4547
  %v4576 = vsub.f32 %v4500, %v4550
  %v4577 = vsub.f32 %v4505, %v4553
  %v4578 = vsub.f32 %v4508, %v4556
  %v4579 = vsub.f32 %v4513, %v4559
  %v4580 = vsub.f32 %v4516, %v4562
  %v4581 = vsub.f32 %v4521, %v4565
  %v4582 = vsub.f32 %v4524, %v4568
  %v4583 = vmul.f32 %v4569, 1.442695
  %v4584 = vpow.pop %v4583
  %v4585 = vmul.f32 %v4570, 1.442695
  %v4586 = vpow.pop %v4585
  %v4587 = vmul.f32 %v4571, 1.442695
  %v4588 = vpow.pop %v4587
  %v4589 = vmul.f32 %v4572, 1.442695
  %v4590 = vpow.pop %v4589
  %v4591 = vmul.f32 %v4573, 1.442695
  %v4592 = vpow.pop %v4591
  %v4593 = vmul.f32 %v4574, 1.442695
  %v4594 = vpow.pop %v4593
  %v4595 = vmul.f32 %v4575, 1.442695
  %v4596 = vpow.pop %v4595
  %v4597 = vmul.f32 %v4576, 1.442695
  %v4598 = vpow.pop %v4597
  %v4599 = vmul.f32 %v4577, 1.442695
  %v4600 = vpow.pop %v4599
  %v4601 = vmul.f32 %v4578, 1.442695
  %v4602 = vpow.pop %v4601
  %v4603 = vmul.f32 %v4579, 1.442695
  %v4604 = vpow.pop %v4603
  %v4605 = vmul.f32 %v4580, 1.442695
  %v4606 = vpow.pop %v4605
  %v4607 = vmul.f32 %v4581, 1.442695
  %v4608 = vpow.pop %v4607
  %v4609 = vmul.f32 %v4582, 1.442695
  %v4610 = vpow.pop %v4609
  %v4611 = vsel %vm973, %v4584, 0.0
  %4612 = vadd.xlane.f32.xlu0 %v4611
  %v4613 = vpop.xlane.xlu0 %4612
  %v4614 = vsel %vm973, %v4586, 0.0
  %4615 = vadd.xlane.f32.xlu0 %v4614
  %v4616 = vpop.xlane.xlu0 %4615
  %v4617 = vsel %vm973, %v4588, 0.0
  %4618 = vadd.xlane.f32.xlu0 %v4617
  %v4619 = vpop.xlane.xlu0 %4618
  %v4620 = vsel %vm973, %v4590, 0.0
  %4621 = vadd.xlane.f32.xlu0 %v4620
  %v4622 = vpop.xlane.xlu0 %4621
  %v4623 = vsel %vm973, %v4592, 0.0
  %4624 = vadd.xlane.f32.xlu0 %v4623
  %v4625 = vpop.xlane.xlu0 %4624
  %v4626 = vsel %vm973, %v4594, 0.0
  %4627 = vadd.xlane.f32.xlu0 %v4626
  %v4628 = vpop.xlane.xlu0 %4627
  %v4629 = vsel %vm973, %v4596, 0.0
  %4630 = vadd.xlane.f32.xlu0 %v4629
  %v4631 = vpop.xlane.xlu0 %4630
  %v4632 = vsel %vm973, %v4598, 0.0
  %4633 = vadd.xlane.f32.xlu0 %v4632
  %v4634 = vpop.xlane.xlu0 %4633
  %v4635 = vsel %vm973, %v4600, 0.0
  %4636 = vadd.xlane.f32.xlu0 %v4635
  %v4637 = vpop.xlane.xlu0 %4636
  %v4638 = vsel %vm973, %v4602, 0.0
  %4639 = vadd.xlane.f32.xlu0 %v4638
  %v4640 = vpop.xlane.xlu0 %4639
  %v4641 = vsel %vm973, %v4604, 0.0
  %4642 = vadd.xlane.f32.xlu0 %v4641
  %v4643 = vpop.xlane.xlu0 %4642
  %v4644 = vsel %vm973, %v4606, 0.0
  %4645 = vadd.xlane.f32.xlu0 %v4644
  %v4646 = vpop.xlane.xlu0 %4645
  %v4647 = vsel %vm973, %v4608, 0.0
  %4648 = vadd.xlane.f32.xlu0 %v4647
  %v4649 = vpop.xlane.xlu0 %4648
  %v4650 = vsel %vm973, %v4610, 0.0
  %4651 = vadd.xlane.f32.xlu0 %v4650
  %v4652 = vpop.xlane.xlu0 %4651
  %v4653 = vrcp.pop %v4613
  %v4654 = vrcp.pop %v4616
  %v4655 = vrcp.pop %v4619
  %v4656 = vrcp.pop %v4622
  %v4657 = vrcp.pop %v4625
  %v4658 = vrcp.pop %v4628
  %v4659 = vrcp.pop %v4631
  %v4660 = vrcp.pop %v4634
  %v4661 = vrcp.pop %v4637
  %v4662 = vrcp.pop %v4640
  %v4663 = vrcp.pop %v4643
  %v4664 = vrcp.pop %v4646
  %v4665 = vrcp.pop %v4649
  %v4666 = vrcp.pop %v4652
  %v4667 = vmul.f32 %v4584, %v4653
  %v4668 = vmul.f32 %v4586, %v4654
  %v4669 = vmul.f32 %v4588, %v4655
  %v4670 = vmul.f32 %v4590, %v4656
  %v4671 = vmul.f32 %v4592, %v4657
  %v4672 = vmul.f32 %v4594, %v4658
  %v4673 = vmul.f32 %v4596, %v4659
  %v4674 = vmul.f32 %v4598, %v4660
  %v4675 = vmul.f32 %v4600, %v4661
  %v4676 = vmul.f32 %v4602, %v4662
  %v4677 = vmul.f32 %v4604, %v4663
  %v4678 = vmul.f32 %v4606, %v4664
  %v4679 = vmul.f32 %v4608, %v4665
  %v4680 = vmul.f32 %v4610, %v4666
  %v4681 = vpack.c.bf16 %v4668, %v4667
  %v4682 = vpack.c.bf16 %v4670, %v4669
  %v4683 = vpack.c.bf16 %v4672, %v4671
  %v4684 = vpack.c.bf16 %v4674, %v4673
  %v4685 = vpack.c.bf16 %v4676, %v4675
  %v4686 = vpack.c.bf16 %v4678, %v4677
  %v4687 = vpack.c.bf16 %v4680, %v4679
  %4688 = vrot.lane.b32.xlu0 %v3910, 56
  %v4689 = vpop.permute.xlu0 %4688
  %4690 = vrot.lane.b32.xlu0 %v3911, 56
  %v4691 = vpop.permute.xlu0 %4690
  %4692 = vrot.lane.b32.xlu0 %v3912, 56
  %v4693 = vpop.permute.xlu0 %4692
  %4694 = vrot.lane.b32.xlu0 %v3913, 56
  %v4695 = vpop.permute.xlu0 %4694
  %4696 = vrot.lane.b32.xlu0 %v3914, 56
  %v4697 = vpop.permute.xlu0 %4696
  %4698 = vrot.lane.b32.xlu0 %v3915, 56
  %v4699 = vpop.permute.xlu0 %4698
  %4700 = vrot.lane.b32.xlu0 %v3916, 56
  %v4701 = vpop.permute.xlu0 %4700
  %v4710 = vsel %vm973, %v4681, 0
  %v4713 = vsel %vm973, %v4682, 0
  %v4716 = vsel %vm973, %v4683, 0
  %v4719 = vsel %vm973, %v4684, 0
  %v4722 = vsel %vm973, %v4685, 0
  %v4725 = vsel %vm973, %v4686, 0
  %v4728 = vsel %vm973, %v4687, 0
  %4730 = vmatprep.subr.bf16.mxu0 0
  %4731 = vmatpush1.bf16.msra.mxu0 %v4689
  %4732 = vmatprep.subr.bf16.mxu0 0
  %4733 = vmatpush1.bf16.msra.mxu0 %v4691
  %4734 = vmatprep.subr.bf16.mxu0 0
  %4735 = vmatpush1.bf16.msra.mxu0 %v4693
  %4736 = vmatprep.subr.bf16.mxu0 0
  %4737 = vmatpush1.bf16.msra.mxu0 %v4695
  %4738 = vmatprep.subr.bf16.mxu0 0
  %4739 = vmatpush1.bf16.msra.mxu0 %v4697
  %4740 = vmatprep.subr.bf16.mxu0 0
  %4741 = vmatpush1.bf16.msra.mxu0 %v4699
  %4742 = vmatprep.subr.bf16.mxu0 0
  %4743 = vmatpush1.bf16.msra.mxu0 %v4701
  %4744 = vmatprep.subr.bf16.mxu0 0
  %4745 = vmatpush1.bf16.msra.mxu0 0
  %4746 = vmatprep.subr.bf16.mxu0 0
  %4747 = vmatpush1.bf16.msra.mxu0 0
  %4748 = vmatprep.subr.bf16.mxu0 0
  %4749 = vmatpush1.bf16.msra.mxu0 0
  %4750 = vmatprep.subr.bf16.mxu0 0
  %4751 = vmatpush1.bf16.msra.mxu0 0
  %4752 = vmatprep.subr.bf16.mxu0 0
  %4753 = vmatpush1.bf16.msra.mxu0 0
  %4754 = vmatprep.subr.bf16.mxu0 0
  %4755 = vmatpush1.bf16.msra.mxu0 0
  %4756 = vmatprep.subr.bf16.mxu0 0
  %4757 = vmatpush1.bf16.msra.mxu0 0
  %4758 = vmatprep.subr.bf16.mxu0 0
  %4759 = vmatpush1.bf16.msra.mxu0 0
  %4760 = vmatprep.subr.bf16.mxu0 0
  %4761 = vmatpush1.bf16.msra.mxu0 0
  %4762 = vmatprep.mubr.bf16.mxu0 0
  %4763 = vmatmul.mubr.bf16.gmra.mrb[0].mxu0 %v4710
  %v4764 = vpop.f32.mrb[0].mxu0
  %v4765 = vadd.f32 0.0, %v4764
  %v4766 = vpop.f32.mrb[0].mxu0
  %v4767 = vpop.f32.mrb[0].mxu0
  %v4768 = vadd.f32 0.0, %v4767
  %v4769 = vpop.f32.mrb[0].mxu0
  %4770 = vmatprep.mubr.bf16.mxu0 0
  %4771 = vmatmul.mubr.bf16.gmra.mrb[0].mxu0 %v4713
  %v4772 = vpop.f32.mrb[0].mxu0
  %v4773 = vadd.f32 0.0, %v4772
  %v4774 = vpop.f32.mrb[0].mxu0
  %v4775 = vpop.f32.mrb[0].mxu0
  %v4776 = vadd.f32 0.0, %v4775
  %v4777 = vpop.f32.mrb[0].mxu0
  %4778 = vmatprep.mubr.bf16.mxu0 0
  %4779 = vmatmul.mubr.bf16.gmra.mrb[0].mxu0 %v4716
  %v4780 = vpop.f32.mrb[0].mxu0
  %v4781 = vadd.f32 0.0, %v4780
  %v4782 = vpop.f32.mrb[0].mxu0
  %v4783 = vpop.f32.mrb[0].mxu0
  %v4784 = vadd.f32 0.0, %v4783
  %v4785 = vpop.f32.mrb[0].mxu0
  %4786 = vmatprep.mubr.bf16.mxu0 0
  %4787 = vmatmul.mubr.bf16.gmra.mrb[0].mxu0 %v4719
  %v4788 = vpop.f32.mrb[0].mxu0
  %v4789 = vadd.f32 0.0, %v4788
  %v4790 = vpop.f32.mrb[0].mxu0
  %v4791 = vpop.f32.mrb[0].mxu0
  %v4792 = vadd.f32 0.0, %v4791
  %v4793 = vpop.f32.mrb[0].mxu0
  %4794 = vmatprep.mubr.bf16.mxu0 0
  %4795 = vmatmul.mubr.bf16.gmra.mrb[0].mxu0 %v4722
  %v4796 = vpop.f32.mrb[0].mxu0
  %v4797 = vadd.f32 0.0, %v4796
  %v4798 = vpop.f32.mrb[0].mxu0
  %v4799 = vpop.f32.mrb[0].mxu0
  %v4800 = vadd.f32 0.0, %v4799
  %v4801 = vpop.f32.mrb[0].mxu0
  %4802 = vmatprep.mubr.bf16.mxu0 0
  %4803 = vmatmul.mubr.bf16.gmra.mrb[0].mxu0 %v4725
  %v4804 = vpop.f32.mrb[0].mxu0
  %v4805 = vadd.f32 0.0, %v4804
  %v4806 = vpop.f32.mrb[0].mxu0
  %v4807 = vpop.f32.mrb[0].mxu0
  %v4808 = vadd.f32 0.0, %v4807
  %v4809 = vpop.f32.mrb[0].mxu0
  %4810 = vmatprep.mubr.bf16.mxu0 0
  %4811 = vmatmul.mubr.bf16.gmra.mrb[0].mxu0 %v4728
  %v4812 = vpop.f32.mrb[0].mxu0
  %v4813 = vadd.f32 0.0, %v4812
  %v4814 = vpop.f32.mrb[0].mxu0
  %v4815 = vpop.f32.mrb[0].mxu0
  %v4816 = vadd.f32 0.0, %v4815
  %v4817 = vpop.f32.mrb[0].mxu0
  %4818 = vdwg.mxu0
  %4819 = vrot.lane.b32.xlu0 %v3903, 112
  %v4820 = vpop.permute.xlu0 %4819
  %4821 = vrot.lane.b32.xlu0 %v3904, 112
  %v4822 = vpop.permute.xlu0 %4821
  %4823 = vrot.lane.b32.xlu0 %v3905, 112
  %v4824 = vpop.permute.xlu0 %4823
  %4825 = vrot.lane.b32.xlu0 %v3906, 112
  %v4826 = vpop.permute.xlu0 %4825
  %4827 = vrot.lane.b32.xlu0 %v3907, 112
  %v4828 = vpop.permute.xlu0 %4827
  %4829 = vrot.lane.b32.xlu0 %v3908, 112
  %v4830 = vpop.permute.xlu0 %4829
  %4831 = vrot.lane.b32.xlu0 %v3909, 112
  %v4832 = vpop.permute.xlu0 %4831
  %4833 = vrot.lane.b32.xlu0 %v3910, 80
  %v4834 = vpop.permute.xlu0 %4833
  %4835 = vrot.lane.b32.xlu0 %v3911, 80
  %v4836 = vpop.permute.xlu0 %4835
  %4837 = vrot.lane.b32.xlu0 %v3912, 80
  %v4838 = vpop.permute.xlu0 %4837
  %4839 = vrot.lane.b32.xlu0 %v3913, 80
  %v4840 = vpop.permute.xlu0 %4839
  %4841 = vrot.lane.b32.xlu0 %v3914, 80
  %v4842 = vpop.permute.xlu0 %4841
  %4843 = vrot.lane.b32.xlu0 %v3915, 80
  %v4844 = vpop.permute.xlu0 %4843
  %4845 = vrot.lane.b32.xlu0 %v3916, 80
  %v4846 = vpop.permute.xlu0 %4845
  %v4848 = vsel %vm841, %v4820, 0
  %v4851 = vsel %vm841, %v4822, 0
  %v4854 = vsel %vm841, %v4824, 0
  %v4857 = vsel %vm841, %v4826, 0
  %v4860 = vsel %vm841, %v4828, 0
  %v4863 = vsel %vm841, %v4830, 0
  %v4866 = vsel %vm841, %v4832, 0
  %v4869 = vsel %vm841, %v4834, 0
  %v4872 = vsel %vm841, %v4836, 0
  %v4875 = vsel %vm841, %v4838, 0
  %v4878 = vsel %vm841, %v4840, 0
  %v4881 = vsel %vm841, %v4842, 0
  %v4884 = vsel %vm841, %v4844, 0
  %v4887 = vsel %vm841, %v4846, 0
  %4889 = vmatprep.subr.bf16.mxu0 0
  %4890 = vmatpush1.bf16.xpose.msra.mxu0 %v4869
  %4891 = vmatprep.subr.bf16.mxu0 0
  %4892 = vmatpush1.bf16.xpose.msra.mxu0 %v4872
  %4893 = vmatprep.subr.bf16.mxu0 0
  %4894 = vmatpush1.bf16.xpose.msra.mxu0 %v4875
  %4895 = vmatprep.subr.bf16.mxu0 0
  %4896 = vmatpush1.bf16.xpose.msra.mxu0 %v4878
  %4897 = vmatprep.subr.bf16.mxu0 0
  %4898 = vmatpush1.bf16.xpose.msra.mxu0 %v4881
  %4899 = vmatprep.subr.bf16.mxu0 0
  %4900 = vmatpush1.bf16.xpose.msra.mxu0 %v4884
  %4901 = vmatprep.subr.bf16.mxu0 0
  %4902 = vmatpush1.bf16.xpose.msra.mxu0 %v4887
  %4903 = vmatprep.subr.bf16.mxu0 0
  %4904 = vmatpush1.bf16.xpose.msra.mxu0 0
  %4905 = vmatprep.subr.bf16.mxu0 0
  %4906 = vmatpush1.bf16.xpose.msra.mxu0 0
  %4907 = vmatprep.subr.bf16.mxu0 0
  %4908 = vmatpush1.bf16.xpose.msra.mxu0 0
  %4909 = vmatprep.subr.bf16.mxu0 0
  %4910 = vmatpush1.bf16.xpose.msra.mxu0 0
  %4911 = vmatprep.subr.bf16.mxu0 0
  %4912 = vmatpush1.bf16.xpose.msra.mxu0 0
  %4913 = vmatprep.subr.bf16.mxu0 0
  %4914 = vmatpush1.bf16.xpose.msra.mxu0 0
  %4915 = vmatprep.subr.bf16.mxu0 0
  %4916 = vmatpush1.bf16.xpose.msra.mxu0 0
  %4917 = vmatprep.subr.bf16.mxu0 0
  %4918 = vmatpush1.bf16.xpose.msra.mxu0 0
  %4919 = vmatprep.subr.bf16.mxu0 0
  %4920 = vmatpush1.bf16.xpose.msra.mxu0 0
  %4921 = vmatprep.mubr.bf16.mxu0 0
  %4922 = vmatmul.mubr.bf16.gmra.mrb[0].mxu0 %v4848
  %v4923 = vpop.f32.mrb[0].mxu0
  %v4924 = vadd.f32 %v75, %v4923
  %v4925 = vpop.f32.mrb[0].mxu0
  %v4926 = vpop.f32.mrb[0].mxu0
  %v4927 = vadd.f32 %v76, %v4926
  %v4928 = vpop.f32.mrb[0].mxu0
  %4929 = vmatprep.mubr.bf16.mxu0 0
  %4930 = vmatmul.mubr.bf16.gmra.mrb[0].mxu0 %v4851
  %v4931 = vpop.f32.mrb[0].mxu0
  %v4932 = vadd.f32 %v77, %v4931
  %v4933 = vpop.f32.mrb[0].mxu0
  %v4934 = vpop.f32.mrb[0].mxu0
  %v4935 = vadd.f32 %v78, %v4934
  %v4936 = vpop.f32.mrb[0].mxu0
  %4937 = vmatprep.mubr.bf16.mxu0 0
  %4938 = vmatmul.mubr.bf16.gmra.mrb[0].mxu0 %v4854
  %v4939 = vpop.f32.mrb[0].mxu0
  %v4940 = vadd.f32 %v79, %v4939
  %v4941 = vpop.f32.mrb[0].mxu0
  %v4942 = vpop.f32.mrb[0].mxu0
  %v4943 = vadd.f32 %v80, %v4942
  %v4944 = vpop.f32.mrb[0].mxu0
  %4945 = vmatprep.mubr.bf16.mxu0 0
  %4946 = vmatmul.mubr.bf16.gmra.mrb[0].mxu0 %v4857
  %v4947 = vpop.f32.mrb[0].mxu0
  %v4948 = vadd.f32 %v81, %v4947
  %v4949 = vpop.f32.mrb[0].mxu0
  %v4950 = vpop.f32.mrb[0].mxu0
  %v4951 = vadd.f32 %v82, %v4950
  %v4952 = vpop.f32.mrb[0].mxu0
  %4953 = vmatprep.mubr.bf16.mxu0 0
  %4954 = vmatmul.mubr.bf16.gmra.mrb[0].mxu0 %v4860
  %v4955 = vpop.f32.mrb[0].mxu0
  %v4956 = vadd.f32 %v83, %v4955
  %v4957 = vpop.f32.mrb[0].mxu0
  %v4958 = vpop.f32.mrb[0].mxu0
  %v4959 = vadd.f32 %v84, %v4958
  %v4960 = vpop.f32.mrb[0].mxu0
  %4961 = vmatprep.mubr.bf16.mxu0 0
  %4962 = vmatmul.mubr.bf16.gmra.mrb[0].mxu0 %v4863
  %v4963 = vpop.f32.mrb[0].mxu0
  %v4964 = vadd.f32 %v85, %v4963
  %v4965 = vpop.f32.mrb[0].mxu0
  %v4966 = vpop.f32.mrb[0].mxu0
  %v4967 = vadd.f32 %v86, %v4966
  %v4968 = vpop.f32.mrb[0].mxu0
  %4969 = vmatprep.mubr.bf16.mxu0 0
  %4970 = vmatmul.mubr.bf16.gmra.mrb[0].mxu0 %v4866
  %v4971 = vpop.f32.mrb[0].mxu0
  %v4972 = vadd.f32 %v87, %v4971
  %v4973 = vpop.f32.mrb[0].mxu0
  %v4974 = vpop.f32.mrb[0].mxu0
  %v4975 = vadd.f32 %v88, %v4974
  %v4976 = vpop.f32.mrb[0].mxu0
  %4977 = vdwg.mxu0
  %v4978 = vsel %vm973, %v4924, -inf
  %4979 = vmax.xlane.f32.xlu0 %v4978
  %v4980 = vpop.xlane.xlu0 %4979
  %v4981 = vsel %vm973, %v4927, -inf
  %4982 = vmax.xlane.f32.xlu0 %v4981
  %v4983 = vpop.xlane.xlu0 %4982
  %v4984 = vsel %vm973, %v4932, -inf
  %4985 = vmax.xlane.f32.xlu0 %v4984
  %v4986 = vpop.xlane.xlu0 %4985
  %v4987 = vsel %vm973, %v4935, -inf
  %4988 = vmax.xlane.f32.xlu0 %v4987
  %v4989 = vpop.xlane.xlu0 %4988
  %v4990 = vsel %vm973, %v4940, -inf
  %4991 = vmax.xlane.f32.xlu0 %v4990
  %v4992 = vpop.xlane.xlu0 %4991
  %v4993 = vsel %vm973, %v4943, -inf
  %4994 = vmax.xlane.f32.xlu0 %v4993
  %v4995 = vpop.xlane.xlu0 %4994
  %v4996 = vsel %vm973, %v4948, -inf
  %4997 = vmax.xlane.f32.xlu0 %v4996
  %v4998 = vpop.xlane.xlu0 %4997
  %v4999 = vsel %vm973, %v4951, -inf
  %5000 = vmax.xlane.f32.xlu0 %v4999
  %v5001 = vpop.xlane.xlu0 %5000
  %v5002 = vsel %vm973, %v4956, -inf
  %5003 = vmax.xlane.f32.xlu0 %v5002
  %v5004 = vpop.xlane.xlu0 %5003
  %v5005 = vsel %vm973, %v4959, -inf
  %5006 = vmax.xlane.f32.xlu0 %v5005
  %v5007 = vpop.xlane.xlu0 %5006
  %v5008 = vsel %vm973, %v4964, -inf
  %5009 = vmax.xlane.f32.xlu0 %v5008
  %v5010 = vpop.xlane.xlu0 %5009
  %v5011 = vsel %vm973, %v4967, -inf
  %5012 = vmax.xlane.f32.xlu0 %v5011
  %v5013 = vpop.xlane.xlu0 %5012
  %v5014 = vsel %vm973, %v4972, -inf
  %5015 = vmax.xlane.f32.xlu0 %v5014
  %v5016 = vpop.xlane.xlu0 %5015
  %v5017 = vsel %vm973, %v4975, -inf
  %5018 = vmax.xlane.f32.xlu0 %v5017
  %v5019 = vpop.xlane.xlu0 %5018
  %v5020 = vsub.f32 %v4924, %v4980
  %v5021 = vsub.f32 %v4927, %v4983
  %v5022 = vsub.f32 %v4932, %v4986
  %v5023 = vsub.f32 %v4935, %v4989
  %v5024 = vsub.f32 %v4940, %v4992
  %v5025 = vsub.f32 %v4943, %v4995
  %v5026 = vsub.f32 %v4948, %v4998
  %v5027 = vsub.f32 %v4951, %v5001
  %v5028 = vsub.f32 %v4956, %v5004
  %v5029 = vsub.f32 %v4959, %v5007
  %v5030 = vsub.f32 %v4964, %v5010
  %v5031 = vsub.f32 %v4967, %v5013
  %v5032 = vsub.f32 %v4972, %v5016
  %v5033 = vsub.f32 %v4975, %v5019
  %v5034 = vmul.f32 %v5020, 1.442695
  %v5035 = vpow.pop %v5034
  %v5036 = vmul.f32 %v5021, 1.442695
  %v5037 = vpow.pop %v5036
  %v5038 = vmul.f32 %v5022, 1.442695
  %v5039 = vpow.pop %v5038
  %v5040 = vmul.f32 %v5023, 1.442695
  %v5041 = vpow.pop %v5040
  %v5042 = vmul.f32 %v5024, 1.442695
  %v5043 = vpow.pop %v5042
  %v5044 = vmul.f32 %v5025, 1.442695
  %v5045 = vpow.pop %v5044
  %v5046 = vmul.f32 %v5026, 1.442695
  %v5047 = vpow.pop %v5046
  %v5048 = vmul.f32 %v5027, 1.442695
  %v5049 = vpow.pop %v5048
  %v5050 = vmul.f32 %v5028, 1.442695
  %v5051 = vpow.pop %v5050
  %v5052 = vmul.f32 %v5029, 1.442695
  %v5053 = vpow.pop %v5052
  %v5054 = vmul.f32 %v5030, 1.442695
  %v5055 = vpow.pop %v5054
  %v5056 = vmul.f32 %v5031, 1.442695
  %v5057 = vpow.pop %v5056
  %v5058 = vmul.f32 %v5032, 1.442695
  %v5059 = vpow.pop %v5058
  %v5060 = vmul.f32 %v5033, 1.442695
  %v5061 = vpow.pop %v5060
  %v5062 = vsel %vm973, %v5035, 0.0
  %5063 = vadd.xlane.f32.xlu0 %v5062
  %v5064 = vpop.xlane.xlu0 %5063
  %v5065 = vsel %vm973, %v5037, 0.0
  %5066 = vadd.xlane.f32.xlu0 %v5065
  %v5067 = vpop.xlane.xlu0 %5066
  %v5068 = vsel %vm973, %v5039, 0.0
  %5069 = vadd.xlane.f32.xlu0 %v5068
  %v5070 = vpop.xlane.xlu0 %5069
  %v5071 = vsel %vm973, %v5041, 0.0
  %5072 = vadd.xlane.f32.xlu0 %v5071
  %v5073 = vpop.xlane.xlu0 %5072
  %v5074 = vsel %vm973, %v5043, 0.0
  %5075 = vadd.xlane.f32.xlu0 %v5074
  %v5076 = vpop.xlane.xlu0 %5075
  %v5077 = vsel %vm973, %v5045, 0.0
  %5078 = vadd.xlane.f32.xlu0 %v5077
  %v5079 = vpop.xlane.xlu0 %5078
  %v5080 = vsel %vm973, %v5047, 0.0
  %5081 = vadd.xlane.f32.xlu0 %v5080
  %v5082 = vpop.xlane.xlu0 %5081
  %v5083 = vsel %vm973, %v5049, 0.0
  %5084 = vadd.xlane.f32.xlu0 %v5083
  %v5085 = vpop.xlane.xlu0 %5084
  %v5086 = vsel %vm973, %v5051, 0.0
  %5087 = vadd.xlane.f32.xlu0 %v5086
  %v5088 = vpop.xlane.xlu0 %5087
  %v5089 = vsel %vm973, %v5053, 0.0
  %5090 = vadd.xlane.f32.xlu0 %v5089
  %v5091 = vpop.xlane.xlu0 %5090
  %v5092 = vsel %vm973, %v5055, 0.0
  %5093 = vadd.xlane.f32.xlu0 %v5092
  %v5094 = vpop.xlane.xlu0 %5093
  %v5095 = vsel %vm973, %v5057, 0.0
  %5096 = vadd.xlane.f32.xlu0 %v5095
  %v5097 = vpop.xlane.xlu0 %5096
  %v5098 = vsel %vm973, %v5059, 0.0
  %5099 = vadd.xlane.f32.xlu0 %v5098
  %v5100 = vpop.xlane.xlu0 %5099
  %v5101 = vsel %vm973, %v5061, 0.0
  %5102 = vadd.xlane.f32.xlu0 %v5101
  %v5103 = vpop.xlane.xlu0 %5102
  %v5104 = vrcp.pop %v5064
  %v5105 = vrcp.pop %v5067
  %v5106 = vrcp.pop %v5070
  %v5107 = vrcp.pop %v5073
  %v5108 = vrcp.pop %v5076
  %v5109 = vrcp.pop %v5079
  %v5110 = vrcp.pop %v5082
  %v5111 = vrcp.pop %v5085
  %v5112 = vrcp.pop %v5088
  %v5113 = vrcp.pop %v5091
  %v5114 = vrcp.pop %v5094
  %v5115 = vrcp.pop %v5097
  %v5116 = vrcp.pop %v5100
  %v5117 = vrcp.pop %v5103
  %v5118 = vmul.f32 %v5035, %v5104
  %v5119 = vmul.f32 %v5037, %v5105
  %v5120 = vmul.f32 %v5039, %v5106
  %v5121 = vmul.f32 %v5041, %v5107
  %v5122 = vmul.f32 %v5043, %v5108
  %v5123 = vmul.f32 %v5045, %v5109
  %v5124 = vmul.f32 %v5047, %v5110
  %v5125 = vmul.f32 %v5049, %v5111
  %v5126 = vmul.f32 %v5051, %v5112
  %v5127 = vmul.f32 %v5053, %v5113
  %v5128 = vmul.f32 %v5055, %v5114
  %v5129 = vmul.f32 %v5057, %v5115
  %v5130 = vmul.f32 %v5059, %v5116
  %v5131 = vmul.f32 %v5061, %v5117
  %v5132 = vpack.c.bf16 %v5119, %v5118
  %v5133 = vpack.c.bf16 %v5121, %v5120
  %v5134 = vpack.c.bf16 %v5123, %v5122
  %v5135 = vpack.c.bf16 %v5125, %v5124
  %v5136 = vpack.c.bf16 %v5127, %v5126
  %v5137 = vpack.c.bf16 %v5129, %v5128
  %v5138 = vpack.c.bf16 %v5131, %v5130
  %5139 = vrot.lane.b32.xlu0 %v3910, 48
  %v5140 = vpop.permute.xlu0 %5139
  %5141 = vrot.lane.b32.xlu0 %v3911, 48
  %v5142 = vpop.permute.xlu0 %5141
  %5143 = vrot.lane.b32.xlu0 %v3912, 48
  %v5144 = vpop.permute.xlu0 %5143
  %5145 = vrot.lane.b32.xlu0 %v3913, 48
  %v5146 = vpop.permute.xlu0 %5145
  %5147 = vrot.lane.b32.xlu0 %v3914, 48
  %v5148 = vpop.permute.xlu0 %5147
  %5149 = vrot.lane.b32.xlu0 %v3915, 48
  %v5150 = vpop.permute.xlu0 %5149
  %5151 = vrot.lane.b32.xlu0 %v3916, 48
  %v5152 = vpop.permute.xlu0 %5151
  %v5161 = vsel %vm973, %v5132, 0
  %v5164 = vsel %vm973, %v5133, 0
  %v5167 = vsel %vm973, %v5134, 0
  %v5170 = vsel %vm973, %v5135, 0
  %v5173 = vsel %vm973, %v5136, 0
  %v5176 = vsel %vm973, %v5137, 0
  %v5179 = vsel %vm973, %v5138, 0
  %5181 = vmatprep.subr.bf16.mxu0 0
  %5182 = vmatpush1.bf16.msra.mxu0 %v5140
  %5183 = vmatprep.subr.bf16.mxu0 0
  %5184 = vmatpush1.bf16.msra.mxu0 %v5142
  %5185 = vmatprep.subr.bf16.mxu0 0
  %5186 = vmatpush1.bf16.msra.mxu0 %v5144
  %5187 = vmatprep.subr.bf16.mxu0 0
  %5188 = vmatpush1.bf16.msra.mxu0 %v5146
  %5189 = vmatprep.subr.bf16.mxu0 0
  %5190 = vmatpush1.bf16.msra.mxu0 %v5148
  %5191 = vmatprep.subr.bf16.mxu0 0
  %5192 = vmatpush1.bf16.msra.mxu0 %v5150
  %5193 = vmatprep.subr.bf16.mxu0 0
  %5194 = vmatpush1.bf16.msra.mxu0 %v5152
  %5195 = vmatprep.subr.bf16.mxu0 0
  %5196 = vmatpush1.bf16.msra.mxu0 0
  %5197 = vmatprep.subr.bf16.mxu0 0
  %5198 = vmatpush1.bf16.msra.mxu0 0
  %5199 = vmatprep.subr.bf16.mxu0 0
  %5200 = vmatpush1.bf16.msra.mxu0 0
  %5201 = vmatprep.subr.bf16.mxu0 0
  %5202 = vmatpush1.bf16.msra.mxu0 0
  %5203 = vmatprep.subr.bf16.mxu0 0
  %5204 = vmatpush1.bf16.msra.mxu0 0
  %5205 = vmatprep.subr.bf16.mxu0 0
  %5206 = vmatpush1.bf16.msra.mxu0 0
  %5207 = vmatprep.subr.bf16.mxu0 0
  %5208 = vmatpush1.bf16.msra.mxu0 0
  %5209 = vmatprep.subr.bf16.mxu0 0
  %5210 = vmatpush1.bf16.msra.mxu0 0
  %5211 = vmatprep.subr.bf16.mxu0 0
  %5212 = vmatpush1.bf16.msra.mxu0 0
  %5213 = vmatprep.mubr.bf16.mxu0 0
  %5214 = vmatmul.mubr.bf16.gmra.mrb[0].mxu0 %v5161
  %v5215 = vpop.f32.mrb[0].mxu0
  %v5216 = vadd.f32 0.0, %v5215
  %v5217 = vpop.f32.mrb[0].mxu0
  %v5218 = vpop.f32.mrb[0].mxu0
  %v5219 = vadd.f32 0.0, %v5218
  %v5220 = vpop.f32.mrb[0].mxu0
  %5221 = vmatprep.mubr.bf16.mxu0 0
  %5222 = vmatmul.mubr.bf16.gmra.mrb[0].mxu0 %v5164
  %v5223 = vpop.f32.mrb[0].mxu0
  %v5224 = vadd.f32 0.0, %v5223
  %v5225 = vpop.f32.mrb[0].mxu0
  %v5226 = vpop.f32.mrb[0].mxu0
  %v5227 = vadd.f32 0.0, %v5226
  %v5228 = vpop.f32.mrb[0].mxu0
  %5229 = vmatprep.mubr.bf16.mxu0 0
  %5230 = vmatmul.mubr.bf16.gmra.mrb[0].mxu0 %v5167
  %v5231 = vpop.f32.mrb[0].mxu0
  %v5232 = vadd.f32 0.0, %v5231
  %v5233 = vpop.f32.mrb[0].mxu0
  %v5234 = vpop.f32.mrb[0].mxu0
  %v5235 = vadd.f32 0.0, %v5234
  %v5236 = vpop.f32.mrb[0].mxu0
  %5237 = vmatprep.mubr.bf16.mxu0 0
  %5238 = vmatmul.mubr.bf16.gmra.mrb[0].mxu0 %v5170
  %v5239 = vpop.f32.mrb[0].mxu0
  %v5240 = vadd.f32 0.0, %v5239
  %v5241 = vpop.f32.mrb[0].mxu0
  %v5242 = vpop.f32.mrb[0].mxu0
  %v5243 = vadd.f32 0.0, %v5242
  %v5244 = vpop.f32.mrb[0].mxu0
  %5245 = vmatprep.mubr.bf16.mxu0 0
  %5246 = vmatmul.mubr.bf16.gmra.mrb[0].mxu0 %v5173
  %v5247 = vpop.f32.mrb[0].mxu0
  %v5248 = vadd.f32 0.0, %v5247
  %v5249 = vpop.f32.mrb[0].mxu0
  %v5250 = vpop.f32.mrb[0].mxu0
  %v5251 = vadd.f32 0.0, %v5250
  %v5252 = vpop.f32.mrb[0].mxu0
  %5253 = vmatprep.mubr.bf16.mxu0 0
  %5254 = vmatmul.mubr.bf16.gmra.mrb[0].mxu0 %v5176
  %v5255 = vpop.f32.mrb[0].mxu0
  %v5256 = vadd.f32 0.0, %v5255
  %v5257 = vpop.f32.mrb[0].mxu0
  %v5258 = vpop.f32.mrb[0].mxu0
  %v5259 = vadd.f32 0.0, %v5258
  %v5260 = vpop.f32.mrb[0].mxu0
  %5261 = vmatprep.mubr.bf16.mxu0 0
  %5262 = vmatmul.mubr.bf16.gmra.mrb[0].mxu0 %v5179
  %v5263 = vpop.f32.mrb[0].mxu0
  %v5264 = vadd.f32 0.0, %v5263
  %v5265 = vpop.f32.mrb[0].mxu0
  %v5266 = vpop.f32.mrb[0].mxu0
  %v5267 = vadd.f32 0.0, %v5266
  %v5268 = vpop.f32.mrb[0].mxu0
  %5269 = vdwg.mxu0
  %5270 = vrot.lane.b32.xlu0 %v3903, 104
  %v5271 = vpop.permute.xlu0 %5270
  %5272 = vrot.lane.b32.xlu0 %v3904, 104
  %v5273 = vpop.permute.xlu0 %5272
  %5274 = vrot.lane.b32.xlu0 %v3905, 104
  %v5275 = vpop.permute.xlu0 %5274
  %5276 = vrot.lane.b32.xlu0 %v3906, 104
  %v5277 = vpop.permute.xlu0 %5276
  %5278 = vrot.lane.b32.xlu0 %v3907, 104
  %v5279 = vpop.permute.xlu0 %5278
  %5280 = vrot.lane.b32.xlu0 %v3908, 104
  %v5281 = vpop.permute.xlu0 %5280
  %5282 = vrot.lane.b32.xlu0 %v3909, 104
  %v5283 = vpop.permute.xlu0 %5282
  %5284 = vrot.lane.b32.xlu0 %v3910, 72
  %v5285 = vpop.permute.xlu0 %5284
  %5286 = vrot.lane.b32.xlu0 %v3911, 72
  %v5287 = vpop.permute.xlu0 %5286
  %5288 = vrot.lane.b32.xlu0 %v3912, 72
  %v5289 = vpop.permute.xlu0 %5288
  %5290 = vrot.lane.b32.xlu0 %v3913, 72
  %v5291 = vpop.permute.xlu0 %5290
  %5292 = vrot.lane.b32.xlu0 %v3914, 72
  %v5293 = vpop.permute.xlu0 %5292
  %5294 = vrot.lane.b32.xlu0 %v3915, 72
  %v5295 = vpop.permute.xlu0 %5294
  %5296 = vrot.lane.b32.xlu0 %v3916, 72
  %v5297 = vpop.permute.xlu0 %5296
  %v5299 = vsel %vm841, %v5271, 0
  %v5302 = vsel %vm841, %v5273, 0
  %v5305 = vsel %vm841, %v5275, 0
  %v5308 = vsel %vm841, %v5277, 0
  %v5311 = vsel %vm841, %v5279, 0
  %v5314 = vsel %vm841, %v5281, 0
  %v5317 = vsel %vm841, %v5283, 0
  %v5320 = vsel %vm841, %v5285, 0
  %v5323 = vsel %vm841, %v5287, 0
  %v5326 = vsel %vm841, %v5289, 0
  %v5329 = vsel %vm841, %v5291, 0
  %v5332 = vsel %vm841, %v5293, 0
  %v5335 = vsel %vm841, %v5295, 0
  %v5338 = vsel %vm841, %v5297, 0
  %5340 = vmatprep.subr.bf16.mxu0 0
  %5341 = vmatpush1.bf16.xpose.msra.mxu0 %v5320
  %5342 = vmatprep.subr.bf16.mxu0 0
  %5343 = vmatpush1.bf16.xpose.msra.mxu0 %v5323
  %5344 = vmatprep.subr.bf16.mxu0 0
  %5345 = vmatpush1.bf16.xpose.msra.mxu0 %v5326
  %5346 = vmatprep.subr.bf16.mxu0 0
  %5347 = vmatpush1.bf16.xpose.msra.mxu0 %v5329
  %5348 = vmatprep.subr.bf16.mxu0 0
  %5349 = vmatpush1.bf16.xpose.msra.mxu0 %v5332
  %5350 = vmatprep.subr.bf16.mxu0 0
  %5351 = vmatpush1.bf16.xpose.msra.mxu0 %v5335
  %5352 = vmatprep.subr.bf16.mxu0 0
  %5353 = vmatpush1.bf16.xpose.msra.mxu0 %v5338
  %5354 = vmatprep.subr.bf16.mxu0 0
  %5355 = vmatpush1.bf16.xpose.msra.mxu0 0
  %5356 = vmatprep.subr.bf16.mxu0 0
  %5357 = vmatpush1.bf16.xpose.msra.mxu0 0
  %5358 = vmatprep.subr.bf16.mxu0 0
  %5359 = vmatpush1.bf16.xpose.msra.mxu0 0
  %5360 = vmatprep.subr.bf16.mxu0 0
  %5361 = vmatpush1.bf16.xpose.msra.mxu0 0
  %5362 = vmatprep.subr.bf16.mxu0 0
  %5363 = vmatpush1.bf16.xpose.msra.mxu0 0
  %5364 = vmatprep.subr.bf16.mxu0 0
  %5365 = vmatpush1.bf16.xpose.msra.mxu0 0
  %5366 = vmatprep.subr.bf16.mxu0 0
  %5367 = vmatpush1.bf16.xpose.msra.mxu0 0
  %5368 = vmatprep.subr.bf16.mxu0 0
  %5369 = vmatpush1.bf16.xpose.msra.mxu0 0
  %5370 = vmatprep.subr.bf16.mxu0 0
  %5371 = vmatpush1.bf16.xpose.msra.mxu0 0
  %5372 = vmatprep.mubr.bf16.mxu0 0
  %5373 = vmatmul.mubr.bf16.gmra.mrb[0].mxu0 %v5299
  %v5374 = vpop.f32.mrb[0].mxu0
  %v5375 = vadd.f32 %v75, %v5374
  %v5376 = vpop.f32.mrb[0].mxu0
  %v5377 = vpop.f32.mrb[0].mxu0
  %v5378 = vadd.f32 %v76, %v5377
  %v5379 = vpop.f32.mrb[0].mxu0
  %5380 = vmatprep.mubr.bf16.mxu0 0
  %5381 = vmatmul.mubr.bf16.gmra.mrb[0].mxu0 %v5302
  %v5382 = vpop.f32.mrb[0].mxu0
  %v5383 = vadd.f32 %v77, %v5382
  %v5384 = vpop.f32.mrb[0].mxu0
  %v5385 = vpop.f32.mrb[0].mxu0
  %v5386 = vadd.f32 %v78, %v5385
  %v5387 = vpop.f32.mrb[0].mxu0
  %5388 = vmatprep.mubr.bf16.mxu0 0
  %5389 = vmatmul.mubr.bf16.gmra.mrb[0].mxu0 %v5305
  %v5390 = vpop.f32.mrb[0].mxu0
  %v5391 = vadd.f32 %v79, %v5390
  %v5392 = vpop.f32.mrb[0].mxu0
  %v5393 = vpop.f32.mrb[0].mxu0
  %v5394 = vadd.f32 %v80, %v5393
  %v5395 = vpop.f32.mrb[0].mxu0
  %5396 = vmatprep.mubr.bf16.mxu0 0
  %5397 = vmatmul.mubr.bf16.gmra.mrb[0].mxu0 %v5308
  %v5398 = vpop.f32.mrb[0].mxu0
  %v5399 = vadd.f32 %v81, %v5398
  %v5400 = vpop.f32.mrb[0].mxu0
  %v5401 = vpop.f32.mrb[0].mxu0
  %v5402 = vadd.f32 %v82, %v5401
  %v5403 = vpop.f32.mrb[0].mxu0
  %5404 = vmatprep.mubr.bf16.mxu0 0
  %5405 = vmatmul.mubr.bf16.gmra.mrb[0].mxu0 %v5311
  %v5406 = vpop.f32.mrb[0].mxu0
  %v5407 = vadd.f32 %v83, %v5406
  %v5408 = vpop.f32.mrb[0].mxu0
  %v5409 = vpop.f32.mrb[0].mxu0
  %v5410 = vadd.f32 %v84, %v5409
  %v5411 = vpop.f32.mrb[0].mxu0
  %5412 = vmatprep.mubr.bf16.mxu0 0
  %5413 = vmatmul.mubr.bf16.gmra.mrb[0].mxu0 %v5314
  %v5414 = vpop.f32.mrb[0].mxu0
  %v5415 = vadd.f32 %v85, %v5414
  %v5416 = vpop.f32.mrb[0].mxu0
  %v5417 = vpop.f32.mrb[0].mxu0
  %v5418 = vadd.f32 %v86, %v5417
  %v5419 = vpop.f32.mrb[0].mxu0
  %5420 = vmatprep.mubr.bf16.mxu0 0
  %5421 = vmatmul.mubr.bf16.gmra.mrb[0].mxu0 %v5317
  %v5422 = vpop.f32.mrb[0].mxu0
  %v5423 = vadd.f32 %v87, %v5422
  %v5424 = vpop.f32.mrb[0].mxu0
  %v5425 = vpop.f32.mrb[0].mxu0
  %v5426 = vadd.f32 %v88, %v5425
  %v5427 = vpop.f32.mrb[0].mxu0
  %5428 = vdwg.mxu0
  %v5429 = vsel %vm973, %v5375, -inf
  %5430 = vmax.xlane.f32.xlu0 %v5429
  %v5431 = vpop.xlane.xlu0 %5430
  %v5432 = vsel %vm973, %v5378, -inf
  %5433 = vmax.xlane.f32.xlu0 %v5432
  %v5434 = vpop.xlane.xlu0 %5433
  %v5435 = vsel %vm973, %v5383, -inf
  %5436 = vmax.xlane.f32.xlu0 %v5435
  %v5437 = vpop.xlane.xlu0 %5436
  %v5438 = vsel %vm973, %v5386, -inf
  %5439 = vmax.xlane.f32.xlu0 %v5438
  %v5440 = vpop.xlane.xlu0 %5439
  %v5441 = vsel %vm973, %v5391, -inf
  %5442 = vmax.xlane.f32.xlu0 %v5441
  %v5443 = vpop.xlane.xlu0 %5442
  %v5444 = vsel %vm973, %v5394, -inf
  %5445 = vmax.xlane.f32.xlu0 %v5444
  %v5446 = vpop.xlane.xlu0 %5445
  %v5447 = vsel %vm973, %v5399, -inf
  %5448 = vmax.xlane.f32.xlu0 %v5447
  %v5449 = vpop.xlane.xlu0 %5448
  %v5450 = vsel %vm973, %v5402, -inf
  %5451 = vmax.xlane.f32.xlu0 %v5450
  %v5452 = vpop.xlane.xlu0 %5451
  %v5453 = vsel %vm973, %v5407, -inf
  %5454 = vmax.xlane.f32.xlu0 %v5453
  %v5455 = vpop.xlane.xlu0 %5454
  %v5456 = vsel %vm973, %v5410, -inf
  %5457 = vmax.xlane.f32.xlu0 %v5456
  %v5458 = vpop.xlane.xlu0 %5457
  %v5459 = vsel %vm973, %v5415, -inf
  %5460 = vmax.xlane.f32.xlu0 %v5459
  %v5461 = vpop.xlane.xlu0 %5460
  %v5462 = vsel %vm973, %v5418, -inf
  %5463 = vmax.xlane.f32.xlu0 %v5462
  %v5464 = vpop.xlane.xlu0 %5463
  %v5465 = vsel %vm973, %v5423, -inf
  %5466 = vmax.xlane.f32.xlu0 %v5465
  %v5467 = vpop.xlane.xlu0 %5466
  %v5468 = vsel %vm973, %v5426, -inf
  %5469 = vmax.xlane.f32.xlu0 %v5468
  %v5470 = vpop.xlane.xlu0 %5469
  %v5471 = vsub.f32 %v5375, %v5431
  %v5472 = vsub.f32 %v5378, %v5434
  %v5473 = vsub.f32 %v5383, %v5437
  %v5474 = vsub.f32 %v5386, %v5440
  %v5475 = vsub.f32 %v5391, %v5443
  %v5476 = vsub.f32 %v5394, %v5446
  %v5477 = vsub.f32 %v5399, %v5449
  %v5478 = vsub.f32 %v5402, %v5452
  %v5479 = vsub.f32 %v5407, %v5455
  %v5480 = vsub.f32 %v5410, %v5458
  %v5481 = vsub.f32 %v5415, %v5461
  %v5482 = vsub.f32 %v5418, %v5464
  %v5483 = vsub.f32 %v5423, %v5467
  %v5484 = vsub.f32 %v5426, %v5470
  %v5485 = vmul.f32 %v5471, 1.442695
  %v5486 = vpow.pop %v5485
  %v5487 = vmul.f32 %v5472, 1.442695
  %v5488 = vpow.pop %v5487
  %v5489 = vmul.f32 %v5473, 1.442695
  %v5490 = vpow.pop %v5489
  %v5491 = vmul.f32 %v5474, 1.442695
  %v5492 = vpow.pop %v5491
  %v5493 = vmul.f32 %v5475, 1.442695
  %v5494 = vpow.pop %v5493
  %v5495 = vmul.f32 %v5476, 1.442695
  %v5496 = vpow.pop %v5495
  %v5497 = vmul.f32 %v5477, 1.442695
  %v5498 = vpow.pop %v5497
  %v5499 = vmul.f32 %v5478, 1.442695
  %v5500 = vpow.pop %v5499
  %v5501 = vmul.f32 %v5479, 1.442695
  %v5502 = vpow.pop %v5501
  %v5503 = vmul.f32 %v5480, 1.442695
  %v5504 = vpow.pop %v5503
  %v5505 = vmul.f32 %v5481, 1.442695
  %v5506 = vpow.pop %v5505
  %v5507 = vmul.f32 %v5482, 1.442695
  %v5508 = vpow.pop %v5507
  %v5509 = vmul.f32 %v5483, 1.442695
  %v5510 = vpow.pop %v5509
  %v5511 = vmul.f32 %v5484, 1.442695
  %v5512 = vpow.pop %v5511
  %v5513 = vsel %vm973, %v5486, 0.0
  %5514 = vadd.xlane.f32.xlu0 %v5513
  %v5515 = vpop.xlane.xlu0 %5514
  %v5516 = vsel %vm973, %v5488, 0.0
  %5517 = vadd.xlane.f32.xlu0 %v5516
  %v5518 = vpop.xlane.xlu0 %5517
  %v5519 = vsel %vm973, %v5490, 0.0
  %5520 = vadd.xlane.f32.xlu0 %v5519
  %v5521 = vpop.xlane.xlu0 %5520
  %v5522 = vsel %vm973, %v5492, 0.0
  %5523 = vadd.xlane.f32.xlu0 %v5522
  %v5524 = vpop.xlane.xlu0 %5523
  %v5525 = vsel %vm973, %v5494, 0.0
  %5526 = vadd.xlane.f32.xlu0 %v5525
  %v5527 = vpop.xlane.xlu0 %5526
  %v5528 = vsel %vm973, %v5496, 0.0
  %5529 = vadd.xlane.f32.xlu0 %v5528
  %v5530 = vpop.xlane.xlu0 %5529
  %v5531 = vsel %vm973, %v5498, 0.0
  %5532 = vadd.xlane.f32.xlu0 %v5531
  %v5533 = vpop.xlane.xlu0 %5532
  %v5534 = vsel %vm973, %v5500, 0.0
  %5535 = vadd.xlane.f32.xlu0 %v5534
  %v5536 = vpop.xlane.xlu0 %5535
  %v5537 = vsel %vm973, %v5502, 0.0
  %5538 = vadd.xlane.f32.xlu0 %v5537
  %v5539 = vpop.xlane.xlu0 %5538
  %v5540 = vsel %vm973, %v5504, 0.0
  %5541 = vadd.xlane.f32.xlu0 %v5540
  %v5542 = vpop.xlane.xlu0 %5541
  %v5543 = vsel %vm973, %v5506, 0.0
  %5544 = vadd.xlane.f32.xlu0 %v5543
  %v5545 = vpop.xlane.xlu0 %5544
  %v5546 = vsel %vm973, %v5508, 0.0
  %5547 = vadd.xlane.f32.xlu0 %v5546
  %v5548 = vpop.xlane.xlu0 %5547
  %v5549 = vsel %vm973, %v5510, 0.0
  %5550 = vadd.xlane.f32.xlu0 %v5549
  %v5551 = vpop.xlane.xlu0 %5550
  %v5552 = vsel %vm973, %v5512, 0.0
  %5553 = vadd.xlane.f32.xlu0 %v5552
  %v5554 = vpop.xlane.xlu0 %5553
  %v5555 = vrcp.pop %v5515
  %v5556 = vrcp.pop %v5518
  %v5557 = vrcp.pop %v5521
  %v5558 = vrcp.pop %v5524
  %v5559 = vrcp.pop %v5527
  %v5560 = vrcp.pop %v5530
  %v5561 = vrcp.pop %v5533
  %v5562 = vrcp.pop %v5536
  %v5563 = vrcp.pop %v5539
  %v5564 = vrcp.pop %v5542
  %v5565 = vrcp.pop %v5545
  %v5566 = vrcp.pop %v5548
  %v5567 = vrcp.pop %v5551
  %v5568 = vrcp.pop %v5554
  %v5569 = vmul.f32 %v5486, %v5555
  %v5570 = vmul.f32 %v5488, %v5556
  %v5571 = vmul.f32 %v5490, %v5557
  %v5572 = vmul.f32 %v5492, %v5558
  %v5573 = vmul.f32 %v5494, %v5559
  %v5574 = vmul.f32 %v5496, %v5560
  %v5575 = vmul.f32 %v5498, %v5561
  %v5576 = vmul.f32 %v5500, %v5562
  %v5577 = vmul.f32 %v5502, %v5563
  %v5578 = vmul.f32 %v5504, %v5564
  %v5579 = vmul.f32 %v5506, %v5565
  %v5580 = vmul.f32 %v5508, %v5566
  %v5581 = vmul.f32 %v5510, %v5567
  %v5582 = vmul.f32 %v5512, %v5568
  %v5583 = vpack.c.bf16 %v5570, %v5569
  %v5584 = vpack.c.bf16 %v5572, %v5571
  %v5585 = vpack.c.bf16 %v5574, %v5573
  %v5586 = vpack.c.bf16 %v5576, %v5575
  %v5587 = vpack.c.bf16 %v5578, %v5577
  %v5588 = vpack.c.bf16 %v5580, %v5579
  %v5589 = vpack.c.bf16 %v5582, %v5581
  %5590 = vrot.lane.b32.xlu0 %v3910, 40
  %v5591 = vpop.permute.xlu0 %5590
  %5592 = vrot.lane.b32.xlu0 %v3911, 40
  %v5593 = vpop.permute.xlu0 %5592
  %5594 = vrot.lane.b32.xlu0 %v3912, 40
  %v5595 = vpop.permute.xlu0 %5594
  %5596 = vrot.lane.b32.xlu0 %v3913, 40
  %v5597 = vpop.permute.xlu0 %5596
  %5598 = vrot.lane.b32.xlu0 %v3914, 40
  %v5599 = vpop.permute.xlu0 %5598
  %5600 = vrot.lane.b32.xlu0 %v3915, 40
  %v5601 = vpop.permute.xlu0 %5600
  %5602 = vrot.lane.b32.xlu0 %v3916, 40
  %v5603 = vpop.permute.xlu0 %5602
  %v5612 = vsel %vm973, %v5583, 0
  %v5615 = vsel %vm973, %v5584, 0
  %v5618 = vsel %vm973, %v5585, 0
  %v5621 = vsel %vm973, %v5586, 0
  %v5624 = vsel %vm973, %v5587, 0
  %v5627 = vsel %vm973, %v5588, 0
  %v5630 = vsel %vm973, %v5589, 0
  %5632 = vmatprep.subr.bf16.mxu0 0
  %5633 = vmatpush1.bf16.msra.mxu0 %v5591
  %5634 = vmatprep.subr.bf16.mxu0 0
  %5635 = vmatpush1.bf16.msra.mxu0 %v5593
  %5636 = vmatprep.subr.bf16.mxu0 0
  %5637 = vmatpush1.bf16.msra.mxu0 %v5595
  %5638 = vmatprep.subr.bf16.mxu0 0
  %5639 = vmatpush1.bf16.msra.mxu0 %v5597
  %5640 = vmatprep.subr.bf16.mxu0 0
  %5641 = vmatpush1.bf16.msra.mxu0 %v5599
  %5642 = vmatprep.subr.bf16.mxu0 0
  %5643 = vmatpush1.bf16.msra.mxu0 %v5601
  %5644 = vmatprep.subr.bf16.mxu0 0
  %5645 = vmatpush1.bf16.msra.mxu0 %v5603
  %5646 = vmatprep.subr.bf16.mxu0 0
  %5647 = vmatpush1.bf16.msra.mxu0 0
  %5648 = vmatprep.subr.bf16.mxu0 0
  %5649 = vmatpush1.bf16.msra.mxu0 0
  %5650 = vmatprep.subr.bf16.mxu0 0
  %5651 = vmatpush1.bf16.msra.mxu0 0
  %5652 = vmatprep.subr.bf16.mxu0 0
  %5653 = vmatpush1.bf16.msra.mxu0 0
  %5654 = vmatprep.subr.bf16.mxu0 0
  %5655 = vmatpush1.bf16.msra.mxu0 0
  %5656 = vmatprep.subr.bf16.mxu0 0
  %5657 = vmatpush1.bf16.msra.mxu0 0
  %5658 = vmatprep.subr.bf16.mxu0 0
  %5659 = vmatpush1.bf16.msra.mxu0 0
  %5660 = vmatprep.subr.bf16.mxu0 0
  %5661 = vmatpush1.bf16.msra.mxu0 0
  %5662 = vmatprep.subr.bf16.mxu0 0
  %5663 = vmatpush1.bf16.msra.mxu0 0
  %5664 = vmatprep.mubr.bf16.mxu0 0
  %5665 = vmatmul.mubr.bf16.gmra.mrb[0].mxu0 %v5612
  %v5666 = vpop.f32.mrb[0].mxu0
  %v5667 = vadd.f32 0.0, %v5666
  %v5668 = vpop.f32.mrb[0].mxu0
  %v5669 = vpop.f32.mrb[0].mxu0
  %v5670 = vadd.f32 0.0, %v5669
  %v5671 = vpop.f32.mrb[0].mxu0
  %5672 = vmatprep.mubr.bf16.mxu0 0
  %5673 = vmatmul.mubr.bf16.gmra.mrb[0].mxu0 %v5615
  %v5674 = vpop.f32.mrb[0].mxu0
  %v5675 = vadd.f32 0.0, %v5674
  %v5676 = vpop.f32.mrb[0].mxu0
  %v5677 = vpop.f32.mrb[0].mxu0
  %v5678 = vadd.f32 0.0, %v5677
  %v5679 = vpop.f32.mrb[0].mxu0
  %5680 = vmatprep.mubr.bf16.mxu0 0
  %5681 = vmatmul.mubr.bf16.gmra.mrb[0].mxu0 %v5618
  %v5682 = vpop.f32.mrb[0].mxu0
  %v5683 = vadd.f32 0.0, %v5682
  %v5684 = vpop.f32.mrb[0].mxu0
  %v5685 = vpop.f32.mrb[0].mxu0
  %v5686 = vadd.f32 0.0, %v5685
  %v5687 = vpop.f32.mrb[0].mxu0
  %5688 = vmatprep.mubr.bf16.mxu0 0
  %5689 = vmatmul.mubr.bf16.gmra.mrb[0].mxu0 %v5621
  %v5690 = vpop.f32.mrb[0].mxu0
  %v5691 = vadd.f32 0.0, %v5690
  %v5692 = vpop.f32.mrb[0].mxu0
  %v5693 = vpop.f32.mrb[0].mxu0
  %v5694 = vadd.f32 0.0, %v5693
  %v5695 = vpop.f32.mrb[0].mxu0
  %5696 = vmatprep.mubr.bf16.mxu0 0
  %5697 = vmatmul.mubr.bf16.gmra.mrb[0].mxu0 %v5624
  %v5698 = vpop.f32.mrb[0].mxu0
  %v5699 = vadd.f32 0.0, %v5698
  %v5700 = vpop.f32.mrb[0].mxu0
  %v5701 = vpop.f32.mrb[0].mxu0
  %v5702 = vadd.f32 0.0, %v5701
  %v5703 = vpop.f32.mrb[0].mxu0
  %5704 = vmatprep.mubr.bf16.mxu0 0
  %5705 = vmatmul.mubr.bf16.gmra.mrb[0].mxu0 %v5627
  %v5706 = vpop.f32.mrb[0].mxu0
  %v5707 = vadd.f32 0.0, %v5706
  %v5708 = vpop.f32.mrb[0].mxu0
  %v5709 = vpop.f32.mrb[0].mxu0
  %v5710 = vadd.f32 0.0, %v5709
  %v5711 = vpop.f32.mrb[0].mxu0
  %5712 = vmatprep.mubr.bf16.mxu0 0
  %5713 = vmatmul.mubr.bf16.gmra.mrb[0].mxu0 %v5630
  %v5714 = vpop.f32.mrb[0].mxu0
  %v5715 = vadd.f32 0.0, %v5714
  %v5716 = vpop.f32.mrb[0].mxu0
  %v5717 = vpop.f32.mrb[0].mxu0
  %v5718 = vadd.f32 0.0, %v5717
  %v5719 = vpop.f32.mrb[0].mxu0
  %5720 = vdwg.mxu0
  %5735 = vrot.lane.b32.xlu0 %v4765, 8
  %v5736 = vpop.permute.xlu0 %5735
  %5737 = vrot.lane.b32.xlu0 %v4768, 8
  %v5738 = vpop.permute.xlu0 %5737
  %5739 = vrot.lane.b32.xlu0 %v4773, 8
  %v5740 = vpop.permute.xlu0 %5739
  %5741 = vrot.lane.b32.xlu0 %v4776, 8
  %v5742 = vpop.permute.xlu0 %5741
  %5743 = vrot.lane.b32.xlu0 %v4781, 8
  %v5744 = vpop.permute.xlu0 %5743
  %5745 = vrot.lane.b32.xlu0 %v4784, 8
  %v5746 = vpop.permute.xlu0 %5745
  %5747 = vrot.lane.b32.xlu0 %v4789, 8
  %v5748 = vpop.permute.xlu0 %5747
  %5749 = vrot.lane.b32.xlu0 %v4792, 8
  %v5750 = vpop.permute.xlu0 %5749
  %5751 = vrot.lane.b32.xlu0 %v4797, 8
  %v5752 = vpop.permute.xlu0 %5751
  %5753 = vrot.lane.b32.xlu0 %v4800, 8
  %v5754 = vpop.permute.xlu0 %5753
  %5755 = vrot.lane.b32.xlu0 %v4805, 8
  %v5756 = vpop.permute.xlu0 %5755
  %5757 = vrot.lane.b32.xlu0 %v4808, 8
  %v5758 = vpop.permute.xlu0 %5757
  %5759 = vrot.lane.b32.xlu0 %v4813, 8
  %v5760 = vpop.permute.xlu0 %5759
  %5761 = vrot.lane.b32.xlu0 %v4816, 8
  %v5762 = vpop.permute.xlu0 %5761
  %5791 = vrot.lane.b32.xlu0 %v5216, 16
  %v5792 = vpop.permute.xlu0 %5791
  %5793 = vrot.lane.b32.xlu0 %v5219, 16
  %v5794 = vpop.permute.xlu0 %5793
  %5795 = vrot.lane.b32.xlu0 %v5224, 16
  %v5796 = vpop.permute.xlu0 %5795
  %5797 = vrot.lane.b32.xlu0 %v5227, 16
  %v5798 = vpop.permute.xlu0 %5797
  %5799 = vrot.lane.b32.xlu0 %v5232, 16
  %v5800 = vpop.permute.xlu0 %5799
  %5801 = vrot.lane.b32.xlu0 %v5235, 16
  %v5802 = vpop.permute.xlu0 %5801
  %5803 = vrot.lane.b32.xlu0 %v5240, 16
  %v5804 = vpop.permute.xlu0 %5803
  %5805 = vrot.lane.b32.xlu0 %v5243, 16
  %v5806 = vpop.permute.xlu0 %5805
  %5807 = vrot.lane.b32.xlu0 %v5248, 16
  %v5808 = vpop.permute.xlu0 %5807
  %5809 = vrot.lane.b32.xlu0 %v5251, 16
  %v5810 = vpop.permute.xlu0 %5809
  %5811 = vrot.lane.b32.xlu0 %v5256, 16
  %v5812 = vpop.permute.xlu0 %5811
  %5813 = vrot.lane.b32.xlu0 %v5259, 16
  %v5814 = vpop.permute.xlu0 %5813
  %5815 = vrot.lane.b32.xlu0 %v5264, 16
  %v5816 = vpop.permute.xlu0 %5815
  %5817 = vrot.lane.b32.xlu0 %v5267, 16
  %v5818 = vpop.permute.xlu0 %5817
  %5847 = vrot.lane.b32.xlu0 %v5667, 24
  %v5848 = vpop.permute.xlu0 %5847
  %5849 = vrot.lane.b32.xlu0 %v5670, 24
  %v5850 = vpop.permute.xlu0 %5849
  %5851 = vrot.lane.b32.xlu0 %v5675, 24
  %v5852 = vpop.permute.xlu0 %5851
  %5853 = vrot.lane.b32.xlu0 %v5678, 24
  %v5854 = vpop.permute.xlu0 %5853
  %5855 = vrot.lane.b32.xlu0 %v5683, 24
  %v5856 = vpop.permute.xlu0 %5855
  %5857 = vrot.lane.b32.xlu0 %v5686, 24
  %v5858 = vpop.permute.xlu0 %5857
  %5859 = vrot.lane.b32.xlu0 %v5691, 24
  %v5860 = vpop.permute.xlu0 %5859
  %5861 = vrot.lane.b32.xlu0 %v5694, 24
  %v5862 = vpop.permute.xlu0 %5861
  %5863 = vrot.lane.b32.xlu0 %v5699, 24
  %v5864 = vpop.permute.xlu0 %5863
  %5865 = vrot.lane.b32.xlu0 %v5702, 24
  %v5866 = vpop.permute.xlu0 %5865
  %5867 = vrot.lane.b32.xlu0 %v5707, 24
  %v5868 = vpop.permute.xlu0 %5867
  %5869 = vrot.lane.b32.xlu0 %v5710, 24
  %v5870 = vpop.permute.xlu0 %5869
  %5871 = vrot.lane.b32.xlu0 %v5715, 24
  %v5872 = vpop.permute.xlu0 %5871
  %5873 = vrot.lane.b32.xlu0 %v5718, 24
  %v5874 = vpop.permute.xlu0 %5873
  %v5889 = vsel %vm841, %v4307, %v5736
  %v5890 = vsel %vm841, %v4310, %v5738
  %v5891 = vsel %vm841, %v4315, %v5740
  %v5892 = vsel %vm841, %v4318, %v5742
  %v5893 = vsel %vm841, %v4323, %v5744
  %v5894 = vsel %vm841, %v4326, %v5746
  %v5895 = vsel %vm841, %v4331, %v5748
  %v5896 = vsel %vm841, %v4334, %v5750
  %v5897 = vsel %vm841, %v4339, %v5752
  %v5898 = vsel %vm841, %v4342, %v5754
  %v5899 = vsel %vm841, %v4347, %v5756
  %v5900 = vsel %vm841, %v4350, %v5758
  %v5901 = vsel %vm841, %v4355, %v5760
  %v5902 = vsel %vm841, %v4358, %v5762
  %v5903 = vsel %vm2808, %v5889, %v5792
  %v5904 = vsel %vm2808, %v5890, %v5794
  %v5905 = vsel %vm2808, %v5891, %v5796
  %v5906 = vsel %vm2808, %v5892, %v5798
  %v5907 = vsel %vm2808, %v5893, %v5800
  %v5908 = vsel %vm2808, %v5894, %v5802
  %v5909 = vsel %vm2808, %v5895, %v5804
  %v5910 = vsel %vm2808, %v5896, %v5806
  %v5911 = vsel %vm2808, %v5897, %v5808
  %v5912 = vsel %vm2808, %v5898, %v5810
  %v5913 = vsel %vm2808, %v5899, %v5812
  %v5914 = vsel %vm2808, %v5900, %v5814
  %v5915 = vsel %vm2808, %v5901, %v5816
  %v5916 = vsel %vm2808, %v5902, %v5818
  %v5917 = vsel %vm129, %v5903, %v5848
  %v5918 = vsel %vm129, %v5904, %v5850
  %v5919 = vsel %vm129, %v5905, %v5852
  %v5920 = vsel %vm129, %v5906, %v5854
  %v5921 = vsel %vm129, %v5907, %v5856
  %v5922 = vsel %vm129, %v5908, %v5858
  %v5923 = vsel %vm129, %v5909, %v5860
  %v5924 = vsel %vm129, %v5910, %v5862
  %v5925 = vsel %vm129, %v5911, %v5864
  %v5926 = vsel %vm129, %v5912, %v5866
  %v5927 = vsel %vm129, %v5913, %v5868
  %v5928 = vsel %vm129, %v5914, %v5870
  %v5929 = vsel %vm129, %v5915, %v5872
  %v5930 = vsel %vm129, %v5916, %v5874
  %v5931 = vpack.c.bf16 %v5918, %v5917
  %v5932 = vpack.c.bf16 %v5920, %v5919
  %v5933 = vpack.c.bf16 %v5922, %v5921
  %v5934 = vpack.c.bf16 %v5924, %v5923
  %v5935 = vpack.c.bf16 %v5926, %v5925
  %v5936 = vpack.c.bf16 %v5928, %v5927
  %v5937 = vpack.c.bf16 %v5930, %v5929
  %s5938 = scalar_lea.vmem %s12, 16
  %v5939 = vld [vmem:[%s5938] sm:$0xf]
  %v5940 = vld [vmem:[%s5938 + $0x4] sm:$0xf]
  %v5941 = vld [vmem:[%s5938 + $0x8] sm:$0xf]
  %v5942 = vld [vmem:[%s5938 + $0xc] sm:$0xf]
  %s5943 = scalar_lea.vmem %s13, 1
  %v5944 = vld [vmem:[%s5943] sm:$0x1]
  %v5946 = vlaneseq
  %v5947 = vshrl.u32 %v5946, 7
  %v5948 = vsub.s32 0, %v5947
  %v5949 = vrot.slane %v5944, %v5948
  %v5955 = vunpack.c.l.b16 %v5939
  %v5956 = vunpack.c.l.b16 %v5940
  %v5957 = vunpack.c.l.b16 %v5941
  %v5958 = vunpack.c.l.b16 %v5942
  %v5959 = vpack.c.b16 %v5956, %v5955
  %v5960 = vpack.c.b16 %v5958, %v5957
  %v5964 = vsel %vm246, %v5931, 0
  %v5967 = vsel %vm246, %v5932, 0
  %v5970 = vsel %vm246, %v5933, 0
  %v5973 = vsel %vm246, %v5934, 0
  %v5976 = vsel %vm246, %v5935, 0
  %v5979 = vsel %vm246, %v5936, 0
  %v5982 = vsel %vm246, %v5937, 0
  %5984 = vmatprep.subr.bf16.mxu0 0
  %5985 = vmatpush1.bf16.msra.mxu0 %v5959
  %5986 = vmatprep.subr.bf16.mxu0 0
  %5987 = vmatpush1.bf16.msra.mxu0 %v5960
  %5988 = vmatprep.subr.bf16.mxu0 0
  %5989 = vmatpush1.bf16.msra.mxu0 0
  %5990 = vmatprep.subr.bf16.mxu0 0
  %5991 = vmatpush1.bf16.msra.mxu0 0
  %5992 = vmatprep.subr.bf16.mxu0 0
  %5993 = vmatpush1.bf16.msra.mxu0 0
  %5994 = vmatprep.subr.bf16.mxu0 0
  %5995 = vmatpush1.bf16.msra.mxu0 0
  %5996 = vmatprep.subr.bf16.mxu0 0
  %5997 = vmatpush1.bf16.msra.mxu0 0
  %5998 = vmatprep.subr.bf16.mxu0 0
  %5999 = vmatpush1.bf16.msra.mxu0 0
  %6000 = vmatprep.subr.bf16.mxu0 0
  %6001 = vmatpush1.bf16.msra.mxu0 0
  %6002 = vmatprep.subr.bf16.mxu0 0
  %6003 = vmatpush1.bf16.msra.mxu0 0
  %6004 = vmatprep.subr.bf16.mxu0 0
  %6005 = vmatpush1.bf16.msra.mxu0 0
  %6006 = vmatprep.subr.bf16.mxu0 0
  %6007 = vmatpush1.bf16.msra.mxu0 0
  %6008 = vmatprep.subr.bf16.mxu0 0
  %6009 = vmatpush1.bf16.msra.mxu0 0
  %6010 = vmatprep.subr.bf16.mxu0 0
  %6011 = vmatpush1.bf16.msra.mxu0 0
  %6012 = vmatprep.subr.bf16.mxu0 0
  %6013 = vmatpush1.bf16.msra.mxu0 0
  %6014 = vmatprep.subr.bf16.mxu0 0
  %6015 = vmatpush1.bf16.msra.mxu0 0
  %6016 = vmatprep.mubr.bf16.mxu0 0
  %6017 = vmatmul.mubr.bf16.gmra.mrb[0].mxu0 %v5964
  %v6018 = vpop.f32.mrb[0].mxu0
  %v6019 = vadd.f32 %v5949, %v6018
  %v6020 = vpop.f32.mrb[0].mxu0
  %v6021 = vpop.f32.mrb[0].mxu0
  %v6022 = vadd.f32 %v5949, %v6021
  %v6023 = vpop.f32.mrb[0].mxu0
  %6024 = vmatprep.mubr.bf16.mxu0 0
  %6025 = vmatmul.mubr.bf16.gmra.mrb[0].mxu0 %v5967
  %v6026 = vpop.f32.mrb[0].mxu0
  %v6027 = vadd.f32 %v5949, %v6026
  %v6028 = vpop.f32.mrb[0].mxu0
  %v6029 = vpop.f32.mrb[0].mxu0
  %v6030 = vadd.f32 %v5949, %v6029
  %v6031 = vpop.f32.mrb[0].mxu0
  %6032 = vmatprep.mubr.bf16.mxu0 0
  %6033 = vmatmul.mubr.bf16.gmra.mrb[0].mxu0 %v5970
  %v6034 = vpop.f32.mrb[0].mxu0
  %v6035 = vadd.f32 %v5949, %v6034
  %v6036 = vpop.f32.mrb[0].mxu0
  %v6037 = vpop.f32.mrb[0].mxu0
  %v6038 = vadd.f32 %v5949, %v6037
  %v6039 = vpop.f32.mrb[0].mxu0
  %6040 = vmatprep.mubr.bf16.mxu0 0
  %6041 = vmatmul.mubr.bf16.gmra.mrb[0].mxu0 %v5973
  %v6042 = vpop.f32.mrb[0].mxu0
  %v6043 = vadd.f32 %v5949, %v6042
  %v6044 = vpop.f32.mrb[0].mxu0
  %v6045 = vpop.f32.mrb[0].mxu0
  %v6046 = vadd.f32 %v5949, %v6045
  %v6047 = vpop.f32.mrb[0].mxu0
  %6048 = vmatprep.mubr.bf16.mxu0 0
  %6049 = vmatmul.mubr.bf16.gmra.mrb[0].mxu0 %v5976
  %v6050 = vpop.f32.mrb[0].mxu0
  %v6051 = vadd.f32 %v5949, %v6050
  %v6052 = vpop.f32.mrb[0].mxu0
  %v6053 = vpop.f32.mrb[0].mxu0
  %v6054 = vadd.f32 %v5949, %v6053
  %v6055 = vpop.f32.mrb[0].mxu0
  %6056 = vmatprep.mubr.bf16.mxu0 0
  %6057 = vmatmul.mubr.bf16.gmra.mrb[0].mxu0 %v5979
  %v6058 = vpop.f32.mrb[0].mxu0
  %v6059 = vadd.f32 %v5949, %v6058
  %v6060 = vpop.f32.mrb[0].mxu0
  %v6061 = vpop.f32.mrb[0].mxu0
  %v6062 = vadd.f32 %v5949, %v6061
  %v6063 = vpop.f32.mrb[0].mxu0
  %6064 = vmatprep.mubr.bf16.mxu0 0
  %6065 = vmatmul.mubr.bf16.gmra.mrb[0].mxu0 %v5982
  %v6066 = vpop.f32.mrb[0].mxu0
  %v6067 = vadd.f32 %v5949, %v6066
  %v6068 = vpop.f32.mrb[0].mxu0
  %v6069 = vpop.f32.mrb[0].mxu0
  %v6070 = vadd.f32 %v5949, %v6069
  %v6071 = vpop.f32.mrb[0].mxu0
  %6072 = vdwg.mxu0
  %v6073 = vadd.f32 %v3733, %v6019
  %v6074 = vadd.f32 %v3734, %v6022
  %v6075 = vadd.f32 %v3735, %v6027
  %v6076 = vadd.f32 %v3736, %v6030
  %v6077 = vadd.f32 %v3737, %v6035
  %v6078 = vadd.f32 %v3738, %v6038
  %v6079 = vadd.f32 %v3739, %v6043
  %v6080 = vadd.f32 %v3740, %v6046
  %v6081 = vadd.f32 %v3741, %v6051
  %v6082 = vadd.f32 %v3742, %v6054
  %v6083 = vadd.f32 %v3743, %v6059
  %v6084 = vadd.f32 %v3744, %v6062
  %v6085 = vadd.f32 %v3745, %v6067
  %v6086 = vadd.f32 %v3746, %v6070
  %s6087 = scalar_lea.vmem %s14, 1
  %v6088 = vld [vmem:[%s6087] sm:$0x1]
  %s6089 = scalar_lea.vmem %s15, 1
  %v6090 = vld [vmem:[%s6089] sm:$0x1]
  %v6091 = vsel %vm246, %v6073, 0.0
  %6092 = vadd.xlane.f32.xlu0 %v6091
  %v6093 = vpop.xlane.xlu0 %6092
  %v6094 = vsel %vm246, %v6074, 0.0
  %6095 = vadd.xlane.f32.xlu0 %v6094
  %v6096 = vpop.xlane.xlu0 %6095
  %v6097 = vsel %vm246, %v6075, 0.0
  %6098 = vadd.xlane.f32.xlu0 %v6097
  %v6099 = vpop.xlane.xlu0 %6098
  %v6100 = vsel %vm246, %v6076, 0.0
  %6101 = vadd.xlane.f32.xlu0 %v6100
  %v6102 = vpop.xlane.xlu0 %6101
  %v6103 = vsel %vm246, %v6077, 0.0
  %6104 = vadd.xlane.f32.xlu0 %v6103
  %v6105 = vpop.xlane.xlu0 %6104
  %v6106 = vsel %vm246, %v6078, 0.0
  %6107 = vadd.xlane.f32.xlu0 %v6106
  %v6108 = vpop.xlane.xlu0 %6107
  %v6109 = vsel %vm246, %v6079, 0.0
  %6110 = vadd.xlane.f32.xlu0 %v6109
  %v6111 = vpop.xlane.xlu0 %6110
  %v6112 = vsel %vm246, %v6080, 0.0
  %6113 = vadd.xlane.f32.xlu0 %v6112
  %v6114 = vpop.xlane.xlu0 %6113
  %v6115 = vsel %vm246, %v6081, 0.0
  %6116 = vadd.xlane.f32.xlu0 %v6115
  %v6117 = vpop.xlane.xlu0 %6116
  %v6118 = vsel %vm246, %v6082, 0.0
  %6119 = vadd.xlane.f32.xlu0 %v6118
  %v6120 = vpop.xlane.xlu0 %6119
  %v6121 = vsel %vm246, %v6083, 0.0
  %6122 = vadd.xlane.f32.xlu0 %v6121
  %v6123 = vpop.xlane.xlu0 %6122
  %v6124 = vsel %vm246, %v6084, 0.0
  %6125 = vadd.xlane.f32.xlu0 %v6124
  %v6126 = vpop.xlane.xlu0 %6125
  %v6127 = vsel %vm246, %v6085, 0.0
  %6128 = vadd.xlane.f32.xlu0 %v6127
  %v6129 = vpop.xlane.xlu0 %6128
  %v6130 = vsel %vm246, %v6086, 0.0
  %6131 = vadd.xlane.f32.xlu0 %v6130
  %v6132 = vpop.xlane.xlu0 %6131
  %v6133 = vmul.f32 %v6093, %v289
  %v6134 = vmul.f32 %v6096, %v289
  %v6135 = vmul.f32 %v6099, %v289
  %v6136 = vmul.f32 %v6102, %v289
  %v6137 = vmul.f32 %v6105, %v289
  %v6138 = vmul.f32 %v6108, %v289
  %v6139 = vmul.f32 %v6111, %v289
  %v6140 = vmul.f32 %v6114, %v289
  %v6141 = vmul.f32 %v6117, %v289
  %v6142 = vmul.f32 %v6120, %v289
  %v6143 = vmul.f32 %v6123, %v289
  %v6144 = vmul.f32 %v6126, %v289
  %v6145 = vmul.f32 %v6129, %v289
  %v6146 = vmul.f32 %v6132, %v289
  %v6147 = vsub.f32 %v6073, %v6133
  %v6148 = vsub.f32 %v6074, %v6134
  %v6149 = vsub.f32 %v6075, %v6135
  %v6150 = vsub.f32 %v6076, %v6136
  %v6151 = vsub.f32 %v6077, %v6137
  %v6152 = vsub.f32 %v6078, %v6138
  %v6153 = vsub.f32 %v6079, %v6139
  %v6154 = vsub.f32 %v6080, %v6140
  %v6155 = vsub.f32 %v6081, %v6141
  %v6156 = vsub.f32 %v6082, %v6142
  %v6157 = vsub.f32 %v6083, %v6143
  %v6158 = vsub.f32 %v6084, %v6144
  %v6159 = vsub.f32 %v6085, %v6145
  %v6160 = vsub.f32 %v6086, %v6146
  %v6161 = vmul.f32 %v6147, %v6147
  %v6162 = vmul.f32 %v6148, %v6148
  %v6163 = vmul.f32 %v6149, %v6149
  %v6164 = vmul.f32 %v6150, %v6150
  %v6165 = vmul.f32 %v6151, %v6151
  %v6166 = vmul.f32 %v6152, %v6152
  %v6167 = vmul.f32 %v6153, %v6153
  %v6168 = vmul.f32 %v6154, %v6154
  %v6169 = vmul.f32 %v6155, %v6155
  %v6170 = vmul.f32 %v6156, %v6156
  %v6171 = vmul.f32 %v6157, %v6157
  %v6172 = vmul.f32 %v6158, %v6158
  %v6173 = vmul.f32 %v6159, %v6159
  %v6174 = vmul.f32 %v6160, %v6160
  %v6175 = vsel %vm246, %v6161, 0.0
  %6176 = vadd.xlane.f32.xlu0 %v6175
  %v6177 = vpop.xlane.xlu0 %6176
  %v6178 = vsel %vm246, %v6162, 0.0
  %6179 = vadd.xlane.f32.xlu0 %v6178
  %v6180 = vpop.xlane.xlu0 %6179
  %v6181 = vsel %vm246, %v6163, 0.0
  %6182 = vadd.xlane.f32.xlu0 %v6181
  %v6183 = vpop.xlane.xlu0 %6182
  %v6184 = vsel %vm246, %v6164, 0.0
  %6185 = vadd.xlane.f32.xlu0 %v6184
  %v6186 = vpop.xlane.xlu0 %6185
  %v6187 = vsel %vm246, %v6165, 0.0
  %6188 = vadd.xlane.f32.xlu0 %v6187
  %v6189 = vpop.xlane.xlu0 %6188
  %v6190 = vsel %vm246, %v6166, 0.0
  %6191 = vadd.xlane.f32.xlu0 %v6190
  %v6192 = vpop.xlane.xlu0 %6191
  %v6193 = vsel %vm246, %v6167, 0.0
  %6194 = vadd.xlane.f32.xlu0 %v6193
  %v6195 = vpop.xlane.xlu0 %6194
  %v6196 = vsel %vm246, %v6168, 0.0
  %6197 = vadd.xlane.f32.xlu0 %v6196
  %v6198 = vpop.xlane.xlu0 %6197
  %v6199 = vsel %vm246, %v6169, 0.0
  %6200 = vadd.xlane.f32.xlu0 %v6199
  %v6201 = vpop.xlane.xlu0 %6200
  %v6202 = vsel %vm246, %v6170, 0.0
  %6203 = vadd.xlane.f32.xlu0 %v6202
  %v6204 = vpop.xlane.xlu0 %6203
  %v6205 = vsel %vm246, %v6171, 0.0
  %6206 = vadd.xlane.f32.xlu0 %v6205
  %v6207 = vpop.xlane.xlu0 %6206
  %v6208 = vsel %vm246, %v6172, 0.0
  %6209 = vadd.xlane.f32.xlu0 %v6208
  %v6210 = vpop.xlane.xlu0 %6209
  %v6211 = vsel %vm246, %v6173, 0.0
  %6212 = vadd.xlane.f32.xlu0 %v6211
  %v6213 = vpop.xlane.xlu0 %6212
  %v6214 = vsel %vm246, %v6174, 0.0
  %6215 = vadd.xlane.f32.xlu0 %v6214
  %v6216 = vpop.xlane.xlu0 %6215
  %v6217 = vmul.f32 %v6177, %v289
  %v6218 = vmul.f32 %v6180, %v289
  %v6219 = vmul.f32 %v6183, %v289
  %v6220 = vmul.f32 %v6186, %v289
  %v6221 = vmul.f32 %v6189, %v289
  %v6222 = vmul.f32 %v6192, %v289
  %v6223 = vmul.f32 %v6195, %v289
  %v6224 = vmul.f32 %v6198, %v289
  %v6225 = vmul.f32 %v6201, %v289
  %v6226 = vmul.f32 %v6204, %v289
  %v6227 = vmul.f32 %v6207, %v289
  %v6228 = vmul.f32 %v6210, %v289
  %v6229 = vmul.f32 %v6213, %v289
  %v6230 = vmul.f32 %v6216, %v289
  %v6231 = vadd.f32 %v6217, 1e-05
  %v6232 = vadd.f32 %v6218, 1e-05
  %v6233 = vadd.f32 %v6219, 1e-05
  %v6234 = vadd.f32 %v6220, 1e-05
  %v6235 = vadd.f32 %v6221, 1e-05
  %v6236 = vadd.f32 %v6222, 1e-05
  %v6237 = vadd.f32 %v6223, 1e-05
  %v6238 = vadd.f32 %v6224, 1e-05
  %v6239 = vadd.f32 %v6225, 1e-05
  %v6240 = vadd.f32 %v6226, 1e-05
  %v6241 = vadd.f32 %v6227, 1e-05
  %v6242 = vadd.f32 %v6228, 1e-05
  %v6243 = vadd.f32 %v6229, 1e-05
  %v6244 = vadd.f32 %v6230, 1e-05
  %v6245 = vrsqrt.pop %v6231
  %v6246 = vrsqrt.pop %v6232
  %v6247 = vrsqrt.pop %v6233
  %v6248 = vrsqrt.pop %v6234
  %v6249 = vrsqrt.pop %v6235
  %v6250 = vrsqrt.pop %v6236
  %v6251 = vrsqrt.pop %v6237
  %v6252 = vrsqrt.pop %v6238
  %v6253 = vrsqrt.pop %v6239
  %v6254 = vrsqrt.pop %v6240
  %v6255 = vrsqrt.pop %v6241
  %v6256 = vrsqrt.pop %v6242
  %v6257 = vrsqrt.pop %v6243
  %v6258 = vrsqrt.pop %v6244
  %v6259 = vmul.f32 %v6147, %v6245
  %v6260 = vmul.f32 %v6148, %v6246
  %v6261 = vmul.f32 %v6149, %v6247
  %v6262 = vmul.f32 %v6150, %v6248
  %v6263 = vmul.f32 %v6151, %v6249
  %v6264 = vmul.f32 %v6152, %v6250
  %v6265 = vmul.f32 %v6153, %v6251
  %v6266 = vmul.f32 %v6154, %v6252
  %v6267 = vmul.f32 %v6155, %v6253
  %v6268 = vmul.f32 %v6156, %v6254
  %v6269 = vmul.f32 %v6157, %v6255
  %v6270 = vmul.f32 %v6158, %v6256
  %v6271 = vmul.f32 %v6159, %v6257
  %v6272 = vmul.f32 %v6160, %v6258
  %v6274 = vlaneseq
  %v6275 = vshrl.u32 %v6274, 7
  %v6276 = vsub.s32 0, %v6275
  %v6277 = vrot.slane %v6088, %v6276
  %v6279 = vmul.f32 %v6259, %v6277
  %v6280 = vmul.f32 %v6260, %v6277
  %v6281 = vmul.f32 %v6261, %v6277
  %v6282 = vmul.f32 %v6262, %v6277
  %v6283 = vmul.f32 %v6263, %v6277
  %v6284 = vmul.f32 %v6264, %v6277
  %v6285 = vmul.f32 %v6265, %v6277
  %v6286 = vmul.f32 %v6266, %v6277
  %v6287 = vmul.f32 %v6267, %v6277
  %v6288 = vmul.f32 %v6268, %v6277
  %v6289 = vmul.f32 %v6269, %v6277
  %v6290 = vmul.f32 %v6270, %v6277
  %v6291 = vmul.f32 %v6271, %v6277
  %v6292 = vmul.f32 %v6272, %v6277
  %v6294 = vlaneseq
  %v6295 = vshrl.u32 %v6294, 7
  %v6296 = vsub.s32 0, %v6295
  %v6297 = vrot.slane %v6090, %v6296
  %v6299 = vadd.f32 %v6279, %v6297
  %v6300 = vadd.f32 %v6280, %v6297
  %v6301 = vadd.f32 %v6281, %v6297
  %v6302 = vadd.f32 %v6282, %v6297
  %v6303 = vadd.f32 %v6283, %v6297
  %v6304 = vadd.f32 %v6284, %v6297
  %v6305 = vadd.f32 %v6285, %v6297
  %v6306 = vadd.f32 %v6286, %v6297
  %v6307 = vadd.f32 %v6287, %v6297
  %v6308 = vadd.f32 %v6288, %v6297
  %v6309 = vadd.f32 %v6289, %v6297
  %v6310 = vadd.f32 %v6290, %v6297
  %v6311 = vadd.f32 %v6291, %v6297
  %v6312 = vadd.f32 %v6292, %v6297
  %v6313 = vpack.c.bf16 %v6300, %v6299
  %v6314 = vpack.c.bf16 %v6302, %v6301
  %v6315 = vpack.c.bf16 %v6304, %v6303
  %v6316 = vpack.c.bf16 %v6306, %v6305
  %v6317 = vpack.c.bf16 %v6308, %v6307
  %v6318 = vpack.c.bf16 %v6310, %v6309
  %v6319 = vpack.c.bf16 %v6312, %v6311
  %s6320 = scalar_lea.vmem %s16, 16
  %v6321 = vld [vmem:[%s6320] sm:$0xf]
  %v6322 = vld [vmem:[%s6320 + $0x4] sm:$0xf]
  %v6323 = vld [vmem:[%s6320 + $0x8] sm:$0xf]
  %v6324 = vld [vmem:[%s6320 + $0xc] sm:$0xf]
  %s6325 = scalar_lea.vmem %s17, 1
  %v6326 = vld [vmem:[%s6325] sm:$0x1]
  %v6328 = vlaneseq
  %v6329 = vshrl.u32 %v6328, 7
  %v6330 = vsub.s32 0, %v6329
  %v6331 = vrot.slane %v6326, %v6330
  %v6337 = vunpack.c.l.b16 %v6321
  %v6338 = vunpack.c.l.b16 %v6322
  %v6339 = vunpack.c.l.b16 %v6323
  %v6340 = vunpack.c.l.b16 %v6324
  %v6341 = vpack.c.b16 %v6338, %v6337
  %v6342 = vpack.c.b16 %v6340, %v6339
  %v6346 = vsel %vm246, %v6313, 0
  %v6349 = vsel %vm246, %v6314, 0
  %v6352 = vsel %vm246, %v6315, 0
  %v6355 = vsel %vm246, %v6316, 0
  %v6358 = vsel %vm246, %v6317, 0
  %v6361 = vsel %vm246, %v6318, 0
  %v6364 = vsel %vm246, %v6319, 0
  %6366 = vmatprep.subr.bf16.mxu0 0
  %6367 = vmatpush1.bf16.msra.mxu0 %v6341
  %6368 = vmatprep.subr.bf16.mxu0 0
  %6369 = vmatpush1.bf16.msra.mxu0 %v6342
  %6370 = vmatprep.subr.bf16.mxu0 0
  %6371 = vmatpush1.bf16.msra.mxu0 0
  %6372 = vmatprep.subr.bf16.mxu0 0
  %6373 = vmatpush1.bf16.msra.mxu0 0
  %6374 = vmatprep.subr.bf16.mxu0 0
  %6375 = vmatpush1.bf16.msra.mxu0 0
  %6376 = vmatprep.subr.bf16.mxu0 0
  %6377 = vmatpush1.bf16.msra.mxu0 0
  %6378 = vmatprep.subr.bf16.mxu0 0
  %6379 = vmatpush1.bf16.msra.mxu0 0
  %6380 = vmatprep.subr.bf16.mxu0 0
  %6381 = vmatpush1.bf16.msra.mxu0 0
  %6382 = vmatprep.subr.bf16.mxu0 0
  %6383 = vmatpush1.bf16.msra.mxu0 0
  %6384 = vmatprep.subr.bf16.mxu0 0
  %6385 = vmatpush1.bf16.msra.mxu0 0
  %6386 = vmatprep.subr.bf16.mxu0 0
  %6387 = vmatpush1.bf16.msra.mxu0 0
  %6388 = vmatprep.subr.bf16.mxu0 0
  %6389 = vmatpush1.bf16.msra.mxu0 0
  %6390 = vmatprep.subr.bf16.mxu0 0
  %6391 = vmatpush1.bf16.msra.mxu0 0
  %6392 = vmatprep.subr.bf16.mxu0 0
  %6393 = vmatpush1.bf16.msra.mxu0 0
  %6394 = vmatprep.subr.bf16.mxu0 0
  %6395 = vmatpush1.bf16.msra.mxu0 0
  %6396 = vmatprep.subr.bf16.mxu0 0
  %6397 = vmatpush1.bf16.msra.mxu0 0
  %6398 = vmatprep.mubr.bf16.mxu0 0
  %6399 = vmatmul.mubr.bf16.gmra.mrb[0].mxu0 %v6346
  %v6400 = vpop.f32.mrb[0].mxu0
  %v6401 = vadd.f32 %v6331, %v6400
  %v6402 = vpop.f32.mrb[0].mxu0
  %v6403 = vpop.f32.mrb[0].mxu0
  %v6404 = vadd.f32 %v6331, %v6403
  %v6405 = vpop.f32.mrb[0].mxu0
  %6406 = vmatprep.mubr.bf16.mxu0 0
  %6407 = vmatmul.mubr.bf16.gmra.mrb[0].mxu0 %v6349
  %v6408 = vpop.f32.mrb[0].mxu0
  %v6409 = vadd.f32 %v6331, %v6408
  %v6410 = vpop.f32.mrb[0].mxu0
  %v6411 = vpop.f32.mrb[0].mxu0
  %v6412 = vadd.f32 %v6331, %v6411
  %v6413 = vpop.f32.mrb[0].mxu0
  %6414 = vmatprep.mubr.bf16.mxu0 0
  %6415 = vmatmul.mubr.bf16.gmra.mrb[0].mxu0 %v6352
  %v6416 = vpop.f32.mrb[0].mxu0
  %v6417 = vadd.f32 %v6331, %v6416
  %v6418 = vpop.f32.mrb[0].mxu0
  %v6419 = vpop.f32.mrb[0].mxu0
  %v6420 = vadd.f32 %v6331, %v6419
  %v6421 = vpop.f32.mrb[0].mxu0
  %6422 = vmatprep.mubr.bf16.mxu0 0
  %6423 = vmatmul.mubr.bf16.gmra.mrb[0].mxu0 %v6355
  %v6424 = vpop.f32.mrb[0].mxu0
  %v6425 = vadd.f32 %v6331, %v6424
  %v6426 = vpop.f32.mrb[0].mxu0
  %v6427 = vpop.f32.mrb[0].mxu0
  %v6428 = vadd.f32 %v6331, %v6427
  %v6429 = vpop.f32.mrb[0].mxu0
  %6430 = vmatprep.mubr.bf16.mxu0 0
  %6431 = vmatmul.mubr.bf16.gmra.mrb[0].mxu0 %v6358
  %v6432 = vpop.f32.mrb[0].mxu0
  %v6433 = vadd.f32 %v6331, %v6432
  %v6434 = vpop.f32.mrb[0].mxu0
  %v6435 = vpop.f32.mrb[0].mxu0
  %v6436 = vadd.f32 %v6331, %v6435
  %v6437 = vpop.f32.mrb[0].mxu0
  %6438 = vmatprep.mubr.bf16.mxu0 0
  %6439 = vmatmul.mubr.bf16.gmra.mrb[0].mxu0 %v6361
  %v6440 = vpop.f32.mrb[0].mxu0
  %v6441 = vadd.f32 %v6331, %v6440
  %v6442 = vpop.f32.mrb[0].mxu0
  %v6443 = vpop.f32.mrb[0].mxu0
  %v6444 = vadd.f32 %v6331, %v6443
  %v6445 = vpop.f32.mrb[0].mxu0
  %6446 = vmatprep.mubr.bf16.mxu0 0
  %6447 = vmatmul.mubr.bf16.gmra.mrb[0].mxu0 %v6364
  %v6448 = vpop.f32.mrb[0].mxu0
  %v6449 = vadd.f32 %v6331, %v6448
  %v6450 = vpop.f32.mrb[0].mxu0
  %v6451 = vpop.f32.mrb[0].mxu0
  %v6452 = vadd.f32 %v6331, %v6451
  %v6453 = vpop.f32.mrb[0].mxu0
  %6454 = vdwg.mxu0
  %v6455 = vmax.f32 %v6401, 0.0
  %v6456 = vmax.f32 %v6404, 0.0
  %v6457 = vmax.f32 %v6409, 0.0
  %v6458 = vmax.f32 %v6412, 0.0
  %v6459 = vmax.f32 %v6417, 0.0
  %v6460 = vmax.f32 %v6420, 0.0
  %v6461 = vmax.f32 %v6425, 0.0
  %v6462 = vmax.f32 %v6428, 0.0
  %v6463 = vmax.f32 %v6433, 0.0
  %v6464 = vmax.f32 %v6436, 0.0
  %v6465 = vmax.f32 %v6441, 0.0
  %v6466 = vmax.f32 %v6444, 0.0
  %v6467 = vmax.f32 %v6449, 0.0
  %v6468 = vmax.f32 %v6452, 0.0
  %v6469 = vpack.c.bf16 %v6456, %v6455
  %v6470 = vpack.c.bf16 %v6458, %v6457
  %v6471 = vpack.c.bf16 %v6460, %v6459
  %v6472 = vpack.c.bf16 %v6462, %v6461
  %v6473 = vpack.c.bf16 %v6464, %v6463
  %v6474 = vpack.c.bf16 %v6466, %v6465
  %v6475 = vpack.c.bf16 %v6468, %v6467
  %s6476 = scalar_lea.vmem %s18, 16
  %v6477 = vld [vmem:[%s6476] sm:$0xf]
  %v6478 = vld [vmem:[%s6476 + $0x4] sm:$0xf]
  %v6479 = vld [vmem:[%s6476 + $0x8] sm:$0xf]
  %v6480 = vld [vmem:[%s6476 + $0xc] sm:$0xf]
  %s6481 = scalar_lea.vmem %s19, 1
  %v6482 = vld [vmem:[%s6481] sm:$0x1]
  %v6484 = vlaneseq
  %v6485 = vshrl.u32 %v6484, 7
  %v6486 = vsub.s32 0, %v6485
  %v6487 = vrot.slane %v6482, %v6486
  %v6493 = vunpack.c.l.b16 %v6477
  %v6494 = vunpack.c.l.b16 %v6478
  %v6495 = vunpack.c.l.b16 %v6479
  %v6496 = vunpack.c.l.b16 %v6480
  %v6497 = vpack.c.b16 %v6494, %v6493
  %v6498 = vpack.c.b16 %v6496, %v6495
  %v6502 = vsel %vm246, %v6469, 0
  %v6505 = vsel %vm246, %v6470, 0
  %v6508 = vsel %vm246, %v6471, 0
  %v6511 = vsel %vm246, %v6472, 0
  %v6514 = vsel %vm246, %v6473, 0
  %v6517 = vsel %vm246, %v6474, 0
  %v6520 = vsel %vm246, %v6475, 0
  %6522 = vmatprep.subr.bf16.mxu0 0
  %6523 = vmatpush1.bf16.msra.mxu0 %v6497
  %6524 = vmatprep.subr.bf16.mxu0 0
  %6525 = vmatpush1.bf16.msra.mxu0 %v6498
  %6526 = vmatprep.subr.bf16.mxu0 0
  %6527 = vmatpush1.bf16.msra.mxu0 0
  %6528 = vmatprep.subr.bf16.mxu0 0
  %6529 = vmatpush1.bf16.msra.mxu0 0
  %6530 = vmatprep.subr.bf16.mxu0 0
  %6531 = vmatpush1.bf16.msra.mxu0 0
  %6532 = vmatprep.subr.bf16.mxu0 0
  %6533 = vmatpush1.bf16.msra.mxu0 0
  %6534 = vmatprep.subr.bf16.mxu0 0
  %6535 = vmatpush1.bf16.msra.mxu0 0
  %6536 = vmatprep.subr.bf16.mxu0 0
  %6537 = vmatpush1.bf16.msra.mxu0 0
  %6538 = vmatprep.subr.bf16.mxu0 0
  %6539 = vmatpush1.bf16.msra.mxu0 0
  %6540 = vmatprep.subr.bf16.mxu0 0
  %6541 = vmatpush1.bf16.msra.mxu0 0
  %6542 = vmatprep.subr.bf16.mxu0 0
  %6543 = vmatpush1.bf16.msra.mxu0 0
  %6544 = vmatprep.subr.bf16.mxu0 0
  %6545 = vmatpush1.bf16.msra.mxu0 0
  %6546 = vmatprep.subr.bf16.mxu0 0
  %6547 = vmatpush1.bf16.msra.mxu0 0
  %6548 = vmatprep.subr.bf16.mxu0 0
  %6549 = vmatpush1.bf16.msra.mxu0 0
  %6550 = vmatprep.subr.bf16.mxu0 0
  %6551 = vmatpush1.bf16.msra.mxu0 0
  %6552 = vmatprep.subr.bf16.mxu0 0
  %6553 = vmatpush1.bf16.msra.mxu0 0
  %6554 = vmatprep.mubr.bf16.mxu0 0
  %6555 = vmatmul.mubr.bf16.gmra.mrb[0].mxu0 %v6502
  %v6556 = vpop.f32.mrb[0].mxu0
  %v6557 = vadd.f32 %v6487, %v6556
  %v6558 = vpop.f32.mrb[0].mxu0
  %v6559 = vpop.f32.mrb[0].mxu0
  %v6560 = vadd.f32 %v6487, %v6559
  %v6561 = vpop.f32.mrb[0].mxu0
  %6562 = vmatprep.mubr.bf16.mxu0 0
  %6563 = vmatmul.mubr.bf16.gmra.mrb[0].mxu0 %v6505
  %v6564 = vpop.f32.mrb[0].mxu0
  %v6565 = vadd.f32 %v6487, %v6564
  %v6566 = vpop.f32.mrb[0].mxu0
  %v6567 = vpop.f32.mrb[0].mxu0
  %v6568 = vadd.f32 %v6487, %v6567
  %v6569 = vpop.f32.mrb[0].mxu0
  %6570 = vmatprep.mubr.bf16.mxu0 0
  %6571 = vmatmul.mubr.bf16.gmra.mrb[0].mxu0 %v6508
  %v6572 = vpop.f32.mrb[0].mxu0
  %v6573 = vadd.f32 %v6487, %v6572
  %v6574 = vpop.f32.mrb[0].mxu0
  %v6575 = vpop.f32.mrb[0].mxu0
  %v6576 = vadd.f32 %v6487, %v6575
  %v6577 = vpop.f32.mrb[0].mxu0
  %6578 = vmatprep.mubr.bf16.mxu0 0
  %6579 = vmatmul.mubr.bf16.gmra.mrb[0].mxu0 %v6511
  %v6580 = vpop.f32.mrb[0].mxu0
  %v6581 = vadd.f32 %v6487, %v6580
  %v6582 = vpop.f32.mrb[0].mxu0
  %v6583 = vpop.f32.mrb[0].mxu0
  %v6584 = vadd.f32 %v6487, %v6583
  %v6585 = vpop.f32.mrb[0].mxu0
  %6586 = vmatprep.mubr.bf16.mxu0 0
  %6587 = vmatmul.mubr.bf16.gmra.mrb[0].mxu0 %v6514
  %v6588 = vpop.f32.mrb[0].mxu0
  %v6589 = vadd.f32 %v6487, %v6588
  %v6590 = vpop.f32.mrb[0].mxu0
  %v6591 = vpop.f32.mrb[0].mxu0
  %v6592 = vadd.f32 %v6487, %v6591
  %v6593 = vpop.f32.mrb[0].mxu0
  %6594 = vmatprep.mubr.bf16.mxu0 0
  %6595 = vmatmul.mubr.bf16.gmra.mrb[0].mxu0 %v6517
  %v6596 = vpop.f32.mrb[0].mxu0
  %v6597 = vadd.f32 %v6487, %v6596
  %v6598 = vpop.f32.mrb[0].mxu0
  %v6599 = vpop.f32.mrb[0].mxu0
  %v6600 = vadd.f32 %v6487, %v6599
  %v6601 = vpop.f32.mrb[0].mxu0
  %6602 = vmatprep.mubr.bf16.mxu0 0
  %6603 = vmatmul.mubr.bf16.gmra.mrb[0].mxu0 %v6520
  %v6604 = vpop.f32.mrb[0].mxu0
  %v6605 = vadd.f32 %v6487, %v6604
  %v6606 = vpop.f32.mrb[0].mxu0
  %v6607 = vpop.f32.mrb[0].mxu0
  %v6608 = vadd.f32 %v6487, %v6607
  %v6609 = vpop.f32.mrb[0].mxu0
  %6610 = vdwg.mxu0
  %v6611 = vadd.f32 %v6299, %v6557
  %v6612 = vadd.f32 %v6300, %v6560
  %v6613 = vadd.f32 %v6301, %v6565
  %v6614 = vadd.f32 %v6302, %v6568
  %v6615 = vadd.f32 %v6303, %v6573
  %v6616 = vadd.f32 %v6304, %v6576
  %v6617 = vadd.f32 %v6305, %v6581
  %v6618 = vadd.f32 %v6306, %v6584
  %v6619 = vadd.f32 %v6307, %v6589
  %v6620 = vadd.f32 %v6308, %v6592
  %v6621 = vadd.f32 %v6309, %v6597
  %v6622 = vadd.f32 %v6310, %v6600
  %v6623 = vadd.f32 %v6311, %v6605
  %v6624 = vadd.f32 %v6312, %v6608
  %s6625 = scalar_lea.vmem %s20, 1
  %v6626 = vld [vmem:[%s6625] sm:$0x1]
  %s6627 = scalar_lea.vmem %s21, 1
  %v6628 = vld [vmem:[%s6627] sm:$0x1]
  %v6629 = vsel %vm246, %v6611, 0.0
  %6630 = vadd.xlane.f32.xlu0 %v6629
  %v6631 = vpop.xlane.xlu0 %6630
  %v6632 = vsel %vm246, %v6612, 0.0
  %6633 = vadd.xlane.f32.xlu0 %v6632
  %v6634 = vpop.xlane.xlu0 %6633
  %v6635 = vsel %vm246, %v6613, 0.0
  %6636 = vadd.xlane.f32.xlu0 %v6635
  %v6637 = vpop.xlane.xlu0 %6636
  %v6638 = vsel %vm246, %v6614, 0.0
  %6639 = vadd.xlane.f32.xlu0 %v6638
  %v6640 = vpop.xlane.xlu0 %6639
  %v6641 = vsel %vm246, %v6615, 0.0
  %6642 = vadd.xlane.f32.xlu0 %v6641
  %v6643 = vpop.xlane.xlu0 %6642
  %v6644 = vsel %vm246, %v6616, 0.0
  %6645 = vadd.xlane.f32.xlu0 %v6644
  %v6646 = vpop.xlane.xlu0 %6645
  %v6647 = vsel %vm246, %v6617, 0.0
  %6648 = vadd.xlane.f32.xlu0 %v6647
  %v6649 = vpop.xlane.xlu0 %6648
  %v6650 = vsel %vm246, %v6618, 0.0
  %6651 = vadd.xlane.f32.xlu0 %v6650
  %v6652 = vpop.xlane.xlu0 %6651
  %v6653 = vsel %vm246, %v6619, 0.0
  %6654 = vadd.xlane.f32.xlu0 %v6653
  %v6655 = vpop.xlane.xlu0 %6654
  %v6656 = vsel %vm246, %v6620, 0.0
  %6657 = vadd.xlane.f32.xlu0 %v6656
  %v6658 = vpop.xlane.xlu0 %6657
  %v6659 = vsel %vm246, %v6621, 0.0
  %6660 = vadd.xlane.f32.xlu0 %v6659
  %v6661 = vpop.xlane.xlu0 %6660
  %v6662 = vsel %vm246, %v6622, 0.0
  %6663 = vadd.xlane.f32.xlu0 %v6662
  %v6664 = vpop.xlane.xlu0 %6663
  %v6665 = vsel %vm246, %v6623, 0.0
  %6666 = vadd.xlane.f32.xlu0 %v6665
  %v6667 = vpop.xlane.xlu0 %6666
  %v6668 = vsel %vm246, %v6624, 0.0
  %6669 = vadd.xlane.f32.xlu0 %v6668
  %v6670 = vpop.xlane.xlu0 %6669
  %v6671 = vmul.f32 %v6631, %v289
  %v6672 = vmul.f32 %v6634, %v289
  %v6673 = vmul.f32 %v6637, %v289
  %v6674 = vmul.f32 %v6640, %v289
  %v6675 = vmul.f32 %v6643, %v289
  %v6676 = vmul.f32 %v6646, %v289
  %v6677 = vmul.f32 %v6649, %v289
  %v6678 = vmul.f32 %v6652, %v289
  %v6679 = vmul.f32 %v6655, %v289
  %v6680 = vmul.f32 %v6658, %v289
  %v6681 = vmul.f32 %v6661, %v289
  %v6682 = vmul.f32 %v6664, %v289
  %v6683 = vmul.f32 %v6667, %v289
  %v6684 = vmul.f32 %v6670, %v289
  %v6685 = vsub.f32 %v6611, %v6671
  %v6686 = vsub.f32 %v6612, %v6672
  %v6687 = vsub.f32 %v6613, %v6673
  %v6688 = vsub.f32 %v6614, %v6674
  %v6689 = vsub.f32 %v6615, %v6675
  %v6690 = vsub.f32 %v6616, %v6676
  %v6691 = vsub.f32 %v6617, %v6677
  %v6692 = vsub.f32 %v6618, %v6678
  %v6693 = vsub.f32 %v6619, %v6679
  %v6694 = vsub.f32 %v6620, %v6680
  %v6695 = vsub.f32 %v6621, %v6681
  %v6696 = vsub.f32 %v6622, %v6682
  %v6697 = vsub.f32 %v6623, %v6683
  %v6698 = vsub.f32 %v6624, %v6684
  %v6699 = vmul.f32 %v6685, %v6685
  %v6700 = vmul.f32 %v6686, %v6686
  %v6701 = vmul.f32 %v6687, %v6687
  %v6702 = vmul.f32 %v6688, %v6688
  %v6703 = vmul.f32 %v6689, %v6689
  %v6704 = vmul.f32 %v6690, %v6690
  %v6705 = vmul.f32 %v6691, %v6691
  %v6706 = vmul.f32 %v6692, %v6692
  %v6707 = vmul.f32 %v6693, %v6693
  %v6708 = vmul.f32 %v6694, %v6694
  %v6709 = vmul.f32 %v6695, %v6695
  %v6710 = vmul.f32 %v6696, %v6696
  %v6711 = vmul.f32 %v6697, %v6697
  %v6712 = vmul.f32 %v6698, %v6698
  %v6713 = vsel %vm246, %v6699, 0.0
  %6714 = vadd.xlane.f32.xlu0 %v6713
  %v6715 = vpop.xlane.xlu0 %6714
  %v6716 = vsel %vm246, %v6700, 0.0
  %6717 = vadd.xlane.f32.xlu0 %v6716
  %v6718 = vpop.xlane.xlu0 %6717
  %v6719 = vsel %vm246, %v6701, 0.0
  %6720 = vadd.xlane.f32.xlu0 %v6719
  %v6721 = vpop.xlane.xlu0 %6720
  %v6722 = vsel %vm246, %v6702, 0.0
  %6723 = vadd.xlane.f32.xlu0 %v6722
  %v6724 = vpop.xlane.xlu0 %6723
  %v6725 = vsel %vm246, %v6703, 0.0
  %6726 = vadd.xlane.f32.xlu0 %v6725
  %v6727 = vpop.xlane.xlu0 %6726
  %v6728 = vsel %vm246, %v6704, 0.0
  %6729 = vadd.xlane.f32.xlu0 %v6728
  %v6730 = vpop.xlane.xlu0 %6729
  %v6731 = vsel %vm246, %v6705, 0.0
  %6732 = vadd.xlane.f32.xlu0 %v6731
  %v6733 = vpop.xlane.xlu0 %6732
  %v6734 = vsel %vm246, %v6706, 0.0
  %6735 = vadd.xlane.f32.xlu0 %v6734
  %v6736 = vpop.xlane.xlu0 %6735
  %v6737 = vsel %vm246, %v6707, 0.0
  %6738 = vadd.xlane.f32.xlu0 %v6737
  %v6739 = vpop.xlane.xlu0 %6738
  %v6740 = vsel %vm246, %v6708, 0.0
  %6741 = vadd.xlane.f32.xlu0 %v6740
  %v6742 = vpop.xlane.xlu0 %6741
  %v6743 = vsel %vm246, %v6709, 0.0
  %6744 = vadd.xlane.f32.xlu0 %v6743
  %v6745 = vpop.xlane.xlu0 %6744
  %v6746 = vsel %vm246, %v6710, 0.0
  %6747 = vadd.xlane.f32.xlu0 %v6746
  %v6748 = vpop.xlane.xlu0 %6747
  %v6749 = vsel %vm246, %v6711, 0.0
  %6750 = vadd.xlane.f32.xlu0 %v6749
  %v6751 = vpop.xlane.xlu0 %6750
  %v6752 = vsel %vm246, %v6712, 0.0
  %6753 = vadd.xlane.f32.xlu0 %v6752
  %v6754 = vpop.xlane.xlu0 %6753
  %v6755 = vmul.f32 %v6715, %v289
  %v6756 = vmul.f32 %v6718, %v289
  %v6757 = vmul.f32 %v6721, %v289
  %v6758 = vmul.f32 %v6724, %v289
  %v6759 = vmul.f32 %v6727, %v289
  %v6760 = vmul.f32 %v6730, %v289
  %v6761 = vmul.f32 %v6733, %v289
  %v6762 = vmul.f32 %v6736, %v289
  %v6763 = vmul.f32 %v6739, %v289
  %v6764 = vmul.f32 %v6742, %v289
  %v6765 = vmul.f32 %v6745, %v289
  %v6766 = vmul.f32 %v6748, %v289
  %v6767 = vmul.f32 %v6751, %v289
  %v6768 = vmul.f32 %v6754, %v289
  %v6769 = vadd.f32 %v6755, 1e-05
  %v6770 = vadd.f32 %v6756, 1e-05
  %v6771 = vadd.f32 %v6757, 1e-05
  %v6772 = vadd.f32 %v6758, 1e-05
  %v6773 = vadd.f32 %v6759, 1e-05
  %v6774 = vadd.f32 %v6760, 1e-05
  %v6775 = vadd.f32 %v6761, 1e-05
  %v6776 = vadd.f32 %v6762, 1e-05
  %v6777 = vadd.f32 %v6763, 1e-05
  %v6778 = vadd.f32 %v6764, 1e-05
  %v6779 = vadd.f32 %v6765, 1e-05
  %v6780 = vadd.f32 %v6766, 1e-05
  %v6781 = vadd.f32 %v6767, 1e-05
  %v6782 = vadd.f32 %v6768, 1e-05
  %v6783 = vrsqrt.pop %v6769
  %v6784 = vrsqrt.pop %v6770
  %v6785 = vrsqrt.pop %v6771
  %v6786 = vrsqrt.pop %v6772
  %v6787 = vrsqrt.pop %v6773
  %v6788 = vrsqrt.pop %v6774
  %v6789 = vrsqrt.pop %v6775
  %v6790 = vrsqrt.pop %v6776
  %v6791 = vrsqrt.pop %v6777
  %v6792 = vrsqrt.pop %v6778
  %v6793 = vrsqrt.pop %v6779
  %v6794 = vrsqrt.pop %v6780
  %v6795 = vrsqrt.pop %v6781
  %v6796 = vrsqrt.pop %v6782
  %v6797 = vmul.f32 %v6685, %v6783
  %v6798 = vmul.f32 %v6686, %v6784
  %v6799 = vmul.f32 %v6687, %v6785
  %v6800 = vmul.f32 %v6688, %v6786
  %v6801 = vmul.f32 %v6689, %v6787
  %v6802 = vmul.f32 %v6690, %v6788
  %v6803 = vmul.f32 %v6691, %v6789
  %v6804 = vmul.f32 %v6692, %v6790
  %v6805 = vmul.f32 %v6693, %v6791
  %v6806 = vmul.f32 %v6694, %v6792
  %v6807 = vmul.f32 %v6695, %v6793
  %v6808 = vmul.f32 %v6696, %v6794
  %v6809 = vmul.f32 %v6697, %v6795
  %v6810 = vmul.f32 %v6698, %v6796
  %v6812 = vlaneseq
  %v6813 = vshrl.u32 %v6812, 7
  %v6814 = vsub.s32 0, %v6813
  %v6815 = vrot.slane %v6626, %v6814
  %v6817 = vmul.f32 %v6797, %v6815
  %v6818 = vmul.f32 %v6798, %v6815
  %v6819 = vmul.f32 %v6799, %v6815
  %v6820 = vmul.f32 %v6800, %v6815
  %v6821 = vmul.f32 %v6801, %v6815
  %v6822 = vmul.f32 %v6802, %v6815
  %v6823 = vmul.f32 %v6803, %v6815
  %v6824 = vmul.f32 %v6804, %v6815
  %v6825 = vmul.f32 %v6805, %v6815
  %v6826 = vmul.f32 %v6806, %v6815
  %v6827 = vmul.f32 %v6807, %v6815
  %v6828 = vmul.f32 %v6808, %v6815
  %v6829 = vmul.f32 %v6809, %v6815
  %v6830 = vmul.f32 %v6810, %v6815
  %v6832 = vlaneseq
  %v6833 = vshrl.u32 %v6832, 7
  %v6834 = vsub.s32 0, %v6833
  %v6835 = vrot.slane %v6628, %v6834
  %v6837 = vadd.f32 %v6817, %v6835
  %v6838 = vadd.f32 %v6818, %v6835
  %v6839 = vadd.f32 %v6819, %v6835
  %v6840 = vadd.f32 %v6820, %v6835
  %v6841 = vadd.f32 %v6821, %v6835
  %v6842 = vadd.f32 %v6822, %v6835
  %v6843 = vadd.f32 %v6823, %v6835
  %v6844 = vadd.f32 %v6824, %v6835
  %v6845 = vadd.f32 %v6825, %v6835
  %v6846 = vadd.f32 %v6826, %v6835
  %v6847 = vadd.f32 %v6827, %v6835
  %v6848 = vadd.f32 %v6828, %v6835
  %v6849 = vadd.f32 %v6829, %v6835
  %v6850 = vadd.f32 %v6830, %v6835
  %v6851 = vld [vmem:[%s3] sm:$0xff]
  %v6852 = vld [vmem:[%s3 + $0x8] sm:$0xff]
  %v6853 = vld [vmem:[%s3 + $0x10] sm:$0xff]
  %v6854 = vld [vmem:[%s3 + $0x18] sm:$0xff]
  %v6855 = vld [vmem:[%s3 + $0x20] sm:$0xff]
  %v6856 = vld [vmem:[%s3 + $0x28] sm:$0xff]
  %v6857 = vld [vmem:[%s3 + $0x30] sm:$0xff]
  %v6858 = vld [vmem:[%s3 + $0x38] sm:$0xff]
  %v6859 = vld [vmem:[%s3 + $0x40] sm:$0xff]
  %v6860 = vld [vmem:[%s3 + $0x48] sm:$0xff]
  %v6861 = vld [vmem:[%s3 + $0x50] sm:$0xff]
  %v6862 = vld [vmem:[%s3 + $0x58] sm:$0xff]
  %v6863 = vld [vmem:[%s3 + $0x60] sm:$0xff]
  %v6864 = vld [vmem:[%s3 + $0x68] sm:$0xff]
  %6866 = vset.pattern.permute.xlu0 0
  %6867 = vperm.xlu0 %6866, %v6851
  %v6868 = vpop.permute.xlu0 %6867
  %6871 = vset.pattern.permute.xlu0 0
  %6872 = vperm.xlu0 %6871, %v6852
  %v6873 = vpop.permute.xlu0 %6872
  %6876 = vset.pattern.permute.xlu0 0
  %6877 = vperm.xlu0 %6876, %v6853
  %v6878 = vpop.permute.xlu0 %6877
  %6881 = vset.pattern.permute.xlu0 0
  %6882 = vperm.xlu0 %6881, %v6854
  %v6883 = vpop.permute.xlu0 %6882
  %6886 = vset.pattern.permute.xlu0 0
  %6887 = vperm.xlu0 %6886, %v6855
  %v6888 = vpop.permute.xlu0 %6887
  %6891 = vset.pattern.permute.xlu0 0
  %6892 = vperm.xlu0 %6891, %v6856
  %v6893 = vpop.permute.xlu0 %6892
  %6896 = vset.pattern.permute.xlu0 0
  %6897 = vperm.xlu0 %6896, %v6857
  %v6898 = vpop.permute.xlu0 %6897
  %6901 = vset.pattern.permute.xlu0 0
  %6902 = vperm.xlu0 %6901, %v6858
  %v6903 = vpop.permute.xlu0 %6902
  %6906 = vset.pattern.permute.xlu0 0
  %6907 = vperm.xlu0 %6906, %v6859
  %v6908 = vpop.permute.xlu0 %6907
  %6911 = vset.pattern.permute.xlu0 0
  %6912 = vperm.xlu0 %6911, %v6860
  %v6913 = vpop.permute.xlu0 %6912
  %6916 = vset.pattern.permute.xlu0 0
  %6917 = vperm.xlu0 %6916, %v6861
  %v6918 = vpop.permute.xlu0 %6917
  %6921 = vset.pattern.permute.xlu0 0
  %6922 = vperm.xlu0 %6921, %v6862
  %v6923 = vpop.permute.xlu0 %6922
  %6926 = vset.pattern.permute.xlu0 0
  %6927 = vperm.xlu0 %6926, %v6863
  %v6928 = vpop.permute.xlu0 %6927
  %6931 = vset.pattern.permute.xlu0 0
  %6932 = vperm.xlu0 %6931, %v6864
  %v6933 = vpop.permute.xlu0 %6932
  %v6935 = vadd.f32 %v6837, %v6868
  %v6936 = vadd.f32 %v6838, %v6873
  %v6937 = vadd.f32 %v6839, %v6878
  %v6938 = vadd.f32 %v6840, %v6883
  %v6939 = vadd.f32 %v6841, %v6888
  %v6940 = vadd.f32 %v6842, %v6893
  %v6941 = vadd.f32 %v6843, %v6898
  %v6942 = vadd.f32 %v6844, %v6903
  %v6943 = vadd.f32 %v6845, %v6908
  %v6944 = vadd.f32 %v6846, %v6913
  %v6945 = vadd.f32 %v6847, %v6918
  %v6946 = vadd.f32 %v6848, %v6923
  %v6947 = vadd.f32 %v6849, %v6928
  %v6948 = vadd.f32 %v6850, %v6933
  %v6949 = vsel %vm246, %v6935, -inf
  %v6950 = vsel %vm246, %v6936, -inf
  %v6951 = vsel %vm246, %v6937, -inf
  %v6952 = vsel %vm246, %v6938, -inf
  %v6953 = vsel %vm246, %v6939, -inf
  %v6954 = vmax.f32 %v6949, %v6953
  %v6955 = vsel %vm246, %v6940, -inf
  %v6956 = vmax.f32 %v6950, %v6955
  %v6957 = vsel %vm246, %v6941, -inf
  %v6958 = vmax.f32 %v6951, %v6957
  %v6959 = vmax.f32 %v6954, %v6956
  %v6960 = vmax.f32 %v6958, %v6952
  %v6961 = vmax.f32 %v6959, %v6960
  %v6962 = vrot.slane %v6961, 4
  %v6963 = vmax.f32 %v6961, %v6962
  %v6964 = vrot.slane %v6963, 2
  %v6965 = vmax.f32 %v6963, %v6964
  %v6966 = vrot.slane %v6965, 1
  %v6967 = vmax.f32 %v6965, %v6966
  %v6968 = vsel %vm246, %v6942, -inf
  %v6969 = vsel %vm246, %v6943, -inf
  %v6970 = vsel %vm246, %v6944, -inf
  %v6971 = vsel %vm246, %v6945, -inf
  %v6972 = vsel %vm246, %v6946, -inf
  %v6973 = vmax.f32 %v6968, %v6972
  %v6974 = vsel %vm246, %v6947, -inf
  %v6975 = vmax.f32 %v6969, %v6974
  %v6976 = vsel %vm246, %v6948, -inf
  %v6977 = vmax.f32 %v6970, %v6976
  %v6978 = vmax.f32 %v6973, %v6975
  %v6979 = vmax.f32 %v6977, %v6971
  %v6980 = vmax.f32 %v6978, %v6979
  %v6981 = vrot.slane %v6980, 4
  %v6982 = vmax.f32 %v6980, %v6981
  %v6983 = vrot.slane %v6982, 2
  %v6984 = vmax.f32 %v6982, %v6983
  %v6985 = vrot.slane %v6984, 1
  %v6986 = vmax.f32 %v6984, %v6985
  %vm6987 = vcmask 1040384
  %v6988 = vsel %vm6987, %v6967, %v6986
  %v6989 = vpack.c.bf16 %v6988, %v6988
  %v6990 = vld [vmem:[%s22] sm:$0xf]
  %v6991 = vld [vmem:[%s22 + $0x4] sm:$0xf]
  %v6992 = vld [vmem:[%s22 + $0x8] sm:$0xf]
  %v6993 = vld [vmem:[%s22 + $0xc] sm:$0xf]
  %v6998 = vunpack.c.l.b16 %v6990
  %v6999 = vunpack.c.l.b16 %v6991
  %v7000 = vunpack.c.l.b16 %v6992
  %v7001 = vunpack.c.l.b16 %v6993
  %v7002 = vpack.c.b16 %v6999, %v6998
  %v7003 = vpack.c.b16 %v7001, %v7000
  %v7007 = vsel %vm246, %v6989, 0
  %7009 = vmatprep.subr.bf16.mxu0 0
  %7010 = vmatpush1.bf16.msra.mxu0 %v7002
  %7011 = vmatprep.subr.bf16.mxu0 0
  %7012 = vmatpush1.bf16.msra.mxu0 %v7003
  %7013 = vmatprep.subr.bf16.mxu0 0
  %7014 = vmatpush1.bf16.msra.mxu0 0
  %7015 = vmatprep.subr.bf16.mxu0 0
  %7016 = vmatpush1.bf16.msra.mxu0 0
  %7017 = vmatprep.subr.bf16.mxu0 0
  %7018 = vmatpush1.bf16.msra.mxu0 0
  %7019 = vmatprep.subr.bf16.mxu0 0
  %7020 = vmatpush1.bf16.msra.mxu0 0
  %7021 = vmatprep.subr.bf16.mxu0 0
  %7022 = vmatpush1.bf16.msra.mxu0 0
  %7023 = vmatprep.subr.bf16.mxu0 0
  %7024 = vmatpush1.bf16.msra.mxu0 0
  %7025 = vmatprep.subr.bf16.mxu0 0
  %7026 = vmatpush1.bf16.msra.mxu0 0
  %7027 = vmatprep.subr.bf16.mxu0 0
  %7028 = vmatpush1.bf16.msra.mxu0 0
  %7029 = vmatprep.subr.bf16.mxu0 0
  %7030 = vmatpush1.bf16.msra.mxu0 0
  %7031 = vmatprep.subr.bf16.mxu0 0
  %7032 = vmatpush1.bf16.msra.mxu0 0
  %7033 = vmatprep.subr.bf16.mxu0 0
  %7034 = vmatpush1.bf16.msra.mxu0 0
  %7035 = vmatprep.subr.bf16.mxu0 0
  %7036 = vmatpush1.bf16.msra.mxu0 0
  %7037 = vmatprep.subr.bf16.mxu0 0
  %7038 = vmatpush1.bf16.msra.mxu0 0
  %7039 = vmatprep.subr.bf16.mxu0 0
  %7040 = vmatpush1.bf16.msra.mxu0 0
  %7041 = vmatprep.mubr.bf16.mxu0 0
  %7042 = vmatmul.mubr.bf16.gmra.mrb[0].mxu0 %v7007
  %v7043 = vpop.f32.mrb[0].mxu0
  %v7044 = vadd.f32 0.0, %v7043
  %v7045 = vpop.f32.mrb[0].mxu0
  %v7046 = vpop.f32.mrb[0].mxu0
  %v7047 = vpop.f32.mrb[0].mxu0
  %7048 = vdwg.mxu0
  %vm7049 = vcmask 123904
  %7050 = vst.msk [vmem:[%s23] sm:$0x3] %vm7049, %v7044
  // Predicated region
  $region94: #{downstream_forward.3} parent=0 // pred_check
    _
  $region95: #{downstream_forward.3} parent=0 // pred_check_branch
    %7052 = sbr.rel (0) target = $region97
  $region96: #{downstream_forward.3} parent=0 // pred_region
    _
  $region97: #{downstream_forward.3} parent=0 // pred_fallthru
    _
  // Predicated region
  $region98: #{downstream_forward.3} parent=0 // pred_check
    _
  $region99: #{downstream_forward.3} parent=0 // pred_check_branch
    %7054 = sbr.rel (0) target = $region101
  $region100: #{downstream_forward.3} parent=0 // pred_region
    _
  $region101: #{downstream_forward.3} parent=0 // pred_fallthru
    _

</llo_original>
